<compile_context>
chip_gen: v7x
topology: tpu7x:2x2x1
jax: 0.10.0
libtpu: 0.0.40
codegen_flags: <defaults>
</compile_context>

<pallas_src>
import math
import functools

import jax
import jax.numpy as jnp
from jax.experimental import pallas as pl
from jax.experimental.pallas import tpu as pltpu

# ---------------- model hyper-parameters (small, synthetic) ----------------
D_MODEL = 32
N_HEADS = 4
D_K = D_MODEL // N_HEADS
D_FF = 64
N_LAYERS = 2
V_SRC = 16
V_TGT = 16
V_PAD = 128            # lane-dense padded output-projection width
SRC_LEN = 8
TGT_LEN = 8
BATCH = 2
NEG_INF = -1e9
LN_EPS = 1e-6

# ---- packed slab layouts (single source of truth for packer + kernel) ----
# attn_wi: (L, H, D, 9*D_K) bf16   per-head input projections
AI_E_QKV = slice(0 * D_K, 3 * D_K)       # encoder self q|k|v
AI_D_QKV = slice(3 * D_K, 6 * D_K)       # decoder self q|k|v
AI_D_QC = slice(6 * D_K, 7 * D_K)        # decoder cross q
AI_D_KVC = slice(7 * D_K, 9 * D_K)       # decoder cross k|v
# attn_wo: (L, H, D_K, 3*D) bf16   per-head output projections
AO_E = slice(0, D_MODEL)
AO_DS = slice(D_MODEL, 2 * D_MODEL)
AO_DC = slice(2 * D_MODEL, 3 * D_MODEL)
# within a per-head qkv slab
QS, KS, VS = slice(0, D_K), slice(D_K, 2 * D_K), slice(2 * D_K, 3 * D_K)

# vec slab rows (per layer), each padded to 128 lanes
(VR_E_LN1_G, VR_E_LN1_B, VR_E_BO, VR_E_LN2_G, VR_E_LN2_B,
 VR_E_B1, VR_E_B2) = range(7)
(VR_D_LN1_G, VR_D_LN1_B, VR_D_BO_S, VR_D_LN2_G, VR_D_LN2_B, VR_D_BO_C,
 VR_D_LN3_G, VR_D_LN3_B, VR_D_B1, VR_D_B2) = range(7, 17)
VEC_ROWS = 17
# misc slab rows
MR_E_LNF_G, MR_E_LNF_B, MR_D_LNF_G, MR_D_LNF_B, MR_PROJ_B = range(5)


# ------------------------- in-kernel building blocks -------------------------
def _layer_norm(x, g, b):
    # Annotated-Transformer LayerNorm: a_2*(x-mean)/(std+eps)+b_2, unbiased std.
    mean = jnp.mean(x, axis=-1, keepdims=True)
    var = jnp.sum((x - mean) ** 2, axis=-1, keepdims=True) / (x.shape[-1] - 1)
    return g * (x - mean) / (jnp.sqrt(var) + LN_EPS) + b


def _project_heads(n2d, w_h, b_h):
    """Head-batched linear: (s, D) bf16 x (H, D, F) bf16 -> (H, s, F) f32."""
    nb = jnp.broadcast_to(n2d[None], (N_HEADS,) + n2d.shape)
    return jnp.einsum("hsd,hdf->hsf", nb, w_h,
                      preferred_element_type=jnp.float32) + b_h


def _attend(qh, kh, vh, bias, wo_h, bo):
    """Batched-head scaled-dot-product attention + output projection.

    qh: (H, sq, D_K) f32; kh/vh: (H, sk, D_K) f32; bias broadcastable to (sq, sk);
    wo_h: (H, D_K, D) bf16 (head h rows of W_O); bo: (1, D) f32 -> (sq, D) f32.
    Head concat is folded into a batched out-proj einsum + sum over heads.
    """
    bf16 = jnp.bfloat16
    s = jnp.einsum("hqd,hkd->hqk", qh.astype(bf16), kh.astype(bf16),
                   preferred_element_type=jnp.float32)
    s = s * (1.0 / math.sqrt(D_K)) + bias[None]
    s = s - jnp.max(s, axis=-1, keepdims=True)
    p = jnp.exp(s)
    p = p * pl.reciprocal(jnp.sum(p, axis=-1, keepdims=True), approx=True)
    o = jnp.einsum("hqk,hkd->hqd", p.astype(bf16), vh.astype(bf16),
                   preferred_element_type=jnp.float32)
    o = jnp.einsum("hqd,hde->hqe", o.astype(bf16), wo_h,
                   preferred_element_type=jnp.float32)
    return jnp.sum(o, axis=0) + bo


# ------------------------------ fused kernel ---------------------------------
def _fwd_kernel(x_ref, y_ref, sb_ref, tb_ref, awi_ref, abi_ref, awo_ref,
                w1_ref, w2_ref, vec_ref, misc_ref, pw_ref, out_ref):
    bf16 = jnp.bfloat16
    D, F = D_MODEL, D_FF

    x = x_ref[...]                 # (S, D) f32  encoder stream (emb*sqrt(D)+PE)
    y = y_ref[...]                 # (T, D) f32  decoder stream
    src_bias = sb_ref[...]         # (1, S) f32  additive pad bias
    tgt_bias = tb_ref[...]         # (T, T) f32  additive pad+causal bias
    misc = misc_ref[...]           # (5, 128) f32

    def row(m, i, n):
        return m[i:i + 1, :n]

    # ----------------------------- encoder stack -----------------------------
    for l in range(N_LAYERS):
        awi, abi, awo = awi_ref[l], abi_ref[l], awo_ref[l]
        w1, w2, vl = w1_ref[l], w2_ref[l], vec_ref[l]

        n = _layer_norm(x, row(vl, VR_E_LN1_G, D),
                        row(vl, VR_E_LN1_B, D)).astype(bf16)
        qkv = _project_heads(n, awi[:, :, AI_E_QKV], abi[:, :, AI_E_QKV])
        x = x + _attend(qkv[..., QS], qkv[..., KS], qkv[..., VS], src_bias,
                        awo[:, :, AO_E], row(vl, VR_E_BO, D))

        n = _layer_norm(x, row(vl, VR_E_LN2_G, D),
                        row(vl, VR_E_LN2_B, D)).astype(bf16)
        h1 = jnp.maximum(
            jnp.dot(n, w1[:, 0:F], preferred_element_type=jnp.float32)
            + row(vl, VR_E_B1, F), 0.0).astype(bf16)
        x = x + jnp.dot(h1, w2[:, 0:D],
                        preferred_element_type=jnp.float32) + row(vl, VR_E_B2, D)

    memory = _layer_norm(x, row(misc, MR_E_LNF_G, D), row(misc, MR_E_LNF_B, D))
    mem_b = memory.astype(bf16)

    # ----------------------------- decoder stack -----------------------------
    for l in range(N_LAYERS):
        awi, abi, awo = awi_ref[l], abi_ref[l], awo_ref[l]
        w1, w2, vl = w1_ref[l], w2_ref[l], vec_ref[l]

        # masked self-attention
        n = _layer_norm(y, row(vl, VR_D_LN1_G, D),
                        row(vl, VR_D_LN1_B, D)).astype(bf16)
        qkv = _project_heads(n, awi[:, :, AI_D_QKV], abi[:, :, AI_D_QKV])
        y = y + _attend(qkv[..., QS], qkv[..., KS], qkv[..., VS], tgt_bias,
                        awo[:, :, AO_DS], row(vl, VR_D_BO_S, D))

        # cross-attention (q from decoder, k/v from encoder memory)
        n = _layer_norm(y, row(vl, VR_D_LN2_G, D),
                        row(vl, VR_D_LN2_B, D)).astype(bf16)
        qh = _project_heads(n, awi[:, :, AI_D_QC], abi[:, :, AI_D_QC])
        kvh = _project_heads(mem_b, awi[:, :, AI_D_KVC], abi[:, :, AI_D_KVC])
        y = y + _attend(qh, kvh[..., 0:D_K], kvh[..., D_K:2 * D_K], src_bias,
                        awo[:, :, AO_DC], row(vl, VR_D_BO_C, D))

        # feed-forward
        n = _layer_norm(y, row(vl, VR_D_LN3_G, D),
                        row(vl, VR_D_LN3_B, D)).astype(bf16)
        h1 = jnp.maximum(
            jnp.dot(n, w1[:, F:2 * F], preferred_element_type=jnp.float32)
            + row(vl, VR_D_B1, F), 0.0).astype(bf16)
        y = y + jnp.dot(h1, w2[:, D:2 * D],
                        preferred_element_type=jnp.float32) + row(vl, VR_D_B2, D)

    dec = _layer_norm(y, row(misc, MR_D_LNF_G, D),
                      row(misc, MR_D_LNF_B, D)).astype(bf16)

    # -------------- final projection (lane-dense, 128-wide output) --------------
    logits = jnp.dot(dec, pw_ref[...], preferred_element_type=jnp.float32) \
        + misc[MR_PROJ_B:MR_PROJ_B + 1, :]
    out_ref[...] = logits                              # (T, V_PAD)


# ------------------------------ model wrapper --------------------------------
def encoder_decoder_forward(params, src, tgt):
    # src, tgt: (seq_len, batch) int32 token ids; 0 == padding
    src_t = src.T                                      # (B, S)
    tgt_t = tgt.T                                      # (B, T)
    b, s = src_t.shape
    t = tgt_t.shape[1]

    # Embedding gather (tables pre-scaled by sqrt(d_model)) + positional encoding.
    x0 = jnp.take(params["src_emb"], src_t, axis=0) + params["pe"][:s][None]
    y0 = jnp.take(params["tgt_emb"], tgt_t, axis=0) + params["pe"][:t][None]

    # Additive attention biases: 0 where attended, -1e9 where masked.
    src_bias = jnp.where(src_t != 0, 0.0, NEG_INF).astype(jnp.float32)[:, None, :]
    pos = jnp.arange(t)
    causal = pos[None, :] <= pos[:, None]              # (T, T) lower-triangular keep
    tgt_bias = jnp.where((tgt_t != 0)[:, None, :] & causal[None],
                         0.0, NEG_INF).astype(jnp.float32)          # (B, T, T)

    def full(name):
        arr = params[name]
        zeros = (0,) * arr.ndim
        return pl.BlockSpec(arr.shape, lambda bb: zeros)

    out = pl.pallas_call(
        _fwd_kernel,
        out_shape=jax.ShapeDtypeStruct((b, t, V_PAD), jnp.float32),
        grid=(b,),
        in_specs=[
            pl.BlockSpec((None, s, D_MODEL), lambda bb: (bb, 0, 0)),    # x0
            pl.BlockSpec((None, t, D_MODEL), lambda bb: (bb, 0, 0)),    # y0
            pl.BlockSpec((None, 1, s), lambda bb: (bb, 0, 0)),          # src_bias
            pl.BlockSpec((None, t, t), lambda bb: (bb, 0, 0)),          # tgt_bias
            full("attn_wi"), full("attn_bi"), full("attn_wo"),
            full("ffn_w1"), full("ffn_w2"), full("vec"), full("misc"),
            full("proj_w"),
        ],
        out_specs=pl.BlockSpec((None, t, V_PAD), lambda bb: (bb, 0, 0)),
        compiler_params=pltpu.CompilerParams(
            dimension_semantics=("parallel",)),
    )(x0, y0, src_bias, tgt_bias,
      params["attn_wi"], params["attn_bi"], params["attn_wo"],
      params["ffn_w1"], params["ffn_w2"], params["vec"], params["misc"],
      params["proj_w"])

    logits = out[:, :, :V_TGT]                         # (B, T, V)
    seq_logit = logits.transpose(1, 0, 2)              # (T, B, V)
    return seq_logit.reshape(t * b, V_TGT), seq_logit


# ----------------------------- parameter init --------------------------------
def positional_encoding(max_len, d_model):
    pos = jnp.arange(max_len, dtype=jnp.float32)[:, None]
    div = jnp.exp(jnp.arange(0, d_model, 2, dtype=jnp.float32)
                  * (-math.log(10000.0) / d_model))
    pe = jnp.zeros((max_len, d_model), jnp.float32)
    pe = pe.at[:, 0::2].set(jnp.sin(pos * div))
    pe = pe.at[:, 1::2].set(jnp.cos(pos * div))
    return pe


def init_params(key):
    keys = iter(jax.random.split(key, 128))
    H, D, dk = N_HEADS, D_MODEL, D_K

    def lin(din, dout):
        bound = 1.0 / math.sqrt(din)
        w = jax.random.uniform(next(keys), (din, dout), jnp.float32, -bound, bound)
        b = jax.random.uniform(next(keys), (dout,), jnp.float32, -bound, bound)
        return w, b

    def heads_w(w):            # (D, D) -> (H, D, dk): head h <- columns h*dk:(h+1)*dk
        return jnp.transpose(w.reshape(D, H, dk), (1, 0, 2))

    def heads_b(b):            # (D,) -> (H, 1, dk)
        return b.reshape(H, dk)[:, None, :]

    def row(v):                # (n,) -> (1, 128) zero-padded (lane-dense slab row)
        v = jnp.asarray(v, jnp.float32).reshape(1, -1)
        return jnp.pad(v, ((0, 0), (0, 128 - v.shape[1])))

    ones_d = jnp.ones((D,), jnp.float32)
    zeros_d = jnp.zeros((D,), jnp.float32)

    awi_l, abi_l, awo_l, w1_l, w2_l, vec_l = [], [], [], [], [], []
    for _ in range(N_LAYERS):
        # encoder self-attention + FFN
        e_wq, e_bq = lin(D, D); e_wk, e_bk = lin(D, D); e_wv, e_bv = lin(D, D)
        e_wo, e_bo = lin(D, D)
        e_w1, e_b1 = lin(D, D_FF); e_w2, e_b2 = lin(D_FF, D)
        # decoder self-attention
        s_wq, s_bq = lin(D, D); s_wk, s_bk = lin(D, D); s_wv, s_bv = lin(D, D)
        s_wo, s_bo = lin(D, D)
        # decoder cross-attention
        c_wq, c_bq = lin(D, D); c_wk, c_bk = lin(D, D); c_wv, c_bv = lin(D, D)
        c_wo, c_bo = lin(D, D)
        # decoder FFN
        d_w1, d_b1 = lin(D, D_FF); d_w2, d_b2 = lin(D_FF, D)

        awi_l.append(jnp.concatenate(
            [heads_w(e_wq), heads_w(e_wk), heads_w(e_wv),
             heads_w(s_wq), heads_w(s_wk), heads_w(s_wv),
             heads_w(c_wq), heads_w(c_wk), heads_w(c_wv)], axis=-1))  # (H, D, 72)
        abi_l.append(jnp.concatenate(
            [heads_b(e_bq), heads_b(e_bk), heads_b(e_bv),
             heads_b(s_bq), heads_b(s_bk), heads_b(s_bv),
             heads_b(c_bq), heads_b(c_bk), heads_b(c_bv)], axis=-1))  # (H, 1, 72)
        awo_l.append(jnp.concatenate(
            [e_wo.reshape(H, dk, D), s_wo.reshape(H, dk, D),
             c_wo.reshape(H, dk, D)], axis=-1))                        # (H, dk, 96)
        w1_l.append(jnp.concatenate([e_w1, d_w1], axis=-1))            # (D, 128)
        w2_l.append(jnp.concatenate([e_w2, d_w2], axis=-1))            # (D_FF, 64)
        vec_l.append(jnp.concatenate(
            [row(ones_d), row(zeros_d), row(e_bo),
             row(ones_d), row(zeros_d), row(e_b1), row(e_b2),
             row(ones_d), row(zeros_d), row(s_bo),
             row(ones_d), row(zeros_d), row(c_bo),
             row(ones_d), row(zeros_d), row(d_b1), row(d_b2)],
            axis=0))                                                   # (17, 128)

    proj_w, proj_b = lin(D, V_TGT)

    params = {
        "attn_wi": jnp.stack(awi_l).astype(jnp.bfloat16),    # (L, H, D, 72)
        "attn_bi": jnp.stack(abi_l),                         # (L, H, 1, 72) f32
        "attn_wo": jnp.stack(awo_l).astype(jnp.bfloat16),    # (L, H, dk, 96)
        "ffn_w1": jnp.stack(w1_l).astype(jnp.bfloat16),      # (L, D, 128)
        "ffn_w2": jnp.stack(w2_l).astype(jnp.bfloat16),      # (L, D_FF, 64)
        "vec": jnp.stack(vec_l),                             # (L, 17, 128) f32
        "misc": jnp.concatenate(
            [row(ones_d), row(zeros_d),                      # encoder final LN
             row(ones_d), row(zeros_d),                      # decoder final LN
             row(proj_b)], axis=0),                          # (5, 128) f32
        "proj_w": jnp.pad(proj_w, ((0, 0), (0, V_PAD - V_TGT))
                          ).astype(jnp.bfloat16),            # (D, 128)
        # embedding tables pre-scaled by sqrt(d_model); PE added in the wrapper.
        "src_emb": jax.random.normal(next(keys), (V_SRC, D), jnp.float32)
                   * math.sqrt(D),
        "tgt_emb": jax.random.normal(next(keys), (V_TGT, D), jnp.float32)
                   * math.sqrt(D),
        "pe": positional_encoding(64, D),
    }
    return params


# --------------------------------- main ---------------------------------------
if __name__ == "__main__":
    key = jax.random.PRNGKey(0)
    k_params, k_src, k_tgt = jax.random.split(key, 3)
    params = init_params(k_params)

    # (seq_len, batch) token ids; 0 acts as padding and exercises the masks.
    src = jax.random.randint(k_src, (SRC_LEN, BATCH), 0, V_SRC, dtype=jnp.int32)
    tgt = jax.random.randint(k_tgt, (TGT_LEN, BATCH), 0, V_TGT, dtype=jnp.int32)

    fwd = jax.jit(functools.partial(encoder_decoder_forward, params))
    flat_logits, seq_logits = fwd(src, tgt)
    jax.block_until_ready((flat_logits, seq_logits))

    assert flat_logits.shape == (TGT_LEN * BATCH, V_TGT)
    assert seq_logits.shape == (TGT_LEN, BATCH, V_TGT)
    assert bool(jnp.all(jnp.isfinite(seq_logits)))
    print("KERNEL_OK")
</pallas_src>

<mosaic_0001>
module attributes {stable_mosaic.version = 11 : i64} {
  func.func @_fwd_kernel(%arg0: i32, %arg1: memref<1x8x32xf32, #tpu.memory_space<vmem>>, %arg2: memref<1x8x32xf32, #tpu.memory_space<vmem>>, %arg3: memref<1x1x8xf32, #tpu.memory_space<vmem>>, %arg4: memref<1x8x8xf32, #tpu.memory_space<vmem>>, %arg5: memref<2x4x32x72xbf16, #tpu.memory_space<vmem>>, %arg6: memref<2x4x1x72xf32, #tpu.memory_space<vmem>>, %arg7: memref<2x4x8x96xbf16, #tpu.memory_space<vmem>>, %arg8: memref<2x32x128xbf16, #tpu.memory_space<vmem>>, %arg9: memref<2x64x64xbf16, #tpu.memory_space<vmem>>, %arg10: memref<2x17x128xf32, #tpu.memory_space<vmem>>, %arg11: memref<5x128xf32, #tpu.memory_space<vmem>>, %arg12: memref<32x128xbf16, #tpu.memory_space<vmem>>, %arg13: memref<1x8x128xf32, #tpu.memory_space<vmem>>) attributes {dimension_semantics = [#tpu.dimension_semantics<parallel>], iteration_bounds = array<i64: 2>, scalar_prefetch = 0 : i64, scratch_operands = 0 : i64, tpu.core_type = #tpu.core_type<tc>, window_params = [{transform_indices = @transform_0, window_bounds = array<i64: 1, 8, 32>}, {transform_indices = @transform_1, window_bounds = array<i64: 1, 8, 32>}, {transform_indices = @transform_2, window_bounds = array<i64: 1, 1, 8>}, {transform_indices = @transform_3, window_bounds = array<i64: 1, 8, 8>}, {pipeline_mode = #tpu.pipeline_mode<synchronous>, transform_indices = @transform_4, window_bounds = array<i64: 2, 4, 32, 72>}, {pipeline_mode = #tpu.pipeline_mode<synchronous>, transform_indices = @transform_5, window_bounds = array<i64: 2, 4, 1, 72>}, {pipeline_mode = #tpu.pipeline_mode<synchronous>, transform_indices = @transform_6, window_bounds = array<i64: 2, 4, 8, 96>}, {pipeline_mode = #tpu.pipeline_mode<synchronous>, transform_indices = @transform_7, window_bounds = array<i64: 2, 32, 128>}, {pipeline_mode = #tpu.pipeline_mode<synchronous>, transform_indices = @transform_8, window_bounds = array<i64: 2, 64, 64>}, {pipeline_mode = #tpu.pipeline_mode<synchronous>, transform_indices = @transform_9, window_bounds = array<i64: 2, 17, 128>}, {pipeline_mode = #tpu.pipeline_mode<synchronous>, transform_indices = @transform_10, window_bounds = array<i64: 5, 128>}, {pipeline_mode = #tpu.pipeline_mode<synchronous>, transform_indices = @transform_11, window_bounds = array<i64: 32, 128>}, {transform_indices = @transform_12, window_bounds = array<i64: 1, 8, 128>}]} {
    %c0 = arith.constant 0 : index
    %c0_0 = arith.constant 0 : index
    %c0_1 = arith.constant 0 : index
    %0 = vector.load %arg1[%c0, %c0_0, %c0_1] : memref<1x8x32xf32, #tpu.memory_space<vmem>>, vector<1x8x32xf32>
    %1 = vector.shape_cast %0 : vector<1x8x32xf32> to vector<8x32xf32>
    %c0_2 = arith.constant 0 : index
    %c0_3 = arith.constant 0 : index
    %c0_4 = arith.constant 0 : index
    %2 = vector.load %arg2[%c0_2, %c0_3, %c0_4] : memref<1x8x32xf32, #tpu.memory_space<vmem>>, vector<1x8x32xf32>
    %3 = vector.shape_cast %2 : vector<1x8x32xf32> to vector<8x32xf32>
    %c0_5 = arith.constant 0 : index
    %c0_6 = arith.constant 0 : index
    %c0_7 = arith.constant 0 : index
    %4 = vector.load %arg3[%c0_5, %c0_6, %c0_7] : memref<1x1x8xf32, #tpu.memory_space<vmem>>, vector<1x1x8xf32>
    %5 = vector.shape_cast %4 : vector<1x1x8xf32> to vector<1x8xf32>
    %c0_8 = arith.constant 0 : index
    %c0_9 = arith.constant 0 : index
    %c0_10 = arith.constant 0 : index
    %6 = vector.load %arg4[%c0_8, %c0_9, %c0_10] : memref<1x8x8xf32, #tpu.memory_space<vmem>>, vector<1x8x8xf32>
    %7 = vector.shape_cast %6 : vector<1x8x8xf32> to vector<8x8xf32>
    %c0_11 = arith.constant 0 : index
    %c0_12 = arith.constant 0 : index
    %8 = vector.load %arg11[%c0_11, %c0_12] : memref<5x128xf32, #tpu.memory_space<vmem>>, vector<5x128xf32>
    %c0_13 = arith.constant 0 : index
    %c0_14 = arith.constant 0 : index
    %c0_15 = arith.constant 0 : index
    %c0_16 = arith.constant 0 : index
    %9 = vector.load %arg5[%c0_13, %c0_14, %c0_15, %c0_16] : memref<2x4x32x72xbf16, #tpu.memory_space<vmem>>, vector<1x4x32x72xbf16>
    %10 = vector.shape_cast %9 : vector<1x4x32x72xbf16> to vector<4x32x72xbf16>
    %c0_17 = arith.constant 0 : index
    %c0_18 = arith.constant 0 : index
    %c0_19 = arith.constant 0 : index
    %c0_20 = arith.constant 0 : index
    %11 = vector.load %arg6[%c0_17, %c0_18, %c0_19, %c0_20] : memref<2x4x1x72xf32, #tpu.memory_space<vmem>>, vector<1x4x1x72xf32>
    %12 = vector.shape_cast %11 : vector<1x4x1x72xf32> to vector<4x1x72xf32>
    %c0_21 = arith.constant 0 : index
    %c0_22 = arith.constant 0 : index
    %c0_23 = arith.constant 0 : index
    %c0_24 = arith.constant 0 : index
    %13 = vector.load %arg7[%c0_21, %c0_22, %c0_23, %c0_24] : memref<2x4x8x96xbf16, #tpu.memory_space<vmem>>, vector<1x4x8x96xbf16>
    %14 = vector.shape_cast %13 : vector<1x4x8x96xbf16> to vector<4x8x96xbf16>
    %c0_25 = arith.constant 0 : index
    %c0_26 = arith.constant 0 : index
    %c0_27 = arith.constant 0 : index
    %15 = vector.load %arg8[%c0_25, %c0_26, %c0_27] : memref<2x32x128xbf16, #tpu.memory_space<vmem>>, vector<1x32x128xbf16>
    %16 = vector.shape_cast %15 : vector<1x32x128xbf16> to vector<32x128xbf16>
    %c0_28 = arith.constant 0 : index
    %c0_29 = arith.constant 0 : index
    %c0_30 = arith.constant 0 : index
    %17 = vector.load %arg9[%c0_28, %c0_29, %c0_30] : memref<2x64x64xbf16, #tpu.memory_space<vmem>>, vector<1x64x64xbf16>
    %18 = vector.shape_cast %17 : vector<1x64x64xbf16> to vector<64x64xbf16>
    %c0_31 = arith.constant 0 : index
    %c0_32 = arith.constant 0 : index
    %c0_33 = arith.constant 0 : index
    %19 = vector.load %arg10[%c0_31, %c0_32, %c0_33] : memref<2x17x128xf32, #tpu.memory_space<vmem>>, vector<1x17x128xf32>
    %20 = vector.shape_cast %19 : vector<1x17x128xf32> to vector<17x128xf32>
    %21 = vector.extract_strided_slice %20 {offsets = [0, 0], sizes = [1, 32], strides = [1, 1]} : vector<17x128xf32> to vector<1x32xf32>
    %22 = vector.extract_strided_slice %20 {offsets = [1, 0], sizes = [1, 32], strides = [1, 1]} : vector<17x128xf32> to vector<1x32xf32>
    %cst = arith.constant dense<0.000000e+00> : vector<8xf32>
    %23 = vector.multi_reduction <add>, %1, %cst [1] : vector<8x32xf32> to vector<8xf32>
    %24 = vector.shape_cast %23 : vector<8xf32> to vector<8x1xf32>
    %cst_34 = arith.constant 3.200000e+01 : f32
    %25 = vector.broadcast %cst_34 : f32 to vector<8x1xf32>
    %26 = arith.divf %24, %25 : vector<8x1xf32>
    %27 = vector.broadcast %26 : vector<8x1xf32> to vector<8x32xf32>
    %28 = arith.subf %1, %27 : vector<8x32xf32>
    %29 = arith.mulf %28, %28 : vector<8x32xf32>
    %cst_35 = arith.constant dense<0.000000e+00> : vector<8xf32>
    %30 = vector.multi_reduction <add>, %29, %cst_35 [1] : vector<8x32xf32> to vector<8xf32>
    %31 = vector.shape_cast %30 : vector<8xf32> to vector<8x1xf32>
    %cst_36 = arith.constant 3.100000e+01 : f32
    %32 = vector.broadcast %cst_36 : f32 to vector<8x1xf32>
    %33 = arith.divf %31, %32 : vector<8x1xf32>
    %34 = vector.broadcast %26 : vector<8x1xf32> to vector<8x32xf32>
    %35 = arith.subf %1, %34 : vector<8x32xf32>
    %36 = vector.broadcast %21 : vector<1x32xf32> to vector<8x32xf32>
    %37 = arith.mulf %36, %35 : vector<8x32xf32>
    %38 = math.sqrt %33 : vector<8x1xf32>
    %cst_37 = arith.constant 9.99999997E-7 : f32
    %39 = vector.broadcast %cst_37 : f32 to vector<8x1xf32>
    %40 = arith.addf %38, %39 : vector<8x1xf32>
    %41 = vector.broadcast %40 : vector<8x1xf32> to vector<8x32xf32>
    %42 = arith.divf %37, %41 : vector<8x32xf32>
    %43 = vector.broadcast %22 : vector<1x32xf32> to vector<8x32xf32>
    %44 = arith.addf %42, %43 : vector<8x32xf32>
    %45 = arith.truncf %44 : vector<8x32xf32> to vector<8x32xbf16>
    %46 = vector.extract_strided_slice %10 {offsets = [0, 0, 0], sizes = [4, 32, 24], strides = [1, 1, 1]} : vector<4x32x72xbf16> to vector<4x32x24xbf16>
    %47 = vector.extract_strided_slice %12 {offsets = [0, 0, 0], sizes = [4, 1, 24], strides = [1, 1, 1]} : vector<4x1x72xf32> to vector<4x1x24xf32>
    %48 = vector.shape_cast %45 : vector<8x32xbf16> to vector<1x8x32xbf16>
    %49 = vector.shape_cast %48 : vector<1x8x32xbf16> to vector<1x8x32xbf16>
    %50 = vector.broadcast %49 : vector<1x8x32xbf16> to vector<4x8x32xbf16>
    "tpu.trace_start"() <{level = 10 : i32, message = "hsd,hdf->hsf"}> : () -> ()
    %cst_38 = arith.constant dense<0.000000e+00> : vector<4x8x24xf32>
    %51 = tpu.matmul %50, %46, %cst_38 {dimension_numbers = #tpu.dot_dimension_numbers<[2], [1], [1], [2], [0, 0, 0, 1, 1, 2], [0], [0]>} : vector<4x8x32xbf16>, vector<4x32x24xbf16>, vector<4x8x24xf32> -> vector<4x8x24xf32>
    "tpu.trace_stop"() : () -> ()
    %52 = vector.broadcast %47 : vector<4x1x24xf32> to vector<4x8x24xf32>
    %53 = arith.addf %51, %52 : vector<4x8x24xf32>
    %54 = vector.extract_strided_slice %53 {offsets = [0, 0, 0], sizes = [4, 8, 8], strides = [1, 1, 1]} : vector<4x8x24xf32> to vector<4x8x8xf32>
    %55 = vector.extract_strided_slice %53 {offsets = [0, 0, 8], sizes = [4, 8, 8], strides = [1, 1, 1]} : vector<4x8x24xf32> to vector<4x8x8xf32>
    %56 = vector.extract_strided_slice %53 {offsets = [0, 0, 16], sizes = [4, 8, 8], strides = [1, 1, 1]} : vector<4x8x24xf32> to vector<4x8x8xf32>
    %57 = vector.extract_strided_slice %14 {offsets = [0, 0, 0], sizes = [4, 8, 32], strides = [1, 1, 1]} : vector<4x8x96xbf16> to vector<4x8x32xbf16>
    %58 = vector.extract_strided_slice %20 {offsets = [2, 0], sizes = [1, 32], strides = [1, 1]} : vector<17x128xf32> to vector<1x32xf32>
    %59 = arith.truncf %54 : vector<4x8x8xf32> to vector<4x8x8xbf16>
    %60 = arith.truncf %55 : vector<4x8x8xf32> to vector<4x8x8xbf16>
    "tpu.trace_start"() <{level = 10 : i32, message = "hqd,hkd->hqk"}> : () -> ()
    %cst_39 = arith.constant dense<0.000000e+00> : vector<4x8x8xf32>
    %61 = tpu.matmul %59, %60, %cst_39 {dimension_numbers = #tpu.dot_dimension_numbers<[2], [2], [1], [1], [0, 0, 0, 1, 1, 1], [0], [0]>} : vector<4x8x8xbf16>, vector<4x8x8xbf16>, vector<4x8x8xf32> -> vector<4x8x8xf32>
    "tpu.trace_stop"() : () -> ()
    %cst_40 = arith.constant 0.353553385 : f32
    %62 = vector.broadcast %cst_40 : f32 to vector<4x8x8xf32>
    %63 = arith.mulf %61, %62 : vector<4x8x8xf32>
    %64 = vector.shape_cast %5 : vector<1x8xf32> to vector<1x1x8xf32>
    %65 = vector.broadcast %64 : vector<1x1x8xf32> to vector<4x8x8xf32>
    %66 = arith.addf %63, %65 : vector<4x8x8xf32>
    %cst_41 = arith.constant dense<0xFF800000> : vector<4x8xf32>
    %67 = vector.multi_reduction <maximumf>, %66, %cst_41 [2] : vector<4x8x8xf32> to vector<4x8xf32>
    %68 = vector.shape_cast %67 : vector<4x8xf32> to vector<4x8x1xf32>
    %69 = vector.broadcast %68 : vector<4x8x1xf32> to vector<4x8x8xf32>
    %70 = arith.subf %66, %69 : vector<4x8x8xf32>
    %71 = math.exp %70 : vector<4x8x8xf32>
    %cst_42 = arith.constant dense<0.000000e+00> : vector<4x8xf32>
    %72 = vector.multi_reduction <add>, %71, %cst_42 [2] : vector<4x8x8xf32> to vector<4x8xf32>
    %73 = vector.shape_cast %72 : vector<4x8xf32> to vector<4x8x1xf32>
    %74 = tpu.reciprocal %73 {approx = true} : vector<4x8x1xf32> -> vector<4x8x1xf32>
    %75 = vector.broadcast %74 : vector<4x8x1xf32> to vector<4x8x8xf32>
    %76 = arith.mulf %71, %75 : vector<4x8x8xf32>
    %77 = arith.truncf %76 : vector<4x8x8xf32> to vector<4x8x8xbf16>
    %78 = arith.truncf %56 : vector<4x8x8xf32> to vector<4x8x8xbf16>
    "tpu.trace_start"() <{level = 10 : i32, message = "hqk,hkd->hqd"}> : () -> ()
    %cst_43 = arith.constant dense<0.000000e+00> : vector<4x8x8xf32>
    %79 = tpu.matmul %77, %78, %cst_43 {dimension_numbers = #tpu.dot_dimension_numbers<[2], [1], [1], [2], [0, 0, 0, 1, 1, 2], [0], [0]>} : vector<4x8x8xbf16>, vector<4x8x8xbf16>, vector<4x8x8xf32> -> vector<4x8x8xf32>
    "tpu.trace_stop"() : () -> ()
    %80 = arith.truncf %79 : vector<4x8x8xf32> to vector<4x8x8xbf16>
    "tpu.trace_start"() <{level = 10 : i32, message = "hqd,hde->hqe"}> : () -> ()
    %cst_44 = arith.constant dense<0.000000e+00> : vector<4x8x32xf32>
    %81 = tpu.matmul %80, %57, %cst_44 {dimension_numbers = #tpu.dot_dimension_numbers<[2], [1], [1], [2], [0, 0, 0, 1, 1, 2], [0], [0]>} : vector<4x8x8xbf16>, vector<4x8x32xbf16>, vector<4x8x32xf32> -> vector<4x8x32xf32>
    "tpu.trace_stop"() : () -> ()
    %cst_45 = arith.constant dense<0.000000e+00> : vector<8x32xf32>
    %82 = vector.multi_reduction <add>, %81, %cst_45 [0] : vector<4x8x32xf32> to vector<8x32xf32>
    %83 = vector.broadcast %58 : vector<1x32xf32> to vector<8x32xf32>
    %84 = arith.addf %82, %83 : vector<8x32xf32>
    %85 = arith.addf %1, %84 : vector<8x32xf32>
    %86 = vector.extract_strided_slice %20 {offsets = [3, 0], sizes = [1, 32], strides = [1, 1]} : vector<17x128xf32> to vector<1x32xf32>
    %87 = vector.extract_strided_slice %20 {offsets = [4, 0], sizes = [1, 32], strides = [1, 1]} : vector<17x128xf32> to vector<1x32xf32>
    %cst_46 = arith.constant dense<0.000000e+00> : vector<8xf32>
    %88 = vector.multi_reduction <add>, %85, %cst_46 [1] : vector<8x32xf32> to vector<8xf32>
    %89 = vector.shape_cast %88 : vector<8xf32> to vector<8x1xf32>
    %cst_47 = arith.constant 3.200000e+01 : f32
    %90 = vector.broadcast %cst_47 : f32 to vector<8x1xf32>
    %91 = arith.divf %89, %90 : vector<8x1xf32>
    %92 = vector.broadcast %91 : vector<8x1xf32> to vector<8x32xf32>
    %93 = arith.subf %85, %92 : vector<8x32xf32>
    %94 = arith.mulf %93, %93 : vector<8x32xf32>
    %cst_48 = arith.constant dense<0.000000e+00> : vector<8xf32>
    %95 = vector.multi_reduction <add>, %94, %cst_48 [1] : vector<8x32xf32> to vector<8xf32>
    %96 = vector.shape_cast %95 : vector<8xf32> to vector<8x1xf32>
    %cst_49 = arith.constant 3.100000e+01 : f32
    %97 = vector.broadcast %cst_49 : f32 to vector<8x1xf32>
    %98 = arith.divf %96, %97 : vector<8x1xf32>
    %99 = vector.broadcast %91 : vector<8x1xf32> to vector<8x32xf32>
    %100 = arith.subf %85, %99 : vector<8x32xf32>
    %101 = vector.broadcast %86 : vector<1x32xf32> to vector<8x32xf32>
    %102 = arith.mulf %101, %100 : vector<8x32xf32>
    %103 = math.sqrt %98 : vector<8x1xf32>
    %cst_50 = arith.constant 9.99999997E-7 : f32
    %104 = vector.broadcast %cst_50 : f32 to vector<8x1xf32>
    %105 = arith.addf %103, %104 : vector<8x1xf32>
    %106 = vector.broadcast %105 : vector<8x1xf32> to vector<8x32xf32>
    %107 = arith.divf %102, %106 : vector<8x32xf32>
    %108 = vector.broadcast %87 : vector<1x32xf32> to vector<8x32xf32>
    %109 = arith.addf %107, %108 : vector<8x32xf32>
    %110 = arith.truncf %109 : vector<8x32xf32> to vector<8x32xbf16>
    %111 = vector.extract_strided_slice %16 {offsets = [0, 0], sizes = [32, 64], strides = [1, 1]} : vector<32x128xbf16> to vector<32x64xbf16>
    %cst_51 = arith.constant dense<0.000000e+00> : vector<8x64xf32>
    %112 = tpu.matmul %110, %111, %cst_51 {dimension_numbers = #tpu.dot_dimension_numbers<[1], [0], [0], [1], [0, 0, 1, 1], [], []>} : vector<8x32xbf16>, vector<32x64xbf16>, vector<8x64xf32> -> vector<8x64xf32>
    %113 = vector.extract_strided_slice %20 {offsets = [5, 0], sizes = [1, 64], strides = [1, 1]} : vector<17x128xf32> to vector<1x64xf32>
    %114 = vector.broadcast %113 : vector<1x64xf32> to vector<8x64xf32>
    %115 = arith.addf %112, %114 : vector<8x64xf32>
    %cst_52 = arith.constant 0.000000e+00 : f32
    %116 = vector.broadcast %cst_52 : f32 to vector<8x64xf32>
    %117 = arith.maximumf %115, %116 : vector<8x64xf32>
    %118 = arith.truncf %117 : vector<8x64xf32> to vector<8x64xbf16>
    %119 = vector.extract_strided_slice %18 {offsets = [0, 0], sizes = [64, 32], strides = [1, 1]} : vector<64x64xbf16> to vector<64x32xbf16>
    %cst_53 = arith.constant dense<0.000000e+00> : vector<8x32xf32>
    %120 = tpu.matmul %118, %119, %cst_53 {dimension_numbers = #tpu.dot_dimension_numbers<[1], [0], [0], [1], [0, 0, 1, 1], [], []>} : vector<8x64xbf16>, vector<64x32xbf16>, vector<8x32xf32> -> vector<8x32xf32>
    %121 = arith.addf %85, %120 : vector<8x32xf32>
    %122 = vector.extract_strided_slice %20 {offsets = [6, 0], sizes = [1, 32], strides = [1, 1]} : vector<17x128xf32> to vector<1x32xf32>
    %123 = vector.broadcast %122 : vector<1x32xf32> to vector<8x32xf32>
    %124 = arith.addf %121, %123 : vector<8x32xf32>
    %c1 = arith.constant 1 : index
    %c0_54 = arith.constant 0 : index
    %c0_55 = arith.constant 0 : index
    %c0_56 = arith.constant 0 : index
    %125 = vector.load %arg5[%c1, %c0_54, %c0_55, %c0_56] : memref<2x4x32x72xbf16, #tpu.memory_space<vmem>>, vector<1x4x32x72xbf16>
    %126 = vector.shape_cast %125 : vector<1x4x32x72xbf16> to vector<4x32x72xbf16>
    %c1_57 = arith.constant 1 : index
    %c0_58 = arith.constant 0 : index
    %c0_59 = arith.constant 0 : index
    %c0_60 = arith.constant 0 : index
    %127 = vector.load %arg6[%c1_57, %c0_58, %c0_59, %c0_60] : memref<2x4x1x72xf32, #tpu.memory_space<vmem>>, vector<1x4x1x72xf32>
    %128 = vector.shape_cast %127 : vector<1x4x1x72xf32> to vector<4x1x72xf32>
    %c1_61 = arith.constant 1 : index
    %c0_62 = arith.constant 0 : index
    %c0_63 = arith.constant 0 : index
    %c0_64 = arith.constant 0 : index
    %129 = vector.load %arg7[%c1_61, %c0_62, %c0_63, %c0_64] : memref<2x4x8x96xbf16, #tpu.memory_space<vmem>>, vector<1x4x8x96xbf16>
    %130 = vector.shape_cast %129 : vector<1x4x8x96xbf16> to vector<4x8x96xbf16>
    %c1_65 = arith.constant 1 : index
    %c0_66 = arith.constant 0 : index
    %c0_67 = arith.constant 0 : index
    %131 = vector.load %arg8[%c1_65, %c0_66, %c0_67] : memref<2x32x128xbf16, #tpu.memory_space<vmem>>, vector<1x32x128xbf16>
    %132 = vector.shape_cast %131 : vector<1x32x128xbf16> to vector<32x128xbf16>
    %c1_68 = arith.constant 1 : index
    %c0_69 = arith.constant 0 : index
    %c0_70 = arith.constant 0 : index
    %133 = vector.load %arg9[%c1_68, %c0_69, %c0_70] : memref<2x64x64xbf16, #tpu.memory_space<vmem>>, vector<1x64x64xbf16>
    %134 = vector.shape_cast %133 : vector<1x64x64xbf16> to vector<64x64xbf16>
    %c1_71 = arith.constant 1 : index
    %c0_72 = arith.constant 0 : index
    %c0_73 = arith.constant 0 : index
    %135 = vector.load %arg10[%c1_71, %c0_72, %c0_73] : memref<2x17x128xf32, #tpu.memory_space<vmem>>, vector<1x17x128xf32>
    %136 = vector.shape_cast %135 : vector<1x17x128xf32> to vector<17x128xf32>
    %137 = vector.extract_strided_slice %136 {offsets = [0, 0], sizes = [1, 32], strides = [1, 1]} : vector<17x128xf32> to vector<1x32xf32>
    %138 = vector.extract_strided_slice %136 {offsets = [1, 0], sizes = [1, 32], strides = [1, 1]} : vector<17x128xf32> to vector<1x32xf32>
    %cst_74 = arith.constant dense<0.000000e+00> : vector<8xf32>
    %139 = vector.multi_reduction <add>, %124, %cst_74 [1] : vector<8x32xf32> to vector<8xf32>
    %140 = vector.shape_cast %139 : vector<8xf32> to vector<8x1xf32>
    %cst_75 = arith.constant 3.200000e+01 : f32
    %141 = vector.broadcast %cst_75 : f32 to vector<8x1xf32>
    %142 = arith.divf %140, %141 : vector<8x1xf32>
    %143 = vector.broadcast %142 : vector<8x1xf32> to vector<8x32xf32>
    %144 = arith.subf %124, %143 : vector<8x32xf32>
    %145 = arith.mulf %144, %144 : vector<8x32xf32>
    %cst_76 = arith.constant dense<0.000000e+00> : vector<8xf32>
    %146 = vector.multi_reduction <add>, %145, %cst_76 [1] : vector<8x32xf32> to vector<8xf32>
    %147 = vector.shape_cast %146 : vector<8xf32> to vector<8x1xf32>
    %cst_77 = arith.constant 3.100000e+01 : f32
    %148 = vector.broadcast %cst_77 : f32 to vector<8x1xf32>
    %149 = arith.divf %147, %148 : vector<8x1xf32>
    %150 = vector.broadcast %142 : vector<8x1xf32> to vector<8x32xf32>
    %151 = arith.subf %124, %150 : vector<8x32xf32>
    %152 = vector.broadcast %137 : vector<1x32xf32> to vector<8x32xf32>
    %153 = arith.mulf %152, %151 : vector<8x32xf32>
    %154 = math.sqrt %149 : vector<8x1xf32>
    %cst_78 = arith.constant 9.99999997E-7 : f32
    %155 = vector.broadcast %cst_78 : f32 to vector<8x1xf32>
    %156 = arith.addf %154, %155 : vector<8x1xf32>
    %157 = vector.broadcast %156 : vector<8x1xf32> to vector<8x32xf32>
    %158 = arith.divf %153, %157 : vector<8x32xf32>
    %159 = vector.broadcast %138 : vector<1x32xf32> to vector<8x32xf32>
    %160 = arith.addf %158, %159 : vector<8x32xf32>
    %161 = arith.truncf %160 : vector<8x32xf32> to vector<8x32xbf16>
    %162 = vector.extract_strided_slice %126 {offsets = [0, 0, 0], sizes = [4, 32, 24], strides = [1, 1, 1]} : vector<4x32x72xbf16> to vector<4x32x24xbf16>
    %163 = vector.extract_strided_slice %128 {offsets = [0, 0, 0], sizes = [4, 1, 24], strides = [1, 1, 1]} : vector<4x1x72xf32> to vector<4x1x24xf32>
    %164 = vector.shape_cast %161 : vector<8x32xbf16> to vector<1x8x32xbf16>
    %165 = vector.shape_cast %164 : vector<1x8x32xbf16> to vector<1x8x32xbf16>
    %166 = vector.broadcast %165 : vector<1x8x32xbf16> to vector<4x8x32xbf16>
    "tpu.trace_start"() <{level = 10 : i32, message = "hsd,hdf->hsf"}> : () -> ()
    %cst_79 = arith.constant dense<0.000000e+00> : vector<4x8x24xf32>
    %167 = tpu.matmul %166, %162, %cst_79 {dimension_numbers = #tpu.dot_dimension_numbers<[2], [1], [1], [2], [0, 0, 0, 1, 1, 2], [0], [0]>} : vector<4x8x32xbf16>, vector<4x32x24xbf16>, vector<4x8x24xf32> -> vector<4x8x24xf32>
    "tpu.trace_stop"() : () -> ()
    %168 = vector.broadcast %163 : vector<4x1x24xf32> to vector<4x8x24xf32>
    %169 = arith.addf %167, %168 : vector<4x8x24xf32>
    %170 = vector.extract_strided_slice %169 {offsets = [0, 0, 0], sizes = [4, 8, 8], strides = [1, 1, 1]} : vector<4x8x24xf32> to vector<4x8x8xf32>
    %171 = vector.extract_strided_slice %169 {offsets = [0, 0, 8], sizes = [4, 8, 8], strides = [1, 1, 1]} : vector<4x8x24xf32> to vector<4x8x8xf32>
    %172 = vector.extract_strided_slice %169 {offsets = [0, 0, 16], sizes = [4, 8, 8], strides = [1, 1, 1]} : vector<4x8x24xf32> to vector<4x8x8xf32>
    %173 = vector.extract_strided_slice %130 {offsets = [0, 0, 0], sizes = [4, 8, 32], strides = [1, 1, 1]} : vector<4x8x96xbf16> to vector<4x8x32xbf16>
    %174 = vector.extract_strided_slice %136 {offsets = [2, 0], sizes = [1, 32], strides = [1, 1]} : vector<17x128xf32> to vector<1x32xf32>
    %175 = arith.truncf %170 : vector<4x8x8xf32> to vector<4x8x8xbf16>
    %176 = arith.truncf %171 : vector<4x8x8xf32> to vector<4x8x8xbf16>
    "tpu.trace_start"() <{level = 10 : i32, message = "hqd,hkd->hqk"}> : () -> ()
    %cst_80 = arith.constant dense<0.000000e+00> : vector<4x8x8xf32>
    %177 = tpu.matmul %175, %176, %cst_80 {dimension_numbers = #tpu.dot_dimension_numbers<[2], [2], [1], [1], [0, 0, 0, 1, 1, 1], [0], [0]>} : vector<4x8x8xbf16>, vector<4x8x8xbf16>, vector<4x8x8xf32> -> vector<4x8x8xf32>
    "tpu.trace_stop"() : () -> ()
    %cst_81 = arith.constant 0.353553385 : f32
    %178 = vector.broadcast %cst_81 : f32 to vector<4x8x8xf32>
    %179 = arith.mulf %177, %178 : vector<4x8x8xf32>
    %180 = vector.shape_cast %5 : vector<1x8xf32> to vector<1x1x8xf32>
    %181 = vector.broadcast %180 : vector<1x1x8xf32> to vector<4x8x8xf32>
    %182 = arith.addf %179, %181 : vector<4x8x8xf32>
    %cst_82 = arith.constant dense<0xFF800000> : vector<4x8xf32>
    %183 = vector.multi_reduction <maximumf>, %182, %cst_82 [2] : vector<4x8x8xf32> to vector<4x8xf32>
    %184 = vector.shape_cast %183 : vector<4x8xf32> to vector<4x8x1xf32>
    %185 = vector.broadcast %184 : vector<4x8x1xf32> to vector<4x8x8xf32>
    %186 = arith.subf %182, %185 : vector<4x8x8xf32>
    %187 = math.exp %186 : vector<4x8x8xf32>
    %cst_83 = arith.constant dense<0.000000e+00> : vector<4x8xf32>
    %188 = vector.multi_reduction <add>, %187, %cst_83 [2] : vector<4x8x8xf32> to vector<4x8xf32>
    %189 = vector.shape_cast %188 : vector<4x8xf32> to vector<4x8x1xf32>
    %190 = tpu.reciprocal %189 {approx = true} : vector<4x8x1xf32> -> vector<4x8x1xf32>
    %191 = vector.broadcast %190 : vector<4x8x1xf32> to vector<4x8x8xf32>
    %192 = arith.mulf %187, %191 : vector<4x8x8xf32>
    %193 = arith.truncf %192 : vector<4x8x8xf32> to vector<4x8x8xbf16>
    %194 = arith.truncf %172 : vector<4x8x8xf32> to vector<4x8x8xbf16>
    "tpu.trace_start"() <{level = 10 : i32, message = "hqk,hkd->hqd"}> : () -> ()
    %cst_84 = arith.constant dense<0.000000e+00> : vector<4x8x8xf32>
    %195 = tpu.matmul %193, %194, %cst_84 {dimension_numbers = #tpu.dot_dimension_numbers<[2], [1], [1], [2], [0, 0, 0, 1, 1, 2], [0], [0]>} : vector<4x8x8xbf16>, vector<4x8x8xbf16>, vector<4x8x8xf32> -> vector<4x8x8xf32>
    "tpu.trace_stop"() : () -> ()
    %196 = arith.truncf %195 : vector<4x8x8xf32> to vector<4x8x8xbf16>
    "tpu.trace_start"() <{level = 10 : i32, message = "hqd,hde->hqe"}> : () -> ()
    %cst_85 = arith.constant dense<0.000000e+00> : vector<4x8x32xf32>
    %197 = tpu.matmul %196, %173, %cst_85 {dimension_numbers = #tpu.dot_dimension_numbers<[2], [1], [1], [2], [0, 0, 0, 1, 1, 2], [0], [0]>} : vector<4x8x8xbf16>, vector<4x8x32xbf16>, vector<4x8x32xf32> -> vector<4x8x32xf32>
    "tpu.trace_stop"() : () -> ()
    %cst_86 = arith.constant dense<0.000000e+00> : vector<8x32xf32>
    %198 = vector.multi_reduction <add>, %197, %cst_86 [0] : vector<4x8x32xf32> to vector<8x32xf32>
    %199 = vector.broadcast %174 : vector<1x32xf32> to vector<8x32xf32>
    %200 = arith.addf %198, %199 : vector<8x32xf32>
    %201 = arith.addf %124, %200 : vector<8x32xf32>
    %202 = vector.extract_strided_slice %136 {offsets = [3, 0], sizes = [1, 32], strides = [1, 1]} : vector<17x128xf32> to vector<1x32xf32>
    %203 = vector.extract_strided_slice %136 {offsets = [4, 0], sizes = [1, 32], strides = [1, 1]} : vector<17x128xf32> to vector<1x32xf32>
    %cst_87 = arith.constant dense<0.000000e+00> : vector<8xf32>
    %204 = vector.multi_reduction <add>, %201, %cst_87 [1] : vector<8x32xf32> to vector<8xf32>
    %205 = vector.shape_cast %204 : vector<8xf32> to vector<8x1xf32>
    %cst_88 = arith.constant 3.200000e+01 : f32
    %206 = vector.broadcast %cst_88 : f32 to vector<8x1xf32>
    %207 = arith.divf %205, %206 : vector<8x1xf32>
    %208 = vector.broadcast %207 : vector<8x1xf32> to vector<8x32xf32>
    %209 = arith.subf %201, %208 : vector<8x32xf32>
    %210 = arith.mulf %209, %209 : vector<8x32xf32>
    %cst_89 = arith.constant dense<0.000000e+00> : vector<8xf32>
    %211 = vector.multi_reduction <add>, %210, %cst_89 [1] : vector<8x32xf32> to vector<8xf32>
    %212 = vector.shape_cast %211 : vector<8xf32> to vector<8x1xf32>
    %cst_90 = arith.constant 3.100000e+01 : f32
    %213 = vector.broadcast %cst_90 : f32 to vector<8x1xf32>
    %214 = arith.divf %212, %213 : vector<8x1xf32>
    %215 = vector.broadcast %207 : vector<8x1xf32> to vector<8x32xf32>
    %216 = arith.subf %201, %215 : vector<8x32xf32>
    %217 = vector.broadcast %202 : vector<1x32xf32> to vector<8x32xf32>
    %218 = arith.mulf %217, %216 : vector<8x32xf32>
    %219 = math.sqrt %214 : vector<8x1xf32>
    %cst_91 = arith.constant 9.99999997E-7 : f32
    %220 = vector.broadcast %cst_91 : f32 to vector<8x1xf32>
    %221 = arith.addf %219, %220 : vector<8x1xf32>
    %222 = vector.broadcast %221 : vector<8x1xf32> to vector<8x32xf32>
    %223 = arith.divf %218, %222 : vector<8x32xf32>
    %224 = vector.broadcast %203 : vector<1x32xf32> to vector<8x32xf32>
    %225 = arith.addf %223, %224 : vector<8x32xf32>
    %226 = arith.truncf %225 : vector<8x32xf32> to vector<8x32xbf16>
    %227 = vector.extract_strided_slice %132 {offsets = [0, 0], sizes = [32, 64], strides = [1, 1]} : vector<32x128xbf16> to vector<32x64xbf16>
    %cst_92 = arith.constant dense<0.000000e+00> : vector<8x64xf32>
    %228 = tpu.matmul %226, %227, %cst_92 {dimension_numbers = #tpu.dot_dimension_numbers<[1], [0], [0], [1], [0, 0, 1, 1], [], []>} : vector<8x32xbf16>, vector<32x64xbf16>, vector<8x64xf32> -> vector<8x64xf32>
    %229 = vector.extract_strided_slice %136 {offsets = [5, 0], sizes = [1, 64], strides = [1, 1]} : vector<17x128xf32> to vector<1x64xf32>
    %230 = vector.broadcast %229 : vector<1x64xf32> to vector<8x64xf32>
    %231 = arith.addf %228, %230 : vector<8x64xf32>
    %cst_93 = arith.constant 0.000000e+00 : f32
    %232 = vector.broadcast %cst_93 : f32 to vector<8x64xf32>
    %233 = arith.maximumf %231, %232 : vector<8x64xf32>
    %234 = arith.truncf %233 : vector<8x64xf32> to vector<8x64xbf16>
    %235 = vector.extract_strided_slice %134 {offsets = [0, 0], sizes = [64, 32], strides = [1, 1]} : vector<64x64xbf16> to vector<64x32xbf16>
    %cst_94 = arith.constant dense<0.000000e+00> : vector<8x32xf32>
    %236 = tpu.matmul %234, %235, %cst_94 {dimension_numbers = #tpu.dot_dimension_numbers<[1], [0], [0], [1], [0, 0, 1, 1], [], []>} : vector<8x64xbf16>, vector<64x32xbf16>, vector<8x32xf32> -> vector<8x32xf32>
    %237 = arith.addf %201, %236 : vector<8x32xf32>
    %238 = vector.extract_strided_slice %136 {offsets = [6, 0], sizes = [1, 32], strides = [1, 1]} : vector<17x128xf32> to vector<1x32xf32>
    %239 = vector.broadcast %238 : vector<1x32xf32> to vector<8x32xf32>
    %240 = arith.addf %237, %239 : vector<8x32xf32>
    %241 = vector.extract_strided_slice %8 {offsets = [0, 0], sizes = [1, 32], strides = [1, 1]} : vector<5x128xf32> to vector<1x32xf32>
    %242 = vector.extract_strided_slice %8 {offsets = [1, 0], sizes = [1, 32], strides = [1, 1]} : vector<5x128xf32> to vector<1x32xf32>
    %cst_95 = arith.constant dense<0.000000e+00> : vector<8xf32>
    %243 = vector.multi_reduction <add>, %240, %cst_95 [1] : vector<8x32xf32> to vector<8xf32>
    %244 = vector.shape_cast %243 : vector<8xf32> to vector<8x1xf32>
    %cst_96 = arith.constant 3.200000e+01 : f32
    %245 = vector.broadcast %cst_96 : f32 to vector<8x1xf32>
    %246 = arith.divf %244, %245 : vector<8x1xf32>
    %247 = vector.broadcast %246 : vector<8x1xf32> to vector<8x32xf32>
    %248 = arith.subf %240, %247 : vector<8x32xf32>
    %249 = arith.mulf %248, %248 : vector<8x32xf32>
    %cst_97 = arith.constant dense<0.000000e+00> : vector<8xf32>
    %250 = vector.multi_reduction <add>, %249, %cst_97 [1] : vector<8x32xf32> to vector<8xf32>
    %251 = vector.shape_cast %250 : vector<8xf32> to vector<8x1xf32>
    %cst_98 = arith.constant 3.100000e+01 : f32
    %252 = vector.broadcast %cst_98 : f32 to vector<8x1xf32>
    %253 = arith.divf %251, %252 : vector<8x1xf32>
    %254 = vector.broadcast %246 : vector<8x1xf32> to vector<8x32xf32>
    %255 = arith.subf %240, %254 : vector<8x32xf32>
    %256 = vector.broadcast %241 : vector<1x32xf32> to vector<8x32xf32>
    %257 = arith.mulf %256, %255 : vector<8x32xf32>
    %258 = math.sqrt %253 : vector<8x1xf32>
    %cst_99 = arith.constant 9.99999997E-7 : f32
    %259 = vector.broadcast %cst_99 : f32 to vector<8x1xf32>
    %260 = arith.addf %258, %259 : vector<8x1xf32>
    %261 = vector.broadcast %260 : vector<8x1xf32> to vector<8x32xf32>
    %262 = arith.divf %257, %261 : vector<8x32xf32>
    %263 = vector.broadcast %242 : vector<1x32xf32> to vector<8x32xf32>
    %264 = arith.addf %262, %263 : vector<8x32xf32>
    %265 = arith.truncf %264 : vector<8x32xf32> to vector<8x32xbf16>
    %c0_100 = arith.constant 0 : index
    %c0_101 = arith.constant 0 : index
    %c0_102 = arith.constant 0 : index
    %c0_103 = arith.constant 0 : index
    %266 = vector.load %arg5[%c0_100, %c0_101, %c0_102, %c0_103] : memref<2x4x32x72xbf16, #tpu.memory_space<vmem>>, vector<1x4x32x72xbf16>
    %267 = vector.shape_cast %266 : vector<1x4x32x72xbf16> to vector<4x32x72xbf16>
    %c0_104 = arith.constant 0 : index
    %c0_105 = arith.constant 0 : index
    %c0_106 = arith.constant 0 : index
    %c0_107 = arith.constant 0 : index
    %268 = vector.load %arg6[%c0_104, %c0_105, %c0_106, %c0_107] : memref<2x4x1x72xf32, #tpu.memory_space<vmem>>, vector<1x4x1x72xf32>
    %269 = vector.shape_cast %268 : vector<1x4x1x72xf32> to vector<4x1x72xf32>
    %c0_108 = arith.constant 0 : index
    %c0_109 = arith.constant 0 : index
    %c0_110 = arith.constant 0 : index
    %c0_111 = arith.constant 0 : index
    %270 = vector.load %arg7[%c0_108, %c0_109, %c0_110, %c0_111] : memref<2x4x8x96xbf16, #tpu.memory_space<vmem>>, vector<1x4x8x96xbf16>
    %271 = vector.shape_cast %270 : vector<1x4x8x96xbf16> to vector<4x8x96xbf16>
    %c0_112 = arith.constant 0 : index
    %c0_113 = arith.constant 0 : index
    %c0_114 = arith.constant 0 : index
    %272 = vector.load %arg8[%c0_112, %c0_113, %c0_114] : memref<2x32x128xbf16, #tpu.memory_space<vmem>>, vector<1x32x128xbf16>
    %273 = vector.shape_cast %272 : vector<1x32x128xbf16> to vector<32x128xbf16>
    %c0_115 = arith.constant 0 : index
    %c0_116 = arith.constant 0 : index
    %c0_117 = arith.constant 0 : index
    %274 = vector.load %arg9[%c0_115, %c0_116, %c0_117] : memref<2x64x64xbf16, #tpu.memory_space<vmem>>, vector<1x64x64xbf16>
    %275 = vector.shape_cast %274 : vector<1x64x64xbf16> to vector<64x64xbf16>
    %c0_118 = arith.constant 0 : index
    %c0_119 = arith.constant 0 : index
    %c0_120 = arith.constant 0 : index
    %276 = vector.load %arg10[%c0_118, %c0_119, %c0_120] : memref<2x17x128xf32, #tpu.memory_space<vmem>>, vector<1x17x128xf32>
    %277 = vector.shape_cast %276 : vector<1x17x128xf32> to vector<17x128xf32>
    %278 = vector.extract_strided_slice %277 {offsets = [7, 0], sizes = [1, 32], strides = [1, 1]} : vector<17x128xf32> to vector<1x32xf32>
    %279 = vector.extract_strided_slice %277 {offsets = [8, 0], sizes = [1, 32], strides = [1, 1]} : vector<17x128xf32> to vector<1x32xf32>
    %cst_121 = arith.constant dense<0.000000e+00> : vector<8xf32>
    %280 = vector.multi_reduction <add>, %3, %cst_121 [1] : vector<8x32xf32> to vector<8xf32>
    %281 = vector.shape_cast %280 : vector<8xf32> to vector<8x1xf32>
    %cst_122 = arith.constant 3.200000e+01 : f32
    %282 = vector.broadcast %cst_122 : f32 to vector<8x1xf32>
    %283 = arith.divf %281, %282 : vector<8x1xf32>
    %284 = vector.broadcast %283 : vector<8x1xf32> to vector<8x32xf32>
    %285 = arith.subf %3, %284 : vector<8x32xf32>
    %286 = arith.mulf %285, %285 : vector<8x32xf32>
    %cst_123 = arith.constant dense<0.000000e+00> : vector<8xf32>
    %287 = vector.multi_reduction <add>, %286, %cst_123 [1] : vector<8x32xf32> to vector<8xf32>
    %288 = vector.shape_cast %287 : vector<8xf32> to vector<8x1xf32>
    %cst_124 = arith.constant 3.100000e+01 : f32
    %289 = vector.broadcast %cst_124 : f32 to vector<8x1xf32>
    %290 = arith.divf %288, %289 : vector<8x1xf32>
    %291 = vector.broadcast %283 : vector<8x1xf32> to vector<8x32xf32>
    %292 = arith.subf %3, %291 : vector<8x32xf32>
    %293 = vector.broadcast %278 : vector<1x32xf32> to vector<8x32xf32>
    %294 = arith.mulf %293, %292 : vector<8x32xf32>
    %295 = math.sqrt %290 : vector<8x1xf32>
    %cst_125 = arith.constant 9.99999997E-7 : f32
    %296 = vector.broadcast %cst_125 : f32 to vector<8x1xf32>
    %297 = arith.addf %295, %296 : vector<8x1xf32>
    %298 = vector.broadcast %297 : vector<8x1xf32> to vector<8x32xf32>
    %299 = arith.divf %294, %298 : vector<8x32xf32>
    %300 = vector.broadcast %279 : vector<1x32xf32> to vector<8x32xf32>
    %301 = arith.addf %299, %300 : vector<8x32xf32>
    %302 = arith.truncf %301 : vector<8x32xf32> to vector<8x32xbf16>
    %303 = vector.extract_strided_slice %267 {offsets = [0, 0, 24], sizes = [4, 32, 24], strides = [1, 1, 1]} : vector<4x32x72xbf16> to vector<4x32x24xbf16>
    %304 = vector.extract_strided_slice %269 {offsets = [0, 0, 24], sizes = [4, 1, 24], strides = [1, 1, 1]} : vector<4x1x72xf32> to vector<4x1x24xf32>
    %305 = vector.shape_cast %302 : vector<8x32xbf16> to vector<1x8x32xbf16>
    %306 = vector.shape_cast %305 : vector<1x8x32xbf16> to vector<1x8x32xbf16>
    %307 = vector.broadcast %306 : vector<1x8x32xbf16> to vector<4x8x32xbf16>
    "tpu.trace_start"() <{level = 10 : i32, message = "hsd,hdf->hsf"}> : () -> ()
    %cst_126 = arith.constant dense<0.000000e+00> : vector<4x8x24xf32>
    %308 = tpu.matmul %307, %303, %cst_126 {dimension_numbers = #tpu.dot_dimension_numbers<[2], [1], [1], [2], [0, 0, 0, 1, 1, 2], [0], [0]>} : vector<4x8x32xbf16>, vector<4x32x24xbf16>, vector<4x8x24xf32> -> vector<4x8x24xf32>
    "tpu.trace_stop"() : () -> ()
    %309 = vector.broadcast %304 : vector<4x1x24xf32> to vector<4x8x24xf32>
    %310 = arith.addf %308, %309 : vector<4x8x24xf32>
    %311 = vector.extract_strided_slice %310 {offsets = [0, 0, 0], sizes = [4, 8, 8], strides = [1, 1, 1]} : vector<4x8x24xf32> to vector<4x8x8xf32>
    %312 = vector.extract_strided_slice %310 {offsets = [0, 0, 8], sizes = [4, 8, 8], strides = [1, 1, 1]} : vector<4x8x24xf32> to vector<4x8x8xf32>
    %313 = vector.extract_strided_slice %310 {offsets = [0, 0, 16], sizes = [4, 8, 8], strides = [1, 1, 1]} : vector<4x8x24xf32> to vector<4x8x8xf32>
    %314 = vector.extract_strided_slice %271 {offsets = [0, 0, 32], sizes = [4, 8, 32], strides = [1, 1, 1]} : vector<4x8x96xbf16> to vector<4x8x32xbf16>
    %315 = vector.extract_strided_slice %277 {offsets = [9, 0], sizes = [1, 32], strides = [1, 1]} : vector<17x128xf32> to vector<1x32xf32>
    %316 = arith.truncf %311 : vector<4x8x8xf32> to vector<4x8x8xbf16>
    %317 = arith.truncf %312 : vector<4x8x8xf32> to vector<4x8x8xbf16>
    "tpu.trace_start"() <{level = 10 : i32, message = "hqd,hkd->hqk"}> : () -> ()
    %cst_127 = arith.constant dense<0.000000e+00> : vector<4x8x8xf32>
    %318 = tpu.matmul %316, %317, %cst_127 {dimension_numbers = #tpu.dot_dimension_numbers<[2], [2], [1], [1], [0, 0, 0, 1, 1, 1], [0], [0]>} : vector<4x8x8xbf16>, vector<4x8x8xbf16>, vector<4x8x8xf32> -> vector<4x8x8xf32>
    "tpu.trace_stop"() : () -> ()
    %cst_128 = arith.constant 0.353553385 : f32
    %319 = vector.broadcast %cst_128 : f32 to vector<4x8x8xf32>
    %320 = arith.mulf %318, %319 : vector<4x8x8xf32>
    %321 = vector.shape_cast %7 : vector<8x8xf32> to vector<1x8x8xf32>
    %322 = vector.broadcast %321 : vector<1x8x8xf32> to vector<4x8x8xf32>
    %323 = arith.addf %320, %322 : vector<4x8x8xf32>
    %cst_129 = arith.constant dense<0xFF800000> : vector<4x8xf32>
    %324 = vector.multi_reduction <maximumf>, %323, %cst_129 [2] : vector<4x8x8xf32> to vector<4x8xf32>
    %325 = vector.shape_cast %324 : vector<4x8xf32> to vector<4x8x1xf32>
    %326 = vector.broadcast %325 : vector<4x8x1xf32> to vector<4x8x8xf32>
    %327 = arith.subf %323, %326 : vector<4x8x8xf32>
    %328 = math.exp %327 : vector<4x8x8xf32>
    %cst_130 = arith.constant dense<0.000000e+00> : vector<4x8xf32>
    %329 = vector.multi_reduction <add>, %328, %cst_130 [2] : vector<4x8x8xf32> to vector<4x8xf32>
    %330 = vector.shape_cast %329 : vector<4x8xf32> to vector<4x8x1xf32>
    %331 = tpu.reciprocal %330 {approx = true} : vector<4x8x1xf32> -> vector<4x8x1xf32>
    %332 = vector.broadcast %331 : vector<4x8x1xf32> to vector<4x8x8xf32>
    %333 = arith.mulf %328, %332 : vector<4x8x8xf32>
    %334 = arith.truncf %333 : vector<4x8x8xf32> to vector<4x8x8xbf16>
    %335 = arith.truncf %313 : vector<4x8x8xf32> to vector<4x8x8xbf16>
    "tpu.trace_start"() <{level = 10 : i32, message = "hqk,hkd->hqd"}> : () -> ()
    %cst_131 = arith.constant dense<0.000000e+00> : vector<4x8x8xf32>
    %336 = tpu.matmul %334, %335, %cst_131 {dimension_numbers = #tpu.dot_dimension_numbers<[2], [1], [1], [2], [0, 0, 0, 1, 1, 2], [0], [0]>} : vector<4x8x8xbf16>, vector<4x8x8xbf16>, vector<4x8x8xf32> -> vector<4x8x8xf32>
    "tpu.trace_stop"() : () -> ()
    %337 = arith.truncf %336 : vector<4x8x8xf32> to vector<4x8x8xbf16>
    "tpu.trace_start"() <{level = 10 : i32, message = "hqd,hde->hqe"}> : () -> ()
    %cst_132 = arith.constant dense<0.000000e+00> : vector<4x8x32xf32>
    %338 = tpu.matmul %337, %314, %cst_132 {dimension_numbers = #tpu.dot_dimension_numbers<[2], [1], [1], [2], [0, 0, 0, 1, 1, 2], [0], [0]>} : vector<4x8x8xbf16>, vector<4x8x32xbf16>, vector<4x8x32xf32> -> vector<4x8x32xf32>
    "tpu.trace_stop"() : () -> ()
    %cst_133 = arith.constant dense<0.000000e+00> : vector<8x32xf32>
    %339 = vector.multi_reduction <add>, %338, %cst_133 [0] : vector<4x8x32xf32> to vector<8x32xf32>
    %340 = vector.broadcast %315 : vector<1x32xf32> to vector<8x32xf32>
    %341 = arith.addf %339, %340 : vector<8x32xf32>
    %342 = arith.addf %3, %341 : vector<8x32xf32>
    %343 = vector.extract_strided_slice %277 {offsets = [10, 0], sizes = [1, 32], strides = [1, 1]} : vector<17x128xf32> to vector<1x32xf32>
    %344 = vector.extract_strided_slice %277 {offsets = [11, 0], sizes = [1, 32], strides = [1, 1]} : vector<17x128xf32> to vector<1x32xf32>
    %cst_134 = arith.constant dense<0.000000e+00> : vector<8xf32>
    %345 = vector.multi_reduction <add>, %342, %cst_134 [1] : vector<8x32xf32> to vector<8xf32>
    %346 = vector.shape_cast %345 : vector<8xf32> to vector<8x1xf32>
    %cst_135 = arith.constant 3.200000e+01 : f32
    %347 = vector.broadcast %cst_135 : f32 to vector<8x1xf32>
    %348 = arith.divf %346, %347 : vector<8x1xf32>
    %349 = vector.broadcast %348 : vector<8x1xf32> to vector<8x32xf32>
    %350 = arith.subf %342, %349 : vector<8x32xf32>
    %351 = arith.mulf %350, %350 : vector<8x32xf32>
    %cst_136 = arith.constant dense<0.000000e+00> : vector<8xf32>
    %352 = vector.multi_reduction <add>, %351, %cst_136 [1] : vector<8x32xf32> to vector<8xf32>
    %353 = vector.shape_cast %352 : vector<8xf32> to vector<8x1xf32>
    %cst_137 = arith.constant 3.100000e+01 : f32
    %354 = vector.broadcast %cst_137 : f32 to vector<8x1xf32>
    %355 = arith.divf %353, %354 : vector<8x1xf32>
    %356 = vector.broadcast %348 : vector<8x1xf32> to vector<8x32xf32>
    %357 = arith.subf %342, %356 : vector<8x32xf32>
    %358 = vector.broadcast %343 : vector<1x32xf32> to vector<8x32xf32>
    %359 = arith.mulf %358, %357 : vector<8x32xf32>
    %360 = math.sqrt %355 : vector<8x1xf32>
    %cst_138 = arith.constant 9.99999997E-7 : f32
    %361 = vector.broadcast %cst_138 : f32 to vector<8x1xf32>
    %362 = arith.addf %360, %361 : vector<8x1xf32>
    %363 = vector.broadcast %362 : vector<8x1xf32> to vector<8x32xf32>
    %364 = arith.divf %359, %363 : vector<8x32xf32>
    %365 = vector.broadcast %344 : vector<1x32xf32> to vector<8x32xf32>
    %366 = arith.addf %364, %365 : vector<8x32xf32>
    %367 = arith.truncf %366 : vector<8x32xf32> to vector<8x32xbf16>
    %368 = vector.extract_strided_slice %267 {offsets = [0, 0, 48], sizes = [4, 32, 8], strides = [1, 1, 1]} : vector<4x32x72xbf16> to vector<4x32x8xbf16>
    %369 = vector.extract_strided_slice %269 {offsets = [0, 0, 48], sizes = [4, 1, 8], strides = [1, 1, 1]} : vector<4x1x72xf32> to vector<4x1x8xf32>
    %370 = vector.shape_cast %367 : vector<8x32xbf16> to vector<1x8x32xbf16>
    %371 = vector.shape_cast %370 : vector<1x8x32xbf16> to vector<1x8x32xbf16>
    %372 = vector.broadcast %371 : vector<1x8x32xbf16> to vector<4x8x32xbf16>
    "tpu.trace_start"() <{level = 10 : i32, message = "hsd,hdf->hsf"}> : () -> ()
    %cst_139 = arith.constant dense<0.000000e+00> : vector<4x8x8xf32>
    %373 = tpu.matmul %372, %368, %cst_139 {dimension_numbers = #tpu.dot_dimension_numbers<[2], [1], [1], [2], [0, 0, 0, 1, 1, 2], [0], [0]>} : vector<4x8x32xbf16>, vector<4x32x8xbf16>, vector<4x8x8xf32> -> vector<4x8x8xf32>
    "tpu.trace_stop"() : () -> ()
    %374 = vector.broadcast %369 : vector<4x1x8xf32> to vector<4x8x8xf32>
    %375 = arith.addf %373, %374 : vector<4x8x8xf32>
    %376 = vector.extract_strided_slice %267 {offsets = [0, 0, 56], sizes = [4, 32, 16], strides = [1, 1, 1]} : vector<4x32x72xbf16> to vector<4x32x16xbf16>
    %377 = vector.extract_strided_slice %269 {offsets = [0, 0, 56], sizes = [4, 1, 16], strides = [1, 1, 1]} : vector<4x1x72xf32> to vector<4x1x16xf32>
    %378 = vector.shape_cast %265 : vector<8x32xbf16> to vector<1x8x32xbf16>
    %379 = vector.shape_cast %378 : vector<1x8x32xbf16> to vector<1x8x32xbf16>
    %380 = vector.broadcast %379 : vector<1x8x32xbf16> to vector<4x8x32xbf16>
    "tpu.trace_start"() <{level = 10 : i32, message = "hsd,hdf->hsf"}> : () -> ()
    %cst_140 = arith.constant dense<0.000000e+00> : vector<4x8x16xf32>
    %381 = tpu.matmul %380, %376, %cst_140 {dimension_numbers = #tpu.dot_dimension_numbers<[2], [1], [1], [2], [0, 0, 0, 1, 1, 2], [0], [0]>} : vector<4x8x32xbf16>, vector<4x32x16xbf16>, vector<4x8x16xf32> -> vector<4x8x16xf32>
    "tpu.trace_stop"() : () -> ()
    %382 = vector.broadcast %377 : vector<4x1x16xf32> to vector<4x8x16xf32>
    %383 = arith.addf %381, %382 : vector<4x8x16xf32>
    %384 = vector.extract_strided_slice %383 {offsets = [0, 0, 0], sizes = [4, 8, 8], strides = [1, 1, 1]} : vector<4x8x16xf32> to vector<4x8x8xf32>
    %385 = vector.extract_strided_slice %383 {offsets = [0, 0, 8], sizes = [4, 8, 8], strides = [1, 1, 1]} : vector<4x8x16xf32> to vector<4x8x8xf32>
    %386 = vector.extract_strided_slice %271 {offsets = [0, 0, 64], sizes = [4, 8, 32], strides = [1, 1, 1]} : vector<4x8x96xbf16> to vector<4x8x32xbf16>
    %387 = vector.extract_strided_slice %277 {offsets = [12, 0], sizes = [1, 32], strides = [1, 1]} : vector<17x128xf32> to vector<1x32xf32>
    %388 = arith.truncf %375 : vector<4x8x8xf32> to vector<4x8x8xbf16>
    %389 = arith.truncf %384 : vector<4x8x8xf32> to vector<4x8x8xbf16>
    "tpu.trace_start"() <{level = 10 : i32, message = "hqd,hkd->hqk"}> : () -> ()
    %cst_141 = arith.constant dense<0.000000e+00> : vector<4x8x8xf32>
    %390 = tpu.matmul %388, %389, %cst_141 {dimension_numbers = #tpu.dot_dimension_numbers<[2], [2], [1], [1], [0, 0, 0, 1, 1, 1], [0], [0]>} : vector<4x8x8xbf16>, vector<4x8x8xbf16>, vector<4x8x8xf32> -> vector<4x8x8xf32>
    "tpu.trace_stop"() : () -> ()
    %cst_142 = arith.constant 0.353553385 : f32
    %391 = vector.broadcast %cst_142 : f32 to vector<4x8x8xf32>
    %392 = arith.mulf %390, %391 : vector<4x8x8xf32>
    %393 = vector.shape_cast %5 : vector<1x8xf32> to vector<1x1x8xf32>
    %394 = vector.broadcast %393 : vector<1x1x8xf32> to vector<4x8x8xf32>
    %395 = arith.addf %392, %394 : vector<4x8x8xf32>
    %cst_143 = arith.constant dense<0xFF800000> : vector<4x8xf32>
    %396 = vector.multi_reduction <maximumf>, %395, %cst_143 [2] : vector<4x8x8xf32> to vector<4x8xf32>
    %397 = vector.shape_cast %396 : vector<4x8xf32> to vector<4x8x1xf32>
    %398 = vector.broadcast %397 : vector<4x8x1xf32> to vector<4x8x8xf32>
    %399 = arith.subf %395, %398 : vector<4x8x8xf32>
    %400 = math.exp %399 : vector<4x8x8xf32>
    %cst_144 = arith.constant dense<0.000000e+00> : vector<4x8xf32>
    %401 = vector.multi_reduction <add>, %400, %cst_144 [2] : vector<4x8x8xf32> to vector<4x8xf32>
    %402 = vector.shape_cast %401 : vector<4x8xf32> to vector<4x8x1xf32>
    %403 = tpu.reciprocal %402 {approx = true} : vector<4x8x1xf32> -> vector<4x8x1xf32>
    %404 = vector.broadcast %403 : vector<4x8x1xf32> to vector<4x8x8xf32>
    %405 = arith.mulf %400, %404 : vector<4x8x8xf32>
    %406 = arith.truncf %405 : vector<4x8x8xf32> to vector<4x8x8xbf16>
    %407 = arith.truncf %385 : vector<4x8x8xf32> to vector<4x8x8xbf16>
    "tpu.trace_start"() <{level = 10 : i32, message = "hqk,hkd->hqd"}> : () -> ()
    %cst_145 = arith.constant dense<0.000000e+00> : vector<4x8x8xf32>
    %408 = tpu.matmul %406, %407, %cst_145 {dimension_numbers = #tpu.dot_dimension_numbers<[2], [1], [1], [2], [0, 0, 0, 1, 1, 2], [0], [0]>} : vector<4x8x8xbf16>, vector<4x8x8xbf16>, vector<4x8x8xf32> -> vector<4x8x8xf32>
    "tpu.trace_stop"() : () -> ()
    %409 = arith.truncf %408 : vector<4x8x8xf32> to vector<4x8x8xbf16>
    "tpu.trace_start"() <{level = 10 : i32, message = "hqd,hde->hqe"}> : () -> ()
    %cst_146 = arith.constant dense<0.000000e+00> : vector<4x8x32xf32>
    %410 = tpu.matmul %409, %386, %cst_146 {dimension_numbers = #tpu.dot_dimension_numbers<[2], [1], [1], [2], [0, 0, 0, 1, 1, 2], [0], [0]>} : vector<4x8x8xbf16>, vector<4x8x32xbf16>, vector<4x8x32xf32> -> vector<4x8x32xf32>
    "tpu.trace_stop"() : () -> ()
    %cst_147 = arith.constant dense<0.000000e+00> : vector<8x32xf32>
    %411 = vector.multi_reduction <add>, %410, %cst_147 [0] : vector<4x8x32xf32> to vector<8x32xf32>
    %412 = vector.broadcast %387 : vector<1x32xf32> to vector<8x32xf32>
    %413 = arith.addf %411, %412 : vector<8x32xf32>
    %414 = arith.addf %342, %413 : vector<8x32xf32>
    %415 = vector.extract_strided_slice %277 {offsets = [13, 0], sizes = [1, 32], strides = [1, 1]} : vector<17x128xf32> to vector<1x32xf32>
    %416 = vector.extract_strided_slice %277 {offsets = [14, 0], sizes = [1, 32], strides = [1, 1]} : vector<17x128xf32> to vector<1x32xf32>
    %cst_148 = arith.constant dense<0.000000e+00> : vector<8xf32>
    %417 = vector.multi_reduction <add>, %414, %cst_148 [1] : vector<8x32xf32> to vector<8xf32>
    %418 = vector.shape_cast %417 : vector<8xf32> to vector<8x1xf32>
    %cst_149 = arith.constant 3.200000e+01 : f32
    %419 = vector.broadcast %cst_149 : f32 to vector<8x1xf32>
    %420 = arith.divf %418, %419 : vector<8x1xf32>
    %421 = vector.broadcast %420 : vector<8x1xf32> to vector<8x32xf32>
    %422 = arith.subf %414, %421 : vector<8x32xf32>
    %423 = arith.mulf %422, %422 : vector<8x32xf32>
    %cst_150 = arith.constant dense<0.000000e+00> : vector<8xf32>
    %424 = vector.multi_reduction <add>, %423, %cst_150 [1] : vector<8x32xf32> to vector<8xf32>
    %425 = vector.shape_cast %424 : vector<8xf32> to vector<8x1xf32>
    %cst_151 = arith.constant 3.100000e+01 : f32
    %426 = vector.broadcast %cst_151 : f32 to vector<8x1xf32>
    %427 = arith.divf %425, %426 : vector<8x1xf32>
    %428 = vector.broadcast %420 : vector<8x1xf32> to vector<8x32xf32>
    %429 = arith.subf %414, %428 : vector<8x32xf32>
    %430 = vector.broadcast %415 : vector<1x32xf32> to vector<8x32xf32>
    %431 = arith.mulf %430, %429 : vector<8x32xf32>
    %432 = math.sqrt %427 : vector<8x1xf32>
    %cst_152 = arith.constant 9.99999997E-7 : f32
    %433 = vector.broadcast %cst_152 : f32 to vector<8x1xf32>
    %434 = arith.addf %432, %433 : vector<8x1xf32>
    %435 = vector.broadcast %434 : vector<8x1xf32> to vector<8x32xf32>
    %436 = arith.divf %431, %435 : vector<8x32xf32>
    %437 = vector.broadcast %416 : vector<1x32xf32> to vector<8x32xf32>
    %438 = arith.addf %436, %437 : vector<8x32xf32>
    %439 = arith.truncf %438 : vector<8x32xf32> to vector<8x32xbf16>
    %440 = vector.extract_strided_slice %273 {offsets = [0, 64], sizes = [32, 64], strides = [1, 1]} : vector<32x128xbf16> to vector<32x64xbf16>
    %cst_153 = arith.constant dense<0.000000e+00> : vector<8x64xf32>
    %441 = tpu.matmul %439, %440, %cst_153 {dimension_numbers = #tpu.dot_dimension_numbers<[1], [0], [0], [1], [0, 0, 1, 1], [], []>} : vector<8x32xbf16>, vector<32x64xbf16>, vector<8x64xf32> -> vector<8x64xf32>
    %442 = vector.extract_strided_slice %277 {offsets = [15, 0], sizes = [1, 64], strides = [1, 1]} : vector<17x128xf32> to vector<1x64xf32>
    %443 = vector.broadcast %442 : vector<1x64xf32> to vector<8x64xf32>
    %444 = arith.addf %441, %443 : vector<8x64xf32>
    %cst_154 = arith.constant 0.000000e+00 : f32
    %445 = vector.broadcast %cst_154 : f32 to vector<8x64xf32>
    %446 = arith.maximumf %444, %445 : vector<8x64xf32>
    %447 = arith.truncf %446 : vector<8x64xf32> to vector<8x64xbf16>
    %448 = vector.extract_strided_slice %275 {offsets = [0, 32], sizes = [64, 32], strides = [1, 1]} : vector<64x64xbf16> to vector<64x32xbf16>
    %cst_155 = arith.constant dense<0.000000e+00> : vector<8x32xf32>
    %449 = tpu.matmul %447, %448, %cst_155 {dimension_numbers = #tpu.dot_dimension_numbers<[1], [0], [0], [1], [0, 0, 1, 1], [], []>} : vector<8x64xbf16>, vector<64x32xbf16>, vector<8x32xf32> -> vector<8x32xf32>
    %450 = arith.addf %414, %449 : vector<8x32xf32>
    %451 = vector.extract_strided_slice %277 {offsets = [16, 0], sizes = [1, 32], strides = [1, 1]} : vector<17x128xf32> to vector<1x32xf32>
    %452 = vector.broadcast %451 : vector<1x32xf32> to vector<8x32xf32>
    %453 = arith.addf %450, %452 : vector<8x32xf32>
    %c1_156 = arith.constant 1 : index
    %c0_157 = arith.constant 0 : index
    %c0_158 = arith.constant 0 : index
    %c0_159 = arith.constant 0 : index
    %454 = vector.load %arg5[%c1_156, %c0_157, %c0_158, %c0_159] : memref<2x4x32x72xbf16, #tpu.memory_space<vmem>>, vector<1x4x32x72xbf16>
    %455 = vector.shape_cast %454 : vector<1x4x32x72xbf16> to vector<4x32x72xbf16>
    %c1_160 = arith.constant 1 : index
    %c0_161 = arith.constant 0 : index
    %c0_162 = arith.constant 0 : index
    %c0_163 = arith.constant 0 : index
    %456 = vector.load %arg6[%c1_160, %c0_161, %c0_162, %c0_163] : memref<2x4x1x72xf32, #tpu.memory_space<vmem>>, vector<1x4x1x72xf32>
    %457 = vector.shape_cast %456 : vector<1x4x1x72xf32> to vector<4x1x72xf32>
    %c1_164 = arith.constant 1 : index
    %c0_165 = arith.constant 0 : index
    %c0_166 = arith.constant 0 : index
    %c0_167 = arith.constant 0 : index
    %458 = vector.load %arg7[%c1_164, %c0_165, %c0_166, %c0_167] : memref<2x4x8x96xbf16, #tpu.memory_space<vmem>>, vector<1x4x8x96xbf16>
    %459 = vector.shape_cast %458 : vector<1x4x8x96xbf16> to vector<4x8x96xbf16>
    %c1_168 = arith.constant 1 : index
    %c0_169 = arith.constant 0 : index
    %c0_170 = arith.constant 0 : index
    %460 = vector.load %arg8[%c1_168, %c0_169, %c0_170] : memref<2x32x128xbf16, #tpu.memory_space<vmem>>, vector<1x32x128xbf16>
    %461 = vector.shape_cast %460 : vector<1x32x128xbf16> to vector<32x128xbf16>
    %c1_171 = arith.constant 1 : index
    %c0_172 = arith.constant 0 : index
    %c0_173 = arith.constant 0 : index
    %462 = vector.load %arg9[%c1_171, %c0_172, %c0_173] : memref<2x64x64xbf16, #tpu.memory_space<vmem>>, vector<1x64x64xbf16>
    %463 = vector.shape_cast %462 : vector<1x64x64xbf16> to vector<64x64xbf16>
    %c1_174 = arith.constant 1 : index
    %c0_175 = arith.constant 0 : index
    %c0_176 = arith.constant 0 : index
    %464 = vector.load %arg10[%c1_174, %c0_175, %c0_176] : memref<2x17x128xf32, #tpu.memory_space<vmem>>, vector<1x17x128xf32>
    %465 = vector.shape_cast %464 : vector<1x17x128xf32> to vector<17x128xf32>
    %466 = vector.extract_strided_slice %465 {offsets = [7, 0], sizes = [1, 32], strides = [1, 1]} : vector<17x128xf32> to vector<1x32xf32>
    %467 = vector.extract_strided_slice %465 {offsets = [8, 0], sizes = [1, 32], strides = [1, 1]} : vector<17x128xf32> to vector<1x32xf32>
    %cst_177 = arith.constant dense<0.000000e+00> : vector<8xf32>
    %468 = vector.multi_reduction <add>, %453, %cst_177 [1] : vector<8x32xf32> to vector<8xf32>
    %469 = vector.shape_cast %468 : vector<8xf32> to vector<8x1xf32>
    %cst_178 = arith.constant 3.200000e+01 : f32
    %470 = vector.broadcast %cst_178 : f32 to vector<8x1xf32>
    %471 = arith.divf %469, %470 : vector<8x1xf32>
    %472 = vector.broadcast %471 : vector<8x1xf32> to vector<8x32xf32>
    %473 = arith.subf %453, %472 : vector<8x32xf32>
    %474 = arith.mulf %473, %473 : vector<8x32xf32>
    %cst_179 = arith.constant dense<0.000000e+00> : vector<8xf32>
    %475 = vector.multi_reduction <add>, %474, %cst_179 [1] : vector<8x32xf32> to vector<8xf32>
    %476 = vector.shape_cast %475 : vector<8xf32> to vector<8x1xf32>
    %cst_180 = arith.constant 3.100000e+01 : f32
    %477 = vector.broadcast %cst_180 : f32 to vector<8x1xf32>
    %478 = arith.divf %476, %477 : vector<8x1xf32>
    %479 = vector.broadcast %471 : vector<8x1xf32> to vector<8x32xf32>
    %480 = arith.subf %453, %479 : vector<8x32xf32>
    %481 = vector.broadcast %466 : vector<1x32xf32> to vector<8x32xf32>
    %482 = arith.mulf %481, %480 : vector<8x32xf32>
    %483 = math.sqrt %478 : vector<8x1xf32>
    %cst_181 = arith.constant 9.99999997E-7 : f32
    %484 = vector.broadcast %cst_181 : f32 to vector<8x1xf32>
    %485 = arith.addf %483, %484 : vector<8x1xf32>
    %486 = vector.broadcast %485 : vector<8x1xf32> to vector<8x32xf32>
    %487 = arith.divf %482, %486 : vector<8x32xf32>
    %488 = vector.broadcast %467 : vector<1x32xf32> to vector<8x32xf32>
    %489 = arith.addf %487, %488 : vector<8x32xf32>
    %490 = arith.truncf %489 : vector<8x32xf32> to vector<8x32xbf16>
    %491 = vector.extract_strided_slice %455 {offsets = [0, 0, 24], sizes = [4, 32, 24], strides = [1, 1, 1]} : vector<4x32x72xbf16> to vector<4x32x24xbf16>
    %492 = vector.extract_strided_slice %457 {offsets = [0, 0, 24], sizes = [4, 1, 24], strides = [1, 1, 1]} : vector<4x1x72xf32> to vector<4x1x24xf32>
    %493 = vector.shape_cast %490 : vector<8x32xbf16> to vector<1x8x32xbf16>
    %494 = vector.shape_cast %493 : vector<1x8x32xbf16> to vector<1x8x32xbf16>
    %495 = vector.broadcast %494 : vector<1x8x32xbf16> to vector<4x8x32xbf16>
    "tpu.trace_start"() <{level = 10 : i32, message = "hsd,hdf->hsf"}> : () -> ()
    %cst_182 = arith.constant dense<0.000000e+00> : vector<4x8x24xf32>
    %496 = tpu.matmul %495, %491, %cst_182 {dimension_numbers = #tpu.dot_dimension_numbers<[2], [1], [1], [2], [0, 0, 0, 1, 1, 2], [0], [0]>} : vector<4x8x32xbf16>, vector<4x32x24xbf16>, vector<4x8x24xf32> -> vector<4x8x24xf32>
    "tpu.trace_stop"() : () -> ()
    %497 = vector.broadcast %492 : vector<4x1x24xf32> to vector<4x8x24xf32>
    %498 = arith.addf %496, %497 : vector<4x8x24xf32>
    %499 = vector.extract_strided_slice %498 {offsets = [0, 0, 0], sizes = [4, 8, 8], strides = [1, 1, 1]} : vector<4x8x24xf32> to vector<4x8x8xf32>
    %500 = vector.extract_strided_slice %498 {offsets = [0, 0, 8], sizes = [4, 8, 8], strides = [1, 1, 1]} : vector<4x8x24xf32> to vector<4x8x8xf32>
    %501 = vector.extract_strided_slice %498 {offsets = [0, 0, 16], sizes = [4, 8, 8], strides = [1, 1, 1]} : vector<4x8x24xf32> to vector<4x8x8xf32>
    %502 = vector.extract_strided_slice %459 {offsets = [0, 0, 32], sizes = [4, 8, 32], strides = [1, 1, 1]} : vector<4x8x96xbf16> to vector<4x8x32xbf16>
    %503 = vector.extract_strided_slice %465 {offsets = [9, 0], sizes = [1, 32], strides = [1, 1]} : vector<17x128xf32> to vector<1x32xf32>
    %504 = arith.truncf %499 : vector<4x8x8xf32> to vector<4x8x8xbf16>
    %505 = arith.truncf %500 : vector<4x8x8xf32> to vector<4x8x8xbf16>
    "tpu.trace_start"() <{level = 10 : i32, message = "hqd,hkd->hqk"}> : () -> ()
    %cst_183 = arith.constant dense<0.000000e+00> : vector<4x8x8xf32>
    %506 = tpu.matmul %504, %505, %cst_183 {dimension_numbers = #tpu.dot_dimension_numbers<[2], [2], [1], [1], [0, 0, 0, 1, 1, 1], [0], [0]>} : vector<4x8x8xbf16>, vector<4x8x8xbf16>, vector<4x8x8xf32> -> vector<4x8x8xf32>
    "tpu.trace_stop"() : () -> ()
    %cst_184 = arith.constant 0.353553385 : f32
    %507 = vector.broadcast %cst_184 : f32 to vector<4x8x8xf32>
    %508 = arith.mulf %506, %507 : vector<4x8x8xf32>
    %509 = vector.shape_cast %7 : vector<8x8xf32> to vector<1x8x8xf32>
    %510 = vector.broadcast %509 : vector<1x8x8xf32> to vector<4x8x8xf32>
    %511 = arith.addf %508, %510 : vector<4x8x8xf32>
    %cst_185 = arith.constant dense<0xFF800000> : vector<4x8xf32>
    %512 = vector.multi_reduction <maximumf>, %511, %cst_185 [2] : vector<4x8x8xf32> to vector<4x8xf32>
    %513 = vector.shape_cast %512 : vector<4x8xf32> to vector<4x8x1xf32>
    %514 = vector.broadcast %513 : vector<4x8x1xf32> to vector<4x8x8xf32>
    %515 = arith.subf %511, %514 : vector<4x8x8xf32>
    %516 = math.exp %515 : vector<4x8x8xf32>
    %cst_186 = arith.constant dense<0.000000e+00> : vector<4x8xf32>
    %517 = vector.multi_reduction <add>, %516, %cst_186 [2] : vector<4x8x8xf32> to vector<4x8xf32>
    %518 = vector.shape_cast %517 : vector<4x8xf32> to vector<4x8x1xf32>
    %519 = tpu.reciprocal %518 {approx = true} : vector<4x8x1xf32> -> vector<4x8x1xf32>
    %520 = vector.broadcast %519 : vector<4x8x1xf32> to vector<4x8x8xf32>
    %521 = arith.mulf %516, %520 : vector<4x8x8xf32>
    %522 = arith.truncf %521 : vector<4x8x8xf32> to vector<4x8x8xbf16>
    %523 = arith.truncf %501 : vector<4x8x8xf32> to vector<4x8x8xbf16>
    "tpu.trace_start"() <{level = 10 : i32, message = "hqk,hkd->hqd"}> : () -> ()
    %cst_187 = arith.constant dense<0.000000e+00> : vector<4x8x8xf32>
    %524 = tpu.matmul %522, %523, %cst_187 {dimension_numbers = #tpu.dot_dimension_numbers<[2], [1], [1], [2], [0, 0, 0, 1, 1, 2], [0], [0]>} : vector<4x8x8xbf16>, vector<4x8x8xbf16>, vector<4x8x8xf32> -> vector<4x8x8xf32>
    "tpu.trace_stop"() : () -> ()
    %525 = arith.truncf %524 : vector<4x8x8xf32> to vector<4x8x8xbf16>
    "tpu.trace_start"() <{level = 10 : i32, message = "hqd,hde->hqe"}> : () -> ()
    %cst_188 = arith.constant dense<0.000000e+00> : vector<4x8x32xf32>
    %526 = tpu.matmul %525, %502, %cst_188 {dimension_numbers = #tpu.dot_dimension_numbers<[2], [1], [1], [2], [0, 0, 0, 1, 1, 2], [0], [0]>} : vector<4x8x8xbf16>, vector<4x8x32xbf16>, vector<4x8x32xf32> -> vector<4x8x32xf32>
    "tpu.trace_stop"() : () -> ()
    %cst_189 = arith.constant dense<0.000000e+00> : vector<8x32xf32>
    %527 = vector.multi_reduction <add>, %526, %cst_189 [0] : vector<4x8x32xf32> to vector<8x32xf32>
    %528 = vector.broadcast %503 : vector<1x32xf32> to vector<8x32xf32>
    %529 = arith.addf %527, %528 : vector<8x32xf32>
    %530 = arith.addf %453, %529 : vector<8x32xf32>
    %531 = vector.extract_strided_slice %465 {offsets = [10, 0], sizes = [1, 32], strides = [1, 1]} : vector<17x128xf32> to vector<1x32xf32>
    %532 = vector.extract_strided_slice %465 {offsets = [11, 0], sizes = [1, 32], strides = [1, 1]} : vector<17x128xf32> to vector<1x32xf32>
    %cst_190 = arith.constant dense<0.000000e+00> : vector<8xf32>
    %533 = vector.multi_reduction <add>, %530, %cst_190 [1] : vector<8x32xf32> to vector<8xf32>
    %534 = vector.shape_cast %533 : vector<8xf32> to vector<8x1xf32>
    %cst_191 = arith.constant 3.200000e+01 : f32
    %535 = vector.broadcast %cst_191 : f32 to vector<8x1xf32>
    %536 = arith.divf %534, %535 : vector<8x1xf32>
    %537 = vector.broadcast %536 : vector<8x1xf32> to vector<8x32xf32>
    %538 = arith.subf %530, %537 : vector<8x32xf32>
    %539 = arith.mulf %538, %538 : vector<8x32xf32>
    %cst_192 = arith.constant dense<0.000000e+00> : vector<8xf32>
    %540 = vector.multi_reduction <add>, %539, %cst_192 [1] : vector<8x32xf32> to vector<8xf32>
    %541 = vector.shape_cast %540 : vector<8xf32> to vector<8x1xf32>
    %cst_193 = arith.constant 3.100000e+01 : f32
    %542 = vector.broadcast %cst_193 : f32 to vector<8x1xf32>
    %543 = arith.divf %541, %542 : vector<8x1xf32>
    %544 = vector.broadcast %536 : vector<8x1xf32> to vector<8x32xf32>
    %545 = arith.subf %530, %544 : vector<8x32xf32>
    %546 = vector.broadcast %531 : vector<1x32xf32> to vector<8x32xf32>
    %547 = arith.mulf %546, %545 : vector<8x32xf32>
    %548 = math.sqrt %543 : vector<8x1xf32>
    %cst_194 = arith.constant 9.99999997E-7 : f32
    %549 = vector.broadcast %cst_194 : f32 to vector<8x1xf32>
    %550 = arith.addf %548, %549 : vector<8x1xf32>
    %551 = vector.broadcast %550 : vector<8x1xf32> to vector<8x32xf32>
    %552 = arith.divf %547, %551 : vector<8x32xf32>
    %553 = vector.broadcast %532 : vector<1x32xf32> to vector<8x32xf32>
    %554 = arith.addf %552, %553 : vector<8x32xf32>
    %555 = arith.truncf %554 : vector<8x32xf32> to vector<8x32xbf16>
    %556 = vector.extract_strided_slice %455 {offsets = [0, 0, 48], sizes = [4, 32, 8], strides = [1, 1, 1]} : vector<4x32x72xbf16> to vector<4x32x8xbf16>
    %557 = vector.extract_strided_slice %457 {offsets = [0, 0, 48], sizes = [4, 1, 8], strides = [1, 1, 1]} : vector<4x1x72xf32> to vector<4x1x8xf32>
    %558 = vector.shape_cast %555 : vector<8x32xbf16> to vector<1x8x32xbf16>
    %559 = vector.shape_cast %558 : vector<1x8x32xbf16> to vector<1x8x32xbf16>
    %560 = vector.broadcast %559 : vector<1x8x32xbf16> to vector<4x8x32xbf16>
    "tpu.trace_start"() <{level = 10 : i32, message = "hsd,hdf->hsf"}> : () -> ()
    %cst_195 = arith.constant dense<0.000000e+00> : vector<4x8x8xf32>
    %561 = tpu.matmul %560, %556, %cst_195 {dimension_numbers = #tpu.dot_dimension_numbers<[2], [1], [1], [2], [0, 0, 0, 1, 1, 2], [0], [0]>} : vector<4x8x32xbf16>, vector<4x32x8xbf16>, vector<4x8x8xf32> -> vector<4x8x8xf32>
    "tpu.trace_stop"() : () -> ()
    %562 = vector.broadcast %557 : vector<4x1x8xf32> to vector<4x8x8xf32>
    %563 = arith.addf %561, %562 : vector<4x8x8xf32>
    %564 = vector.extract_strided_slice %455 {offsets = [0, 0, 56], sizes = [4, 32, 16], strides = [1, 1, 1]} : vector<4x32x72xbf16> to vector<4x32x16xbf16>
    %565 = vector.extract_strided_slice %457 {offsets = [0, 0, 56], sizes = [4, 1, 16], strides = [1, 1, 1]} : vector<4x1x72xf32> to vector<4x1x16xf32>
    %566 = vector.shape_cast %265 : vector<8x32xbf16> to vector<1x8x32xbf16>
    %567 = vector.shape_cast %566 : vector<1x8x32xbf16> to vector<1x8x32xbf16>
    %568 = vector.broadcast %567 : vector<1x8x32xbf16> to vector<4x8x32xbf16>
    "tpu.trace_start"() <{level = 10 : i32, message = "hsd,hdf->hsf"}> : () -> ()
    %cst_196 = arith.constant dense<0.000000e+00> : vector<4x8x16xf32>
    %569 = tpu.matmul %568, %564, %cst_196 {dimension_numbers = #tpu.dot_dimension_numbers<[2], [1], [1], [2], [0, 0, 0, 1, 1, 2], [0], [0]>} : vector<4x8x32xbf16>, vector<4x32x16xbf16>, vector<4x8x16xf32> -> vector<4x8x16xf32>
    "tpu.trace_stop"() : () -> ()
    %570 = vector.broadcast %565 : vector<4x1x16xf32> to vector<4x8x16xf32>
    %571 = arith.addf %569, %570 : vector<4x8x16xf32>
    %572 = vector.extract_strided_slice %571 {offsets = [0, 0, 0], sizes = [4, 8, 8], strides = [1, 1, 1]} : vector<4x8x16xf32> to vector<4x8x8xf32>
    %573 = vector.extract_strided_slice %571 {offsets = [0, 0, 8], sizes = [4, 8, 8], strides = [1, 1, 1]} : vector<4x8x16xf32> to vector<4x8x8xf32>
    %574 = vector.extract_strided_slice %459 {offsets = [0, 0, 64], sizes = [4, 8, 32], strides = [1, 1, 1]} : vector<4x8x96xbf16> to vector<4x8x32xbf16>
    %575 = vector.extract_strided_slice %465 {offsets = [12, 0], sizes = [1, 32], strides = [1, 1]} : vector<17x128xf32> to vector<1x32xf32>
    %576 = arith.truncf %563 : vector<4x8x8xf32> to vector<4x8x8xbf16>
    %577 = arith.truncf %572 : vector<4x8x8xf32> to vector<4x8x8xbf16>
    "tpu.trace_start"() <{level = 10 : i32, message = "hqd,hkd->hqk"}> : () -> ()
    %cst_197 = arith.constant dense<0.000000e+00> : vector<4x8x8xf32>
    %578 = tpu.matmul %576, %577, %cst_197 {dimension_numbers = #tpu.dot_dimension_numbers<[2], [2], [1], [1], [0, 0, 0, 1, 1, 1], [0], [0]>} : vector<4x8x8xbf16>, vector<4x8x8xbf16>, vector<4x8x8xf32> -> vector<4x8x8xf32>
    "tpu.trace_stop"() : () -> ()
    %cst_198 = arith.constant 0.353553385 : f32
    %579 = vector.broadcast %cst_198 : f32 to vector<4x8x8xf32>
    %580 = arith.mulf %578, %579 : vector<4x8x8xf32>
    %581 = vector.shape_cast %5 : vector<1x8xf32> to vector<1x1x8xf32>
    %582 = vector.broadcast %581 : vector<1x1x8xf32> to vector<4x8x8xf32>
    %583 = arith.addf %580, %582 : vector<4x8x8xf32>
    %cst_199 = arith.constant dense<0xFF800000> : vector<4x8xf32>
    %584 = vector.multi_reduction <maximumf>, %583, %cst_199 [2] : vector<4x8x8xf32> to vector<4x8xf32>
    %585 = vector.shape_cast %584 : vector<4x8xf32> to vector<4x8x1xf32>
    %586 = vector.broadcast %585 : vector<4x8x1xf32> to vector<4x8x8xf32>
    %587 = arith.subf %583, %586 : vector<4x8x8xf32>
    %588 = math.exp %587 : vector<4x8x8xf32>
    %cst_200 = arith.constant dense<0.000000e+00> : vector<4x8xf32>
    %589 = vector.multi_reduction <add>, %588, %cst_200 [2] : vector<4x8x8xf32> to vector<4x8xf32>
    %590 = vector.shape_cast %589 : vector<4x8xf32> to vector<4x8x1xf32>
    %591 = tpu.reciprocal %590 {approx = true} : vector<4x8x1xf32> -> vector<4x8x1xf32>
    %592 = vector.broadcast %591 : vector<4x8x1xf32> to vector<4x8x8xf32>
    %593 = arith.mulf %588, %592 : vector<4x8x8xf32>
    %594 = arith.truncf %593 : vector<4x8x8xf32> to vector<4x8x8xbf16>
    %595 = arith.truncf %573 : vector<4x8x8xf32> to vector<4x8x8xbf16>
    "tpu.trace_start"() <{level = 10 : i32, message = "hqk,hkd->hqd"}> : () -> ()
    %cst_201 = arith.constant dense<0.000000e+00> : vector<4x8x8xf32>
    %596 = tpu.matmul %594, %595, %cst_201 {dimension_numbers = #tpu.dot_dimension_numbers<[2], [1], [1], [2], [0, 0, 0, 1, 1, 2], [0], [0]>} : vector<4x8x8xbf16>, vector<4x8x8xbf16>, vector<4x8x8xf32> -> vector<4x8x8xf32>
    "tpu.trace_stop"() : () -> ()
    %597 = arith.truncf %596 : vector<4x8x8xf32> to vector<4x8x8xbf16>
    "tpu.trace_start"() <{level = 10 : i32, message = "hqd,hde->hqe"}> : () -> ()
    %cst_202 = arith.constant dense<0.000000e+00> : vector<4x8x32xf32>
    %598 = tpu.matmul %597, %574, %cst_202 {dimension_numbers = #tpu.dot_dimension_numbers<[2], [1], [1], [2], [0, 0, 0, 1, 1, 2], [0], [0]>} : vector<4x8x8xbf16>, vector<4x8x32xbf16>, vector<4x8x32xf32> -> vector<4x8x32xf32>
    "tpu.trace_stop"() : () -> ()
    %cst_203 = arith.constant dense<0.000000e+00> : vector<8x32xf32>
    %599 = vector.multi_reduction <add>, %598, %cst_203 [0] : vector<4x8x32xf32> to vector<8x32xf32>
    %600 = vector.broadcast %575 : vector<1x32xf32> to vector<8x32xf32>
    %601 = arith.addf %599, %600 : vector<8x32xf32>
    %602 = arith.addf %530, %601 : vector<8x32xf32>
    %603 = vector.extract_strided_slice %465 {offsets = [13, 0], sizes = [1, 32], strides = [1, 1]} : vector<17x128xf32> to vector<1x32xf32>
    %604 = vector.extract_strided_slice %465 {offsets = [14, 0], sizes = [1, 32], strides = [1, 1]} : vector<17x128xf32> to vector<1x32xf32>
    %cst_204 = arith.constant dense<0.000000e+00> : vector<8xf32>
    %605 = vector.multi_reduction <add>, %602, %cst_204 [1] : vector<8x32xf32> to vector<8xf32>
    %606 = vector.shape_cast %605 : vector<8xf32> to vector<8x1xf32>
    %cst_205 = arith.constant 3.200000e+01 : f32
    %607 = vector.broadcast %cst_205 : f32 to vector<8x1xf32>
    %608 = arith.divf %606, %607 : vector<8x1xf32>
    %609 = vector.broadcast %608 : vector<8x1xf32> to vector<8x32xf32>
    %610 = arith.subf %602, %609 : vector<8x32xf32>
    %611 = arith.mulf %610, %610 : vector<8x32xf32>
    %cst_206 = arith.constant dense<0.000000e+00> : vector<8xf32>
    %612 = vector.multi_reduction <add>, %611, %cst_206 [1] : vector<8x32xf32> to vector<8xf32>
    %613 = vector.shape_cast %612 : vector<8xf32> to vector<8x1xf32>
    %cst_207 = arith.constant 3.100000e+01 : f32
    %614 = vector.broadcast %cst_207 : f32 to vector<8x1xf32>
    %615 = arith.divf %613, %614 : vector<8x1xf32>
    %616 = vector.broadcast %608 : vector<8x1xf32> to vector<8x32xf32>
    %617 = arith.subf %602, %616 : vector<8x32xf32>
    %618 = vector.broadcast %603 : vector<1x32xf32> to vector<8x32xf32>
    %619 = arith.mulf %618, %617 : vector<8x32xf32>
    %620 = math.sqrt %615 : vector<8x1xf32>
    %cst_208 = arith.constant 9.99999997E-7 : f32
    %621 = vector.broadcast %cst_208 : f32 to vector<8x1xf32>
    %622 = arith.addf %620, %621 : vector<8x1xf32>
    %623 = vector.broadcast %622 : vector<8x1xf32> to vector<8x32xf32>
    %624 = arith.divf %619, %623 : vector<8x32xf32>
    %625 = vector.broadcast %604 : vector<1x32xf32> to vector<8x32xf32>
    %626 = arith.addf %624, %625 : vector<8x32xf32>
    %627 = arith.truncf %626 : vector<8x32xf32> to vector<8x32xbf16>
    %628 = vector.extract_strided_slice %461 {offsets = [0, 64], sizes = [32, 64], strides = [1, 1]} : vector<32x128xbf16> to vector<32x64xbf16>
    %cst_209 = arith.constant dense<0.000000e+00> : vector<8x64xf32>
    %629 = tpu.matmul %627, %628, %cst_209 {dimension_numbers = #tpu.dot_dimension_numbers<[1], [0], [0], [1], [0, 0, 1, 1], [], []>} : vector<8x32xbf16>, vector<32x64xbf16>, vector<8x64xf32> -> vector<8x64xf32>
    %630 = vector.extract_strided_slice %465 {offsets = [15, 0], sizes = [1, 64], strides = [1, 1]} : vector<17x128xf32> to vector<1x64xf32>
    %631 = vector.broadcast %630 : vector<1x64xf32> to vector<8x64xf32>
    %632 = arith.addf %629, %631 : vector<8x64xf32>
    %cst_210 = arith.constant 0.000000e+00 : f32
    %633 = vector.broadcast %cst_210 : f32 to vector<8x64xf32>
    %634 = arith.maximumf %632, %633 : vector<8x64xf32>
    %635 = arith.truncf %634 : vector<8x64xf32> to vector<8x64xbf16>
    %636 = vector.extract_strided_slice %463 {offsets = [0, 32], sizes = [64, 32], strides = [1, 1]} : vector<64x64xbf16> to vector<64x32xbf16>
    %cst_211 = arith.constant dense<0.000000e+00> : vector<8x32xf32>
    %637 = tpu.matmul %635, %636, %cst_211 {dimension_numbers = #tpu.dot_dimension_numbers<[1], [0], [0], [1], [0, 0, 1, 1], [], []>} : vector<8x64xbf16>, vector<64x32xbf16>, vector<8x32xf32> -> vector<8x32xf32>
    %638 = arith.addf %602, %637 : vector<8x32xf32>
    %639 = vector.extract_strided_slice %465 {offsets = [16, 0], sizes = [1, 32], strides = [1, 1]} : vector<17x128xf32> to vector<1x32xf32>
    %640 = vector.broadcast %639 : vector<1x32xf32> to vector<8x32xf32>
    %641 = arith.addf %638, %640 : vector<8x32xf32>
    %642 = vector.extract_strided_slice %8 {offsets = [2, 0], sizes = [1, 32], strides = [1, 1]} : vector<5x128xf32> to vector<1x32xf32>
    %643 = vector.extract_strided_slice %8 {offsets = [3, 0], sizes = [1, 32], strides = [1, 1]} : vector<5x128xf32> to vector<1x32xf32>
    %cst_212 = arith.constant dense<0.000000e+00> : vector<8xf32>
    %644 = vector.multi_reduction <add>, %641, %cst_212 [1] : vector<8x32xf32> to vector<8xf32>
    %645 = vector.shape_cast %644 : vector<8xf32> to vector<8x1xf32>
    %cst_213 = arith.constant 3.200000e+01 : f32
    %646 = vector.broadcast %cst_213 : f32 to vector<8x1xf32>
    %647 = arith.divf %645, %646 : vector<8x1xf32>
    %648 = vector.broadcast %647 : vector<8x1xf32> to vector<8x32xf32>
    %649 = arith.subf %641, %648 : vector<8x32xf32>
    %650 = arith.mulf %649, %649 : vector<8x32xf32>
    %cst_214 = arith.constant dense<0.000000e+00> : vector<8xf32>
    %651 = vector.multi_reduction <add>, %650, %cst_214 [1] : vector<8x32xf32> to vector<8xf32>
    %652 = vector.shape_cast %651 : vector<8xf32> to vector<8x1xf32>
    %cst_215 = arith.constant 3.100000e+01 : f32
    %653 = vector.broadcast %cst_215 : f32 to vector<8x1xf32>
    %654 = arith.divf %652, %653 : vector<8x1xf32>
    %655 = vector.broadcast %647 : vector<8x1xf32> to vector<8x32xf32>
    %656 = arith.subf %641, %655 : vector<8x32xf32>
    %657 = vector.broadcast %642 : vector<1x32xf32> to vector<8x32xf32>
    %658 = arith.mulf %657, %656 : vector<8x32xf32>
    %659 = math.sqrt %654 : vector<8x1xf32>
    %cst_216 = arith.constant 9.99999997E-7 : f32
    %660 = vector.broadcast %cst_216 : f32 to vector<8x1xf32>
    %661 = arith.addf %659, %660 : vector<8x1xf32>
    %662 = vector.broadcast %661 : vector<8x1xf32> to vector<8x32xf32>
    %663 = arith.divf %658, %662 : vector<8x32xf32>
    %664 = vector.broadcast %643 : vector<1x32xf32> to vector<8x32xf32>
    %665 = arith.addf %663, %664 : vector<8x32xf32>
    %666 = arith.truncf %665 : vector<8x32xf32> to vector<8x32xbf16>
    %c0_217 = arith.constant 0 : index
    %c0_218 = arith.constant 0 : index
    %667 = vector.load %arg12[%c0_217, %c0_218] : memref<32x128xbf16, #tpu.memory_space<vmem>>, vector<32x128xbf16>
    %cst_219 = arith.constant dense<0.000000e+00> : vector<8x128xf32>
    %668 = tpu.matmul %666, %667, %cst_219 {dimension_numbers = #tpu.dot_dimension_numbers<[1], [0], [0], [1], [0, 0, 1, 1], [], []>} : vector<8x32xbf16>, vector<32x128xbf16>, vector<8x128xf32> -> vector<8x128xf32>
    %669 = vector.extract_strided_slice %8 {offsets = [4, 0], sizes = [1, 128], strides = [1, 1]} : vector<5x128xf32> to vector<1x128xf32>
    %670 = vector.broadcast %669 : vector<1x128xf32> to vector<8x128xf32>
    %671 = arith.addf %668, %670 : vector<8x128xf32>
    %c0_220 = arith.constant 0 : index
    %c0_221 = arith.constant 0 : index
    %c0_222 = arith.constant 0 : index
    %672 = vector.load %arg13[%c0_220, %c0_221, %c0_222] : memref<1x8x128xf32, #tpu.memory_space<vmem>>, vector<1x8x128xf32>
    %673 = vector.shape_cast %672 : vector<1x8x128xf32> to vector<8x128xf32>
    %674 = vector.shape_cast %671 : vector<8x128xf32> to vector<1x8x128xf32>
    tpu.vector_store %arg13[%c0_220, %c0_221, %c0_222], %674 {strides = array<i32>} : memref<1x8x128xf32, #tpu.memory_space<vmem>>, vector<1x8x128xf32>,
    return
  }
  func.func @transform_0(%arg0: i32) -> (i32, i32, i32) {
    %c0_i32 = arith.constant 0 : i32
    %c0_i32_0 = arith.constant 0 : i32
    %c0_i32_1 = arith.constant 0 : i32
    return %arg0, %c0_i32, %c0_i32_0 : i32, i32, i32
  }
  func.func @transform_1(%arg0: i32) -> (i32, i32, i32) {
    %c0_i32 = arith.constant 0 : i32
    %c0_i32_0 = arith.constant 0 : i32
    %c0_i32_1 = arith.constant 0 : i32
    return %arg0, %c0_i32, %c0_i32_0 : i32, i32, i32
  }
  func.func @transform_2(%arg0: i32) -> (i32, i32, i32) {
    %c0_i32 = arith.constant 0 : i32
    %c0_i32_0 = arith.constant 0 : i32
    %c0_i32_1 = arith.constant 0 : i32
    return %arg0, %c0_i32, %c0_i32_0 : i32, i32, i32
  }
  func.func @transform_3(%arg0: i32) -> (i32, i32, i32) {
    %c0_i32 = arith.constant 0 : i32
    %c0_i32_0 = arith.constant 0 : i32
    %c0_i32_1 = arith.constant 0 : i32
    return %arg0, %c0_i32, %c0_i32_0 : i32, i32, i32
  }
  func.func @transform_4(%arg0: i32) -> (i32, i32, i32, i32) {
    %c0_i32 = arith.constant 0 : i32
    %c0_i32_0 = arith.constant 0 : i32
    %c0_i32_1 = arith.constant 0 : i32
    %c0_i32_2 = arith.constant 0 : i32
    %c0_i32_3 = arith.constant 0 : i32
    return %c0_i32, %c0_i32_0, %c0_i32_1, %c0_i32_2 : i32, i32, i32, i32
  }
  func.func @transform_5(%arg0: i32) -> (i32, i32, i32, i32) {
    %c0_i32 = arith.constant 0 : i32
    %c0_i32_0 = arith.constant 0 : i32
    %c0_i32_1 = arith.constant 0 : i32
    %c0_i32_2 = arith.constant 0 : i32
    %c0_i32_3 = arith.constant 0 : i32
    return %c0_i32, %c0_i32_0, %c0_i32_1, %c0_i32_2 : i32, i32, i32, i32
  }
  func.func @transform_6(%arg0: i32) -> (i32, i32, i32, i32) {
    %c0_i32 = arith.constant 0 : i32
    %c0_i32_0 = arith.constant 0 : i32
    %c0_i32_1 = arith.constant 0 : i32
    %c0_i32_2 = arith.constant 0 : i32
    %c0_i32_3 = arith.constant 0 : i32
    return %c0_i32, %c0_i32_0, %c0_i32_1, %c0_i32_2 : i32, i32, i32, i32
  }
  func.func @transform_7(%arg0: i32) -> (i32, i32, i32) {
    %c0_i32 = arith.constant 0 : i32
    %c0_i32_0 = arith.constant 0 : i32
    %c0_i32_1 = arith.constant 0 : i32
    %c0_i32_2 = arith.constant 0 : i32
    return %c0_i32, %c0_i32_0, %c0_i32_1 : i32, i32, i32
  }
  func.func @transform_8(%arg0: i32) -> (i32, i32, i32) {
    %c0_i32 = arith.constant 0 : i32
    %c0_i32_0 = arith.constant 0 : i32
    %c0_i32_1 = arith.constant 0 : i32
    %c0_i32_2 = arith.constant 0 : i32
    return %c0_i32, %c0_i32_0, %c0_i32_1 : i32, i32, i32
  }
  func.func @transform_9(%arg0: i32) -> (i32, i32, i32) {
    %c0_i32 = arith.constant 0 : i32
    %c0_i32_0 = arith.constant 0 : i32
    %c0_i32_1 = arith.constant 0 : i32
    %c0_i32_2 = arith.constant 0 : i32
    return %c0_i32, %c0_i32_0, %c0_i32_1 : i32, i32, i32
  }
  func.func @transform_10(%arg0: i32) -> (i32, i32) {
    %c0_i32 = arith.constant 0 : i32
    %c0_i32_0 = arith.constant 0 : i32
    %c0_i32_1 = arith.constant 0 : i32
    return %c0_i32, %c0_i32_0 : i32, i32
  }
  func.func @transform_11(%arg0: i32) -> (i32, i32) {
    %c0_i32 = arith.constant 0 : i32
    %c0_i32_0 = arith.constant 0 : i32
    %c0_i32_1 = arith.constant 0 : i32
    return %c0_i32, %c0_i32_0 : i32, i32
  }
  func.func @transform_12(%arg0: i32) -> (i32, i32, i32) {
    %c0_i32 = arith.constant 0 : i32
    %c0_i32_0 = arith.constant 0 : i32
    %c0_i32_1 = arith.constant 0 : i32
    return %arg0, %c0_i32, %c0_i32_0 : i32, i32, i32
  }
}

</mosaic_0001>

<llo_original>
// kernel: encoder_decoder_forward.1
$region0: #{encoder_decoder_forward.1}
  #allocation0 [shape = 'u32[]', space=smem, size = 0x4, offset = 0x4, fixed_abs, tag = 'smem constant byte address 0x4 - core index']
  #allocation1 [shape = 'u32[144,128]{1,0:T(1,128)}', space=vmem, size = 0x12000, scoped, tag = 'internal scratch']
  %s0 = inlined_call_operand.vmem [shape: f32[2,8,32], index: 0, kind: input, shape index: {}]
  %s1 = inlined_call_operand.vmem [shape: f32[2,8,32], index: 1, kind: input, shape index: {}]
  %s2 = inlined_call_operand.vmem [shape: f32[2,1,8], index: 2, kind: input, shape index: {}]
  %s3 = inlined_call_operand.vmem [shape: f32[2,8,8], index: 3, kind: input, shape index: {}]
  %s4 = inlined_call_operand.vmem [shape: bf16[2,4,32,72], index: 4, kind: input, shape index: {}]
  %s5 = inlined_call_operand.vmem [shape: f32[2,4,1,72], index: 5, kind: input, shape index: {}]
  %s6 = inlined_call_operand.vmem [shape: bf16[2,4,8,96], index: 6, kind: input, shape index: {}]
  %s7 = inlined_call_operand.vmem [shape: bf16[2,32,128], index: 7, kind: input, shape index: {}]
  %s8 = inlined_call_operand.vmem [shape: bf16[2,64,64], index: 8, kind: input, shape index: {}]
  %s9 = inlined_call_operand.vmem [shape: f32[2,17,128], index: 9, kind: input, shape index: {}]
  %s10 = inlined_call_operand.vmem [shape: f32[5,128], index: 10, kind: input, shape index: {}]
  %s11 = inlined_call_operand.vmem [shape: bf16[32,128], index: 11, kind: input, shape index: {}]
  %s12 = inlined_call_operand.vmem [shape: f32[2,8,128], index: 12, kind: output, shape index: {}]
  %s13 = sld [smem:[#allocation0]]
  $region81: #{encoder_decoder_forward.1} parent=0
    _
  %s15 = ssub.s32 1, %s13
  %s16 = scalar_select 0, %s15, %s13
  loop: start=0, step=1, limit=4
  $region2: #{encoder_decoder_forward.1} parent=0 // loop_pre_header
    _
  $region3: #{encoder_decoder_forward.1} parent=0 // loop_header
    %s18 = sphi 0, %s22
    %p19 = scmp.ge.s32.totalorder %s18, 4
    %s28 = sphi 0, %s30
    %s31 = sphi 0, %s28
    %s32 = sphi 0, %s31
    %s48 = sphi 0, %s32
    %s54 = sphi 0, %s56
    %s57 = sphi 0, %s54
    %s58 = sphi 0, %s57
    %s74 = sphi 0, %s58
    %s80 = sphi 0, %s82
    %s83 = sphi 0, %s80
    %s84 = sphi 0, %s83
    %s100 = sphi 0, %s84
    %s106 = sphi 0, %s108
    %s109 = sphi 0, %s106
    %s110 = sphi 0, %s109
    %s126 = sphi 0, %s110
    %s130 = sphi 0, %s130
    %s132 = sphi 0, %s130
    %s133 = sphi 0, %s132
    %s147 = sphi 0, %s133
    %s151 = sphi 0, %s151
    %s153 = sphi 0, %s151
    %s154 = sphi 0, %s153
    %s168 = sphi 0, %s154
    %s172 = sphi 0, %s172
    %s174 = sphi 0, %s172
    %s175 = sphi 0, %s174
    %s189 = sphi 0, %s175
    %s193 = sphi 0, %s193
    %s195 = sphi 0, %s193
    %s196 = sphi 0, %s195
    %s210 = sphi 0, %s196
    %s214 = sphi 0, %s214
    %s216 = sphi 0, %s214
    %s217 = sphi 0, %s216
    %s231 = sphi 0, %s217
    %s235 = sphi 0, %s235
    %s237 = sphi 0, %s235
    %s238 = sphi 0, %s237
    %s252 = sphi 0, %s238
    %s256 = sphi 0, %s256
    %s258 = sphi 0, %s256
    %s259 = sphi 0, %s258
    %s273 = sphi 0, %s259
    %s277 = sphi 0, %s277
    %s279 = sphi 0, %s277
    %s280 = sphi 0, %s279
    %s294 = sphi 0, %s280
    %s300 = sphi 0, %s302
    %s303 = sphi 0, %s300
    %s304 = sphi 0, %s303
    %s320 = sphi 0, %s304
  $region4: #{encoder_decoder_forward.1} parent=0 // loop_header_branch
    %21 = sbr.rel (%p19) target = $region8
  $region5: #{encoder_decoder_forward.1} parent=0 // loop_body
    %s23 = ssub.s32 %s18, 1
    %s24 = ssub.s32 %s18, 2
    %s25 = sadd.s32 %s18, 1
    %s26 = ssub.s32 %s18, %s25
    %p27 = scmp.eq.s32.totalorder %s26, 0
    %s29 = sadd.s32 %s28, 1
    %s30 = scalar_select %p27, %s28, %s29
    %p33 = pneg %p27
    %p34 = scmp.eq.s32.totalorder %s18, 1
    %p35 = por %p33, %p34
    %p36 = scmp.ne.s32.totalorder %s28, %s31
    %p37 = scmp.eq.s32.totalorder %s18, 0
    %p38 = por %p36, %p37
    %p39 = scmp.ne.s32.totalorder %s28, %s31
    %p40 = scmp.eq.s32.totalorder %s23, 1
    %p41 = por %p39, %p40
    %p42 = scmp.ne.s32.totalorder %s31, %s32
    %p43 = scmp.eq.s32.totalorder %s23, 0
    %p44 = por %p42, %p43
    %p45 = scmp.ne.s32.totalorder %s31, %s32
    %p46 = scmp.eq.s32.totalorder %s24, 1
    %p47 = por %p45, %p46
    %p49 = scmp.ne.s32.totalorder %s32, %s48
    %p50 = scmp.eq.s32.totalorder %s24, 0
    %p51 = por %p49, %p50
    %s52 = ssub.s32 %s18, %s25
    %p53 = scmp.eq.s32.totalorder %s52, 0
    %s55 = sadd.s32 %s54, 1
    %s56 = scalar_select %p53, %s54, %s55
    %p59 = pneg %p53
    %p60 = scmp.eq.s32.totalorder %s18, 1
    %p61 = por %p59, %p60
    %p62 = scmp.ne.s32.totalorder %s54, %s57
    %p63 = scmp.eq.s32.totalorder %s18, 0
    %p64 = por %p62, %p63
    %p65 = scmp.ne.s32.totalorder %s54, %s57
    %p66 = scmp.eq.s32.totalorder %s23, 1
    %p67 = por %p65, %p66
    %p68 = scmp.ne.s32.totalorder %s57, %s58
    %p69 = scmp.eq.s32.totalorder %s23, 0
    %p70 = por %p68, %p69
    %p71 = scmp.ne.s32.totalorder %s57, %s58
    %p72 = scmp.eq.s32.totalorder %s24, 1
    %p73 = por %p71, %p72
    %p75 = scmp.ne.s32.totalorder %s58, %s74
    %p76 = scmp.eq.s32.totalorder %s24, 0
    %p77 = por %p75, %p76
    %s78 = ssub.s32 %s18, %s25
    %p79 = scmp.eq.s32.totalorder %s78, 0
    %s81 = sadd.s32 %s80, 1
    %s82 = scalar_select %p79, %s80, %s81
    %p85 = pneg %p79
    %p86 = scmp.eq.s32.totalorder %s18, 1
    %p87 = por %p85, %p86
    %p88 = scmp.ne.s32.totalorder %s80, %s83
    %p89 = scmp.eq.s32.totalorder %s18, 0
    %p90 = por %p88, %p89
    %p91 = scmp.ne.s32.totalorder %s80, %s83
    %p92 = scmp.eq.s32.totalorder %s23, 1
    %p93 = por %p91, %p92
    %p94 = scmp.ne.s32.totalorder %s83, %s84
    %p95 = scmp.eq.s32.totalorder %s23, 0
    %p96 = por %p94, %p95
    %p97 = scmp.ne.s32.totalorder %s83, %s84
    %p98 = scmp.eq.s32.totalorder %s24, 1
    %p99 = por %p97, %p98
    %p101 = scmp.ne.s32.totalorder %s84, %s100
    %p102 = scmp.eq.s32.totalorder %s24, 0
    %p103 = por %p101, %p102
    %s104 = ssub.s32 %s18, %s25
    %p105 = scmp.eq.s32.totalorder %s104, 0
    %s107 = sadd.s32 %s106, 1
    %s108 = scalar_select %p105, %s106, %s107
    %p111 = pneg %p105
    %p112 = scmp.eq.s32.totalorder %s18, 1
    %p113 = por %p111, %p112
    %p114 = scmp.ne.s32.totalorder %s106, %s109
    %p115 = scmp.eq.s32.totalorder %s18, 0
    %p116 = por %p114, %p115
    %p117 = scmp.ne.s32.totalorder %s106, %s109
    %p118 = scmp.eq.s32.totalorder %s23, 1
    %p119 = por %p117, %p118
    %p120 = scmp.ne.s32.totalorder %s109, %s110
    %p121 = scmp.eq.s32.totalorder %s23, 0
    %p122 = por %p120, %p121
    %p123 = scmp.ne.s32.totalorder %s109, %s110
    %p124 = scmp.eq.s32.totalorder %s24, 1
    %p125 = por %p123, %p124
    %p127 = scmp.ne.s32.totalorder %s110, %s126
    %p128 = scmp.eq.s32.totalorder %s24, 0
    %p129 = por %p127, %p128
    %s131 = sadd.s32 %s130, 1
    %p134 = scmp.eq.s32.totalorder %s18, 1
    %p135 = scmp.ne.s32.totalorder %s130, %s132
    %p136 = scmp.eq.s32.totalorder %s18, 0
    %p137 = por %p135, %p136
    %p138 = scmp.ne.s32.totalorder %s130, %s132
    %p139 = scmp.eq.s32.totalorder %s23, 1
    %p140 = por %p138, %p139
    %p141 = scmp.ne.s32.totalorder %s132, %s133
    %p142 = scmp.eq.s32.totalorder %s23, 0
    %p143 = por %p141, %p142
    %p144 = scmp.ne.s32.totalorder %s132, %s133
    %p145 = scmp.eq.s32.totalorder %s24, 1
    %p146 = por %p144, %p145
    %p148 = scmp.ne.s32.totalorder %s133, %s147
    %p149 = scmp.eq.s32.totalorder %s24, 0
    %p150 = por %p148, %p149
    %s152 = sadd.s32 %s151, 1
    %p155 = scmp.eq.s32.totalorder %s18, 1
    %p156 = scmp.ne.s32.totalorder %s151, %s153
    %p157 = scmp.eq.s32.totalorder %s18, 0
    %p158 = por %p156, %p157
    %p159 = scmp.ne.s32.totalorder %s151, %s153
    %p160 = scmp.eq.s32.totalorder %s23, 1
    %p161 = por %p159, %p160
    %p162 = scmp.ne.s32.totalorder %s153, %s154
    %p163 = scmp.eq.s32.totalorder %s23, 0
    %p164 = por %p162, %p163
    %p165 = scmp.ne.s32.totalorder %s153, %s154
    %p166 = scmp.eq.s32.totalorder %s24, 1
    %p167 = por %p165, %p166
    %p169 = scmp.ne.s32.totalorder %s154, %s168
    %p170 = scmp.eq.s32.totalorder %s24, 0
    %p171 = por %p169, %p170
    %s173 = sadd.s32 %s172, 1
    %p176 = scmp.eq.s32.totalorder %s18, 1
    %p177 = scmp.ne.s32.totalorder %s172, %s174
    %p178 = scmp.eq.s32.totalorder %s18, 0
    %p179 = por %p177, %p178
    %p180 = scmp.ne.s32.totalorder %s172, %s174
    %p181 = scmp.eq.s32.totalorder %s23, 1
    %p182 = por %p180, %p181
    %p183 = scmp.ne.s32.totalorder %s174, %s175
    %p184 = scmp.eq.s32.totalorder %s23, 0
    %p185 = por %p183, %p184
    %p186 = scmp.ne.s32.totalorder %s174, %s175
    %p187 = scmp.eq.s32.totalorder %s24, 1
    %p188 = por %p186, %p187
    %p190 = scmp.ne.s32.totalorder %s175, %s189
    %p191 = scmp.eq.s32.totalorder %s24, 0
    %p192 = por %p190, %p191
    %s194 = sadd.s32 %s193, 1
    %p197 = scmp.eq.s32.totalorder %s18, 1
    %p198 = scmp.ne.s32.totalorder %s193, %s195
    %p199 = scmp.eq.s32.totalorder %s18, 0
    %p200 = por %p198, %p199
    %p201 = scmp.ne.s32.totalorder %s193, %s195
    %p202 = scmp.eq.s32.totalorder %s23, 1
    %p203 = por %p201, %p202
    %p204 = scmp.ne.s32.totalorder %s195, %s196
    %p205 = scmp.eq.s32.totalorder %s23, 0
    %p206 = por %p204, %p205
    %p207 = scmp.ne.s32.totalorder %s195, %s196
    %p208 = scmp.eq.s32.totalorder %s24, 1
    %p209 = por %p207, %p208
    %p211 = scmp.ne.s32.totalorder %s196, %s210
    %p212 = scmp.eq.s32.totalorder %s24, 0
    %p213 = por %p211, %p212
    %s215 = sadd.s32 %s214, 1
    %p218 = scmp.eq.s32.totalorder %s18, 1
    %p219 = scmp.ne.s32.totalorder %s214, %s216
    %p220 = scmp.eq.s32.totalorder %s18, 0
    %p221 = por %p219, %p220
    %p222 = scmp.ne.s32.totalorder %s214, %s216
    %p223 = scmp.eq.s32.totalorder %s23, 1
    %p224 = por %p222, %p223
    %p225 = scmp.ne.s32.totalorder %s216, %s217
    %p226 = scmp.eq.s32.totalorder %s23, 0
    %p227 = por %p225, %p226
    %p228 = scmp.ne.s32.totalorder %s216, %s217
    %p229 = scmp.eq.s32.totalorder %s24, 1
    %p230 = por %p228, %p229
    %p232 = scmp.ne.s32.totalorder %s217, %s231
    %p233 = scmp.eq.s32.totalorder %s24, 0
    %p234 = por %p232, %p233
    %s236 = sadd.s32 %s235, 1
    %p239 = scmp.eq.s32.totalorder %s18, 1
    %p240 = scmp.ne.s32.totalorder %s235, %s237
    %p241 = scmp.eq.s32.totalorder %s18, 0
    %p242 = por %p240, %p241
    %p243 = scmp.ne.s32.totalorder %s235, %s237
    %p244 = scmp.eq.s32.totalorder %s23, 1
    %p245 = por %p243, %p244
    %p246 = scmp.ne.s32.totalorder %s237, %s238
    %p247 = scmp.eq.s32.totalorder %s23, 0
    %p248 = por %p246, %p247
    %p249 = scmp.ne.s32.totalorder %s237, %s238
    %p250 = scmp.eq.s32.totalorder %s24, 1
    %p251 = por %p249, %p250
    %p253 = scmp.ne.s32.totalorder %s238, %s252
    %p254 = scmp.eq.s32.totalorder %s24, 0
    %p255 = por %p253, %p254
    %s257 = sadd.s32 %s256, 1
    %p260 = scmp.eq.s32.totalorder %s18, 1
    %p261 = scmp.ne.s32.totalorder %s256, %s258
    %p262 = scmp.eq.s32.totalorder %s18, 0
    %p263 = por %p261, %p262
    %p264 = scmp.ne.s32.totalorder %s256, %s258
    %p265 = scmp.eq.s32.totalorder %s23, 1
    %p266 = por %p264, %p265
    %p267 = scmp.ne.s32.totalorder %s258, %s259
    %p268 = scmp.eq.s32.totalorder %s23, 0
    %p269 = por %p267, %p268
    %p270 = scmp.ne.s32.totalorder %s258, %s259
    %p271 = scmp.eq.s32.totalorder %s24, 1
    %p272 = por %p270, %p271
    %p274 = scmp.ne.s32.totalorder %s259, %s273
    %p275 = scmp.eq.s32.totalorder %s24, 0
    %p276 = por %p274, %p275
    %s278 = sadd.s32 %s277, 1
    %p281 = scmp.eq.s32.totalorder %s18, 1
    %p282 = scmp.ne.s32.totalorder %s277, %s279
    %p283 = scmp.eq.s32.totalorder %s18, 0
    %p284 = por %p282, %p283
    %p285 = scmp.ne.s32.totalorder %s277, %s279
    %p286 = scmp.eq.s32.totalorder %s23, 1
    %p287 = por %p285, %p286
    %p288 = scmp.ne.s32.totalorder %s279, %s280
    %p289 = scmp.eq.s32.totalorder %s23, 0
    %p290 = por %p288, %p289
    %p291 = scmp.ne.s32.totalorder %s279, %s280
    %p292 = scmp.eq.s32.totalorder %s24, 1
    %p293 = por %p291, %p292
    %p295 = scmp.ne.s32.totalorder %s280, %s294
    %p296 = scmp.eq.s32.totalorder %s24, 0
    %p297 = por %p295, %p296
    %s298 = ssub.s32 %s18, %s25
    %p299 = scmp.eq.s32.totalorder %s298, 0
    %s301 = sadd.s32 %s300, 1
    %s302 = scalar_select %p299, %s300, %s301
    %p305 = pneg %p299
    %p306 = scmp.eq.s32.totalorder %s18, 1
    %p307 = por %p305, %p306
    %p308 = scmp.ne.s32.totalorder %s300, %s303
    %p309 = scmp.eq.s32.totalorder %s18, 0
    %p310 = por %p308, %p309
    %p311 = scmp.ne.s32.totalorder %s300, %s303
    %p312 = scmp.eq.s32.totalorder %s23, 1
    %p313 = por %p311, %p312
    %p314 = scmp.ne.s32.totalorder %s303, %s304
    %p315 = scmp.eq.s32.totalorder %s23, 0
    %p316 = por %p314, %p315
    %p317 = scmp.ne.s32.totalorder %s303, %s304
    %p318 = scmp.eq.s32.totalorder %s24, 1
    %p319 = por %p317, %p318
    %p321 = scmp.ne.s32.totalorder %s304, %s320
    %p322 = scmp.eq.s32.totalorder %s24, 0
    %p323 = por %p321, %p322
    %p324 = scmp.le.s32.totalorder 1, %s18
    %p325 = scmp.lt.s32.totalorder %s18, 3
    %p326 = pnand %p324, %p325
    %p327 = pneg %p326
    // Predicated region
    $region9: #{encoder_decoder_forward.1} parent=5 // pred_check
      _
    $region10: #{encoder_decoder_forward.1} parent=5 // pred_check_branch
      %329 = sbr.rel (%p326) target = $region12
    $region11: #{encoder_decoder_forward.1} parent=5 // pred_region
      %s330 = ssub.s32 %s18, 1
      // Predicated region
      $region13: #{encoder_decoder_forward.1} parent=11 // pred_check
        %p331 = pneg %p143
      $region14: #{encoder_decoder_forward.1} parent=11 // pred_check_branch
        %333 = sbr.rel (%p331) target = $region16
      $region15: #{encoder_decoder_forward.1} parent=11 // pred_region
        _
      $region16: #{encoder_decoder_forward.1} parent=11 // pred_fallthru
        _
      // Predicated region
      $region17: #{encoder_decoder_forward.1} parent=11 // pred_check
        %p334 = pneg %p164
      $region18: #{encoder_decoder_forward.1} parent=11 // pred_check_branch
        %336 = sbr.rel (%p334) target = $region20
      $region19: #{encoder_decoder_forward.1} parent=11 // pred_region
        _
      $region20: #{encoder_decoder_forward.1} parent=11 // pred_fallthru
        _
      // Predicated region
      $region21: #{encoder_decoder_forward.1} parent=11 // pred_check
        %p337 = pneg %p185
      $region22: #{encoder_decoder_forward.1} parent=11 // pred_check_branch
        %339 = sbr.rel (%p337) target = $region24
      $region23: #{encoder_decoder_forward.1} parent=11 // pred_region
        _
      $region24: #{encoder_decoder_forward.1} parent=11 // pred_fallthru
        _
      // Predicated region
      $region25: #{encoder_decoder_forward.1} parent=11 // pred_check
        %p340 = pneg %p206
      $region26: #{encoder_decoder_forward.1} parent=11 // pred_check_branch
        %342 = sbr.rel (%p340) target = $region28
      $region27: #{encoder_decoder_forward.1} parent=11 // pred_region
        _
      $region28: #{encoder_decoder_forward.1} parent=11 // pred_fallthru
        _
      // Predicated region
      $region29: #{encoder_decoder_forward.1} parent=11 // pred_check
        %p343 = pneg %p227
      $region30: #{encoder_decoder_forward.1} parent=11 // pred_check_branch
        %345 = sbr.rel (%p343) target = $region32
      $region31: #{encoder_decoder_forward.1} parent=11 // pred_region
        _
      $region32: #{encoder_decoder_forward.1} parent=11 // pred_fallthru
        _
      // Predicated region
      $region33: #{encoder_decoder_forward.1} parent=11 // pred_check
        %p346 = pneg %p248
      $region34: #{encoder_decoder_forward.1} parent=11 // pred_check_branch
        %348 = sbr.rel (%p346) target = $region36
      $region35: #{encoder_decoder_forward.1} parent=11 // pred_region
        _
      $region36: #{encoder_decoder_forward.1} parent=11 // pred_fallthru
        _
      // Predicated region
      $region37: #{encoder_decoder_forward.1} parent=11 // pred_check
        %p349 = pneg %p269
      $region38: #{encoder_decoder_forward.1} parent=11 // pred_check_branch
        %351 = sbr.rel (%p349) target = $region40
      $region39: #{encoder_decoder_forward.1} parent=11 // pred_region
        _
      $region40: #{encoder_decoder_forward.1} parent=11 // pred_fallthru
        _
      // Predicated region
      $region41: #{encoder_decoder_forward.1} parent=11 // pred_check
        %p352 = pneg %p290
      $region42: #{encoder_decoder_forward.1} parent=11 // pred_check_branch
        %354 = sbr.rel (%p352) target = $region44
      $region43: #{encoder_decoder_forward.1} parent=11 // pred_region
        _
      $region44: #{encoder_decoder_forward.1} parent=11 // pred_fallthru
        _
    $region12: #{encoder_decoder_forward.1} parent=5 // pred_fallthru
      _
    %p355 = scmp.lt.s32.totalorder %s18, 2
    // Predicated region
    $region45: #{encoder_decoder_forward.1} parent=5 // pred_check
      %p356 = pneg %p355
    $region46: #{encoder_decoder_forward.1} parent=5 // pred_check_branch
      %358 = sbr.rel (%p356) target = $region48
    $region47: #{encoder_decoder_forward.1} parent=5 // pred_region
      // Predicated region
      $region49: #{encoder_decoder_forward.1} parent=47 // pred_check
        %p359 = pneg %p38
      $region50: #{encoder_decoder_forward.1} parent=47 // pred_check_branch
        %361 = sbr.rel (%p359) target = $region52
      $region51: #{encoder_decoder_forward.1} parent=47 // pred_region
        %p362 = scmp.lt.s32.totalorder %s18, 1
        %s363 = scalar_select %p362, %s18, 1
        %s364 = smul.addr %s363, 8
        %s365 = scalar_lea.vmem %s0, %s364
      $region52: #{encoder_decoder_forward.1} parent=47 // pred_fallthru
        _
      // Predicated region
      $region53: #{encoder_decoder_forward.1} parent=47 // pred_check
        %p366 = pneg %p64
      $region54: #{encoder_decoder_forward.1} parent=47 // pred_check_branch
        %368 = sbr.rel (%p366) target = $region56
      $region55: #{encoder_decoder_forward.1} parent=47 // pred_region
        %p369 = scmp.lt.s32.totalorder %s18, 1
        %s370 = scalar_select %p369, %s18, 1
        %s371 = smul.addr %s370, 8
        %s372 = scalar_lea.vmem %s1, %s371
      $region56: #{encoder_decoder_forward.1} parent=47 // pred_fallthru
        _
      // Predicated region
      $region57: #{encoder_decoder_forward.1} parent=47 // pred_check
        %p373 = pneg %p90
      $region58: #{encoder_decoder_forward.1} parent=47 // pred_check_branch
        %375 = sbr.rel (%p373) target = $region60
      $region59: #{encoder_decoder_forward.1} parent=47 // pred_region
        %p376 = scmp.lt.s32.totalorder %s18, 1
        %s377 = scalar_select %p376, %s18, 1
        %s378 = scalar_lea.vmem %s2, %s377
      $region60: #{encoder_decoder_forward.1} parent=47 // pred_fallthru
        _
      // Predicated region
      $region61: #{encoder_decoder_forward.1} parent=47 // pred_check
        %p379 = pneg %p116
      $region62: #{encoder_decoder_forward.1} parent=47 // pred_check_branch
        %381 = sbr.rel (%p379) target = $region64
      $region63: #{encoder_decoder_forward.1} parent=47 // pred_region
        %p382 = scmp.lt.s32.totalorder %s18, 1
        %s383 = scalar_select %p382, %s18, 1
        %s384 = smul.addr %s383, 8
        %s385 = scalar_lea.vmem %s3, %s384
      $region64: #{encoder_decoder_forward.1} parent=47 // pred_fallthru
        _
    $region48: #{encoder_decoder_forward.1} parent=5 // pred_fallthru
      _
    %p386 = scmp.le.s32.totalorder 1, %s18
    %p387 = scmp.lt.s32.totalorder %s18, 3
    %p388 = pnand %p386, %p387
    %p389 = pneg %p388
    // Predicated region
    $region65: #{encoder_decoder_forward.1} parent=5 // pred_check
      _
    $region66: #{encoder_decoder_forward.1} parent=5 // pred_check_branch
      %391 = sbr.rel (%p388) target = $region68
    $region67: #{encoder_decoder_forward.1} parent=5 // pred_region
      %s392 = ssub.s32 %s18, 1
      %p393 = scmp.lt.s32.totalorder %s23, 1
      %s394 = scalar_select %p393, %s23, 1
      %s395 = smul.addr %s394, 8
      %s396 = scalar_lea.vmem %s0, %s395
      %p397 = pneg %p44
      %p398 = pneg %p41
      %p399 = scmp.lt.s32.totalorder %s23, 1
      %s400 = scalar_select %p399, %s23, 1
      %s401 = smul.addr %s400, 8
      %s402 = scalar_lea.vmem %s1, %s401
      %p403 = pneg %p70
      %p404 = pneg %p67
      %p405 = scmp.lt.s32.totalorder %s23, 1
      %s406 = scalar_select %p405, %s23, 1
      %s407 = scalar_lea.vmem %s2, %s406
      %p408 = pneg %p96
      %p409 = pneg %p93
      %p410 = scmp.lt.s32.totalorder %s23, 1
      %s411 = scalar_select %p410, %s23, 1
      %s412 = smul.addr %s411, 8
      %s413 = scalar_lea.vmem %s3, %s412
      %p414 = pneg %p122
      %p415 = pneg %p119
      %p416 = pneg %p143
      %p417 = pneg %p140
      %p418 = pneg %p164
      %p419 = pneg %p161
      %p420 = pneg %p185
      %p421 = pneg %p182
      %p422 = pneg %p206
      %p423 = pneg %p203
      %p424 = pneg %p227
      %p425 = pneg %p224
      %p426 = pneg %p248
      %p427 = pneg %p245
      %p428 = pneg %p269
      %p429 = pneg %p266
      %p430 = pneg %p290
      %p431 = pneg %p287
      %p432 = pneg %p316
      %p433 = pneg %p313
      %p434 = scmp.lt.s32.totalorder %s23, 1
      %s435 = scalar_select %p434, %s23, 1
      %s436 = smul.addr %s435, 8
      %s437 = scalar_lea.vmem %s12, %s436
      %p438 = scmp.lt.s32.totalorder %s23, 1
      %s439 = scalar_select %p438, %s23, 1
      %s440 = smul.addr %s439, 8
      %s441 = scalar_lea.vmem %s0, %s440
      %p442 = scmp.lt.s32.totalorder %s23, 1
      %s443 = scalar_select %p442, %s23, 1
      %s444 = smul.addr %s443, 8
      %s445 = scalar_lea.vmem %s1, %s444
      %p446 = scmp.lt.s32.totalorder %s23, 1
      %s447 = scalar_select %p446, %s23, 1
      %s448 = scalar_lea.vmem %s2, %s447
      %p449 = scmp.lt.s32.totalorder %s23, 1
      %s450 = scalar_select %p449, %s23, 1
      %s451 = smul.addr %s450, 8
      %s452 = scalar_lea.vmem %s3, %s451
      %p453 = scmp.lt.s32.totalorder %s23, 1
      %s454 = scalar_select %p453, %s23, 1
      %s455 = smul.addr %s454, 8
      %s456 = scalar_lea.vmem %s12, %s455
      %v458 = vld [vmem:[%s441] sm:$0xff]
      %v459 = vld [vmem:[%s445] sm:$0xff]
      %v460 = vld [vmem:[%s448] sm:$0x1]
      %v461 = vld [vmem:[%s452] sm:$0xff]
      %v462 = vld [vmem:[%s10] sm:$0x1f]
      %v463 = vld [vmem:[%s4] sm:$0xf]
      %v464 = vld [vmem:[%s4 + $0x4] sm:$0xf]
      %v465 = vld [vmem:[%s4 + $0x8] sm:$0xf]
      %v466 = vld [vmem:[%s4 + $0xc] sm:$0xf]
      %v467 = vld [vmem:[%s4 + $0x10] sm:$0xf]
      %v468 = vld [vmem:[%s4 + $0x14] sm:$0xf]
      %v469 = vld [vmem:[%s4 + $0x18] sm:$0xf]
      %v470 = vld [vmem:[%s4 + $0x1c] sm:$0xf]
      %v471 = vld [vmem:[%s4 + $0x20] sm:$0xf]
      %v472 = vld [vmem:[%s4 + $0x24] sm:$0xf]
      %v473 = vld [vmem:[%s4 + $0x28] sm:$0xf]
      %v474 = vld [vmem:[%s4 + $0x2c] sm:$0xf]
      %v475 = vld [vmem:[%s4 + $0x30] sm:$0xf]
      %v476 = vld [vmem:[%s4 + $0x34] sm:$0xf]
      %v477 = vld [vmem:[%s4 + $0x38] sm:$0xf]
      %v478 = vld [vmem:[%s4 + $0x3c] sm:$0xf]
      %v479 = vld [vmem:[%s5] sm:$0x1]
      %v480 = vld [vmem:[%s5 + $0x1] sm:$0x1]
      %v481 = vld [vmem:[%s5 + $0x2] sm:$0x1]
      %v482 = vld [vmem:[%s5 + $0x3] sm:$0x1]
      %v483 = vld [vmem:[%s6] sm:$0xf]
      %v484 = vld [vmem:[%s6 + $0x4] sm:$0xf]
      %v485 = vld [vmem:[%s6 + $0x8] sm:$0xf]
      %v486 = vld [vmem:[%s6 + $0xc] sm:$0xf]
      %v487 = vld [vmem:[%s7] sm:$0xf]
      %v488 = vld [vmem:[%s7 + $0x4] sm:$0xf]
      %v489 = vld [vmem:[%s7 + $0x8] sm:$0xf]
      %v490 = vld [vmem:[%s7 + $0xc] sm:$0xf]
      %v491 = vld [vmem:[%s8] sm:$0xf]
      %v492 = vld [vmem:[%s8 + $0x4] sm:$0xf]
      %v493 = vld [vmem:[%s8 + $0x8] sm:$0xf]
      %v494 = vld [vmem:[%s8 + $0xc] sm:$0xf]
      %v495 = vld [vmem:[%s8 + $0x10] sm:$0xf]
      %v496 = vld [vmem:[%s8 + $0x14] sm:$0xf]
      %v497 = vld [vmem:[%s8 + $0x18] sm:$0xf]
      %v498 = vld [vmem:[%s8 + $0x1c] sm:$0xf]
      %v499 = vld [vmem:[%s9] sm:$0xff]
      %vm500 = vcmask 261120
      %v501 = vsel %vm500, %v458, 0.0
      %502 = vadd.xlane.f32.xlu0 %v501
      %v503 = vpop.xlane.xlu0 %502
      %v504 = vrcp.pop 32.0
      %v505 = vmul.f32 %v503, %v504
      %v506 = vsub.f32 %v458, %v505
      %v507 = vmul.f32 %v506, %v506
      %v508 = vsel %vm500, %v507, 0.0
      %509 = vadd.xlane.f32.xlu0 %v508
      %v510 = vpop.xlane.xlu0 %509
      %v511 = vrcp.pop 31.0
      %v512 = vmul.f32 %v510, %v511
      %v513 = vlaneseq
      %v514 = vshrl.u32 %v513, 7
      %v515 = vsub.s32 0, %v514
      %v516 = vrot.slane %v499, %v515
      %v517 = vmul.f32 %v516, %v506
      %v518 = vrsqrt.pop %v512
      %v519 = vmul.f32 %v512, %v518
      %vm520 = vcmp.eq.f32.partialorder %v512, inf
      %v521 = vsel %vm520, %v512, %v519
      %vm522 = vcmp.eq.f32.partialorder %v512, 0.0
      %v523 = vand.u32 %v512, 2147483648
      %v524 = vsel %vm522, %v523, %v521
      %v525 = vadd.f32 %v524, 1e-06
      %v526 = vrcp.pop %v525
      %v527 = vmul.f32 %v517, %v526
      %v528 = vlaneseq
      %v529 = vshrl.u32 %v528, 7
      %v530 = vsub.s32 1, %v529
      %v531 = vrot.slane %v499, %v530
      %v532 = vadd.f32 %v527, %v531
      %v533 = vpack.c.bf16 %v532, %v532
      %v538 = vlaneseq
      %v539 = vshrl.u32 %v538, 7
      %v540 = vsub.s32 0, %v539
      %v541 = vrot.slane %v479, %v540
      %v542 = vlaneseq
      %v543 = vshrl.u32 %v542, 7
      %v544 = vsub.s32 0, %v543
      %v545 = vrot.slane %v480, %v544
      %v546 = vlaneseq
      %v547 = vshrl.u32 %v546, 7
      %v548 = vsub.s32 0, %v547
      %v549 = vrot.slane %v481, %v548
      %v550 = vlaneseq
      %v551 = vshrl.u32 %v550, 7
      %v552 = vsub.s32 0, %v551
      %v553 = vrot.slane %v482, %v552
      %v562 = vunpack.c.l.b16 %v463
      %v563 = vunpack.c.l.b16 %v464
      %v564 = vunpack.c.l.b16 %v465
      %v565 = vunpack.c.l.b16 %v466
      %v566 = vpack.c.b16 %v563, %v562
      %v567 = vpack.c.b16 %v565, %v564
      %v571 = vsel %vm500, %v533, 0
      %573 = vmatprep.subr.bf16.mxu0 0
      %574 = vmatpush1.bf16.msra.mxu0 %v566
      %575 = vmatprep.subr.bf16.mxu0 0
      %576 = vmatpush1.bf16.msra.mxu0 %v567
      %577 = vmatprep.subr.bf16.mxu0 0
      %578 = vmatpush1.bf16.msra.mxu0 0
      %579 = vmatprep.subr.bf16.mxu0 0
      %580 = vmatpush1.bf16.msra.mxu0 0
      %581 = vmatprep.subr.bf16.mxu0 0
      %582 = vmatpush1.bf16.msra.mxu0 0
      %583 = vmatprep.subr.bf16.mxu0 0
      %584 = vmatpush1.bf16.msra.mxu0 0
      %585 = vmatprep.subr.bf16.mxu0 0
      %586 = vmatpush1.bf16.msra.mxu0 0
      %587 = vmatprep.subr.bf16.mxu0 0
      %588 = vmatpush1.bf16.msra.mxu0 0
      %589 = vmatprep.subr.bf16.mxu0 0
      %590 = vmatpush1.bf16.msra.mxu0 0
      %591 = vmatprep.subr.bf16.mxu0 0
      %592 = vmatpush1.bf16.msra.mxu0 0
      %593 = vmatprep.subr.bf16.mxu0 0
      %594 = vmatpush1.bf16.msra.mxu0 0
      %595 = vmatprep.subr.bf16.mxu0 0
      %596 = vmatpush1.bf16.msra.mxu0 0
      %597 = vmatprep.subr.bf16.mxu0 0
      %598 = vmatpush1.bf16.msra.mxu0 0
      %599 = vmatprep.subr.bf16.mxu0 0
      %600 = vmatpush1.bf16.msra.mxu0 0
      %601 = vmatprep.subr.bf16.mxu0 0
      %602 = vmatpush1.bf16.msra.mxu0 0
      %603 = vmatprep.subr.bf16.mxu0 0
      %604 = vmatpush1.bf16.msra.mxu0 0
      %605 = vmatprep.mubr.bf16.mxu0 0
      %606 = vmatmul.mubr.bf16.gmra.mrb[0].mxu0 %v571
      %v607 = vpop.f32.mrb[0].mxu0
      %v608 = vadd.f32 %v541, %v607
      %v609 = vpop.f32.mrb[0].mxu0
      %v610 = vpop.f32.mrb[0].mxu0
      %v611 = vpop.f32.mrb[0].mxu0
      %612 = vdwg.mxu0
      %v617 = vunpack.c.l.b16 %v467
      %v618 = vunpack.c.l.b16 %v468
      %v619 = vunpack.c.l.b16 %v469
      %v620 = vunpack.c.l.b16 %v470
      %v621 = vpack.c.b16 %v618, %v617
      %v622 = vpack.c.b16 %v620, %v619
      %625 = vmatprep.subr.bf16.mxu0 0
      %626 = vmatpush1.bf16.msra.mxu0 %v621
      %627 = vmatprep.subr.bf16.mxu0 0
      %628 = vmatpush1.bf16.msra.mxu0 %v622
      %629 = vmatprep.subr.bf16.mxu0 0
      %630 = vmatpush1.bf16.msra.mxu0 0
      %631 = vmatprep.subr.bf16.mxu0 0
      %632 = vmatpush1.bf16.msra.mxu0 0
      %633 = vmatprep.subr.bf16.mxu0 0
      %634 = vmatpush1.bf16.msra.mxu0 0
      %635 = vmatprep.subr.bf16.mxu0 0
      %636 = vmatpush1.bf16.msra.mxu0 0
      %637 = vmatprep.subr.bf16.mxu0 0
      %638 = vmatpush1.bf16.msra.mxu0 0
      %639 = vmatprep.subr.bf16.mxu0 0
      %640 = vmatpush1.bf16.msra.mxu0 0
      %641 = vmatprep.subr.bf16.mxu0 0
      %642 = vmatpush1.bf16.msra.mxu0 0
      %643 = vmatprep.subr.bf16.mxu0 0
      %644 = vmatpush1.bf16.msra.mxu0 0
      %645 = vmatprep.subr.bf16.mxu0 0
      %646 = vmatpush1.bf16.msra.mxu0 0
      %647 = vmatprep.subr.bf16.mxu0 0
      %648 = vmatpush1.bf16.msra.mxu0 0
      %649 = vmatprep.subr.bf16.mxu0 0
      %650 = vmatpush1.bf16.msra.mxu0 0
      %651 = vmatprep.subr.bf16.mxu0 0
      %652 = vmatpush1.bf16.msra.mxu0 0
      %653 = vmatprep.subr.bf16.mxu0 0
      %654 = vmatpush1.bf16.msra.mxu0 0
      %655 = vmatprep.subr.bf16.mxu0 0
      %656 = vmatpush1.bf16.msra.mxu0 0
      %657 = vmatprep.mubr.bf16.mxu0 0
      %658 = vmatmul.mubr.bf16.gmra.mrb[0].mxu0 %v571
      %v659 = vpop.f32.mrb[0].mxu0
      %v660 = vadd.f32 %v545, %v659
      %v661 = vpop.f32.mrb[0].mxu0
      %v662 = vpop.f32.mrb[0].mxu0
      %v663 = vpop.f32.mrb[0].mxu0
      %664 = vdwg.mxu0
      %v669 = vunpack.c.l.b16 %v471
      %v670 = vunpack.c.l.b16 %v472
      %v671 = vunpack.c.l.b16 %v473
      %v672 = vunpack.c.l.b16 %v474
      %v673 = vpack.c.b16 %v670, %v669
      %v674 = vpack.c.b16 %v672, %v671
      %677 = vmatprep.subr.bf16.mxu0 0
      %678 = vmatpush1.bf16.msra.mxu0 %v673
      %679 = vmatprep.subr.bf16.mxu0 0
      %680 = vmatpush1.bf16.msra.mxu0 %v674
      %681 = vmatprep.subr.bf16.mxu0 0
      %682 = vmatpush1.bf16.msra.mxu0 0
      %683 = vmatprep.subr.bf16.mxu0 0
      %684 = vmatpush1.bf16.msra.mxu0 0
      %685 = vmatprep.subr.bf16.mxu0 0
      %686 = vmatpush1.bf16.msra.mxu0 0
      %687 = vmatprep.subr.bf16.mxu0 0
      %688 = vmatpush1.bf16.msra.mxu0 0
      %689 = vmatprep.subr.bf16.mxu0 0
      %690 = vmatpush1.bf16.msra.mxu0 0
      %691 = vmatprep.subr.bf16.mxu0 0
      %692 = vmatpush1.bf16.msra.mxu0 0
      %693 = vmatprep.subr.bf16.mxu0 0
      %694 = vmatpush1.bf16.msra.mxu0 0
      %695 = vmatprep.subr.bf16.mxu0 0
      %696 = vmatpush1.bf16.msra.mxu0 0
      %697 = vmatprep.subr.bf16.mxu0 0
      %698 = vmatpush1.bf16.msra.mxu0 0
      %699 = vmatprep.subr.bf16.mxu0 0
      %700 = vmatpush1.bf16.msra.mxu0 0
      %701 = vmatprep.subr.bf16.mxu0 0
      %702 = vmatpush1.bf16.msra.mxu0 0
      %703 = vmatprep.subr.bf16.mxu0 0
      %704 = vmatpush1.bf16.msra.mxu0 0
      %705 = vmatprep.subr.bf16.mxu0 0
      %706 = vmatpush1.bf16.msra.mxu0 0
      %707 = vmatprep.subr.bf16.mxu0 0
      %708 = vmatpush1.bf16.msra.mxu0 0
      %709 = vmatprep.mubr.bf16.mxu0 0
      %710 = vmatmul.mubr.bf16.gmra.mrb[0].mxu0 %v571
      %v711 = vpop.f32.mrb[0].mxu0
      %v712 = vadd.f32 %v549, %v711
      %v713 = vpop.f32.mrb[0].mxu0
      %v714 = vpop.f32.mrb[0].mxu0
      %v715 = vpop.f32.mrb[0].mxu0
      %716 = vdwg.mxu0
      %v721 = vunpack.c.l.b16 %v475
      %v722 = vunpack.c.l.b16 %v476
      %v723 = vunpack.c.l.b16 %v477
      %v724 = vunpack.c.l.b16 %v478
      %v725 = vpack.c.b16 %v722, %v721
      %v726 = vpack.c.b16 %v724, %v723
      %729 = vmatprep.subr.bf16.mxu0 0
      %730 = vmatpush1.bf16.msra.mxu0 %v725
      %731 = vmatprep.subr.bf16.mxu0 0
      %732 = vmatpush1.bf16.msra.mxu0 %v726
      %733 = vmatprep.subr.bf16.mxu0 0
      %734 = vmatpush1.bf16.msra.mxu0 0
      %735 = vmatprep.subr.bf16.mxu0 0
      %736 = vmatpush1.bf16.msra.mxu0 0
      %737 = vmatprep.subr.bf16.mxu0 0
      %738 = vmatpush1.bf16.msra.mxu0 0
      %739 = vmatprep.subr.bf16.mxu0 0
      %740 = vmatpush1.bf16.msra.mxu0 0
      %741 = vmatprep.subr.bf16.mxu0 0
      %742 = vmatpush1.bf16.msra.mxu0 0
      %743 = vmatprep.subr.bf16.mxu0 0
      %744 = vmatpush1.bf16.msra.mxu0 0
      %745 = vmatprep.subr.bf16.mxu0 0
      %746 = vmatpush1.bf16.msra.mxu0 0
      %747 = vmatprep.subr.bf16.mxu0 0
      %748 = vmatpush1.bf16.msra.mxu0 0
      %749 = vmatprep.subr.bf16.mxu0 0
      %750 = vmatpush1.bf16.msra.mxu0 0
      %751 = vmatprep.subr.bf16.mxu0 0
      %752 = vmatpush1.bf16.msra.mxu0 0
      %753 = vmatprep.subr.bf16.mxu0 0
      %754 = vmatpush1.bf16.msra.mxu0 0
      %755 = vmatprep.subr.bf16.mxu0 0
      %756 = vmatpush1.bf16.msra.mxu0 0
      %757 = vmatprep.subr.bf16.mxu0 0
      %758 = vmatpush1.bf16.msra.mxu0 0
      %759 = vmatprep.subr.bf16.mxu0 0
      %760 = vmatpush1.bf16.msra.mxu0 0
      %761 = vmatprep.mubr.bf16.mxu0 0
      %762 = vmatmul.mubr.bf16.gmra.mrb[0].mxu0 %v571
      %v763 = vpop.f32.mrb[0].mxu0
      %v764 = vadd.f32 %v553, %v763
      %v765 = vpop.f32.mrb[0].mxu0
      %v766 = vpop.f32.mrb[0].mxu0
      %v767 = vpop.f32.mrb[0].mxu0
      %768 = vdwg.mxu0
      %v769 = vpack.c.bf16 %v608, %v608
      %v770 = vpack.c.bf16 %v660, %v660
      %v771 = vpack.c.bf16 %v712, %v712
      %v772 = vpack.c.bf16 %v764, %v764
      %774 = vrot.lane.b32.xlu0 %v769, 120
      %v775 = vpop.permute.xlu0 %774
      %vm776 = vcmask 64512
      %v778 = vsel %vm776, %v769, 0
      %v781 = vsel %vm776, %v775, 0
      %783 = vmatprep.subr.bf16.mxu0 0
      %784 = vmatpush1.bf16.xpose.msra.mxu0 %v781
      %785 = vmatprep.subr.bf16.mxu0 0
      %786 = vmatpush1.bf16.xpose.msra.mxu0 0
      %787 = vmatprep.subr.bf16.mxu0 0
      %788 = vmatpush1.bf16.xpose.msra.mxu0 0
      %789 = vmatprep.subr.bf16.mxu0 0
      %790 = vmatpush1.bf16.xpose.msra.mxu0 0
      %791 = vmatprep.subr.bf16.mxu0 0
      %792 = vmatpush1.bf16.xpose.msra.mxu0 0
      %793 = vmatprep.subr.bf16.mxu0 0
      %794 = vmatpush1.bf16.xpose.msra.mxu0 0
      %795 = vmatprep.subr.bf16.mxu0 0
      %796 = vmatpush1.bf16.xpose.msra.mxu0 0
      %797 = vmatprep.subr.bf16.mxu0 0
      %798 = vmatpush1.bf16.xpose.msra.mxu0 0
      %799 = vmatprep.subr.bf16.mxu0 0
      %800 = vmatpush1.bf16.xpose.msra.mxu0 0
      %801 = vmatprep.subr.bf16.mxu0 0
      %802 = vmatpush1.bf16.xpose.msra.mxu0 0
      %803 = vmatprep.subr.bf16.mxu0 0
      %804 = vmatpush1.bf16.xpose.msra.mxu0 0
      %805 = vmatprep.subr.bf16.mxu0 0
      %806 = vmatpush1.bf16.xpose.msra.mxu0 0
      %807 = vmatprep.subr.bf16.mxu0 0
      %808 = vmatpush1.bf16.xpose.msra.mxu0 0
      %809 = vmatprep.subr.bf16.mxu0 0
      %810 = vmatpush1.bf16.xpose.msra.mxu0 0
      %811 = vmatprep.subr.bf16.mxu0 0
      %812 = vmatpush1.bf16.xpose.msra.mxu0 0
      %813 = vmatprep.subr.bf16.mxu0 0
      %814 = vmatpush1.bf16.xpose.msra.mxu0 0
      %815 = vmatprep.mubr.bf16.mxu0 0
      %816 = vmatmul.mubr.bf16.gmra.mrb[0].mxu0 %v778
      %v817 = vpop.f32.mrb[0].mxu0
      %v818 = vadd.f32 0.0, %v817
      %v819 = vpop.f32.mrb[0].mxu0
      %v820 = vpop.f32.mrb[0].mxu0
      %v821 = vpop.f32.mrb[0].mxu0
      %822 = vdwg.mxu0
      %824 = vrot.lane.b32.xlu0 %v770, 120
      %v825 = vpop.permute.xlu0 %824
      %v827 = vsel %vm776, %v770, 0
      %v830 = vsel %vm776, %v825, 0
      %832 = vmatprep.subr.bf16.mxu0 0
      %833 = vmatpush1.bf16.xpose.msra.mxu0 %v830
      %834 = vmatprep.subr.bf16.mxu0 0
      %835 = vmatpush1.bf16.xpose.msra.mxu0 0
      %836 = vmatprep.subr.bf16.mxu0 0
      %837 = vmatpush1.bf16.xpose.msra.mxu0 0
      %838 = vmatprep.subr.bf16.mxu0 0
      %839 = vmatpush1.bf16.xpose.msra.mxu0 0
      %840 = vmatprep.subr.bf16.mxu0 0
      %841 = vmatpush1.bf16.xpose.msra.mxu0 0
      %842 = vmatprep.subr.bf16.mxu0 0
      %843 = vmatpush1.bf16.xpose.msra.mxu0 0
      %844 = vmatprep.subr.bf16.mxu0 0
      %845 = vmatpush1.bf16.xpose.msra.mxu0 0
      %846 = vmatprep.subr.bf16.mxu0 0
      %847 = vmatpush1.bf16.xpose.msra.mxu0 0
      %848 = vmatprep.subr.bf16.mxu0 0
      %849 = vmatpush1.bf16.xpose.msra.mxu0 0
      %850 = vmatprep.subr.bf16.mxu0 0
      %851 = vmatpush1.bf16.xpose.msra.mxu0 0
      %852 = vmatprep.subr.bf16.mxu0 0
      %853 = vmatpush1.bf16.xpose.msra.mxu0 0
      %854 = vmatprep.subr.bf16.mxu0 0
      %855 = vmatpush1.bf16.xpose.msra.mxu0 0
      %856 = vmatprep.subr.bf16.mxu0 0
      %857 = vmatpush1.bf16.xpose.msra.mxu0 0
      %858 = vmatprep.subr.bf16.mxu0 0
      %859 = vmatpush1.bf16.xpose.msra.mxu0 0
      %860 = vmatprep.subr.bf16.mxu0 0
      %861 = vmatpush1.bf16.xpose.msra.mxu0 0
      %862 = vmatprep.subr.bf16.mxu0 0
      %863 = vmatpush1.bf16.xpose.msra.mxu0 0
      %864 = vmatprep.mubr.bf16.mxu0 0
      %865 = vmatmul.mubr.bf16.gmra.mrb[0].mxu0 %v827
      %v866 = vpop.f32.mrb[0].mxu0
      %v867 = vadd.f32 0.0, %v866
      %v868 = vpop.f32.mrb[0].mxu0
      %v869 = vpop.f32.mrb[0].mxu0
      %v870 = vpop.f32.mrb[0].mxu0
      %871 = vdwg.mxu0
      %873 = vrot.lane.b32.xlu0 %v771, 120
      %v874 = vpop.permute.xlu0 %873
      %v876 = vsel %vm776, %v771, 0
      %v879 = vsel %vm776, %v874, 0
      %881 = vmatprep.subr.bf16.mxu0 0
      %882 = vmatpush1.bf16.xpose.msra.mxu0 %v879
      %883 = vmatprep.subr.bf16.mxu0 0
      %884 = vmatpush1.bf16.xpose.msra.mxu0 0
      %885 = vmatprep.subr.bf16.mxu0 0
      %886 = vmatpush1.bf16.xpose.msra.mxu0 0
      %887 = vmatprep.subr.bf16.mxu0 0
      %888 = vmatpush1.bf16.xpose.msra.mxu0 0
      %889 = vmatprep.subr.bf16.mxu0 0
      %890 = vmatpush1.bf16.xpose.msra.mxu0 0
      %891 = vmatprep.subr.bf16.mxu0 0
      %892 = vmatpush1.bf16.xpose.msra.mxu0 0
      %893 = vmatprep.subr.bf16.mxu0 0
      %894 = vmatpush1.bf16.xpose.msra.mxu0 0
      %895 = vmatprep.subr.bf16.mxu0 0
      %896 = vmatpush1.bf16.xpose.msra.mxu0 0
      %897 = vmatprep.subr.bf16.mxu0 0
      %898 = vmatpush1.bf16.xpose.msra.mxu0 0
      %899 = vmatprep.subr.bf16.mxu0 0
      %900 = vmatpush1.bf16.xpose.msra.mxu0 0
      %901 = vmatprep.subr.bf16.mxu0 0
      %902 = vmatpush1.bf16.xpose.msra.mxu0 0
      %903 = vmatprep.subr.bf16.mxu0 0
      %904 = vmatpush1.bf16.xpose.msra.mxu0 0
      %905 = vmatprep.subr.bf16.mxu0 0
      %906 = vmatpush1.bf16.xpose.msra.mxu0 0
      %907 = vmatprep.subr.bf16.mxu0 0
      %908 = vmatpush1.bf16.xpose.msra.mxu0 0
      %909 = vmatprep.subr.bf16.mxu0 0
      %910 = vmatpush1.bf16.xpose.msra.mxu0 0
      %911 = vmatprep.subr.bf16.mxu0 0
      %912 = vmatpush1.bf16.xpose.msra.mxu0 0
      %913 = vmatprep.mubr.bf16.mxu0 0
      %914 = vmatmul.mubr.bf16.gmra.mrb[0].mxu0 %v876
      %v915 = vpop.f32.mrb[0].mxu0
      %v916 = vadd.f32 0.0, %v915
      %v917 = vpop.f32.mrb[0].mxu0
      %v918 = vpop.f32.mrb[0].mxu0
      %v919 = vpop.f32.mrb[0].mxu0
      %920 = vdwg.mxu0
      %922 = vrot.lane.b32.xlu0 %v772, 120
      %v923 = vpop.permute.xlu0 %922
      %v925 = vsel %vm776, %v772, 0
      %v928 = vsel %vm776, %v923, 0
      %930 = vmatprep.subr.bf16.mxu0 0
      %931 = vmatpush1.bf16.xpose.msra.mxu0 %v928
      %932 = vmatprep.subr.bf16.mxu0 0
      %933 = vmatpush1.bf16.xpose.msra.mxu0 0
      %934 = vmatprep.subr.bf16.mxu0 0
      %935 = vmatpush1.bf16.xpose.msra.mxu0 0
      %936 = vmatprep.subr.bf16.mxu0 0
      %937 = vmatpush1.bf16.xpose.msra.mxu0 0
      %938 = vmatprep.subr.bf16.mxu0 0
      %939 = vmatpush1.bf16.xpose.msra.mxu0 0
      %940 = vmatprep.subr.bf16.mxu0 0
      %941 = vmatpush1.bf16.xpose.msra.mxu0 0
      %942 = vmatprep.subr.bf16.mxu0 0
      %943 = vmatpush1.bf16.xpose.msra.mxu0 0
      %944 = vmatprep.subr.bf16.mxu0 0
      %945 = vmatpush1.bf16.xpose.msra.mxu0 0
      %946 = vmatprep.subr.bf16.mxu0 0
      %947 = vmatpush1.bf16.xpose.msra.mxu0 0
      %948 = vmatprep.subr.bf16.mxu0 0
      %949 = vmatpush1.bf16.xpose.msra.mxu0 0
      %950 = vmatprep.subr.bf16.mxu0 0
      %951 = vmatpush1.bf16.xpose.msra.mxu0 0
      %952 = vmatprep.subr.bf16.mxu0 0
      %953 = vmatpush1.bf16.xpose.msra.mxu0 0
      %954 = vmatprep.subr.bf16.mxu0 0
      %955 = vmatpush1.bf16.xpose.msra.mxu0 0
      %956 = vmatprep.subr.bf16.mxu0 0
      %957 = vmatpush1.bf16.xpose.msra.mxu0 0
      %958 = vmatprep.subr.bf16.mxu0 0
      %959 = vmatpush1.bf16.xpose.msra.mxu0 0
      %960 = vmatprep.subr.bf16.mxu0 0
      %961 = vmatpush1.bf16.xpose.msra.mxu0 0
      %962 = vmatprep.mubr.bf16.mxu0 0
      %963 = vmatmul.mubr.bf16.gmra.mrb[0].mxu0 %v925
      %v964 = vpop.f32.mrb[0].mxu0
      %v965 = vadd.f32 0.0, %v964
      %v966 = vpop.f32.mrb[0].mxu0
      %v967 = vpop.f32.mrb[0].mxu0
      %v968 = vpop.f32.mrb[0].mxu0
      %969 = vdwg.mxu0
      %v970 = vmul.f32 %v818, 0.35355338
      %v971 = vmul.f32 %v867, 0.35355338
      %v972 = vmul.f32 %v916, 0.35355338
      %v973 = vmul.f32 %v965, 0.35355338
      %v975 = vlaneseq
      %v976 = vshrl.u32 %v975, 7
      %v977 = vsub.s32 0, %v976
      %v978 = vrot.slane %v460, %v977
      %v980 = vadd.f32 %v970, %v978
      %v981 = vadd.f32 %v971, %v978
      %v982 = vadd.f32 %v972, %v978
      %v983 = vadd.f32 %v973, %v978
      %v984 = vsel %vm776, %v980, -inf
      %985 = vmax.xlane.f32.xlu0 %v984
      %v986 = vpop.xlane.xlu0 %985
      %v987 = vsel %vm776, %v981, -inf
      %988 = vmax.xlane.f32.xlu0 %v987
      %v989 = vpop.xlane.xlu0 %988
      %v990 = vsel %vm776, %v982, -inf
      %991 = vmax.xlane.f32.xlu0 %v990
      %v992 = vpop.xlane.xlu0 %991
      %v993 = vsel %vm776, %v983, -inf
      %994 = vmax.xlane.f32.xlu0 %v993
      %v995 = vpop.xlane.xlu0 %994
      %v996 = vsub.f32 %v980, %v986
      %v997 = vsub.f32 %v981, %v989
      %v998 = vsub.f32 %v982, %v992
      %v999 = vsub.f32 %v983, %v995
      %v1000 = vmul.f32 %v996, 1.442695
      %v1001 = vpow.pop %v1000
      %v1002 = vmul.f32 %v997, 1.442695
      %v1003 = vpow.pop %v1002
      %v1004 = vmul.f32 %v998, 1.442695
      %v1005 = vpow.pop %v1004
      %v1006 = vmul.f32 %v999, 1.442695
      %v1007 = vpow.pop %v1006
      %v1008 = vsel %vm776, %v1001, 0.0
      %1009 = vadd.xlane.f32.xlu0 %v1008
      %v1010 = vpop.xlane.xlu0 %1009
      %v1011 = vsel %vm776, %v1003, 0.0
      %1012 = vadd.xlane.f32.xlu0 %v1011
      %v1013 = vpop.xlane.xlu0 %1012
      %v1014 = vsel %vm776, %v1005, 0.0
      %1015 = vadd.xlane.f32.xlu0 %v1014
      %v1016 = vpop.xlane.xlu0 %1015
      %v1017 = vsel %vm776, %v1007, 0.0
      %1018 = vadd.xlane.f32.xlu0 %v1017
      %v1019 = vpop.xlane.xlu0 %1018
      %v1020 = vrcp.pop %v1010
      %v1021 = vrcp.pop %v1013
      %v1022 = vrcp.pop %v1016
      %v1023 = vrcp.pop %v1019
      %v1024 = vmul.f32 %v1001, %v1020
      %v1025 = vmul.f32 %v1003, %v1021
      %v1026 = vmul.f32 %v1005, %v1022
      %v1027 = vmul.f32 %v1007, %v1023
      %v1028 = vpack.c.bf16 %v1024, %v1024
      %v1029 = vpack.c.bf16 %v1025, %v1025
      %v1030 = vpack.c.bf16 %v1026, %v1026
      %v1031 = vpack.c.bf16 %v1027, %v1027
      %1032 = vrot.lane.b32.xlu0 %v769, 112
      %v1033 = vpop.permute.xlu0 %1032
      %v1035 = vsel %vm776, %v1028, 0
      %vm1037 = vcmask 1043456
      %v1039 = vsel %vm1037, %v1033, 0
      %1041 = vmatprep.subr.bf16.mxu0 0
      %1042 = vmatpush1.bf16.msra.mxu0 %v1039
      %1043 = vmatprep.subr.bf16.mxu0 0
      %1044 = vmatpush1.bf16.msra.mxu0 0
      %1045 = vmatprep.subr.bf16.mxu0 0
      %1046 = vmatpush1.bf16.msra.mxu0 0
      %1047 = vmatprep.subr.bf16.mxu0 0
      %1048 = vmatpush1.bf16.msra.mxu0 0
      %1049 = vmatprep.subr.bf16.mxu0 0
      %1050 = vmatpush1.bf16.msra.mxu0 0
      %1051 = vmatprep.subr.bf16.mxu0 0
      %1052 = vmatpush1.bf16.msra.mxu0 0
      %1053 = vmatprep.subr.bf16.mxu0 0
      %1054 = vmatpush1.bf16.msra.mxu0 0
      %1055 = vmatprep.subr.bf16.mxu0 0
      %1056 = vmatpush1.bf16.msra.mxu0 0
      %1057 = vmatprep.subr.bf16.mxu0 0
      %1058 = vmatpush1.bf16.msra.mxu0 0
      %1059 = vmatprep.subr.bf16.mxu0 0
      %1060 = vmatpush1.bf16.msra.mxu0 0
      %1061 = vmatprep.subr.bf16.mxu0 0
      %1062 = vmatpush1.bf16.msra.mxu0 0
      %1063 = vmatprep.subr.bf16.mxu0 0
      %1064 = vmatpush1.bf16.msra.mxu0 0
      %1065 = vmatprep.subr.bf16.mxu0 0
      %1066 = vmatpush1.bf16.msra.mxu0 0
      %1067 = vmatprep.subr.bf16.mxu0 0
      %1068 = vmatpush1.bf16.msra.mxu0 0
      %1069 = vmatprep.subr.bf16.mxu0 0
      %1070 = vmatpush1.bf16.msra.mxu0 0
      %1071 = vmatprep.subr.bf16.mxu0 0
      %1072 = vmatpush1.bf16.msra.mxu0 0
      %1073 = vmatprep.mubr.bf16.mxu0 0
      %1074 = vmatmul.mubr.bf16.gmra.mrb[0].mxu0 %v1035
      %v1075 = vpop.f32.mrb[0].mxu0
      %v1076 = vadd.f32 0.0, %v1075
      %v1077 = vpop.f32.mrb[0].mxu0
      %v1078 = vpop.f32.mrb[0].mxu0
      %v1079 = vpop.f32.mrb[0].mxu0
      %1080 = vdwg.mxu0
      %1081 = vrot.lane.b32.xlu0 %v770, 112
      %v1082 = vpop.permute.xlu0 %1081
      %v1084 = vsel %vm776, %v1029, 0
      %v1087 = vsel %vm1037, %v1082, 0
      %1089 = vmatprep.subr.bf16.mxu0 0
      %1090 = vmatpush1.bf16.msra.mxu0 %v1087
      %1091 = vmatprep.subr.bf16.mxu0 0
      %1092 = vmatpush1.bf16.msra.mxu0 0
      %1093 = vmatprep.subr.bf16.mxu0 0
      %1094 = vmatpush1.bf16.msra.mxu0 0
      %1095 = vmatprep.subr.bf16.mxu0 0
      %1096 = vmatpush1.bf16.msra.mxu0 0
      %1097 = vmatprep.subr.bf16.mxu0 0
      %1098 = vmatpush1.bf16.msra.mxu0 0
      %1099 = vmatprep.subr.bf16.mxu0 0
      %1100 = vmatpush1.bf16.msra.mxu0 0
      %1101 = vmatprep.subr.bf16.mxu0 0
      %1102 = vmatpush1.bf16.msra.mxu0 0
      %1103 = vmatprep.subr.bf16.mxu0 0
      %1104 = vmatpush1.bf16.msra.mxu0 0
      %1105 = vmatprep.subr.bf16.mxu0 0
      %1106 = vmatpush1.bf16.msra.mxu0 0
      %1107 = vmatprep.subr.bf16.mxu0 0
      %1108 = vmatpush1.bf16.msra.mxu0 0
      %1109 = vmatprep.subr.bf16.mxu0 0
      %1110 = vmatpush1.bf16.msra.mxu0 0
      %1111 = vmatprep.subr.bf16.mxu0 0
      %1112 = vmatpush1.bf16.msra.mxu0 0
      %1113 = vmatprep.subr.bf16.mxu0 0
      %1114 = vmatpush1.bf16.msra.mxu0 0
      %1115 = vmatprep.subr.bf16.mxu0 0
      %1116 = vmatpush1.bf16.msra.mxu0 0
      %1117 = vmatprep.subr.bf16.mxu0 0
      %1118 = vmatpush1.bf16.msra.mxu0 0
      %1119 = vmatprep.subr.bf16.mxu0 0
      %1120 = vmatpush1.bf16.msra.mxu0 0
      %1121 = vmatprep.mubr.bf16.mxu0 0
      %1122 = vmatmul.mubr.bf16.gmra.mrb[0].mxu0 %v1084
      %v1123 = vpop.f32.mrb[0].mxu0
      %v1124 = vadd.f32 0.0, %v1123
      %v1125 = vpop.f32.mrb[0].mxu0
      %v1126 = vpop.f32.mrb[0].mxu0
      %v1127 = vpop.f32.mrb[0].mxu0
      %1128 = vdwg.mxu0
      %1129 = vrot.lane.b32.xlu0 %v771, 112
      %v1130 = vpop.permute.xlu0 %1129
      %v1132 = vsel %vm776, %v1030, 0
      %v1135 = vsel %vm1037, %v1130, 0
      %1137 = vmatprep.subr.bf16.mxu0 0
      %1138 = vmatpush1.bf16.msra.mxu0 %v1135
      %1139 = vmatprep.subr.bf16.mxu0 0
      %1140 = vmatpush1.bf16.msra.mxu0 0
      %1141 = vmatprep.subr.bf16.mxu0 0
      %1142 = vmatpush1.bf16.msra.mxu0 0
      %1143 = vmatprep.subr.bf16.mxu0 0
      %1144 = vmatpush1.bf16.msra.mxu0 0
      %1145 = vmatprep.subr.bf16.mxu0 0
      %1146 = vmatpush1.bf16.msra.mxu0 0
      %1147 = vmatprep.subr.bf16.mxu0 0
      %1148 = vmatpush1.bf16.msra.mxu0 0
      %1149 = vmatprep.subr.bf16.mxu0 0
      %1150 = vmatpush1.bf16.msra.mxu0 0
      %1151 = vmatprep.subr.bf16.mxu0 0
      %1152 = vmatpush1.bf16.msra.mxu0 0
      %1153 = vmatprep.subr.bf16.mxu0 0
      %1154 = vmatpush1.bf16.msra.mxu0 0
      %1155 = vmatprep.subr.bf16.mxu0 0
      %1156 = vmatpush1.bf16.msra.mxu0 0
      %1157 = vmatprep.subr.bf16.mxu0 0
      %1158 = vmatpush1.bf16.msra.mxu0 0
      %1159 = vmatprep.subr.bf16.mxu0 0
      %1160 = vmatpush1.bf16.msra.mxu0 0
      %1161 = vmatprep.subr.bf16.mxu0 0
      %1162 = vmatpush1.bf16.msra.mxu0 0
      %1163 = vmatprep.subr.bf16.mxu0 0
      %1164 = vmatpush1.bf16.msra.mxu0 0
      %1165 = vmatprep.subr.bf16.mxu0 0
      %1166 = vmatpush1.bf16.msra.mxu0 0
      %1167 = vmatprep.subr.bf16.mxu0 0
      %1168 = vmatpush1.bf16.msra.mxu0 0
      %1169 = vmatprep.mubr.bf16.mxu0 0
      %1170 = vmatmul.mubr.bf16.gmra.mrb[0].mxu0 %v1132
      %v1171 = vpop.f32.mrb[0].mxu0
      %v1172 = vadd.f32 0.0, %v1171
      %v1173 = vpop.f32.mrb[0].mxu0
      %v1174 = vpop.f32.mrb[0].mxu0
      %v1175 = vpop.f32.mrb[0].mxu0
      %1176 = vdwg.mxu0
      %1177 = vrot.lane.b32.xlu0 %v772, 112
      %v1178 = vpop.permute.xlu0 %1177
      %v1180 = vsel %vm776, %v1031, 0
      %v1183 = vsel %vm1037, %v1178, 0
      %1185 = vmatprep.subr.bf16.mxu0 0
      %1186 = vmatpush1.bf16.msra.mxu0 %v1183
      %1187 = vmatprep.subr.bf16.mxu0 0
      %1188 = vmatpush1.bf16.msra.mxu0 0
      %1189 = vmatprep.subr.bf16.mxu0 0
      %1190 = vmatpush1.bf16.msra.mxu0 0
      %1191 = vmatprep.subr.bf16.mxu0 0
      %1192 = vmatpush1.bf16.msra.mxu0 0
      %1193 = vmatprep.subr.bf16.mxu0 0
      %1194 = vmatpush1.bf16.msra.mxu0 0
      %1195 = vmatprep.subr.bf16.mxu0 0
      %1196 = vmatpush1.bf16.msra.mxu0 0
      %1197 = vmatprep.subr.bf16.mxu0 0
      %1198 = vmatpush1.bf16.msra.mxu0 0
      %1199 = vmatprep.subr.bf16.mxu0 0
      %1200 = vmatpush1.bf16.msra.mxu0 0
      %1201 = vmatprep.subr.bf16.mxu0 0
      %1202 = vmatpush1.bf16.msra.mxu0 0
      %1203 = vmatprep.subr.bf16.mxu0 0
      %1204 = vmatpush1.bf16.msra.mxu0 0
      %1205 = vmatprep.subr.bf16.mxu0 0
      %1206 = vmatpush1.bf16.msra.mxu0 0
      %1207 = vmatprep.subr.bf16.mxu0 0
      %1208 = vmatpush1.bf16.msra.mxu0 0
      %1209 = vmatprep.subr.bf16.mxu0 0
      %1210 = vmatpush1.bf16.msra.mxu0 0
      %1211 = vmatprep.subr.bf16.mxu0 0
      %1212 = vmatpush1.bf16.msra.mxu0 0
      %1213 = vmatprep.subr.bf16.mxu0 0
      %1214 = vmatpush1.bf16.msra.mxu0 0
      %1215 = vmatprep.subr.bf16.mxu0 0
      %1216 = vmatpush1.bf16.msra.mxu0 0
      %1217 = vmatprep.mubr.bf16.mxu0 0
      %1218 = vmatmul.mubr.bf16.gmra.mrb[0].mxu0 %v1180
      %v1219 = vpop.f32.mrb[0].mxu0
      %v1220 = vadd.f32 0.0, %v1219
      %v1221 = vpop.f32.mrb[0].mxu0
      %v1222 = vpop.f32.mrb[0].mxu0
      %v1223 = vpop.f32.mrb[0].mxu0
      %1224 = vdwg.mxu0
      %v1225 = vpack.c.bf16 %v1076, %v1076
      %v1226 = vpack.c.bf16 %v1124, %v1124
      %v1227 = vpack.c.bf16 %v1172, %v1172
      %v1228 = vpack.c.bf16 %v1220, %v1220
      %v1230 = vsel %vm776, %v1225, 0
      %v1233 = vsel %vm1037, %v483, 0
      %1235 = vmatprep.subr.bf16.mxu0 0
      %1236 = vmatpush1.bf16.msra.mxu0 %v1233
      %1237 = vmatprep.subr.bf16.mxu0 0
      %1238 = vmatpush1.bf16.msra.mxu0 0
      %1239 = vmatprep.subr.bf16.mxu0 0
      %1240 = vmatpush1.bf16.msra.mxu0 0
      %1241 = vmatprep.subr.bf16.mxu0 0
      %1242 = vmatpush1.bf16.msra.mxu0 0
      %1243 = vmatprep.subr.bf16.mxu0 0
      %1244 = vmatpush1.bf16.msra.mxu0 0
      %1245 = vmatprep.subr.bf16.mxu0 0
      %1246 = vmatpush1.bf16.msra.mxu0 0
      %1247 = vmatprep.subr.bf16.mxu0 0
      %1248 = vmatpush1.bf16.msra.mxu0 0
      %1249 = vmatprep.subr.bf16.mxu0 0
      %1250 = vmatpush1.bf16.msra.mxu0 0
      %1251 = vmatprep.subr.bf16.mxu0 0
      %1252 = vmatpush1.bf16.msra.mxu0 0
      %1253 = vmatprep.subr.bf16.mxu0 0
      %1254 = vmatpush1.bf16.msra.mxu0 0
      %1255 = vmatprep.subr.bf16.mxu0 0
      %1256 = vmatpush1.bf16.msra.mxu0 0
      %1257 = vmatprep.subr.bf16.mxu0 0
      %1258 = vmatpush1.bf16.msra.mxu0 0
      %1259 = vmatprep.subr.bf16.mxu0 0
      %1260 = vmatpush1.bf16.msra.mxu0 0
      %1261 = vmatprep.subr.bf16.mxu0 0
      %1262 = vmatpush1.bf16.msra.mxu0 0
      %1263 = vmatprep.subr.bf16.mxu0 0
      %1264 = vmatpush1.bf16.msra.mxu0 0
      %1265 = vmatprep.subr.bf16.mxu0 0
      %1266 = vmatpush1.bf16.msra.mxu0 0
      %1267 = vmatprep.mubr.bf16.mxu0 0
      %1268 = vmatmul.mubr.bf16.gmra.mrb[0].mxu0 %v1230
      %v1269 = vpop.f32.mrb[0].mxu0
      %v1270 = vadd.f32 0.0, %v1269
      %v1271 = vpop.f32.mrb[0].mxu0
      %v1272 = vpop.f32.mrb[0].mxu0
      %v1273 = vpop.f32.mrb[0].mxu0
      %1274 = vdwg.mxu0
      %v1276 = vsel %vm776, %v1226, 0
      %v1279 = vsel %vm1037, %v484, 0
      %1281 = vmatprep.subr.bf16.mxu0 0
      %1282 = vmatpush1.bf16.msra.mxu0 %v1279
      %1283 = vmatprep.subr.bf16.mxu0 0
      %1284 = vmatpush1.bf16.msra.mxu0 0
      %1285 = vmatprep.subr.bf16.mxu0 0
      %1286 = vmatpush1.bf16.msra.mxu0 0
      %1287 = vmatprep.subr.bf16.mxu0 0
      %1288 = vmatpush1.bf16.msra.mxu0 0
      %1289 = vmatprep.subr.bf16.mxu0 0
      %1290 = vmatpush1.bf16.msra.mxu0 0
      %1291 = vmatprep.subr.bf16.mxu0 0
      %1292 = vmatpush1.bf16.msra.mxu0 0
      %1293 = vmatprep.subr.bf16.mxu0 0
      %1294 = vmatpush1.bf16.msra.mxu0 0
      %1295 = vmatprep.subr.bf16.mxu0 0
      %1296 = vmatpush1.bf16.msra.mxu0 0
      %1297 = vmatprep.subr.bf16.mxu0 0
      %1298 = vmatpush1.bf16.msra.mxu0 0
      %1299 = vmatprep.subr.bf16.mxu0 0
      %1300 = vmatpush1.bf16.msra.mxu0 0
      %1301 = vmatprep.subr.bf16.mxu0 0
      %1302 = vmatpush1.bf16.msra.mxu0 0
      %1303 = vmatprep.subr.bf16.mxu0 0
      %1304 = vmatpush1.bf16.msra.mxu0 0
      %1305 = vmatprep.subr.bf16.mxu0 0
      %1306 = vmatpush1.bf16.msra.mxu0 0
      %1307 = vmatprep.subr.bf16.mxu0 0
      %1308 = vmatpush1.bf16.msra.mxu0 0
      %1309 = vmatprep.subr.bf16.mxu0 0
      %1310 = vmatpush1.bf16.msra.mxu0 0
      %1311 = vmatprep.subr.bf16.mxu0 0
      %1312 = vmatpush1.bf16.msra.mxu0 0
      %1313 = vmatprep.mubr.bf16.mxu0 0
      %1314 = vmatmul.mubr.bf16.gmra.mrb[0].mxu0 %v1276
      %v1315 = vpop.f32.mrb[0].mxu0
      %v1316 = vadd.f32 0.0, %v1315
      %v1317 = vpop.f32.mrb[0].mxu0
      %v1318 = vpop.f32.mrb[0].mxu0
      %v1319 = vpop.f32.mrb[0].mxu0
      %1320 = vdwg.mxu0
      %v1322 = vsel %vm776, %v1227, 0
      %v1325 = vsel %vm1037, %v485, 0
      %1327 = vmatprep.subr.bf16.mxu0 0
      %1328 = vmatpush1.bf16.msra.mxu0 %v1325
      %1329 = vmatprep.subr.bf16.mxu0 0
      %1330 = vmatpush1.bf16.msra.mxu0 0
      %1331 = vmatprep.subr.bf16.mxu0 0
      %1332 = vmatpush1.bf16.msra.mxu0 0
      %1333 = vmatprep.subr.bf16.mxu0 0
      %1334 = vmatpush1.bf16.msra.mxu0 0
      %1335 = vmatprep.subr.bf16.mxu0 0
      %1336 = vmatpush1.bf16.msra.mxu0 0
      %1337 = vmatprep.subr.bf16.mxu0 0
      %1338 = vmatpush1.bf16.msra.mxu0 0
      %1339 = vmatprep.subr.bf16.mxu0 0
      %1340 = vmatpush1.bf16.msra.mxu0 0
      %1341 = vmatprep.subr.bf16.mxu0 0
      %1342 = vmatpush1.bf16.msra.mxu0 0
      %1343 = vmatprep.subr.bf16.mxu0 0
      %1344 = vmatpush1.bf16.msra.mxu0 0
      %1345 = vmatprep.subr.bf16.mxu0 0
      %1346 = vmatpush1.bf16.msra.mxu0 0
      %1347 = vmatprep.subr.bf16.mxu0 0
      %1348 = vmatpush1.bf16.msra.mxu0 0
      %1349 = vmatprep.subr.bf16.mxu0 0
      %1350 = vmatpush1.bf16.msra.mxu0 0
      %1351 = vmatprep.subr.bf16.mxu0 0
      %1352 = vmatpush1.bf16.msra.mxu0 0
      %1353 = vmatprep.subr.bf16.mxu0 0
      %1354 = vmatpush1.bf16.msra.mxu0 0
      %1355 = vmatprep.subr.bf16.mxu0 0
      %1356 = vmatpush1.bf16.msra.mxu0 0
      %1357 = vmatprep.subr.bf16.mxu0 0
      %1358 = vmatpush1.bf16.msra.mxu0 0
      %1359 = vmatprep.mubr.bf16.mxu0 0
      %1360 = vmatmul.mubr.bf16.gmra.mrb[0].mxu0 %v1322
      %v1361 = vpop.f32.mrb[0].mxu0
      %v1362 = vadd.f32 0.0, %v1361
      %v1363 = vpop.f32.mrb[0].mxu0
      %v1364 = vpop.f32.mrb[0].mxu0
      %v1365 = vpop.f32.mrb[0].mxu0
      %1366 = vdwg.mxu0
      %v1368 = vsel %vm776, %v1228, 0
      %v1371 = vsel %vm1037, %v486, 0
      %1373 = vmatprep.subr.bf16.mxu0 0
      %1374 = vmatpush1.bf16.msra.mxu0 %v1371
      %1375 = vmatprep.subr.bf16.mxu0 0
      %1376 = vmatpush1.bf16.msra.mxu0 0
      %1377 = vmatprep.subr.bf16.mxu0 0
      %1378 = vmatpush1.bf16.msra.mxu0 0
      %1379 = vmatprep.subr.bf16.mxu0 0
      %1380 = vmatpush1.bf16.msra.mxu0 0
      %1381 = vmatprep.subr.bf16.mxu0 0
      %1382 = vmatpush1.bf16.msra.mxu0 0
      %1383 = vmatprep.subr.bf16.mxu0 0
      %1384 = vmatpush1.bf16.msra.mxu0 0
      %1385 = vmatprep.subr.bf16.mxu0 0
      %1386 = vmatpush1.bf16.msra.mxu0 0
      %1387 = vmatprep.subr.bf16.mxu0 0
      %1388 = vmatpush1.bf16.msra.mxu0 0
      %1389 = vmatprep.subr.bf16.mxu0 0
      %1390 = vmatpush1.bf16.msra.mxu0 0
      %1391 = vmatprep.subr.bf16.mxu0 0
      %1392 = vmatpush1.bf16.msra.mxu0 0
      %1393 = vmatprep.subr.bf16.mxu0 0
      %1394 = vmatpush1.bf16.msra.mxu0 0
      %1395 = vmatprep.subr.bf16.mxu0 0
      %1396 = vmatpush1.bf16.msra.mxu0 0
      %1397 = vmatprep.subr.bf16.mxu0 0
      %1398 = vmatpush1.bf16.msra.mxu0 0
      %1399 = vmatprep.subr.bf16.mxu0 0
      %1400 = vmatpush1.bf16.msra.mxu0 0
      %1401 = vmatprep.subr.bf16.mxu0 0
      %1402 = vmatpush1.bf16.msra.mxu0 0
      %1403 = vmatprep.subr.bf16.mxu0 0
      %1404 = vmatpush1.bf16.msra.mxu0 0
      %1405 = vmatprep.mubr.bf16.mxu0 0
      %1406 = vmatmul.mubr.bf16.gmra.mrb[0].mxu0 %v1368
      %v1407 = vpop.f32.mrb[0].mxu0
      %v1408 = vadd.f32 0.0, %v1407
      %v1409 = vpop.f32.mrb[0].mxu0
      %v1410 = vpop.f32.mrb[0].mxu0
      %v1411 = vpop.f32.mrb[0].mxu0
      %1412 = vdwg.mxu0
      %v1413 = vsel %vm500, %v1270, 0.0
      %v1414 = vsel %vm500, %v1316, 0.0
      %v1415 = vadd.f32 %v1413, %v1414
      %v1416 = vsel %vm500, %v1362, 0.0
      %v1417 = vadd.f32 %v1415, %v1416
      %v1418 = vsel %vm500, %v1408, 0.0
      %v1419 = vadd.f32 %v1417, %v1418
      %v1420 = vlaneseq
      %v1421 = vshrl.u32 %v1420, 7
      %v1422 = vsub.s32 2, %v1421
      %v1423 = vrot.slane %v499, %v1422
      %v1424 = vadd.f32 %v1419, %v1423
      %v1425 = vadd.f32 %v458, %v1424
      %v1426 = vsel %vm500, %v1425, 0.0
      %1427 = vadd.xlane.f32.xlu0 %v1426
      %v1428 = vpop.xlane.xlu0 %1427
      %v1429 = vmul.f32 %v1428, %v504
      %v1430 = vsub.f32 %v1425, %v1429
      %v1431 = vmul.f32 %v1430, %v1430
      %v1432 = vsel %vm500, %v1431, 0.0
      %1433 = vadd.xlane.f32.xlu0 %v1432
      %v1434 = vpop.xlane.xlu0 %1433
      %v1435 = vmul.f32 %v1434, %v511
      %v1436 = vlaneseq
      %v1437 = vshrl.u32 %v1436, 7
      %v1438 = vsub.s32 3, %v1437
      %v1439 = vrot.slane %v499, %v1438
      %v1440 = vmul.f32 %v1439, %v1430
      %v1441 = vrsqrt.pop %v1435
      %v1442 = vmul.f32 %v1435, %v1441
      %vm1443 = vcmp.eq.f32.partialorder %v1435, inf
      %v1444 = vsel %vm1443, %v1435, %v1442
      %vm1445 = vcmp.eq.f32.partialorder %v1435, 0.0
      %v1446 = vand.u32 %v1435, 2147483648
      %v1447 = vsel %vm1445, %v1446, %v1444
      %v1448 = vadd.f32 %v1447, 1e-06
      %v1449 = vrcp.pop %v1448
      %v1450 = vmul.f32 %v1440, %v1449
      %v1451 = vlaneseq
      %v1452 = vshrl.u32 %v1451, 7
      %v1453 = vsub.s32 4, %v1452
      %v1454 = vrot.slane %v499, %v1453
      %v1455 = vadd.f32 %v1450, %v1454
      %v1456 = vpack.c.bf16 %v1455, %v1455
      %v1457 = vlaneseq
      %v1458 = vshrl.u32 %v1457, 7
      %v1459 = vsub.s32 5, %v1458
      %v1460 = vrot.slane %v499, %v1459
      %v1465 = vunpack.c.l.b16 %v487
      %v1466 = vunpack.c.l.b16 %v488
      %v1467 = vunpack.c.l.b16 %v489
      %v1468 = vunpack.c.l.b16 %v490
      %v1469 = vpack.c.b16 %v1466, %v1465
      %v1470 = vpack.c.b16 %v1468, %v1467
      %v1474 = vsel %vm500, %v1456, 0
      %1476 = vmatprep.subr.bf16.mxu0 0
      %1477 = vmatpush1.bf16.msra.mxu0 %v1469
      %1478 = vmatprep.subr.bf16.mxu0 0
      %1479 = vmatpush1.bf16.msra.mxu0 %v1470
      %1480 = vmatprep.subr.bf16.mxu0 0
      %1481 = vmatpush1.bf16.msra.mxu0 0
      %1482 = vmatprep.subr.bf16.mxu0 0
      %1483 = vmatpush1.bf16.msra.mxu0 0
      %1484 = vmatprep.subr.bf16.mxu0 0
      %1485 = vmatpush1.bf16.msra.mxu0 0
      %1486 = vmatprep.subr.bf16.mxu0 0
      %1487 = vmatpush1.bf16.msra.mxu0 0
      %1488 = vmatprep.subr.bf16.mxu0 0
      %1489 = vmatpush1.bf16.msra.mxu0 0
      %1490 = vmatprep.subr.bf16.mxu0 0
      %1491 = vmatpush1.bf16.msra.mxu0 0
      %1492 = vmatprep.subr.bf16.mxu0 0
      %1493 = vmatpush1.bf16.msra.mxu0 0
      %1494 = vmatprep.subr.bf16.mxu0 0
      %1495 = vmatpush1.bf16.msra.mxu0 0
      %1496 = vmatprep.subr.bf16.mxu0 0
      %1497 = vmatpush1.bf16.msra.mxu0 0
      %1498 = vmatprep.subr.bf16.mxu0 0
      %1499 = vmatpush1.bf16.msra.mxu0 0
      %1500 = vmatprep.subr.bf16.mxu0 0
      %1501 = vmatpush1.bf16.msra.mxu0 0
      %1502 = vmatprep.subr.bf16.mxu0 0
      %1503 = vmatpush1.bf16.msra.mxu0 0
      %1504 = vmatprep.subr.bf16.mxu0 0
      %1505 = vmatpush1.bf16.msra.mxu0 0
      %1506 = vmatprep.subr.bf16.mxu0 0
      %1507 = vmatpush1.bf16.msra.mxu0 0
      %1508 = vmatprep.mubr.bf16.mxu0 0
      %1509 = vmatmul.mubr.bf16.gmra.mrb[0].mxu0 %v1474
      %v1510 = vpop.f32.mrb[0].mxu0
      %v1511 = vadd.f32 %v1460, %v1510
      %v1512 = vpop.f32.mrb[0].mxu0
      %v1513 = vpop.f32.mrb[0].mxu0
      %v1514 = vpop.f32.mrb[0].mxu0
      %1515 = vdwg.mxu0
      %v1516 = vmax.f32 %v1511, 0.0
      %v1517 = vpack.c.bf16 %v1516, %v1516
      %v1526 = vunpack.c.l.b16 %v491
      %v1527 = vunpack.c.l.b16 %v492
      %v1528 = vunpack.c.l.b16 %v493
      %v1529 = vunpack.c.l.b16 %v494
      %v1530 = vunpack.c.l.b16 %v495
      %v1531 = vunpack.c.l.b16 %v496
      %v1532 = vunpack.c.l.b16 %v497
      %v1533 = vunpack.c.l.b16 %v498
      %v1534 = vpack.c.b16 %v1527, %v1526
      %v1535 = vpack.c.b16 %v1529, %v1528
      %v1536 = vpack.c.b16 %v1531, %v1530
      %v1537 = vpack.c.b16 %v1533, %v1532
      %vm1542 = vcmask 523264
      %v1544 = vsel %vm1542, %v1517, 0
      %1546 = vmatprep.subr.bf16.mxu0 0
      %1547 = vmatpush1.bf16.msra.mxu0 %v1534
      %1548 = vmatprep.subr.bf16.mxu0 0
      %1549 = vmatpush1.bf16.msra.mxu0 %v1535
      %1550 = vmatprep.subr.bf16.mxu0 0
      %1551 = vmatpush1.bf16.msra.mxu0 %v1536
      %1552 = vmatprep.subr.bf16.mxu0 0
      %1553 = vmatpush1.bf16.msra.mxu0 %v1537
      %1554 = vmatprep.subr.bf16.mxu0 0
      %1555 = vmatpush1.bf16.msra.mxu0 0
      %1556 = vmatprep.subr.bf16.mxu0 0
      %1557 = vmatpush1.bf16.msra.mxu0 0
      %1558 = vmatprep.subr.bf16.mxu0 0
      %1559 = vmatpush1.bf16.msra.mxu0 0
      %1560 = vmatprep.subr.bf16.mxu0 0
      %1561 = vmatpush1.bf16.msra.mxu0 0
      %1562 = vmatprep.subr.bf16.mxu0 0
      %1563 = vmatpush1.bf16.msra.mxu0 0
      %1564 = vmatprep.subr.bf16.mxu0 0
      %1565 = vmatpush1.bf16.msra.mxu0 0
      %1566 = vmatprep.subr.bf16.mxu0 0
      %1567 = vmatpush1.bf16.msra.mxu0 0
      %1568 = vmatprep.subr.bf16.mxu0 0
      %1569 = vmatpush1.bf16.msra.mxu0 0
      %1570 = vmatprep.subr.bf16.mxu0 0
      %1571 = vmatpush1.bf16.msra.mxu0 0
      %1572 = vmatprep.subr.bf16.mxu0 0
      %1573 = vmatpush1.bf16.msra.mxu0 0
      %1574 = vmatprep.subr.bf16.mxu0 0
      %1575 = vmatpush1.bf16.msra.mxu0 0
      %1576 = vmatprep.subr.bf16.mxu0 0
      %1577 = vmatpush1.bf16.msra.mxu0 0
      %1578 = vmatprep.mubr.bf16.mxu0 0
      %1579 = vmatmul.mubr.bf16.gmra.mrb[0].mxu0 %v1544
      %v1580 = vpop.f32.mrb[0].mxu0
      %v1581 = vadd.f32 0.0, %v1580
      %v1582 = vpop.f32.mrb[0].mxu0
      %v1583 = vpop.f32.mrb[0].mxu0
      %v1584 = vpop.f32.mrb[0].mxu0
      %1585 = vdwg.mxu0
      %v1586 = vadd.f32 %v1425, %v1581
      %v1587 = vlaneseq
      %v1588 = vshrl.u32 %v1587, 7
      %v1589 = vsub.s32 6, %v1588
      %v1590 = vrot.slane %v499, %v1589
      %v1591 = vadd.f32 %v1586, %v1590
      %s1592 = scalar_lea.vmem %s4, 64
      %v1593 = vld [vmem:[%s1592] sm:$0xf]
      %v1594 = vld [vmem:[%s1592 + $0x4] sm:$0xf]
      %v1595 = vld [vmem:[%s1592 + $0x8] sm:$0xf]
      %v1596 = vld [vmem:[%s1592 + $0xc] sm:$0xf]
      %v1597 = vld [vmem:[%s1592 + $0x10] sm:$0xf]
      %v1598 = vld [vmem:[%s1592 + $0x14] sm:$0xf]
      %v1599 = vld [vmem:[%s1592 + $0x18] sm:$0xf]
      %v1600 = vld [vmem:[%s1592 + $0x1c] sm:$0xf]
      %v1601 = vld [vmem:[%s1592 + $0x20] sm:$0xf]
      %v1602 = vld [vmem:[%s1592 + $0x24] sm:$0xf]
      %v1603 = vld [vmem:[%s1592 + $0x28] sm:$0xf]
      %v1604 = vld [vmem:[%s1592 + $0x2c] sm:$0xf]
      %v1605 = vld [vmem:[%s1592 + $0x30] sm:$0xf]
      %v1606 = vld [vmem:[%s1592 + $0x34] sm:$0xf]
      %v1607 = vld [vmem:[%s1592 + $0x38] sm:$0xf]
      %v1608 = vld [vmem:[%s1592 + $0x3c] sm:$0xf]
      %s1609 = scalar_lea.vmem %s5, 4
      %v1610 = vld [vmem:[%s1609] sm:$0x1]
      %v1611 = vld [vmem:[%s1609 + $0x1] sm:$0x1]
      %v1612 = vld [vmem:[%s1609 + $0x2] sm:$0x1]
      %v1613 = vld [vmem:[%s1609 + $0x3] sm:$0x1]
      %s1614 = scalar_lea.vmem %s6, 16
      %v1615 = vld [vmem:[%s1614] sm:$0xf]
      %v1616 = vld [vmem:[%s1614 + $0x4] sm:$0xf]
      %v1617 = vld [vmem:[%s1614 + $0x8] sm:$0xf]
      %v1618 = vld [vmem:[%s1614 + $0xc] sm:$0xf]
      %s1619 = scalar_lea.vmem %s7, 16
      %v1620 = vld [vmem:[%s1619] sm:$0xf]
      %v1621 = vld [vmem:[%s1619 + $0x4] sm:$0xf]
      %v1622 = vld [vmem:[%s1619 + $0x8] sm:$0xf]
      %v1623 = vld [vmem:[%s1619 + $0xc] sm:$0xf]
      %s1624 = scalar_lea.vmem %s8, 32
      %v1625 = vld [vmem:[%s1624] sm:$0xf]
      %v1626 = vld [vmem:[%s1624 + $0x4] sm:$0xf]
      %v1627 = vld [vmem:[%s1624 + $0x8] sm:$0xf]
      %v1628 = vld [vmem:[%s1624 + $0xc] sm:$0xf]
      %v1629 = vld [vmem:[%s1624 + $0x10] sm:$0xf]
      %v1630 = vld [vmem:[%s1624 + $0x14] sm:$0xf]
      %v1631 = vld [vmem:[%s1624 + $0x18] sm:$0xf]
      %v1632 = vld [vmem:[%s1624 + $0x1c] sm:$0xf]
      %s1633 = scalar_lea.vmem %s9, 24
      %v1634 = vld [vmem:[%s1633] sm:$0xff]
      %v1635 = vsel %vm500, %v1591, 0.0
      %1636 = vadd.xlane.f32.xlu0 %v1635
      %v1637 = vpop.xlane.xlu0 %1636
      %v1638 = vmul.f32 %v1637, %v504
      %v1639 = vsub.f32 %v1591, %v1638
      %v1640 = vmul.f32 %v1639, %v1639
      %v1641 = vsel %vm500, %v1640, 0.0
      %1642 = vadd.xlane.f32.xlu0 %v1641
      %v1643 = vpop.xlane.xlu0 %1642
      %v1644 = vmul.f32 %v1643, %v511
      %v1645 = vlaneseq
      %v1646 = vshrl.u32 %v1645, 7
      %v1647 = vsub.s32 0, %v1646
      %v1648 = vrot.slane %v1634, %v1647
      %v1649 = vmul.f32 %v1648, %v1639
      %v1650 = vrsqrt.pop %v1644
      %v1651 = vmul.f32 %v1644, %v1650
      %vm1652 = vcmp.eq.f32.partialorder %v1644, inf
      %v1653 = vsel %vm1652, %v1644, %v1651
      %vm1654 = vcmp.eq.f32.partialorder %v1644, 0.0
      %v1655 = vand.u32 %v1644, 2147483648
      %v1656 = vsel %vm1654, %v1655, %v1653
      %v1657 = vadd.f32 %v1656, 1e-06
      %v1658 = vrcp.pop %v1657
      %v1659 = vmul.f32 %v1649, %v1658
      %v1660 = vlaneseq
      %v1661 = vshrl.u32 %v1660, 7
      %v1662 = vsub.s32 1, %v1661
      %v1663 = vrot.slane %v1634, %v1662
      %v1664 = vadd.f32 %v1659, %v1663
      %v1665 = vpack.c.bf16 %v1664, %v1664
      %v1670 = vlaneseq
      %v1671 = vshrl.u32 %v1670, 7
      %v1672 = vsub.s32 0, %v1671
      %v1673 = vrot.slane %v1610, %v1672
      %v1674 = vlaneseq
      %v1675 = vshrl.u32 %v1674, 7
      %v1676 = vsub.s32 0, %v1675
      %v1677 = vrot.slane %v1611, %v1676
      %v1678 = vlaneseq
      %v1679 = vshrl.u32 %v1678, 7
      %v1680 = vsub.s32 0, %v1679
      %v1681 = vrot.slane %v1612, %v1680
      %v1682 = vlaneseq
      %v1683 = vshrl.u32 %v1682, 7
      %v1684 = vsub.s32 0, %v1683
      %v1685 = vrot.slane %v1613, %v1684
      %v1694 = vunpack.c.l.b16 %v1593
      %v1695 = vunpack.c.l.b16 %v1594
      %v1696 = vunpack.c.l.b16 %v1595
      %v1697 = vunpack.c.l.b16 %v1596
      %v1698 = vpack.c.b16 %v1695, %v1694
      %v1699 = vpack.c.b16 %v1697, %v1696
      %v1703 = vsel %vm500, %v1665, 0
      %1705 = vmatprep.subr.bf16.mxu0 0
      %1706 = vmatpush1.bf16.msra.mxu0 %v1698
      %1707 = vmatprep.subr.bf16.mxu0 0
      %1708 = vmatpush1.bf16.msra.mxu0 %v1699
      %1709 = vmatprep.subr.bf16.mxu0 0
      %1710 = vmatpush1.bf16.msra.mxu0 0
      %1711 = vmatprep.subr.bf16.mxu0 0
      %1712 = vmatpush1.bf16.msra.mxu0 0
      %1713 = vmatprep.subr.bf16.mxu0 0
      %1714 = vmatpush1.bf16.msra.mxu0 0
      %1715 = vmatprep.subr.bf16.mxu0 0
      %1716 = vmatpush1.bf16.msra.mxu0 0
      %1717 = vmatprep.subr.bf16.mxu0 0
      %1718 = vmatpush1.bf16.msra.mxu0 0
      %1719 = vmatprep.subr.bf16.mxu0 0
      %1720 = vmatpush1.bf16.msra.mxu0 0
      %1721 = vmatprep.subr.bf16.mxu0 0
      %1722 = vmatpush1.bf16.msra.mxu0 0
      %1723 = vmatprep.subr.bf16.mxu0 0
      %1724 = vmatpush1.bf16.msra.mxu0 0
      %1725 = vmatprep.subr.bf16.mxu0 0
      %1726 = vmatpush1.bf16.msra.mxu0 0
      %1727 = vmatprep.subr.bf16.mxu0 0
      %1728 = vmatpush1.bf16.msra.mxu0 0
      %1729 = vmatprep.subr.bf16.mxu0 0
      %1730 = vmatpush1.bf16.msra.mxu0 0
      %1731 = vmatprep.subr.bf16.mxu0 0
      %1732 = vmatpush1.bf16.msra.mxu0 0
      %1733 = vmatprep.subr.bf16.mxu0 0
      %1734 = vmatpush1.bf16.msra.mxu0 0
      %1735 = vmatprep.subr.bf16.mxu0 0
      %1736 = vmatpush1.bf16.msra.mxu0 0
      %1737 = vmatprep.mubr.bf16.mxu0 0
      %1738 = vmatmul.mubr.bf16.gmra.mrb[0].mxu0 %v1703
      %v1739 = vpop.f32.mrb[0].mxu0
      %v1740 = vadd.f32 %v1673, %v1739
      %v1741 = vpop.f32.mrb[0].mxu0
      %v1742 = vpop.f32.mrb[0].mxu0
      %v1743 = vpop.f32.mrb[0].mxu0
      %1744 = vdwg.mxu0
      %v1749 = vunpack.c.l.b16 %v1597
      %v1750 = vunpack.c.l.b16 %v1598
      %v1751 = vunpack.c.l.b16 %v1599
      %v1752 = vunpack.c.l.b16 %v1600
      %v1753 = vpack.c.b16 %v1750, %v1749
      %v1754 = vpack.c.b16 %v1752, %v1751
      %1757 = vmatprep.subr.bf16.mxu0 0
      %1758 = vmatpush1.bf16.msra.mxu0 %v1753
      %1759 = vmatprep.subr.bf16.mxu0 0
      %1760 = vmatpush1.bf16.msra.mxu0 %v1754
      %1761 = vmatprep.subr.bf16.mxu0 0
      %1762 = vmatpush1.bf16.msra.mxu0 0
      %1763 = vmatprep.subr.bf16.mxu0 0
      %1764 = vmatpush1.bf16.msra.mxu0 0
      %1765 = vmatprep.subr.bf16.mxu0 0
      %1766 = vmatpush1.bf16.msra.mxu0 0
      %1767 = vmatprep.subr.bf16.mxu0 0
      %1768 = vmatpush1.bf16.msra.mxu0 0
      %1769 = vmatprep.subr.bf16.mxu0 0
      %1770 = vmatpush1.bf16.msra.mxu0 0
      %1771 = vmatprep.subr.bf16.mxu0 0
      %1772 = vmatpush1.bf16.msra.mxu0 0
      %1773 = vmatprep.subr.bf16.mxu0 0
      %1774 = vmatpush1.bf16.msra.mxu0 0
      %1775 = vmatprep.subr.bf16.mxu0 0
      %1776 = vmatpush1.bf16.msra.mxu0 0
      %1777 = vmatprep.subr.bf16.mxu0 0
      %1778 = vmatpush1.bf16.msra.mxu0 0
      %1779 = vmatprep.subr.bf16.mxu0 0
      %1780 = vmatpush1.bf16.msra.mxu0 0
      %1781 = vmatprep.subr.bf16.mxu0 0
      %1782 = vmatpush1.bf16.msra.mxu0 0
      %1783 = vmatprep.subr.bf16.mxu0 0
      %1784 = vmatpush1.bf16.msra.mxu0 0
      %1785 = vmatprep.subr.bf16.mxu0 0
      %1786 = vmatpush1.bf16.msra.mxu0 0
      %1787 = vmatprep.subr.bf16.mxu0 0
      %1788 = vmatpush1.bf16.msra.mxu0 0
      %1789 = vmatprep.mubr.bf16.mxu0 0
      %1790 = vmatmul.mubr.bf16.gmra.mrb[0].mxu0 %v1703
      %v1791 = vpop.f32.mrb[0].mxu0
      %v1792 = vadd.f32 %v1677, %v1791
      %v1793 = vpop.f32.mrb[0].mxu0
      %v1794 = vpop.f32.mrb[0].mxu0
      %v1795 = vpop.f32.mrb[0].mxu0
      %1796 = vdwg.mxu0
      %v1801 = vunpack.c.l.b16 %v1601
      %v1802 = vunpack.c.l.b16 %v1602
      %v1803 = vunpack.c.l.b16 %v1603
      %v1804 = vunpack.c.l.b16 %v1604
      %v1805 = vpack.c.b16 %v1802, %v1801
      %v1806 = vpack.c.b16 %v1804, %v1803
      %1809 = vmatprep.subr.bf16.mxu0 0
      %1810 = vmatpush1.bf16.msra.mxu0 %v1805
      %1811 = vmatprep.subr.bf16.mxu0 0
      %1812 = vmatpush1.bf16.msra.mxu0 %v1806
      %1813 = vmatprep.subr.bf16.mxu0 0
      %1814 = vmatpush1.bf16.msra.mxu0 0
      %1815 = vmatprep.subr.bf16.mxu0 0
      %1816 = vmatpush1.bf16.msra.mxu0 0
      %1817 = vmatprep.subr.bf16.mxu0 0
      %1818 = vmatpush1.bf16.msra.mxu0 0
      %1819 = vmatprep.subr.bf16.mxu0 0
      %1820 = vmatpush1.bf16.msra.mxu0 0
      %1821 = vmatprep.subr.bf16.mxu0 0
      %1822 = vmatpush1.bf16.msra.mxu0 0
      %1823 = vmatprep.subr.bf16.mxu0 0
      %1824 = vmatpush1.bf16.msra.mxu0 0
      %1825 = vmatprep.subr.bf16.mxu0 0
      %1826 = vmatpush1.bf16.msra.mxu0 0
      %1827 = vmatprep.subr.bf16.mxu0 0
      %1828 = vmatpush1.bf16.msra.mxu0 0
      %1829 = vmatprep.subr.bf16.mxu0 0
      %1830 = vmatpush1.bf16.msra.mxu0 0
      %1831 = vmatprep.subr.bf16.mxu0 0
      %1832 = vmatpush1.bf16.msra.mxu0 0
      %1833 = vmatprep.subr.bf16.mxu0 0
      %1834 = vmatpush1.bf16.msra.mxu0 0
      %1835 = vmatprep.subr.bf16.mxu0 0
      %1836 = vmatpush1.bf16.msra.mxu0 0
      %1837 = vmatprep.subr.bf16.mxu0 0
      %1838 = vmatpush1.bf16.msra.mxu0 0
      %1839 = vmatprep.subr.bf16.mxu0 0
      %1840 = vmatpush1.bf16.msra.mxu0 0
      %1841 = vmatprep.mubr.bf16.mxu0 0
      %1842 = vmatmul.mubr.bf16.gmra.mrb[0].mxu0 %v1703
      %v1843 = vpop.f32.mrb[0].mxu0
      %v1844 = vadd.f32 %v1681, %v1843
      %v1845 = vpop.f32.mrb[0].mxu0
      %v1846 = vpop.f32.mrb[0].mxu0
      %v1847 = vpop.f32.mrb[0].mxu0
      %1848 = vdwg.mxu0
      %v1853 = vunpack.c.l.b16 %v1605
      %v1854 = vunpack.c.l.b16 %v1606
      %v1855 = vunpack.c.l.b16 %v1607
      %v1856 = vunpack.c.l.b16 %v1608
      %v1857 = vpack.c.b16 %v1854, %v1853
      %v1858 = vpack.c.b16 %v1856, %v1855
      %1861 = vmatprep.subr.bf16.mxu0 0
      %1862 = vmatpush1.bf16.msra.mxu0 %v1857
      %1863 = vmatprep.subr.bf16.mxu0 0
      %1864 = vmatpush1.bf16.msra.mxu0 %v1858
      %1865 = vmatprep.subr.bf16.mxu0 0
      %1866 = vmatpush1.bf16.msra.mxu0 0
      %1867 = vmatprep.subr.bf16.mxu0 0
      %1868 = vmatpush1.bf16.msra.mxu0 0
      %1869 = vmatprep.subr.bf16.mxu0 0
      %1870 = vmatpush1.bf16.msra.mxu0 0
      %1871 = vmatprep.subr.bf16.mxu0 0
      %1872 = vmatpush1.bf16.msra.mxu0 0
      %1873 = vmatprep.subr.bf16.mxu0 0
      %1874 = vmatpush1.bf16.msra.mxu0 0
      %1875 = vmatprep.subr.bf16.mxu0 0
      %1876 = vmatpush1.bf16.msra.mxu0 0
      %1877 = vmatprep.subr.bf16.mxu0 0
      %1878 = vmatpush1.bf16.msra.mxu0 0
      %1879 = vmatprep.subr.bf16.mxu0 0
      %1880 = vmatpush1.bf16.msra.mxu0 0
      %1881 = vmatprep.subr.bf16.mxu0 0
      %1882 = vmatpush1.bf16.msra.mxu0 0
      %1883 = vmatprep.subr.bf16.mxu0 0
      %1884 = vmatpush1.bf16.msra.mxu0 0
      %1885 = vmatprep.subr.bf16.mxu0 0
      %1886 = vmatpush1.bf16.msra.mxu0 0
      %1887 = vmatprep.subr.bf16.mxu0 0
      %1888 = vmatpush1.bf16.msra.mxu0 0
      %1889 = vmatprep.subr.bf16.mxu0 0
      %1890 = vmatpush1.bf16.msra.mxu0 0
      %1891 = vmatprep.subr.bf16.mxu0 0
      %1892 = vmatpush1.bf16.msra.mxu0 0
      %1893 = vmatprep.mubr.bf16.mxu0 0
      %1894 = vmatmul.mubr.bf16.gmra.mrb[0].mxu0 %v1703
      %v1895 = vpop.f32.mrb[0].mxu0
      %v1896 = vadd.f32 %v1685, %v1895
      %v1897 = vpop.f32.mrb[0].mxu0
      %v1898 = vpop.f32.mrb[0].mxu0
      %v1899 = vpop.f32.mrb[0].mxu0
      %1900 = vdwg.mxu0
      %v1901 = vpack.c.bf16 %v1740, %v1740
      %v1902 = vpack.c.bf16 %v1792, %v1792
      %v1903 = vpack.c.bf16 %v1844, %v1844
      %v1904 = vpack.c.bf16 %v1896, %v1896
      %1906 = vrot.lane.b32.xlu0 %v1901, 120
      %v1907 = vpop.permute.xlu0 %1906
      %v1909 = vsel %vm776, %v1901, 0
      %v1912 = vsel %vm776, %v1907, 0
      %1914 = vmatprep.subr.bf16.mxu0 0
      %1915 = vmatpush1.bf16.xpose.msra.mxu0 %v1912
      %1916 = vmatprep.subr.bf16.mxu0 0
      %1917 = vmatpush1.bf16.xpose.msra.mxu0 0
      %1918 = vmatprep.subr.bf16.mxu0 0
      %1919 = vmatpush1.bf16.xpose.msra.mxu0 0
      %1920 = vmatprep.subr.bf16.mxu0 0
      %1921 = vmatpush1.bf16.xpose.msra.mxu0 0
      %1922 = vmatprep.subr.bf16.mxu0 0
      %1923 = vmatpush1.bf16.xpose.msra.mxu0 0
      %1924 = vmatprep.subr.bf16.mxu0 0
      %1925 = vmatpush1.bf16.xpose.msra.mxu0 0
      %1926 = vmatprep.subr.bf16.mxu0 0
      %1927 = vmatpush1.bf16.xpose.msra.mxu0 0
      %1928 = vmatprep.subr.bf16.mxu0 0
      %1929 = vmatpush1.bf16.xpose.msra.mxu0 0
      %1930 = vmatprep.subr.bf16.mxu0 0
      %1931 = vmatpush1.bf16.xpose.msra.mxu0 0
      %1932 = vmatprep.subr.bf16.mxu0 0
      %1933 = vmatpush1.bf16.xpose.msra.mxu0 0
      %1934 = vmatprep.subr.bf16.mxu0 0
      %1935 = vmatpush1.bf16.xpose.msra.mxu0 0
      %1936 = vmatprep.subr.bf16.mxu0 0
      %1937 = vmatpush1.bf16.xpose.msra.mxu0 0
      %1938 = vmatprep.subr.bf16.mxu0 0
      %1939 = vmatpush1.bf16.xpose.msra.mxu0 0
      %1940 = vmatprep.subr.bf16.mxu0 0
      %1941 = vmatpush1.bf16.xpose.msra.mxu0 0
      %1942 = vmatprep.subr.bf16.mxu0 0
      %1943 = vmatpush1.bf16.xpose.msra.mxu0 0
      %1944 = vmatprep.subr.bf16.mxu0 0
      %1945 = vmatpush1.bf16.xpose.msra.mxu0 0
      %1946 = vmatprep.mubr.bf16.mxu0 0
      %1947 = vmatmul.mubr.bf16.gmra.mrb[0].mxu0 %v1909
      %v1948 = vpop.f32.mrb[0].mxu0
      %v1949 = vadd.f32 0.0, %v1948
      %v1950 = vpop.f32.mrb[0].mxu0
      %v1951 = vpop.f32.mrb[0].mxu0
      %v1952 = vpop.f32.mrb[0].mxu0
      %1953 = vdwg.mxu0
      %1955 = vrot.lane.b32.xlu0 %v1902, 120
      %v1956 = vpop.permute.xlu0 %1955
      %v1958 = vsel %vm776, %v1902, 0
      %v1961 = vsel %vm776, %v1956, 0
      %1963 = vmatprep.subr.bf16.mxu0 0
      %1964 = vmatpush1.bf16.xpose.msra.mxu0 %v1961
      %1965 = vmatprep.subr.bf16.mxu0 0
      %1966 = vmatpush1.bf16.xpose.msra.mxu0 0
      %1967 = vmatprep.subr.bf16.mxu0 0
      %1968 = vmatpush1.bf16.xpose.msra.mxu0 0
      %1969 = vmatprep.subr.bf16.mxu0 0
      %1970 = vmatpush1.bf16.xpose.msra.mxu0 0
      %1971 = vmatprep.subr.bf16.mxu0 0
      %1972 = vmatpush1.bf16.xpose.msra.mxu0 0
      %1973 = vmatprep.subr.bf16.mxu0 0
      %1974 = vmatpush1.bf16.xpose.msra.mxu0 0
      %1975 = vmatprep.subr.bf16.mxu0 0
      %1976 = vmatpush1.bf16.xpose.msra.mxu0 0
      %1977 = vmatprep.subr.bf16.mxu0 0
      %1978 = vmatpush1.bf16.xpose.msra.mxu0 0
      %1979 = vmatprep.subr.bf16.mxu0 0
      %1980 = vmatpush1.bf16.xpose.msra.mxu0 0
      %1981 = vmatprep.subr.bf16.mxu0 0
      %1982 = vmatpush1.bf16.xpose.msra.mxu0 0
      %1983 = vmatprep.subr.bf16.mxu0 0
      %1984 = vmatpush1.bf16.xpose.msra.mxu0 0
      %1985 = vmatprep.subr.bf16.mxu0 0
      %1986 = vmatpush1.bf16.xpose.msra.mxu0 0
      %1987 = vmatprep.subr.bf16.mxu0 0
      %1988 = vmatpush1.bf16.xpose.msra.mxu0 0
      %1989 = vmatprep.subr.bf16.mxu0 0
      %1990 = vmatpush1.bf16.xpose.msra.mxu0 0
      %1991 = vmatprep.subr.bf16.mxu0 0
      %1992 = vmatpush1.bf16.xpose.msra.mxu0 0
      %1993 = vmatprep.subr.bf16.mxu0 0
      %1994 = vmatpush1.bf16.xpose.msra.mxu0 0
      %1995 = vmatprep.mubr.bf16.mxu0 0
      %1996 = vmatmul.mubr.bf16.gmra.mrb[0].mxu0 %v1958
      %v1997 = vpop.f32.mrb[0].mxu0
      %v1998 = vadd.f32 0.0, %v1997
      %v1999 = vpop.f32.mrb[0].mxu0
      %v2000 = vpop.f32.mrb[0].mxu0
      %v2001 = vpop.f32.mrb[0].mxu0
      %2002 = vdwg.mxu0
      %2004 = vrot.lane.b32.xlu0 %v1903, 120
      %v2005 = vpop.permute.xlu0 %2004
      %v2007 = vsel %vm776, %v1903, 0
      %v2010 = vsel %vm776, %v2005, 0
      %2012 = vmatprep.subr.bf16.mxu0 0
      %2013 = vmatpush1.bf16.xpose.msra.mxu0 %v2010
      %2014 = vmatprep.subr.bf16.mxu0 0
      %2015 = vmatpush1.bf16.xpose.msra.mxu0 0
      %2016 = vmatprep.subr.bf16.mxu0 0
      %2017 = vmatpush1.bf16.xpose.msra.mxu0 0
      %2018 = vmatprep.subr.bf16.mxu0 0
      %2019 = vmatpush1.bf16.xpose.msra.mxu0 0
      %2020 = vmatprep.subr.bf16.mxu0 0
      %2021 = vmatpush1.bf16.xpose.msra.mxu0 0
      %2022 = vmatprep.subr.bf16.mxu0 0
      %2023 = vmatpush1.bf16.xpose.msra.mxu0 0
      %2024 = vmatprep.subr.bf16.mxu0 0
      %2025 = vmatpush1.bf16.xpose.msra.mxu0 0
      %2026 = vmatprep.subr.bf16.mxu0 0
      %2027 = vmatpush1.bf16.xpose.msra.mxu0 0
      %2028 = vmatprep.subr.bf16.mxu0 0
      %2029 = vmatpush1.bf16.xpose.msra.mxu0 0
      %2030 = vmatprep.subr.bf16.mxu0 0
      %2031 = vmatpush1.bf16.xpose.msra.mxu0 0
      %2032 = vmatprep.subr.bf16.mxu0 0
      %2033 = vmatpush1.bf16.xpose.msra.mxu0 0
      %2034 = vmatprep.subr.bf16.mxu0 0
      %2035 = vmatpush1.bf16.xpose.msra.mxu0 0
      %2036 = vmatprep.subr.bf16.mxu0 0
      %2037 = vmatpush1.bf16.xpose.msra.mxu0 0
      %2038 = vmatprep.subr.bf16.mxu0 0
      %2039 = vmatpush1.bf16.xpose.msra.mxu0 0
      %2040 = vmatprep.subr.bf16.mxu0 0
      %2041 = vmatpush1.bf16.xpose.msra.mxu0 0
      %2042 = vmatprep.subr.bf16.mxu0 0
      %2043 = vmatpush1.bf16.xpose.msra.mxu0 0
      %2044 = vmatprep.mubr.bf16.mxu0 0
      %2045 = vmatmul.mubr.bf16.gmra.mrb[0].mxu0 %v2007
      %v2046 = vpop.f32.mrb[0].mxu0
      %v2047 = vadd.f32 0.0, %v2046
      %v2048 = vpop.f32.mrb[0].mxu0
      %v2049 = vpop.f32.mrb[0].mxu0
      %v2050 = vpop.f32.mrb[0].mxu0
      %2051 = vdwg.mxu0
      %2053 = vrot.lane.b32.xlu0 %v1904, 120
      %v2054 = vpop.permute.xlu0 %2053
      %v2056 = vsel %vm776, %v1904, 0
      %v2059 = vsel %vm776, %v2054, 0
      %2061 = vmatprep.subr.bf16.mxu0 0
      %2062 = vmatpush1.bf16.xpose.msra.mxu0 %v2059
      %2063 = vmatprep.subr.bf16.mxu0 0
      %2064 = vmatpush1.bf16.xpose.msra.mxu0 0
      %2065 = vmatprep.subr.bf16.mxu0 0
      %2066 = vmatpush1.bf16.xpose.msra.mxu0 0
      %2067 = vmatprep.subr.bf16.mxu0 0
      %2068 = vmatpush1.bf16.xpose.msra.mxu0 0
      %2069 = vmatprep.subr.bf16.mxu0 0
      %2070 = vmatpush1.bf16.xpose.msra.mxu0 0
      %2071 = vmatprep.subr.bf16.mxu0 0
      %2072 = vmatpush1.bf16.xpose.msra.mxu0 0
      %2073 = vmatprep.subr.bf16.mxu0 0
      %2074 = vmatpush1.bf16.xpose.msra.mxu0 0
      %2075 = vmatprep.subr.bf16.mxu0 0
      %2076 = vmatpush1.bf16.xpose.msra.mxu0 0
      %2077 = vmatprep.subr.bf16.mxu0 0
      %2078 = vmatpush1.bf16.xpose.msra.mxu0 0
      %2079 = vmatprep.subr.bf16.mxu0 0
      %2080 = vmatpush1.bf16.xpose.msra.mxu0 0
      %2081 = vmatprep.subr.bf16.mxu0 0
      %2082 = vmatpush1.bf16.xpose.msra.mxu0 0
      %2083 = vmatprep.subr.bf16.mxu0 0
      %2084 = vmatpush1.bf16.xpose.msra.mxu0 0
      %2085 = vmatprep.subr.bf16.mxu0 0
      %2086 = vmatpush1.bf16.xpose.msra.mxu0 0
      %2087 = vmatprep.subr.bf16.mxu0 0
      %2088 = vmatpush1.bf16.xpose.msra.mxu0 0
      %2089 = vmatprep.subr.bf16.mxu0 0
      %2090 = vmatpush1.bf16.xpose.msra.mxu0 0
      %2091 = vmatprep.subr.bf16.mxu0 0
      %2092 = vmatpush1.bf16.xpose.msra.mxu0 0
      %2093 = vmatprep.mubr.bf16.mxu0 0
      %2094 = vmatmul.mubr.bf16.gmra.mrb[0].mxu0 %v2056
      %v2095 = vpop.f32.mrb[0].mxu0
      %v2096 = vadd.f32 0.0, %v2095
      %v2097 = vpop.f32.mrb[0].mxu0
      %v2098 = vpop.f32.mrb[0].mxu0
      %v2099 = vpop.f32.mrb[0].mxu0
      %2100 = vdwg.mxu0
      %v2101 = vmul.f32 %v1949, 0.35355338
      %v2102 = vmul.f32 %v1998, 0.35355338
      %v2103 = vmul.f32 %v2047, 0.35355338
      %v2104 = vmul.f32 %v2096, 0.35355338
      %v2105 = vadd.f32 %v2101, %v978
      %v2106 = vadd.f32 %v2102, %v978
      %v2107 = vadd.f32 %v2103, %v978
      %v2108 = vadd.f32 %v2104, %v978
      %v2109 = vsel %vm776, %v2105, -inf
      %2110 = vmax.xlane.f32.xlu0 %v2109
      %v2111 = vpop.xlane.xlu0 %2110
      %v2112 = vsel %vm776, %v2106, -inf
      %2113 = vmax.xlane.f32.xlu0 %v2112
      %v2114 = vpop.xlane.xlu0 %2113
      %v2115 = vsel %vm776, %v2107, -inf
      %2116 = vmax.xlane.f32.xlu0 %v2115
      %v2117 = vpop.xlane.xlu0 %2116
      %v2118 = vsel %vm776, %v2108, -inf
      %2119 = vmax.xlane.f32.xlu0 %v2118
      %v2120 = vpop.xlane.xlu0 %2119
      %v2121 = vsub.f32 %v2105, %v2111
      %v2122 = vsub.f32 %v2106, %v2114
      %v2123 = vsub.f32 %v2107, %v2117
      %v2124 = vsub.f32 %v2108, %v2120
      %v2125 = vmul.f32 %v2121, 1.442695
      %v2126 = vpow.pop %v2125
      %v2127 = vmul.f32 %v2122, 1.442695
      %v2128 = vpow.pop %v2127
      %v2129 = vmul.f32 %v2123, 1.442695
      %v2130 = vpow.pop %v2129
      %v2131 = vmul.f32 %v2124, 1.442695
      %v2132 = vpow.pop %v2131
      %v2133 = vsel %vm776, %v2126, 0.0
      %2134 = vadd.xlane.f32.xlu0 %v2133
      %v2135 = vpop.xlane.xlu0 %2134
      %v2136 = vsel %vm776, %v2128, 0.0
      %2137 = vadd.xlane.f32.xlu0 %v2136
      %v2138 = vpop.xlane.xlu0 %2137
      %v2139 = vsel %vm776, %v2130, 0.0
      %2140 = vadd.xlane.f32.xlu0 %v2139
      %v2141 = vpop.xlane.xlu0 %2140
      %v2142 = vsel %vm776, %v2132, 0.0
      %2143 = vadd.xlane.f32.xlu0 %v2142
      %v2144 = vpop.xlane.xlu0 %2143
      %v2145 = vrcp.pop %v2135
      %v2146 = vrcp.pop %v2138
      %v2147 = vrcp.pop %v2141
      %v2148 = vrcp.pop %v2144
      %v2149 = vmul.f32 %v2126, %v2145
      %v2150 = vmul.f32 %v2128, %v2146
      %v2151 = vmul.f32 %v2130, %v2147
      %v2152 = vmul.f32 %v2132, %v2148
      %v2153 = vpack.c.bf16 %v2149, %v2149
      %v2154 = vpack.c.bf16 %v2150, %v2150
      %v2155 = vpack.c.bf16 %v2151, %v2151
      %v2156 = vpack.c.bf16 %v2152, %v2152
      %2157 = vrot.lane.b32.xlu0 %v1901, 112
      %v2158 = vpop.permute.xlu0 %2157
      %v2160 = vsel %vm776, %v2153, 0
      %v2163 = vsel %vm1037, %v2158, 0
      %2165 = vmatprep.subr.bf16.mxu0 0
      %2166 = vmatpush1.bf16.msra.mxu0 %v2163
      %2167 = vmatprep.subr.bf16.mxu0 0
      %2168 = vmatpush1.bf16.msra.mxu0 0
      %2169 = vmatprep.subr.bf16.mxu0 0
      %2170 = vmatpush1.bf16.msra.mxu0 0
      %2171 = vmatprep.subr.bf16.mxu0 0
      %2172 = vmatpush1.bf16.msra.mxu0 0
      %2173 = vmatprep.subr.bf16.mxu0 0
      %2174 = vmatpush1.bf16.msra.mxu0 0
      %2175 = vmatprep.subr.bf16.mxu0 0
      %2176 = vmatpush1.bf16.msra.mxu0 0
      %2177 = vmatprep.subr.bf16.mxu0 0
      %2178 = vmatpush1.bf16.msra.mxu0 0
      %2179 = vmatprep.subr.bf16.mxu0 0
      %2180 = vmatpush1.bf16.msra.mxu0 0
      %2181 = vmatprep.subr.bf16.mxu0 0
      %2182 = vmatpush1.bf16.msra.mxu0 0
      %2183 = vmatprep.subr.bf16.mxu0 0
      %2184 = vmatpush1.bf16.msra.mxu0 0
      %2185 = vmatprep.subr.bf16.mxu0 0
      %2186 = vmatpush1.bf16.msra.mxu0 0
      %2187 = vmatprep.subr.bf16.mxu0 0
      %2188 = vmatpush1.bf16.msra.mxu0 0
      %2189 = vmatprep.subr.bf16.mxu0 0
      %2190 = vmatpush1.bf16.msra.mxu0 0
      %2191 = vmatprep.subr.bf16.mxu0 0
      %2192 = vmatpush1.bf16.msra.mxu0 0
      %2193 = vmatprep.subr.bf16.mxu0 0
      %2194 = vmatpush1.bf16.msra.mxu0 0
      %2195 = vmatprep.subr.bf16.mxu0 0
      %2196 = vmatpush1.bf16.msra.mxu0 0
      %2197 = vmatprep.mubr.bf16.mxu0 0
      %2198 = vmatmul.mubr.bf16.gmra.mrb[0].mxu0 %v2160
      %v2199 = vpop.f32.mrb[0].mxu0
      %v2200 = vadd.f32 0.0, %v2199
      %v2201 = vpop.f32.mrb[0].mxu0
      %v2202 = vpop.f32.mrb[0].mxu0
      %v2203 = vpop.f32.mrb[0].mxu0
      %2204 = vdwg.mxu0
      %2205 = vrot.lane.b32.xlu0 %v1902, 112
      %v2206 = vpop.permute.xlu0 %2205
      %v2208 = vsel %vm776, %v2154, 0
      %v2211 = vsel %vm1037, %v2206, 0
      %2213 = vmatprep.subr.bf16.mxu0 0
      %2214 = vmatpush1.bf16.msra.mxu0 %v2211
      %2215 = vmatprep.subr.bf16.mxu0 0
      %2216 = vmatpush1.bf16.msra.mxu0 0
      %2217 = vmatprep.subr.bf16.mxu0 0
      %2218 = vmatpush1.bf16.msra.mxu0 0
      %2219 = vmatprep.subr.bf16.mxu0 0
      %2220 = vmatpush1.bf16.msra.mxu0 0
      %2221 = vmatprep.subr.bf16.mxu0 0
      %2222 = vmatpush1.bf16.msra.mxu0 0
      %2223 = vmatprep.subr.bf16.mxu0 0
      %2224 = vmatpush1.bf16.msra.mxu0 0
      %2225 = vmatprep.subr.bf16.mxu0 0
      %2226 = vmatpush1.bf16.msra.mxu0 0
      %2227 = vmatprep.subr.bf16.mxu0 0
      %2228 = vmatpush1.bf16.msra.mxu0 0
      %2229 = vmatprep.subr.bf16.mxu0 0
      %2230 = vmatpush1.bf16.msra.mxu0 0
      %2231 = vmatprep.subr.bf16.mxu0 0
      %2232 = vmatpush1.bf16.msra.mxu0 0
      %2233 = vmatprep.subr.bf16.mxu0 0
      %2234 = vmatpush1.bf16.msra.mxu0 0
      %2235 = vmatprep.subr.bf16.mxu0 0
      %2236 = vmatpush1.bf16.msra.mxu0 0
      %2237 = vmatprep.subr.bf16.mxu0 0
      %2238 = vmatpush1.bf16.msra.mxu0 0
      %2239 = vmatprep.subr.bf16.mxu0 0
      %2240 = vmatpush1.bf16.msra.mxu0 0
      %2241 = vmatprep.subr.bf16.mxu0 0
      %2242 = vmatpush1.bf16.msra.mxu0 0
      %2243 = vmatprep.subr.bf16.mxu0 0
      %2244 = vmatpush1.bf16.msra.mxu0 0
      %2245 = vmatprep.mubr.bf16.mxu0 0
      %2246 = vmatmul.mubr.bf16.gmra.mrb[0].mxu0 %v2208
      %v2247 = vpop.f32.mrb[0].mxu0
      %v2248 = vadd.f32 0.0, %v2247
      %v2249 = vpop.f32.mrb[0].mxu0
      %v2250 = vpop.f32.mrb[0].mxu0
      %v2251 = vpop.f32.mrb[0].mxu0
      %2252 = vdwg.mxu0
      %2253 = vrot.lane.b32.xlu0 %v1903, 112
      %v2254 = vpop.permute.xlu0 %2253
      %v2256 = vsel %vm776, %v2155, 0
      %v2259 = vsel %vm1037, %v2254, 0
      %2261 = vmatprep.subr.bf16.mxu0 0
      %2262 = vmatpush1.bf16.msra.mxu0 %v2259
      %2263 = vmatprep.subr.bf16.mxu0 0
      %2264 = vmatpush1.bf16.msra.mxu0 0
      %2265 = vmatprep.subr.bf16.mxu0 0
      %2266 = vmatpush1.bf16.msra.mxu0 0
      %2267 = vmatprep.subr.bf16.mxu0 0
      %2268 = vmatpush1.bf16.msra.mxu0 0
      %2269 = vmatprep.subr.bf16.mxu0 0
      %2270 = vmatpush1.bf16.msra.mxu0 0
      %2271 = vmatprep.subr.bf16.mxu0 0
      %2272 = vmatpush1.bf16.msra.mxu0 0
      %2273 = vmatprep.subr.bf16.mxu0 0
      %2274 = vmatpush1.bf16.msra.mxu0 0
      %2275 = vmatprep.subr.bf16.mxu0 0
      %2276 = vmatpush1.bf16.msra.mxu0 0
      %2277 = vmatprep.subr.bf16.mxu0 0
      %2278 = vmatpush1.bf16.msra.mxu0 0
      %2279 = vmatprep.subr.bf16.mxu0 0
      %2280 = vmatpush1.bf16.msra.mxu0 0
      %2281 = vmatprep.subr.bf16.mxu0 0
      %2282 = vmatpush1.bf16.msra.mxu0 0
      %2283 = vmatprep.subr.bf16.mxu0 0
      %2284 = vmatpush1.bf16.msra.mxu0 0
      %2285 = vmatprep.subr.bf16.mxu0 0
      %2286 = vmatpush1.bf16.msra.mxu0 0
      %2287 = vmatprep.subr.bf16.mxu0 0
      %2288 = vmatpush1.bf16.msra.mxu0 0
      %2289 = vmatprep.subr.bf16.mxu0 0
      %2290 = vmatpush1.bf16.msra.mxu0 0
      %2291 = vmatprep.subr.bf16.mxu0 0
      %2292 = vmatpush1.bf16.msra.mxu0 0
      %2293 = vmatprep.mubr.bf16.mxu0 0
      %2294 = vmatmul.mubr.bf16.gmra.mrb[0].mxu0 %v2256
      %v2295 = vpop.f32.mrb[0].mxu0
      %v2296 = vadd.f32 0.0, %v2295
      %v2297 = vpop.f32.mrb[0].mxu0
      %v2298 = vpop.f32.mrb[0].mxu0
      %v2299 = vpop.f32.mrb[0].mxu0
      %2300 = vdwg.mxu0
      %2301 = vrot.lane.b32.xlu0 %v1904, 112
      %v2302 = vpop.permute.xlu0 %2301
      %v2304 = vsel %vm776, %v2156, 0
      %v2307 = vsel %vm1037, %v2302, 0
      %2309 = vmatprep.subr.bf16.mxu0 0
      %2310 = vmatpush1.bf16.msra.mxu0 %v2307
      %2311 = vmatprep.subr.bf16.mxu0 0
      %2312 = vmatpush1.bf16.msra.mxu0 0
      %2313 = vmatprep.subr.bf16.mxu0 0
      %2314 = vmatpush1.bf16.msra.mxu0 0
      %2315 = vmatprep.subr.bf16.mxu0 0
      %2316 = vmatpush1.bf16.msra.mxu0 0
      %2317 = vmatprep.subr.bf16.mxu0 0
      %2318 = vmatpush1.bf16.msra.mxu0 0
      %2319 = vmatprep.subr.bf16.mxu0 0
      %2320 = vmatpush1.bf16.msra.mxu0 0
      %2321 = vmatprep.subr.bf16.mxu0 0
      %2322 = vmatpush1.bf16.msra.mxu0 0
      %2323 = vmatprep.subr.bf16.mxu0 0
      %2324 = vmatpush1.bf16.msra.mxu0 0
      %2325 = vmatprep.subr.bf16.mxu0 0
      %2326 = vmatpush1.bf16.msra.mxu0 0
      %2327 = vmatprep.subr.bf16.mxu0 0
      %2328 = vmatpush1.bf16.msra.mxu0 0
      %2329 = vmatprep.subr.bf16.mxu0 0
      %2330 = vmatpush1.bf16.msra.mxu0 0
      %2331 = vmatprep.subr.bf16.mxu0 0
      %2332 = vmatpush1.bf16.msra.mxu0 0
      %2333 = vmatprep.subr.bf16.mxu0 0
      %2334 = vmatpush1.bf16.msra.mxu0 0
      %2335 = vmatprep.subr.bf16.mxu0 0
      %2336 = vmatpush1.bf16.msra.mxu0 0
      %2337 = vmatprep.subr.bf16.mxu0 0
      %2338 = vmatpush1.bf16.msra.mxu0 0
      %2339 = vmatprep.subr.bf16.mxu0 0
      %2340 = vmatpush1.bf16.msra.mxu0 0
      %2341 = vmatprep.mubr.bf16.mxu0 0
      %2342 = vmatmul.mubr.bf16.gmra.mrb[0].mxu0 %v2304
      %v2343 = vpop.f32.mrb[0].mxu0
      %v2344 = vadd.f32 0.0, %v2343
      %v2345 = vpop.f32.mrb[0].mxu0
      %v2346 = vpop.f32.mrb[0].mxu0
      %v2347 = vpop.f32.mrb[0].mxu0
      %2348 = vdwg.mxu0
      %v2349 = vpack.c.bf16 %v2200, %v2200
      %v2350 = vpack.c.bf16 %v2248, %v2248
      %v2351 = vpack.c.bf16 %v2296, %v2296
      %v2352 = vpack.c.bf16 %v2344, %v2344
      %v2354 = vsel %vm776, %v2349, 0
      %v2357 = vsel %vm1037, %v1615, 0
      %2359 = vmatprep.subr.bf16.mxu0 0
      %2360 = vmatpush1.bf16.msra.mxu0 %v2357
      %2361 = vmatprep.subr.bf16.mxu0 0
      %2362 = vmatpush1.bf16.msra.mxu0 0
      %2363 = vmatprep.subr.bf16.mxu0 0
      %2364 = vmatpush1.bf16.msra.mxu0 0
      %2365 = vmatprep.subr.bf16.mxu0 0
      %2366 = vmatpush1.bf16.msra.mxu0 0
      %2367 = vmatprep.subr.bf16.mxu0 0
      %2368 = vmatpush1.bf16.msra.mxu0 0
      %2369 = vmatprep.subr.bf16.mxu0 0
      %2370 = vmatpush1.bf16.msra.mxu0 0
      %2371 = vmatprep.subr.bf16.mxu0 0
      %2372 = vmatpush1.bf16.msra.mxu0 0
      %2373 = vmatprep.subr.bf16.mxu0 0
      %2374 = vmatpush1.bf16.msra.mxu0 0
      %2375 = vmatprep.subr.bf16.mxu0 0
      %2376 = vmatpush1.bf16.msra.mxu0 0
      %2377 = vmatprep.subr.bf16.mxu0 0
      %2378 = vmatpush1.bf16.msra.mxu0 0
      %2379 = vmatprep.subr.bf16.mxu0 0
      %2380 = vmatpush1.bf16.msra.mxu0 0
      %2381 = vmatprep.subr.bf16.mxu0 0
      %2382 = vmatpush1.bf16.msra.mxu0 0
      %2383 = vmatprep.subr.bf16.mxu0 0
      %2384 = vmatpush1.bf16.msra.mxu0 0
      %2385 = vmatprep.subr.bf16.mxu0 0
      %2386 = vmatpush1.bf16.msra.mxu0 0
      %2387 = vmatprep.subr.bf16.mxu0 0
      %2388 = vmatpush1.bf16.msra.mxu0 0
      %2389 = vmatprep.subr.bf16.mxu0 0
      %2390 = vmatpush1.bf16.msra.mxu0 0
      %2391 = vmatprep.mubr.bf16.mxu0 0
      %2392 = vmatmul.mubr.bf16.gmra.mrb[0].mxu0 %v2354
      %v2393 = vpop.f32.mrb[0].mxu0
      %v2394 = vadd.f32 0.0, %v2393
      %v2395 = vpop.f32.mrb[0].mxu0
      %v2396 = vpop.f32.mrb[0].mxu0
      %v2397 = vpop.f32.mrb[0].mxu0
      %2398 = vdwg.mxu0
      %v2400 = vsel %vm776, %v2350, 0
      %v2403 = vsel %vm1037, %v1616, 0
      %2405 = vmatprep.subr.bf16.mxu0 0
      %2406 = vmatpush1.bf16.msra.mxu0 %v2403
      %2407 = vmatprep.subr.bf16.mxu0 0
      %2408 = vmatpush1.bf16.msra.mxu0 0
      %2409 = vmatprep.subr.bf16.mxu0 0
      %2410 = vmatpush1.bf16.msra.mxu0 0
      %2411 = vmatprep.subr.bf16.mxu0 0
      %2412 = vmatpush1.bf16.msra.mxu0 0
      %2413 = vmatprep.subr.bf16.mxu0 0
      %2414 = vmatpush1.bf16.msra.mxu0 0
      %2415 = vmatprep.subr.bf16.mxu0 0
      %2416 = vmatpush1.bf16.msra.mxu0 0
      %2417 = vmatprep.subr.bf16.mxu0 0
      %2418 = vmatpush1.bf16.msra.mxu0 0
      %2419 = vmatprep.subr.bf16.mxu0 0
      %2420 = vmatpush1.bf16.msra.mxu0 0
      %2421 = vmatprep.subr.bf16.mxu0 0
      %2422 = vmatpush1.bf16.msra.mxu0 0
      %2423 = vmatprep.subr.bf16.mxu0 0
      %2424 = vmatpush1.bf16.msra.mxu0 0
      %2425 = vmatprep.subr.bf16.mxu0 0
      %2426 = vmatpush1.bf16.msra.mxu0 0
      %2427 = vmatprep.subr.bf16.mxu0 0
      %2428 = vmatpush1.bf16.msra.mxu0 0
      %2429 = vmatprep.subr.bf16.mxu0 0
      %2430 = vmatpush1.bf16.msra.mxu0 0
      %2431 = vmatprep.subr.bf16.mxu0 0
      %2432 = vmatpush1.bf16.msra.mxu0 0
      %2433 = vmatprep.subr.bf16.mxu0 0
      %2434 = vmatpush1.bf16.msra.mxu0 0
      %2435 = vmatprep.subr.bf16.mxu0 0
      %2436 = vmatpush1.bf16.msra.mxu0 0
      %2437 = vmatprep.mubr.bf16.mxu0 0
      %2438 = vmatmul.mubr.bf16.gmra.mrb[0].mxu0 %v2400
      %v2439 = vpop.f32.mrb[0].mxu0
      %v2440 = vadd.f32 0.0, %v2439
      %v2441 = vpop.f32.mrb[0].mxu0
      %v2442 = vpop.f32.mrb[0].mxu0
      %v2443 = vpop.f32.mrb[0].mxu0
      %2444 = vdwg.mxu0
      %v2446 = vsel %vm776, %v2351, 0
      %v2449 = vsel %vm1037, %v1617, 0
      %2451 = vmatprep.subr.bf16.mxu0 0
      %2452 = vmatpush1.bf16.msra.mxu0 %v2449
      %2453 = vmatprep.subr.bf16.mxu0 0
      %2454 = vmatpush1.bf16.msra.mxu0 0
      %2455 = vmatprep.subr.bf16.mxu0 0
      %2456 = vmatpush1.bf16.msra.mxu0 0
      %2457 = vmatprep.subr.bf16.mxu0 0
      %2458 = vmatpush1.bf16.msra.mxu0 0
      %2459 = vmatprep.subr.bf16.mxu0 0
      %2460 = vmatpush1.bf16.msra.mxu0 0
      %2461 = vmatprep.subr.bf16.mxu0 0
      %2462 = vmatpush1.bf16.msra.mxu0 0
      %2463 = vmatprep.subr.bf16.mxu0 0
      %2464 = vmatpush1.bf16.msra.mxu0 0
      %2465 = vmatprep.subr.bf16.mxu0 0
      %2466 = vmatpush1.bf16.msra.mxu0 0
      %2467 = vmatprep.subr.bf16.mxu0 0
      %2468 = vmatpush1.bf16.msra.mxu0 0
      %2469 = vmatprep.subr.bf16.mxu0 0
      %2470 = vmatpush1.bf16.msra.mxu0 0
      %2471 = vmatprep.subr.bf16.mxu0 0
      %2472 = vmatpush1.bf16.msra.mxu0 0
      %2473 = vmatprep.subr.bf16.mxu0 0
      %2474 = vmatpush1.bf16.msra.mxu0 0
      %2475 = vmatprep.subr.bf16.mxu0 0
      %2476 = vmatpush1.bf16.msra.mxu0 0
      %2477 = vmatprep.subr.bf16.mxu0 0
      %2478 = vmatpush1.bf16.msra.mxu0 0
      %2479 = vmatprep.subr.bf16.mxu0 0
      %2480 = vmatpush1.bf16.msra.mxu0 0
      %2481 = vmatprep.subr.bf16.mxu0 0
      %2482 = vmatpush1.bf16.msra.mxu0 0
      %2483 = vmatprep.mubr.bf16.mxu0 0
      %2484 = vmatmul.mubr.bf16.gmra.mrb[0].mxu0 %v2446
      %v2485 = vpop.f32.mrb[0].mxu0
      %v2486 = vadd.f32 0.0, %v2485
      %v2487 = vpop.f32.mrb[0].mxu0
      %v2488 = vpop.f32.mrb[0].mxu0
      %v2489 = vpop.f32.mrb[0].mxu0
      %2490 = vdwg.mxu0
      %v2492 = vsel %vm776, %v2352, 0
      %v2495 = vsel %vm1037, %v1618, 0
      %2497 = vmatprep.subr.bf16.mxu0 0
      %2498 = vmatpush1.bf16.msra.mxu0 %v2495
      %2499 = vmatprep.subr.bf16.mxu0 0
      %2500 = vmatpush1.bf16.msra.mxu0 0
      %2501 = vmatprep.subr.bf16.mxu0 0
      %2502 = vmatpush1.bf16.msra.mxu0 0
      %2503 = vmatprep.subr.bf16.mxu0 0
      %2504 = vmatpush1.bf16.msra.mxu0 0
      %2505 = vmatprep.subr.bf16.mxu0 0
      %2506 = vmatpush1.bf16.msra.mxu0 0
      %2507 = vmatprep.subr.bf16.mxu0 0
      %2508 = vmatpush1.bf16.msra.mxu0 0
      %2509 = vmatprep.subr.bf16.mxu0 0
      %2510 = vmatpush1.bf16.msra.mxu0 0
      %2511 = vmatprep.subr.bf16.mxu0 0
      %2512 = vmatpush1.bf16.msra.mxu0 0
      %2513 = vmatprep.subr.bf16.mxu0 0
      %2514 = vmatpush1.bf16.msra.mxu0 0
      %2515 = vmatprep.subr.bf16.mxu0 0
      %2516 = vmatpush1.bf16.msra.mxu0 0
      %2517 = vmatprep.subr.bf16.mxu0 0
      %2518 = vmatpush1.bf16.msra.mxu0 0
      %2519 = vmatprep.subr.bf16.mxu0 0
      %2520 = vmatpush1.bf16.msra.mxu0 0
      %2521 = vmatprep.subr.bf16.mxu0 0
      %2522 = vmatpush1.bf16.msra.mxu0 0
      %2523 = vmatprep.subr.bf16.mxu0 0
      %2524 = vmatpush1.bf16.msra.mxu0 0
      %2525 = vmatprep.subr.bf16.mxu0 0
      %2526 = vmatpush1.bf16.msra.mxu0 0
      %2527 = vmatprep.subr.bf16.mxu0 0
      %2528 = vmatpush1.bf16.msra.mxu0 0
      %2529 = vmatprep.mubr.bf16.mxu0 0
      %2530 = vmatmul.mubr.bf16.gmra.mrb[0].mxu0 %v2492
      %v2531 = vpop.f32.mrb[0].mxu0
      %v2532 = vadd.f32 0.0, %v2531
      %v2533 = vpop.f32.mrb[0].mxu0
      %v2534 = vpop.f32.mrb[0].mxu0
      %v2535 = vpop.f32.mrb[0].mxu0
      %2536 = vdwg.mxu0
      %v2537 = vsel %vm500, %v2394, 0.0
      %v2538 = vsel %vm500, %v2440, 0.0
      %v2539 = vadd.f32 %v2537, %v2538
      %v2540 = vsel %vm500, %v2486, 0.0
      %v2541 = vadd.f32 %v2539, %v2540
      %v2542 = vsel %vm500, %v2532, 0.0
      %v2543 = vadd.f32 %v2541, %v2542
      %v2544 = vlaneseq
      %v2545 = vshrl.u32 %v2544, 7
      %v2546 = vsub.s32 2, %v2545
      %v2547 = vrot.slane %v1634, %v2546
      %v2548 = vadd.f32 %v2543, %v2547
      %v2549 = vadd.f32 %v1591, %v2548
      %v2550 = vsel %vm500, %v2549, 0.0
      %2551 = vadd.xlane.f32.xlu0 %v2550
      %v2552 = vpop.xlane.xlu0 %2551
      %v2553 = vmul.f32 %v2552, %v504
      %v2554 = vsub.f32 %v2549, %v2553
      %v2555 = vmul.f32 %v2554, %v2554
      %v2556 = vsel %vm500, %v2555, 0.0
      %2557 = vadd.xlane.f32.xlu0 %v2556
      %v2558 = vpop.xlane.xlu0 %2557
      %v2559 = vmul.f32 %v2558, %v511
      %v2560 = vlaneseq
      %v2561 = vshrl.u32 %v2560, 7
      %v2562 = vsub.s32 3, %v2561
      %v2563 = vrot.slane %v1634, %v2562
      %v2564 = vmul.f32 %v2563, %v2554
      %v2565 = vrsqrt.pop %v2559
      %v2566 = vmul.f32 %v2559, %v2565
      %vm2567 = vcmp.eq.f32.partialorder %v2559, inf
      %v2568 = vsel %vm2567, %v2559, %v2566
      %vm2569 = vcmp.eq.f32.partialorder %v2559, 0.0
      %v2570 = vand.u32 %v2559, 2147483648
      %v2571 = vsel %vm2569, %v2570, %v2568
      %v2572 = vadd.f32 %v2571, 1e-06
      %v2573 = vrcp.pop %v2572
      %v2574 = vmul.f32 %v2564, %v2573
      %v2575 = vlaneseq
      %v2576 = vshrl.u32 %v2575, 7
      %v2577 = vsub.s32 4, %v2576
      %v2578 = vrot.slane %v1634, %v2577
      %v2579 = vadd.f32 %v2574, %v2578
      %v2580 = vpack.c.bf16 %v2579, %v2579
      %v2581 = vlaneseq
      %v2582 = vshrl.u32 %v2581, 7
      %v2583 = vsub.s32 5, %v2582
      %v2584 = vrot.slane %v1634, %v2583
      %v2589 = vunpack.c.l.b16 %v1620
      %v2590 = vunpack.c.l.b16 %v1621
      %v2591 = vunpack.c.l.b16 %v1622
      %v2592 = vunpack.c.l.b16 %v1623
      %v2593 = vpack.c.b16 %v2590, %v2589
      %v2594 = vpack.c.b16 %v2592, %v2591
      %v2598 = vsel %vm500, %v2580, 0
      %2600 = vmatprep.subr.bf16.mxu0 0
      %2601 = vmatpush1.bf16.msra.mxu0 %v2593
      %2602 = vmatprep.subr.bf16.mxu0 0
      %2603 = vmatpush1.bf16.msra.mxu0 %v2594
      %2604 = vmatprep.subr.bf16.mxu0 0
      %2605 = vmatpush1.bf16.msra.mxu0 0
      %2606 = vmatprep.subr.bf16.mxu0 0
      %2607 = vmatpush1.bf16.msra.mxu0 0
      %2608 = vmatprep.subr.bf16.mxu0 0
      %2609 = vmatpush1.bf16.msra.mxu0 0
      %2610 = vmatprep.subr.bf16.mxu0 0
      %2611 = vmatpush1.bf16.msra.mxu0 0
      %2612 = vmatprep.subr.bf16.mxu0 0
      %2613 = vmatpush1.bf16.msra.mxu0 0
      %2614 = vmatprep.subr.bf16.mxu0 0
      %2615 = vmatpush1.bf16.msra.mxu0 0
      %2616 = vmatprep.subr.bf16.mxu0 0
      %2617 = vmatpush1.bf16.msra.mxu0 0
      %2618 = vmatprep.subr.bf16.mxu0 0
      %2619 = vmatpush1.bf16.msra.mxu0 0
      %2620 = vmatprep.subr.bf16.mxu0 0
      %2621 = vmatpush1.bf16.msra.mxu0 0
      %2622 = vmatprep.subr.bf16.mxu0 0
      %2623 = vmatpush1.bf16.msra.mxu0 0
      %2624 = vmatprep.subr.bf16.mxu0 0
      %2625 = vmatpush1.bf16.msra.mxu0 0
      %2626 = vmatprep.subr.bf16.mxu0 0
      %2627 = vmatpush1.bf16.msra.mxu0 0
      %2628 = vmatprep.subr.bf16.mxu0 0
      %2629 = vmatpush1.bf16.msra.mxu0 0
      %2630 = vmatprep.subr.bf16.mxu0 0
      %2631 = vmatpush1.bf16.msra.mxu0 0
      %2632 = vmatprep.mubr.bf16.mxu0 0
      %2633 = vmatmul.mubr.bf16.gmra.mrb[0].mxu0 %v2598
      %v2634 = vpop.f32.mrb[0].mxu0
      %v2635 = vadd.f32 %v2584, %v2634
      %v2636 = vpop.f32.mrb[0].mxu0
      %v2637 = vpop.f32.mrb[0].mxu0
      %v2638 = vpop.f32.mrb[0].mxu0
      %2639 = vdwg.mxu0
      %v2640 = vmax.f32 %v2635, 0.0
      %v2641 = vpack.c.bf16 %v2640, %v2640
      %v2650 = vunpack.c.l.b16 %v1625
      %v2651 = vunpack.c.l.b16 %v1626
      %v2652 = vunpack.c.l.b16 %v1627
      %v2653 = vunpack.c.l.b16 %v1628
      %v2654 = vunpack.c.l.b16 %v1629
      %v2655 = vunpack.c.l.b16 %v1630
      %v2656 = vunpack.c.l.b16 %v1631
      %v2657 = vunpack.c.l.b16 %v1632
      %v2658 = vpack.c.b16 %v2651, %v2650
      %v2659 = vpack.c.b16 %v2653, %v2652
      %v2660 = vpack.c.b16 %v2655, %v2654
      %v2661 = vpack.c.b16 %v2657, %v2656
      %v2667 = vsel %vm1542, %v2641, 0
      %2669 = vmatprep.subr.bf16.mxu0 0
      %2670 = vmatpush1.bf16.msra.mxu0 %v2658
      %2671 = vmatprep.subr.bf16.mxu0 0
      %2672 = vmatpush1.bf16.msra.mxu0 %v2659
      %2673 = vmatprep.subr.bf16.mxu0 0
      %2674 = vmatpush1.bf16.msra.mxu0 %v2660
      %2675 = vmatprep.subr.bf16.mxu0 0
      %2676 = vmatpush1.bf16.msra.mxu0 %v2661
      %2677 = vmatprep.subr.bf16.mxu0 0
      %2678 = vmatpush1.bf16.msra.mxu0 0
      %2679 = vmatprep.subr.bf16.mxu0 0
      %2680 = vmatpush1.bf16.msra.mxu0 0
      %2681 = vmatprep.subr.bf16.mxu0 0
      %2682 = vmatpush1.bf16.msra.mxu0 0
      %2683 = vmatprep.subr.bf16.mxu0 0
      %2684 = vmatpush1.bf16.msra.mxu0 0
      %2685 = vmatprep.subr.bf16.mxu0 0
      %2686 = vmatpush1.bf16.msra.mxu0 0
      %2687 = vmatprep.subr.bf16.mxu0 0
      %2688 = vmatpush1.bf16.msra.mxu0 0
      %2689 = vmatprep.subr.bf16.mxu0 0
      %2690 = vmatpush1.bf16.msra.mxu0 0
      %2691 = vmatprep.subr.bf16.mxu0 0
      %2692 = vmatpush1.bf16.msra.mxu0 0
      %2693 = vmatprep.subr.bf16.mxu0 0
      %2694 = vmatpush1.bf16.msra.mxu0 0
      %2695 = vmatprep.subr.bf16.mxu0 0
      %2696 = vmatpush1.bf16.msra.mxu0 0
      %2697 = vmatprep.subr.bf16.mxu0 0
      %2698 = vmatpush1.bf16.msra.mxu0 0
      %2699 = vmatprep.subr.bf16.mxu0 0
      %2700 = vmatpush1.bf16.msra.mxu0 0
      %2701 = vmatprep.mubr.bf16.mxu0 0
      %2702 = vmatmul.mubr.bf16.gmra.mrb[0].mxu0 %v2667
      %v2703 = vpop.f32.mrb[0].mxu0
      %v2704 = vadd.f32 0.0, %v2703
      %v2705 = vpop.f32.mrb[0].mxu0
      %v2706 = vpop.f32.mrb[0].mxu0
      %v2707 = vpop.f32.mrb[0].mxu0
      %2708 = vdwg.mxu0
      %v2709 = vadd.f32 %v2549, %v2704
      %v2710 = vlaneseq
      %v2711 = vshrl.u32 %v2710, 7
      %v2712 = vsub.s32 6, %v2711
      %v2713 = vrot.slane %v1634, %v2712
      %v2714 = vadd.f32 %v2709, %v2713
      %v2715 = vsel %vm500, %v2714, 0.0
      %2716 = vadd.xlane.f32.xlu0 %v2715
      %v2717 = vpop.xlane.xlu0 %2716
      %v2718 = vmul.f32 %v2717, %v504
      %v2719 = vsub.f32 %v2714, %v2718
      %v2720 = vmul.f32 %v2719, %v2719
      %v2721 = vsel %vm500, %v2720, 0.0
      %2722 = vadd.xlane.f32.xlu0 %v2721
      %v2723 = vpop.xlane.xlu0 %2722
      %v2724 = vmul.f32 %v2723, %v511
      %v2725 = vlaneseq
      %v2726 = vshrl.u32 %v2725, 7
      %v2727 = vsub.s32 0, %v2726
      %v2728 = vrot.slane %v462, %v2727
      %v2729 = vmul.f32 %v2728, %v2719
      %v2730 = vrsqrt.pop %v2724
      %v2731 = vmul.f32 %v2724, %v2730
      %vm2732 = vcmp.eq.f32.partialorder %v2724, inf
      %v2733 = vsel %vm2732, %v2724, %v2731
      %vm2734 = vcmp.eq.f32.partialorder %v2724, 0.0
      %v2735 = vand.u32 %v2724, 2147483648
      %v2736 = vsel %vm2734, %v2735, %v2733
      %v2737 = vadd.f32 %v2736, 1e-06
      %v2738 = vrcp.pop %v2737
      %v2739 = vmul.f32 %v2729, %v2738
      %v2740 = vlaneseq
      %v2741 = vshrl.u32 %v2740, 7
      %v2742 = vsub.s32 1, %v2741
      %v2743 = vrot.slane %v462, %v2742
      %v2744 = vadd.f32 %v2739, %v2743
      %v2745 = vpack.c.bf16 %v2744, %v2744
      %v2746 = vld [vmem:[%s4] sm:$0xf]
      %v2747 = vld [vmem:[%s4 + $0x4] sm:$0xf]
      %v2748 = vld [vmem:[%s4 + $0x8] sm:$0xf]
      %v2749 = vld [vmem:[%s4 + $0xc] sm:$0xf]
      %v2750 = vld [vmem:[%s4 + $0x10] sm:$0xf]
      %v2751 = vld [vmem:[%s4 + $0x14] sm:$0xf]
      %v2752 = vld [vmem:[%s4 + $0x18] sm:$0xf]
      %v2753 = vld [vmem:[%s4 + $0x1c] sm:$0xf]
      %v2754 = vld [vmem:[%s4 + $0x20] sm:$0xf]
      %v2755 = vld [vmem:[%s4 + $0x24] sm:$0xf]
      %v2756 = vld [vmem:[%s4 + $0x28] sm:$0xf]
      %v2757 = vld [vmem:[%s4 + $0x2c] sm:$0xf]
      %v2758 = vld [vmem:[%s4 + $0x30] sm:$0xf]
      %v2759 = vld [vmem:[%s4 + $0x34] sm:$0xf]
      %v2760 = vld [vmem:[%s4 + $0x38] sm:$0xf]
      %v2761 = vld [vmem:[%s4 + $0x3c] sm:$0xf]
      %v2762 = vld [vmem:[%s5] sm:$0x1]
      %v2763 = vld [vmem:[%s5 + $0x1] sm:$0x1]
      %v2764 = vld [vmem:[%s5 + $0x2] sm:$0x1]
      %v2765 = vld [vmem:[%s5 + $0x3] sm:$0x1]
      %v2766 = vld [vmem:[%s6] sm:$0xf]
      %v2767 = vld [vmem:[%s6 + $0x4] sm:$0xf]
      %v2768 = vld [vmem:[%s6 + $0x8] sm:$0xf]
      %v2769 = vld [vmem:[%s6 + $0xc] sm:$0xf]
      %v2770 = vld [vmem:[%s7] sm:$0xf]
      %v2771 = vld [vmem:[%s7 + $0x4] sm:$0xf]
      %v2772 = vld [vmem:[%s7 + $0x8] sm:$0xf]
      %v2773 = vld [vmem:[%s7 + $0xc] sm:$0xf]
      %v2774 = vld [vmem:[%s8] sm:$0xf]
      %v2775 = vld [vmem:[%s8 + $0x4] sm:$0xf]
      %v2776 = vld [vmem:[%s8 + $0x8] sm:$0xf]
      %v2777 = vld [vmem:[%s8 + $0xc] sm:$0xf]
      %v2778 = vld [vmem:[%s8 + $0x10] sm:$0xf]
      %v2779 = vld [vmem:[%s8 + $0x14] sm:$0xf]
      %v2780 = vld [vmem:[%s8 + $0x18] sm:$0xf]
      %v2781 = vld [vmem:[%s8 + $0x1c] sm:$0xf]
      %v2782 = vld [vmem:[%s9] sm:$0xff]
      %v2783 = vld [vmem:[%s9 + $0x8] sm:$0xff]
      %v2784 = vld [vmem:[%s9 + $0x10] sm:$0x1]
      %v2785 = vsel %vm500, %v459, 0.0
      %2786 = vadd.xlane.f32.xlu0 %v2785
      %v2787 = vpop.xlane.xlu0 %2786
      %v2788 = vmul.f32 %v2787, %v504
      %v2789 = vsub.f32 %v459, %v2788
      %v2790 = vmul.f32 %v2789, %v2789
      %v2791 = vsel %vm500, %v2790, 0.0
      %2792 = vadd.xlane.f32.xlu0 %v2791
      %v2793 = vpop.xlane.xlu0 %2792
      %v2794 = vmul.f32 %v2793, %v511
      %v2795 = vlaneseq
      %v2796 = vshrl.u32 %v2795, 7
      %v2797 = vsub.s32 7, %v2796
      %v2798 = vrot.slane %v2782, %v2797
      %v2799 = vmul.f32 %v2798, %v2789
      %v2800 = vrsqrt.pop %v2794
      %v2801 = vmul.f32 %v2794, %v2800
      %vm2802 = vcmp.eq.f32.partialorder %v2794, inf
      %v2803 = vsel %vm2802, %v2794, %v2801
      %vm2804 = vcmp.eq.f32.partialorder %v2794, 0.0
      %v2805 = vand.u32 %v2794, 2147483648
      %v2806 = vsel %vm2804, %v2805, %v2803
      %v2807 = vadd.f32 %v2806, 1e-06
      %v2808 = vrcp.pop %v2807
      %v2809 = vmul.f32 %v2799, %v2808
      %v2810 = vlaneseq
      %v2811 = vshrl.u32 %v2810, 7
      %v2812 = vsub.s32 0, %v2811
      %v2813 = vrot.slane %v2783, %v2812
      %v2814 = vadd.f32 %v2809, %v2813
      %v2815 = vpack.c.bf16 %v2814, %v2814
      %v2820 = vlaneseq
      %v2821 = vshrl.u32 %v2820, 7
      %v2822 = vsub.s32 0, %v2821
      %v2823 = vrot.slane %v2762, %v2822
      %v2824 = vlaneseq
      %v2825 = vshrl.u32 %v2824, 7
      %v2826 = vsub.s32 0, %v2825
      %v2827 = vrot.slane %v2763, %v2826
      %v2828 = vlaneseq
      %v2829 = vshrl.u32 %v2828, 7
      %v2830 = vsub.s32 0, %v2829
      %v2831 = vrot.slane %v2764, %v2830
      %v2832 = vlaneseq
      %v2833 = vshrl.u32 %v2832, 7
      %v2834 = vsub.s32 0, %v2833
      %v2835 = vrot.slane %v2765, %v2834
      %v2840 = vunpack.c.l.b16 %v2746
      %v2841 = vunpack.c.l.b16 %v2747
      %v2842 = vunpack.c.l.b16 %v2748
      %v2843 = vunpack.c.l.b16 %v2749
      %v2844 = vpack.c.b16 %v2841, %v2840
      %v2845 = vpack.c.b16 %v2843, %v2842
      %2846 = vrot.lane.b32.xlu0 %v2844, 104
      %v2847 = vpop.permute.xlu0 %2846
      %2848 = vrot.lane.b32.xlu0 %v2845, 104
      %v2849 = vpop.permute.xlu0 %2848
      %2852 = vrot.lane.b32.xlu0 %v2823, 104
      %v2853 = vpop.permute.xlu0 %2852
      %v2856 = vsel %vm500, %v2815, 0
      %2858 = vmatprep.subr.bf16.mxu0 0
      %2859 = vmatpush1.bf16.msra.mxu0 %v2847
      %2860 = vmatprep.subr.bf16.mxu0 0
      %2861 = vmatpush1.bf16.msra.mxu0 %v2849
      %2862 = vmatprep.subr.bf16.mxu0 0
      %2863 = vmatpush1.bf16.msra.mxu0 0
      %2864 = vmatprep.subr.bf16.mxu0 0
      %2865 = vmatpush1.bf16.msra.mxu0 0
      %2866 = vmatprep.subr.bf16.mxu0 0
      %2867 = vmatpush1.bf16.msra.mxu0 0
      %2868 = vmatprep.subr.bf16.mxu0 0
      %2869 = vmatpush1.bf16.msra.mxu0 0
      %2870 = vmatprep.subr.bf16.mxu0 0
      %2871 = vmatpush1.bf16.msra.mxu0 0
      %2872 = vmatprep.subr.bf16.mxu0 0
      %2873 = vmatpush1.bf16.msra.mxu0 0
      %2874 = vmatprep.subr.bf16.mxu0 0
      %2875 = vmatpush1.bf16.msra.mxu0 0
      %2876 = vmatprep.subr.bf16.mxu0 0
      %2877 = vmatpush1.bf16.msra.mxu0 0
      %2878 = vmatprep.subr.bf16.mxu0 0
      %2879 = vmatpush1.bf16.msra.mxu0 0
      %2880 = vmatprep.subr.bf16.mxu0 0
      %2881 = vmatpush1.bf16.msra.mxu0 0
      %2882 = vmatprep.subr.bf16.mxu0 0
      %2883 = vmatpush1.bf16.msra.mxu0 0
      %2884 = vmatprep.subr.bf16.mxu0 0
      %2885 = vmatpush1.bf16.msra.mxu0 0
      %2886 = vmatprep.subr.bf16.mxu0 0
      %2887 = vmatpush1.bf16.msra.mxu0 0
      %2888 = vmatprep.subr.bf16.mxu0 0
      %2889 = vmatpush1.bf16.msra.mxu0 0
      %2890 = vmatprep.mubr.bf16.mxu0 0
      %2891 = vmatmul.mubr.bf16.gmra.mrb[0].mxu0 %v2856
      %v2892 = vpop.f32.mrb[0].mxu0
      %v2893 = vadd.f32 %v2853, %v2892
      %v2894 = vpop.f32.mrb[0].mxu0
      %v2895 = vpop.f32.mrb[0].mxu0
      %v2896 = vpop.f32.mrb[0].mxu0
      %2897 = vdwg.mxu0
      %v2902 = vunpack.c.l.b16 %v2750
      %v2903 = vunpack.c.l.b16 %v2751
      %v2904 = vunpack.c.l.b16 %v2752
      %v2905 = vunpack.c.l.b16 %v2753
      %v2906 = vpack.c.b16 %v2903, %v2902
      %v2907 = vpack.c.b16 %v2905, %v2904
      %2908 = vrot.lane.b32.xlu0 %v2906, 104
      %v2909 = vpop.permute.xlu0 %2908
      %2910 = vrot.lane.b32.xlu0 %v2907, 104
      %v2911 = vpop.permute.xlu0 %2910
      %2914 = vrot.lane.b32.xlu0 %v2827, 104
      %v2915 = vpop.permute.xlu0 %2914
      %2917 = vmatprep.subr.bf16.mxu0 0
      %2918 = vmatpush1.bf16.msra.mxu0 %v2909
      %2919 = vmatprep.subr.bf16.mxu0 0
      %2920 = vmatpush1.bf16.msra.mxu0 %v2911
      %2921 = vmatprep.subr.bf16.mxu0 0
      %2922 = vmatpush1.bf16.msra.mxu0 0
      %2923 = vmatprep.subr.bf16.mxu0 0
      %2924 = vmatpush1.bf16.msra.mxu0 0
      %2925 = vmatprep.subr.bf16.mxu0 0
      %2926 = vmatpush1.bf16.msra.mxu0 0
      %2927 = vmatprep.subr.bf16.mxu0 0
      %2928 = vmatpush1.bf16.msra.mxu0 0
      %2929 = vmatprep.subr.bf16.mxu0 0
      %2930 = vmatpush1.bf16.msra.mxu0 0
      %2931 = vmatprep.subr.bf16.mxu0 0
      %2932 = vmatpush1.bf16.msra.mxu0 0
      %2933 = vmatprep.subr.bf16.mxu0 0
      %2934 = vmatpush1.bf16.msra.mxu0 0
      %2935 = vmatprep.subr.bf16.mxu0 0
      %2936 = vmatpush1.bf16.msra.mxu0 0
      %2937 = vmatprep.subr.bf16.mxu0 0
      %2938 = vmatpush1.bf16.msra.mxu0 0
      %2939 = vmatprep.subr.bf16.mxu0 0
      %2940 = vmatpush1.bf16.msra.mxu0 0
      %2941 = vmatprep.subr.bf16.mxu0 0
      %2942 = vmatpush1.bf16.msra.mxu0 0
      %2943 = vmatprep.subr.bf16.mxu0 0
      %2944 = vmatpush1.bf16.msra.mxu0 0
      %2945 = vmatprep.subr.bf16.mxu0 0
      %2946 = vmatpush1.bf16.msra.mxu0 0
      %2947 = vmatprep.subr.bf16.mxu0 0
      %2948 = vmatpush1.bf16.msra.mxu0 0
      %2949 = vmatprep.mubr.bf16.mxu0 0
      %2950 = vmatmul.mubr.bf16.gmra.mrb[0].mxu0 %v2856
      %v2951 = vpop.f32.mrb[0].mxu0
      %v2952 = vadd.f32 %v2915, %v2951
      %v2953 = vpop.f32.mrb[0].mxu0
      %v2954 = vpop.f32.mrb[0].mxu0
      %v2955 = vpop.f32.mrb[0].mxu0
      %2956 = vdwg.mxu0
      %v2961 = vunpack.c.l.b16 %v2754
      %v2962 = vunpack.c.l.b16 %v2755
      %v2963 = vunpack.c.l.b16 %v2756
      %v2964 = vunpack.c.l.b16 %v2757
      %v2965 = vpack.c.b16 %v2962, %v2961
      %v2966 = vpack.c.b16 %v2964, %v2963
      %2967 = vrot.lane.b32.xlu0 %v2965, 104
      %v2968 = vpop.permute.xlu0 %2967
      %2969 = vrot.lane.b32.xlu0 %v2966, 104
      %v2970 = vpop.permute.xlu0 %2969
      %2973 = vrot.lane.b32.xlu0 %v2831, 104
      %v2974 = vpop.permute.xlu0 %2973
      %2976 = vmatprep.subr.bf16.mxu0 0
      %2977 = vmatpush1.bf16.msra.mxu0 %v2968
      %2978 = vmatprep.subr.bf16.mxu0 0
      %2979 = vmatpush1.bf16.msra.mxu0 %v2970
      %2980 = vmatprep.subr.bf16.mxu0 0
      %2981 = vmatpush1.bf16.msra.mxu0 0
      %2982 = vmatprep.subr.bf16.mxu0 0
      %2983 = vmatpush1.bf16.msra.mxu0 0
      %2984 = vmatprep.subr.bf16.mxu0 0
      %2985 = vmatpush1.bf16.msra.mxu0 0
      %2986 = vmatprep.subr.bf16.mxu0 0
      %2987 = vmatpush1.bf16.msra.mxu0 0
      %2988 = vmatprep.subr.bf16.mxu0 0
      %2989 = vmatpush1.bf16.msra.mxu0 0
      %2990 = vmatprep.subr.bf16.mxu0 0
      %2991 = vmatpush1.bf16.msra.mxu0 0
      %2992 = vmatprep.subr.bf16.mxu0 0
      %2993 = vmatpush1.bf16.msra.mxu0 0
      %2994 = vmatprep.subr.bf16.mxu0 0
      %2995 = vmatpush1.bf16.msra.mxu0 0
      %2996 = vmatprep.subr.bf16.mxu0 0
      %2997 = vmatpush1.bf16.msra.mxu0 0
      %2998 = vmatprep.subr.bf16.mxu0 0
      %2999 = vmatpush1.bf16.msra.mxu0 0
      %3000 = vmatprep.subr.bf16.mxu0 0
      %3001 = vmatpush1.bf16.msra.mxu0 0
      %3002 = vmatprep.subr.bf16.mxu0 0
      %3003 = vmatpush1.bf16.msra.mxu0 0
      %3004 = vmatprep.subr.bf16.mxu0 0
      %3005 = vmatpush1.bf16.msra.mxu0 0
      %3006 = vmatprep.subr.bf16.mxu0 0
      %3007 = vmatpush1.bf16.msra.mxu0 0
      %3008 = vmatprep.mubr.bf16.mxu0 0
      %3009 = vmatmul.mubr.bf16.gmra.mrb[0].mxu0 %v2856
      %v3010 = vpop.f32.mrb[0].mxu0
      %v3011 = vadd.f32 %v2974, %v3010
      %v3012 = vpop.f32.mrb[0].mxu0
      %v3013 = vpop.f32.mrb[0].mxu0
      %v3014 = vpop.f32.mrb[0].mxu0
      %3015 = vdwg.mxu0
      %v3020 = vunpack.c.l.b16 %v2758
      %v3021 = vunpack.c.l.b16 %v2759
      %v3022 = vunpack.c.l.b16 %v2760
      %v3023 = vunpack.c.l.b16 %v2761
      %v3024 = vpack.c.b16 %v3021, %v3020
      %v3025 = vpack.c.b16 %v3023, %v3022
      %3026 = vrot.lane.b32.xlu0 %v3024, 104
      %v3027 = vpop.permute.xlu0 %3026
      %3028 = vrot.lane.b32.xlu0 %v3025, 104
      %v3029 = vpop.permute.xlu0 %3028
      %3032 = vrot.lane.b32.xlu0 %v2835, 104
      %v3033 = vpop.permute.xlu0 %3032
      %3035 = vmatprep.subr.bf16.mxu0 0
      %3036 = vmatpush1.bf16.msra.mxu0 %v3027
      %3037 = vmatprep.subr.bf16.mxu0 0
      %3038 = vmatpush1.bf16.msra.mxu0 %v3029
      %3039 = vmatprep.subr.bf16.mxu0 0
      %3040 = vmatpush1.bf16.msra.mxu0 0
      %3041 = vmatprep.subr.bf16.mxu0 0
      %3042 = vmatpush1.bf16.msra.mxu0 0
      %3043 = vmatprep.subr.bf16.mxu0 0
      %3044 = vmatpush1.bf16.msra.mxu0 0
      %3045 = vmatprep.subr.bf16.mxu0 0
      %3046 = vmatpush1.bf16.msra.mxu0 0
      %3047 = vmatprep.subr.bf16.mxu0 0
      %3048 = vmatpush1.bf16.msra.mxu0 0
      %3049 = vmatprep.subr.bf16.mxu0 0
      %3050 = vmatpush1.bf16.msra.mxu0 0
      %3051 = vmatprep.subr.bf16.mxu0 0
      %3052 = vmatpush1.bf16.msra.mxu0 0
      %3053 = vmatprep.subr.bf16.mxu0 0
      %3054 = vmatpush1.bf16.msra.mxu0 0
      %3055 = vmatprep.subr.bf16.mxu0 0
      %3056 = vmatpush1.bf16.msra.mxu0 0
      %3057 = vmatprep.subr.bf16.mxu0 0
      %3058 = vmatpush1.bf16.msra.mxu0 0
      %3059 = vmatprep.subr.bf16.mxu0 0
      %3060 = vmatpush1.bf16.msra.mxu0 0
      %3061 = vmatprep.subr.bf16.mxu0 0
      %3062 = vmatpush1.bf16.msra.mxu0 0
      %3063 = vmatprep.subr.bf16.mxu0 0
      %3064 = vmatpush1.bf16.msra.mxu0 0
      %3065 = vmatprep.subr.bf16.mxu0 0
      %3066 = vmatpush1.bf16.msra.mxu0 0
      %3067 = vmatprep.mubr.bf16.mxu0 0
      %3068 = vmatmul.mubr.bf16.gmra.mrb[0].mxu0 %v2856
      %v3069 = vpop.f32.mrb[0].mxu0
      %v3070 = vadd.f32 %v3033, %v3069
      %v3071 = vpop.f32.mrb[0].mxu0
      %v3072 = vpop.f32.mrb[0].mxu0
      %v3073 = vpop.f32.mrb[0].mxu0
      %3074 = vdwg.mxu0
      %v3075 = vpack.c.bf16 %v2893, %v2893
      %v3076 = vpack.c.bf16 %v2952, %v2952
      %v3077 = vpack.c.bf16 %v3011, %v3011
      %v3078 = vpack.c.bf16 %v3070, %v3070
      %3080 = vrot.lane.b32.xlu0 %v3075, 120
      %v3081 = vpop.permute.xlu0 %3080
      %v3083 = vsel %vm776, %v3075, 0
      %v3086 = vsel %vm776, %v3081, 0
      %3088 = vmatprep.subr.bf16.mxu0 0
      %3089 = vmatpush1.bf16.xpose.msra.mxu0 %v3086
      %3090 = vmatprep.subr.bf16.mxu0 0
      %3091 = vmatpush1.bf16.xpose.msra.mxu0 0
      %3092 = vmatprep.subr.bf16.mxu0 0
      %3093 = vmatpush1.bf16.xpose.msra.mxu0 0
      %3094 = vmatprep.subr.bf16.mxu0 0
      %3095 = vmatpush1.bf16.xpose.msra.mxu0 0
      %3096 = vmatprep.subr.bf16.mxu0 0
      %3097 = vmatpush1.bf16.xpose.msra.mxu0 0
      %3098 = vmatprep.subr.bf16.mxu0 0
      %3099 = vmatpush1.bf16.xpose.msra.mxu0 0
      %3100 = vmatprep.subr.bf16.mxu0 0
      %3101 = vmatpush1.bf16.xpose.msra.mxu0 0
      %3102 = vmatprep.subr.bf16.mxu0 0
      %3103 = vmatpush1.bf16.xpose.msra.mxu0 0
      %3104 = vmatprep.subr.bf16.mxu0 0
      %3105 = vmatpush1.bf16.xpose.msra.mxu0 0
      %3106 = vmatprep.subr.bf16.mxu0 0
      %3107 = vmatpush1.bf16.xpose.msra.mxu0 0
      %3108 = vmatprep.subr.bf16.mxu0 0
      %3109 = vmatpush1.bf16.xpose.msra.mxu0 0
      %3110 = vmatprep.subr.bf16.mxu0 0
      %3111 = vmatpush1.bf16.xpose.msra.mxu0 0
      %3112 = vmatprep.subr.bf16.mxu0 0
      %3113 = vmatpush1.bf16.xpose.msra.mxu0 0
      %3114 = vmatprep.subr.bf16.mxu0 0
      %3115 = vmatpush1.bf16.xpose.msra.mxu0 0
      %3116 = vmatprep.subr.bf16.mxu0 0
      %3117 = vmatpush1.bf16.xpose.msra.mxu0 0
      %3118 = vmatprep.subr.bf16.mxu0 0
      %3119 = vmatpush1.bf16.xpose.msra.mxu0 0
      %3120 = vmatprep.mubr.bf16.mxu0 0
      %3121 = vmatmul.mubr.bf16.gmra.mrb[0].mxu0 %v3083
      %v3122 = vpop.f32.mrb[0].mxu0
      %v3123 = vadd.f32 0.0, %v3122
      %v3124 = vpop.f32.mrb[0].mxu0
      %v3125 = vpop.f32.mrb[0].mxu0
      %v3126 = vpop.f32.mrb[0].mxu0
      %3127 = vdwg.mxu0
      %3129 = vrot.lane.b32.xlu0 %v3076, 120
      %v3130 = vpop.permute.xlu0 %3129
      %v3132 = vsel %vm776, %v3076, 0
      %v3135 = vsel %vm776, %v3130, 0
      %3137 = vmatprep.subr.bf16.mxu0 0
      %3138 = vmatpush1.bf16.xpose.msra.mxu0 %v3135
      %3139 = vmatprep.subr.bf16.mxu0 0
      %3140 = vmatpush1.bf16.xpose.msra.mxu0 0
      %3141 = vmatprep.subr.bf16.mxu0 0
      %3142 = vmatpush1.bf16.xpose.msra.mxu0 0
      %3143 = vmatprep.subr.bf16.mxu0 0
      %3144 = vmatpush1.bf16.xpose.msra.mxu0 0
      %3145 = vmatprep.subr.bf16.mxu0 0
      %3146 = vmatpush1.bf16.xpose.msra.mxu0 0
      %3147 = vmatprep.subr.bf16.mxu0 0
      %3148 = vmatpush1.bf16.xpose.msra.mxu0 0
      %3149 = vmatprep.subr.bf16.mxu0 0
      %3150 = vmatpush1.bf16.xpose.msra.mxu0 0
      %3151 = vmatprep.subr.bf16.mxu0 0
      %3152 = vmatpush1.bf16.xpose.msra.mxu0 0
      %3153 = vmatprep.subr.bf16.mxu0 0
      %3154 = vmatpush1.bf16.xpose.msra.mxu0 0
      %3155 = vmatprep.subr.bf16.mxu0 0
      %3156 = vmatpush1.bf16.xpose.msra.mxu0 0
      %3157 = vmatprep.subr.bf16.mxu0 0
      %3158 = vmatpush1.bf16.xpose.msra.mxu0 0
      %3159 = vmatprep.subr.bf16.mxu0 0
      %3160 = vmatpush1.bf16.xpose.msra.mxu0 0
      %3161 = vmatprep.subr.bf16.mxu0 0
      %3162 = vmatpush1.bf16.xpose.msra.mxu0 0
      %3163 = vmatprep.subr.bf16.mxu0 0
      %3164 = vmatpush1.bf16.xpose.msra.mxu0 0
      %3165 = vmatprep.subr.bf16.mxu0 0
      %3166 = vmatpush1.bf16.xpose.msra.mxu0 0
      %3167 = vmatprep.subr.bf16.mxu0 0
      %3168 = vmatpush1.bf16.xpose.msra.mxu0 0
      %3169 = vmatprep.mubr.bf16.mxu0 0
      %3170 = vmatmul.mubr.bf16.gmra.mrb[0].mxu0 %v3132
      %v3171 = vpop.f32.mrb[0].mxu0
      %v3172 = vadd.f32 0.0, %v3171
      %v3173 = vpop.f32.mrb[0].mxu0
      %v3174 = vpop.f32.mrb[0].mxu0
      %v3175 = vpop.f32.mrb[0].mxu0
      %3176 = vdwg.mxu0
      %3178 = vrot.lane.b32.xlu0 %v3077, 120
      %v3179 = vpop.permute.xlu0 %3178
      %v3181 = vsel %vm776, %v3077, 0
      %v3184 = vsel %vm776, %v3179, 0
      %3186 = vmatprep.subr.bf16.mxu0 0
      %3187 = vmatpush1.bf16.xpose.msra.mxu0 %v3184
      %3188 = vmatprep.subr.bf16.mxu0 0
      %3189 = vmatpush1.bf16.xpose.msra.mxu0 0
      %3190 = vmatprep.subr.bf16.mxu0 0
      %3191 = vmatpush1.bf16.xpose.msra.mxu0 0
      %3192 = vmatprep.subr.bf16.mxu0 0
      %3193 = vmatpush1.bf16.xpose.msra.mxu0 0
      %3194 = vmatprep.subr.bf16.mxu0 0
      %3195 = vmatpush1.bf16.xpose.msra.mxu0 0
      %3196 = vmatprep.subr.bf16.mxu0 0
      %3197 = vmatpush1.bf16.xpose.msra.mxu0 0
      %3198 = vmatprep.subr.bf16.mxu0 0
      %3199 = vmatpush1.bf16.xpose.msra.mxu0 0
      %3200 = vmatprep.subr.bf16.mxu0 0
      %3201 = vmatpush1.bf16.xpose.msra.mxu0 0
      %3202 = vmatprep.subr.bf16.mxu0 0
      %3203 = vmatpush1.bf16.xpose.msra.mxu0 0
      %3204 = vmatprep.subr.bf16.mxu0 0
      %3205 = vmatpush1.bf16.xpose.msra.mxu0 0
      %3206 = vmatprep.subr.bf16.mxu0 0
      %3207 = vmatpush1.bf16.xpose.msra.mxu0 0
      %3208 = vmatprep.subr.bf16.mxu0 0
      %3209 = vmatpush1.bf16.xpose.msra.mxu0 0
      %3210 = vmatprep.subr.bf16.mxu0 0
      %3211 = vmatpush1.bf16.xpose.msra.mxu0 0
      %3212 = vmatprep.subr.bf16.mxu0 0
      %3213 = vmatpush1.bf16.xpose.msra.mxu0 0
      %3214 = vmatprep.subr.bf16.mxu0 0
      %3215 = vmatpush1.bf16.xpose.msra.mxu0 0
      %3216 = vmatprep.subr.bf16.mxu0 0
      %3217 = vmatpush1.bf16.xpose.msra.mxu0 0
      %3218 = vmatprep.mubr.bf16.mxu0 0
      %3219 = vmatmul.mubr.bf16.gmra.mrb[0].mxu0 %v3181
      %v3220 = vpop.f32.mrb[0].mxu0
      %v3221 = vadd.f32 0.0, %v3220
      %v3222 = vpop.f32.mrb[0].mxu0
      %v3223 = vpop.f32.mrb[0].mxu0
      %v3224 = vpop.f32.mrb[0].mxu0
      %3225 = vdwg.mxu0
      %3227 = vrot.lane.b32.xlu0 %v3078, 120
      %v3228 = vpop.permute.xlu0 %3227
      %v3230 = vsel %vm776, %v3078, 0
      %v3233 = vsel %vm776, %v3228, 0
      %3235 = vmatprep.subr.bf16.mxu0 0
      %3236 = vmatpush1.bf16.xpose.msra.mxu0 %v3233
      %3237 = vmatprep.subr.bf16.mxu0 0
      %3238 = vmatpush1.bf16.xpose.msra.mxu0 0
      %3239 = vmatprep.subr.bf16.mxu0 0
      %3240 = vmatpush1.bf16.xpose.msra.mxu0 0
      %3241 = vmatprep.subr.bf16.mxu0 0
      %3242 = vmatpush1.bf16.xpose.msra.mxu0 0
      %3243 = vmatprep.subr.bf16.mxu0 0
      %3244 = vmatpush1.bf16.xpose.msra.mxu0 0
      %3245 = vmatprep.subr.bf16.mxu0 0
      %3246 = vmatpush1.bf16.xpose.msra.mxu0 0
      %3247 = vmatprep.subr.bf16.mxu0 0
      %3248 = vmatpush1.bf16.xpose.msra.mxu0 0
      %3249 = vmatprep.subr.bf16.mxu0 0
      %3250 = vmatpush1.bf16.xpose.msra.mxu0 0
      %3251 = vmatprep.subr.bf16.mxu0 0
      %3252 = vmatpush1.bf16.xpose.msra.mxu0 0
      %3253 = vmatprep.subr.bf16.mxu0 0
      %3254 = vmatpush1.bf16.xpose.msra.mxu0 0
      %3255 = vmatprep.subr.bf16.mxu0 0
      %3256 = vmatpush1.bf16.xpose.msra.mxu0 0
      %3257 = vmatprep.subr.bf16.mxu0 0
      %3258 = vmatpush1.bf16.xpose.msra.mxu0 0
      %3259 = vmatprep.subr.bf16.mxu0 0
      %3260 = vmatpush1.bf16.xpose.msra.mxu0 0
      %3261 = vmatprep.subr.bf16.mxu0 0
      %3262 = vmatpush1.bf16.xpose.msra.mxu0 0
      %3263 = vmatprep.subr.bf16.mxu0 0
      %3264 = vmatpush1.bf16.xpose.msra.mxu0 0
      %3265 = vmatprep.subr.bf16.mxu0 0
      %3266 = vmatpush1.bf16.xpose.msra.mxu0 0
      %3267 = vmatprep.mubr.bf16.mxu0 0
      %3268 = vmatmul.mubr.bf16.gmra.mrb[0].mxu0 %v3230
      %v3269 = vpop.f32.mrb[0].mxu0
      %v3270 = vadd.f32 0.0, %v3269
      %v3271 = vpop.f32.mrb[0].mxu0
      %v3272 = vpop.f32.mrb[0].mxu0
      %v3273 = vpop.f32.mrb[0].mxu0
      %3274 = vdwg.mxu0
      %v3275 = vmul.f32 %v3123, 0.35355338
      %v3276 = vmul.f32 %v3172, 0.35355338
      %v3277 = vmul.f32 %v3221, 0.35355338
      %v3278 = vmul.f32 %v3270, 0.35355338
      %v3279 = vadd.f32 %v3275, %v461
      %v3280 = vadd.f32 %v3276, %v461
      %v3281 = vadd.f32 %v3277, %v461
      %v3282 = vadd.f32 %v3278, %v461
      %v3283 = vsel %vm776, %v3279, -inf
      %3284 = vmax.xlane.f32.xlu0 %v3283
      %v3285 = vpop.xlane.xlu0 %3284
      %v3286 = vsel %vm776, %v3280, -inf
      %3287 = vmax.xlane.f32.xlu0 %v3286
      %v3288 = vpop.xlane.xlu0 %3287
      %v3289 = vsel %vm776, %v3281, -inf
      %3290 = vmax.xlane.f32.xlu0 %v3289
      %v3291 = vpop.xlane.xlu0 %3290
      %v3292 = vsel %vm776, %v3282, -inf
      %3293 = vmax.xlane.f32.xlu0 %v3292
      %v3294 = vpop.xlane.xlu0 %3293
      %v3295 = vsub.f32 %v3279, %v3285
      %v3296 = vsub.f32 %v3280, %v3288
      %v3297 = vsub.f32 %v3281, %v3291
      %v3298 = vsub.f32 %v3282, %v3294
      %v3299 = vmul.f32 %v3295, 1.442695
      %v3300 = vpow.pop %v3299
      %v3301 = vmul.f32 %v3296, 1.442695
      %v3302 = vpow.pop %v3301
      %v3303 = vmul.f32 %v3297, 1.442695
      %v3304 = vpow.pop %v3303
      %v3305 = vmul.f32 %v3298, 1.442695
      %v3306 = vpow.pop %v3305
      %v3307 = vsel %vm776, %v3300, 0.0
      %3308 = vadd.xlane.f32.xlu0 %v3307
      %v3309 = vpop.xlane.xlu0 %3308
      %v3310 = vsel %vm776, %v3302, 0.0
      %3311 = vadd.xlane.f32.xlu0 %v3310
      %v3312 = vpop.xlane.xlu0 %3311
      %v3313 = vsel %vm776, %v3304, 0.0
      %3314 = vadd.xlane.f32.xlu0 %v3313
      %v3315 = vpop.xlane.xlu0 %3314
      %v3316 = vsel %vm776, %v3306, 0.0
      %3317 = vadd.xlane.f32.xlu0 %v3316
      %v3318 = vpop.xlane.xlu0 %3317
      %v3319 = vrcp.pop %v3309
      %v3320 = vrcp.pop %v3312
      %v3321 = vrcp.pop %v3315
      %v3322 = vrcp.pop %v3318
      %v3323 = vmul.f32 %v3300, %v3319
      %v3324 = vmul.f32 %v3302, %v3320
      %v3325 = vmul.f32 %v3304, %v3321
      %v3326 = vmul.f32 %v3306, %v3322
      %v3327 = vpack.c.bf16 %v3323, %v3323
      %v3328 = vpack.c.bf16 %v3324, %v3324
      %v3329 = vpack.c.bf16 %v3325, %v3325
      %v3330 = vpack.c.bf16 %v3326, %v3326
      %3331 = vrot.lane.b32.xlu0 %v3075, 112
      %v3332 = vpop.permute.xlu0 %3331
      %v3334 = vsel %vm776, %v3327, 0
      %v3337 = vsel %vm1037, %v3332, 0
      %3339 = vmatprep.subr.bf16.mxu0 0
      %3340 = vmatpush1.bf16.msra.mxu0 %v3337
      %3341 = vmatprep.subr.bf16.mxu0 0
      %3342 = vmatpush1.bf16.msra.mxu0 0
      %3343 = vmatprep.subr.bf16.mxu0 0
      %3344 = vmatpush1.bf16.msra.mxu0 0
      %3345 = vmatprep.subr.bf16.mxu0 0
      %3346 = vmatpush1.bf16.msra.mxu0 0
      %3347 = vmatprep.subr.bf16.mxu0 0
      %3348 = vmatpush1.bf16.msra.mxu0 0
      %3349 = vmatprep.subr.bf16.mxu0 0
      %3350 = vmatpush1.bf16.msra.mxu0 0
      %3351 = vmatprep.subr.bf16.mxu0 0
      %3352 = vmatpush1.bf16.msra.mxu0 0
      %3353 = vmatprep.subr.bf16.mxu0 0
      %3354 = vmatpush1.bf16.msra.mxu0 0
      %3355 = vmatprep.subr.bf16.mxu0 0
      %3356 = vmatpush1.bf16.msra.mxu0 0
      %3357 = vmatprep.subr.bf16.mxu0 0
      %3358 = vmatpush1.bf16.msra.mxu0 0
      %3359 = vmatprep.subr.bf16.mxu0 0
      %3360 = vmatpush1.bf16.msra.mxu0 0
      %3361 = vmatprep.subr.bf16.mxu0 0
      %3362 = vmatpush1.bf16.msra.mxu0 0
      %3363 = vmatprep.subr.bf16.mxu0 0
      %3364 = vmatpush1.bf16.msra.mxu0 0
      %3365 = vmatprep.subr.bf16.mxu0 0
      %3366 = vmatpush1.bf16.msra.mxu0 0
      %3367 = vmatprep.subr.bf16.mxu0 0
      %3368 = vmatpush1.bf16.msra.mxu0 0
      %3369 = vmatprep.subr.bf16.mxu0 0
      %3370 = vmatpush1.bf16.msra.mxu0 0
      %3371 = vmatprep.mubr.bf16.mxu0 0
      %3372 = vmatmul.mubr.bf16.gmra.mrb[0].mxu0 %v3334
      %v3373 = vpop.f32.mrb[0].mxu0
      %v3374 = vadd.f32 0.0, %v3373
      %v3375 = vpop.f32.mrb[0].mxu0
      %v3376 = vpop.f32.mrb[0].mxu0
      %v3377 = vpop.f32.mrb[0].mxu0
      %3378 = vdwg.mxu0
      %3379 = vrot.lane.b32.xlu0 %v3076, 112
      %v3380 = vpop.permute.xlu0 %3379
      %v3382 = vsel %vm776, %v3328, 0
      %v3385 = vsel %vm1037, %v3380, 0
      %3387 = vmatprep.subr.bf16.mxu0 0
      %3388 = vmatpush1.bf16.msra.mxu0 %v3385
      %3389 = vmatprep.subr.bf16.mxu0 0
      %3390 = vmatpush1.bf16.msra.mxu0 0
      %3391 = vmatprep.subr.bf16.mxu0 0
      %3392 = vmatpush1.bf16.msra.mxu0 0
      %3393 = vmatprep.subr.bf16.mxu0 0
      %3394 = vmatpush1.bf16.msra.mxu0 0
      %3395 = vmatprep.subr.bf16.mxu0 0
      %3396 = vmatpush1.bf16.msra.mxu0 0
      %3397 = vmatprep.subr.bf16.mxu0 0
      %3398 = vmatpush1.bf16.msra.mxu0 0
      %3399 = vmatprep.subr.bf16.mxu0 0
      %3400 = vmatpush1.bf16.msra.mxu0 0
      %3401 = vmatprep.subr.bf16.mxu0 0
      %3402 = vmatpush1.bf16.msra.mxu0 0
      %3403 = vmatprep.subr.bf16.mxu0 0
      %3404 = vmatpush1.bf16.msra.mxu0 0
      %3405 = vmatprep.subr.bf16.mxu0 0
      %3406 = vmatpush1.bf16.msra.mxu0 0
      %3407 = vmatprep.subr.bf16.mxu0 0
      %3408 = vmatpush1.bf16.msra.mxu0 0
      %3409 = vmatprep.subr.bf16.mxu0 0
      %3410 = vmatpush1.bf16.msra.mxu0 0
      %3411 = vmatprep.subr.bf16.mxu0 0
      %3412 = vmatpush1.bf16.msra.mxu0 0
      %3413 = vmatprep.subr.bf16.mxu0 0
      %3414 = vmatpush1.bf16.msra.mxu0 0
      %3415 = vmatprep.subr.bf16.mxu0 0
      %3416 = vmatpush1.bf16.msra.mxu0 0
      %3417 = vmatprep.subr.bf16.mxu0 0
      %3418 = vmatpush1.bf16.msra.mxu0 0
      %3419 = vmatprep.mubr.bf16.mxu0 0
      %3420 = vmatmul.mubr.bf16.gmra.mrb[0].mxu0 %v3382
      %v3421 = vpop.f32.mrb[0].mxu0
      %v3422 = vadd.f32 0.0, %v3421
      %v3423 = vpop.f32.mrb[0].mxu0
      %v3424 = vpop.f32.mrb[0].mxu0
      %v3425 = vpop.f32.mrb[0].mxu0
      %3426 = vdwg.mxu0
      %3427 = vrot.lane.b32.xlu0 %v3077, 112
      %v3428 = vpop.permute.xlu0 %3427
      %v3430 = vsel %vm776, %v3329, 0
      %v3433 = vsel %vm1037, %v3428, 0
      %3435 = vmatprep.subr.bf16.mxu0 0
      %3436 = vmatpush1.bf16.msra.mxu0 %v3433
      %3437 = vmatprep.subr.bf16.mxu0 0
      %3438 = vmatpush1.bf16.msra.mxu0 0
      %3439 = vmatprep.subr.bf16.mxu0 0
      %3440 = vmatpush1.bf16.msra.mxu0 0
      %3441 = vmatprep.subr.bf16.mxu0 0
      %3442 = vmatpush1.bf16.msra.mxu0 0
      %3443 = vmatprep.subr.bf16.mxu0 0
      %3444 = vmatpush1.bf16.msra.mxu0 0
      %3445 = vmatprep.subr.bf16.mxu0 0
      %3446 = vmatpush1.bf16.msra.mxu0 0
      %3447 = vmatprep.subr.bf16.mxu0 0
      %3448 = vmatpush1.bf16.msra.mxu0 0
      %3449 = vmatprep.subr.bf16.mxu0 0
      %3450 = vmatpush1.bf16.msra.mxu0 0
      %3451 = vmatprep.subr.bf16.mxu0 0
      %3452 = vmatpush1.bf16.msra.mxu0 0
      %3453 = vmatprep.subr.bf16.mxu0 0
      %3454 = vmatpush1.bf16.msra.mxu0 0
      %3455 = vmatprep.subr.bf16.mxu0 0
      %3456 = vmatpush1.bf16.msra.mxu0 0
      %3457 = vmatprep.subr.bf16.mxu0 0
      %3458 = vmatpush1.bf16.msra.mxu0 0
      %3459 = vmatprep.subr.bf16.mxu0 0
      %3460 = vmatpush1.bf16.msra.mxu0 0
      %3461 = vmatprep.subr.bf16.mxu0 0
      %3462 = vmatpush1.bf16.msra.mxu0 0
      %3463 = vmatprep.subr.bf16.mxu0 0
      %3464 = vmatpush1.bf16.msra.mxu0 0
      %3465 = vmatprep.subr.bf16.mxu0 0
      %3466 = vmatpush1.bf16.msra.mxu0 0
      %3467 = vmatprep.mubr.bf16.mxu0 0
      %3468 = vmatmul.mubr.bf16.gmra.mrb[0].mxu0 %v3430
      %v3469 = vpop.f32.mrb[0].mxu0
      %v3470 = vadd.f32 0.0, %v3469
      %v3471 = vpop.f32.mrb[0].mxu0
      %v3472 = vpop.f32.mrb[0].mxu0
      %v3473 = vpop.f32.mrb[0].mxu0
      %3474 = vdwg.mxu0
      %3475 = vrot.lane.b32.xlu0 %v3078, 112
      %v3476 = vpop.permute.xlu0 %3475
      %v3478 = vsel %vm776, %v3330, 0
      %v3481 = vsel %vm1037, %v3476, 0
      %3483 = vmatprep.subr.bf16.mxu0 0
      %3484 = vmatpush1.bf16.msra.mxu0 %v3481
      %3485 = vmatprep.subr.bf16.mxu0 0
      %3486 = vmatpush1.bf16.msra.mxu0 0
      %3487 = vmatprep.subr.bf16.mxu0 0
      %3488 = vmatpush1.bf16.msra.mxu0 0
      %3489 = vmatprep.subr.bf16.mxu0 0
      %3490 = vmatpush1.bf16.msra.mxu0 0
      %3491 = vmatprep.subr.bf16.mxu0 0
      %3492 = vmatpush1.bf16.msra.mxu0 0
      %3493 = vmatprep.subr.bf16.mxu0 0
      %3494 = vmatpush1.bf16.msra.mxu0 0
      %3495 = vmatprep.subr.bf16.mxu0 0
      %3496 = vmatpush1.bf16.msra.mxu0 0
      %3497 = vmatprep.subr.bf16.mxu0 0
      %3498 = vmatpush1.bf16.msra.mxu0 0
      %3499 = vmatprep.subr.bf16.mxu0 0
      %3500 = vmatpush1.bf16.msra.mxu0 0
      %3501 = vmatprep.subr.bf16.mxu0 0
      %3502 = vmatpush1.bf16.msra.mxu0 0
      %3503 = vmatprep.subr.bf16.mxu0 0
      %3504 = vmatpush1.bf16.msra.mxu0 0
      %3505 = vmatprep.subr.bf16.mxu0 0
      %3506 = vmatpush1.bf16.msra.mxu0 0
      %3507 = vmatprep.subr.bf16.mxu0 0
      %3508 = vmatpush1.bf16.msra.mxu0 0
      %3509 = vmatprep.subr.bf16.mxu0 0
      %3510 = vmatpush1.bf16.msra.mxu0 0
      %3511 = vmatprep.subr.bf16.mxu0 0
      %3512 = vmatpush1.bf16.msra.mxu0 0
      %3513 = vmatprep.subr.bf16.mxu0 0
      %3514 = vmatpush1.bf16.msra.mxu0 0
      %3515 = vmatprep.mubr.bf16.mxu0 0
      %3516 = vmatmul.mubr.bf16.gmra.mrb[0].mxu0 %v3478
      %v3517 = vpop.f32.mrb[0].mxu0
      %v3518 = vadd.f32 0.0, %v3517
      %v3519 = vpop.f32.mrb[0].mxu0
      %v3520 = vpop.f32.mrb[0].mxu0
      %v3521 = vpop.f32.mrb[0].mxu0
      %3522 = vdwg.mxu0
      %v3523 = vpack.c.bf16 %v3374, %v3374
      %v3524 = vpack.c.bf16 %v3422, %v3422
      %v3525 = vpack.c.bf16 %v3470, %v3470
      %v3526 = vpack.c.bf16 %v3518, %v3518
      %v3528 = vunpack.c.l.b16 %v2766
      %v3529 = vpack.c.b16 %v3528, %v3528
      %3530 = vrot.lane.b32.xlu0 %v3529, 96
      %v3531 = vpop.permute.xlu0 %3530
      %v3533 = vsel %vm776, %v3523, 0
      %v3536 = vsel %vm1037, %v3531, 0
      %3538 = vmatprep.subr.bf16.mxu0 0
      %3539 = vmatpush1.bf16.msra.mxu0 %v3536
      %3540 = vmatprep.subr.bf16.mxu0 0
      %3541 = vmatpush1.bf16.msra.mxu0 0
      %3542 = vmatprep.subr.bf16.mxu0 0
      %3543 = vmatpush1.bf16.msra.mxu0 0
      %3544 = vmatprep.subr.bf16.mxu0 0
      %3545 = vmatpush1.bf16.msra.mxu0 0
      %3546 = vmatprep.subr.bf16.mxu0 0
      %3547 = vmatpush1.bf16.msra.mxu0 0
      %3548 = vmatprep.subr.bf16.mxu0 0
      %3549 = vmatpush1.bf16.msra.mxu0 0
      %3550 = vmatprep.subr.bf16.mxu0 0
      %3551 = vmatpush1.bf16.msra.mxu0 0
      %3552 = vmatprep.subr.bf16.mxu0 0
      %3553 = vmatpush1.bf16.msra.mxu0 0
      %3554 = vmatprep.subr.bf16.mxu0 0
      %3555 = vmatpush1.bf16.msra.mxu0 0
      %3556 = vmatprep.subr.bf16.mxu0 0
      %3557 = vmatpush1.bf16.msra.mxu0 0
      %3558 = vmatprep.subr.bf16.mxu0 0
      %3559 = vmatpush1.bf16.msra.mxu0 0
      %3560 = vmatprep.subr.bf16.mxu0 0
      %3561 = vmatpush1.bf16.msra.mxu0 0
      %3562 = vmatprep.subr.bf16.mxu0 0
      %3563 = vmatpush1.bf16.msra.mxu0 0
      %3564 = vmatprep.subr.bf16.mxu0 0
      %3565 = vmatpush1.bf16.msra.mxu0 0
      %3566 = vmatprep.subr.bf16.mxu0 0
      %3567 = vmatpush1.bf16.msra.mxu0 0
      %3568 = vmatprep.subr.bf16.mxu0 0
      %3569 = vmatpush1.bf16.msra.mxu0 0
      %3570 = vmatprep.mubr.bf16.mxu0 0
      %3571 = vmatmul.mubr.bf16.gmra.mrb[0].mxu0 %v3533
      %v3572 = vpop.f32.mrb[0].mxu0
      %v3573 = vadd.f32 0.0, %v3572
      %v3574 = vpop.f32.mrb[0].mxu0
      %v3575 = vpop.f32.mrb[0].mxu0
      %v3576 = vpop.f32.mrb[0].mxu0
      %3577 = vdwg.mxu0
      %v3579 = vunpack.c.l.b16 %v2767
      %v3580 = vpack.c.b16 %v3579, %v3579
      %3581 = vrot.lane.b32.xlu0 %v3580, 96
      %v3582 = vpop.permute.xlu0 %3581
      %v3584 = vsel %vm776, %v3524, 0
      %v3587 = vsel %vm1037, %v3582, 0
      %3589 = vmatprep.subr.bf16.mxu0 0
      %3590 = vmatpush1.bf16.msra.mxu0 %v3587
      %3591 = vmatprep.subr.bf16.mxu0 0
      %3592 = vmatpush1.bf16.msra.mxu0 0
      %3593 = vmatprep.subr.bf16.mxu0 0
      %3594 = vmatpush1.bf16.msra.mxu0 0
      %3595 = vmatprep.subr.bf16.mxu0 0
      %3596 = vmatpush1.bf16.msra.mxu0 0
      %3597 = vmatprep.subr.bf16.mxu0 0
      %3598 = vmatpush1.bf16.msra.mxu0 0
      %3599 = vmatprep.subr.bf16.mxu0 0
      %3600 = vmatpush1.bf16.msra.mxu0 0
      %3601 = vmatprep.subr.bf16.mxu0 0
      %3602 = vmatpush1.bf16.msra.mxu0 0
      %3603 = vmatprep.subr.bf16.mxu0 0
      %3604 = vmatpush1.bf16.msra.mxu0 0
      %3605 = vmatprep.subr.bf16.mxu0 0
      %3606 = vmatpush1.bf16.msra.mxu0 0
      %3607 = vmatprep.subr.bf16.mxu0 0
      %3608 = vmatpush1.bf16.msra.mxu0 0
      %3609 = vmatprep.subr.bf16.mxu0 0
      %3610 = vmatpush1.bf16.msra.mxu0 0
      %3611 = vmatprep.subr.bf16.mxu0 0
      %3612 = vmatpush1.bf16.msra.mxu0 0
      %3613 = vmatprep.subr.bf16.mxu0 0
      %3614 = vmatpush1.bf16.msra.mxu0 0
      %3615 = vmatprep.subr.bf16.mxu0 0
      %3616 = vmatpush1.bf16.msra.mxu0 0
      %3617 = vmatprep.subr.bf16.mxu0 0
      %3618 = vmatpush1.bf16.msra.mxu0 0
      %3619 = vmatprep.subr.bf16.mxu0 0
      %3620 = vmatpush1.bf16.msra.mxu0 0
      %3621 = vmatprep.mubr.bf16.mxu0 0
      %3622 = vmatmul.mubr.bf16.gmra.mrb[0].mxu0 %v3584
      %v3623 = vpop.f32.mrb[0].mxu0
      %v3624 = vadd.f32 0.0, %v3623
      %v3625 = vpop.f32.mrb[0].mxu0
      %v3626 = vpop.f32.mrb[0].mxu0
      %v3627 = vpop.f32.mrb[0].mxu0
      %3628 = vdwg.mxu0
      %v3630 = vunpack.c.l.b16 %v2768
      %v3631 = vpack.c.b16 %v3630, %v3630
      %3632 = vrot.lane.b32.xlu0 %v3631, 96
      %v3633 = vpop.permute.xlu0 %3632
      %v3635 = vsel %vm776, %v3525, 0
      %v3638 = vsel %vm1037, %v3633, 0
      %3640 = vmatprep.subr.bf16.mxu0 0
      %3641 = vmatpush1.bf16.msra.mxu0 %v3638
      %3642 = vmatprep.subr.bf16.mxu0 0
      %3643 = vmatpush1.bf16.msra.mxu0 0
      %3644 = vmatprep.subr.bf16.mxu0 0
      %3645 = vmatpush1.bf16.msra.mxu0 0
      %3646 = vmatprep.subr.bf16.mxu0 0
      %3647 = vmatpush1.bf16.msra.mxu0 0
      %3648 = vmatprep.subr.bf16.mxu0 0
      %3649 = vmatpush1.bf16.msra.mxu0 0
      %3650 = vmatprep.subr.bf16.mxu0 0
      %3651 = vmatpush1.bf16.msra.mxu0 0
      %3652 = vmatprep.subr.bf16.mxu0 0
      %3653 = vmatpush1.bf16.msra.mxu0 0
      %3654 = vmatprep.subr.bf16.mxu0 0
      %3655 = vmatpush1.bf16.msra.mxu0 0
      %3656 = vmatprep.subr.bf16.mxu0 0
      %3657 = vmatpush1.bf16.msra.mxu0 0
      %3658 = vmatprep.subr.bf16.mxu0 0
      %3659 = vmatpush1.bf16.msra.mxu0 0
      %3660 = vmatprep.subr.bf16.mxu0 0
      %3661 = vmatpush1.bf16.msra.mxu0 0
      %3662 = vmatprep.subr.bf16.mxu0 0
      %3663 = vmatpush1.bf16.msra.mxu0 0
      %3664 = vmatprep.subr.bf16.mxu0 0
      %3665 = vmatpush1.bf16.msra.mxu0 0
      %3666 = vmatprep.subr.bf16.mxu0 0
      %3667 = vmatpush1.bf16.msra.mxu0 0
      %3668 = vmatprep.subr.bf16.mxu0 0
      %3669 = vmatpush1.bf16.msra.mxu0 0
      %3670 = vmatprep.subr.bf16.mxu0 0
      %3671 = vmatpush1.bf16.msra.mxu0 0
      %3672 = vmatprep.mubr.bf16.mxu0 0
      %3673 = vmatmul.mubr.bf16.gmra.mrb[0].mxu0 %v3635
      %v3674 = vpop.f32.mrb[0].mxu0
      %v3675 = vadd.f32 0.0, %v3674
      %v3676 = vpop.f32.mrb[0].mxu0
      %v3677 = vpop.f32.mrb[0].mxu0
      %v3678 = vpop.f32.mrb[0].mxu0
      %3679 = vdwg.mxu0
      %v3681 = vunpack.c.l.b16 %v2769
      %v3682 = vpack.c.b16 %v3681, %v3681
      %3683 = vrot.lane.b32.xlu0 %v3682, 96
      %v3684 = vpop.permute.xlu0 %3683
      %v3686 = vsel %vm776, %v3526, 0
      %v3689 = vsel %vm1037, %v3684, 0
      %3691 = vmatprep.subr.bf16.mxu0 0
      %3692 = vmatpush1.bf16.msra.mxu0 %v3689
      %3693 = vmatprep.subr.bf16.mxu0 0
      %3694 = vmatpush1.bf16.msra.mxu0 0
      %3695 = vmatprep.subr.bf16.mxu0 0
      %3696 = vmatpush1.bf16.msra.mxu0 0
      %3697 = vmatprep.subr.bf16.mxu0 0
      %3698 = vmatpush1.bf16.msra.mxu0 0
      %3699 = vmatprep.subr.bf16.mxu0 0
      %3700 = vmatpush1.bf16.msra.mxu0 0
      %3701 = vmatprep.subr.bf16.mxu0 0
      %3702 = vmatpush1.bf16.msra.mxu0 0
      %3703 = vmatprep.subr.bf16.mxu0 0
      %3704 = vmatpush1.bf16.msra.mxu0 0
      %3705 = vmatprep.subr.bf16.mxu0 0
      %3706 = vmatpush1.bf16.msra.mxu0 0
      %3707 = vmatprep.subr.bf16.mxu0 0
      %3708 = vmatpush1.bf16.msra.mxu0 0
      %3709 = vmatprep.subr.bf16.mxu0 0
      %3710 = vmatpush1.bf16.msra.mxu0 0
      %3711 = vmatprep.subr.bf16.mxu0 0
      %3712 = vmatpush1.bf16.msra.mxu0 0
      %3713 = vmatprep.subr.bf16.mxu0 0
      %3714 = vmatpush1.bf16.msra.mxu0 0
      %3715 = vmatprep.subr.bf16.mxu0 0
      %3716 = vmatpush1.bf16.msra.mxu0 0
      %3717 = vmatprep.subr.bf16.mxu0 0
      %3718 = vmatpush1.bf16.msra.mxu0 0
      %3719 = vmatprep.subr.bf16.mxu0 0
      %3720 = vmatpush1.bf16.msra.mxu0 0
      %3721 = vmatprep.subr.bf16.mxu0 0
      %3722 = vmatpush1.bf16.msra.mxu0 0
      %3723 = vmatprep.mubr.bf16.mxu0 0
      %3724 = vmatmul.mubr.bf16.gmra.mrb[0].mxu0 %v3686
      %v3725 = vpop.f32.mrb[0].mxu0
      %v3726 = vadd.f32 0.0, %v3725
      %v3727 = vpop.f32.mrb[0].mxu0
      %v3728 = vpop.f32.mrb[0].mxu0
      %v3729 = vpop.f32.mrb[0].mxu0
      %3730 = vdwg.mxu0
      %v3731 = vsel %vm500, %v3573, 0.0
      %v3732 = vsel %vm500, %v3624, 0.0
      %v3733 = vadd.f32 %v3731, %v3732
      %v3734 = vsel %vm500, %v3675, 0.0
      %v3735 = vadd.f32 %v3733, %v3734
      %v3736 = vsel %vm500, %v3726, 0.0
      %v3737 = vadd.f32 %v3735, %v3736
      %v3738 = vlaneseq
      %v3739 = vshrl.u32 %v3738, 7
      %v3740 = vsub.s32 1, %v3739
      %v3741 = vrot.slane %v2783, %v3740
      %v3742 = vadd.f32 %v3737, %v3741
      %v3743 = vadd.f32 %v459, %v3742
      %v3744 = vsel %vm500, %v3743, 0.0
      %3745 = vadd.xlane.f32.xlu0 %v3744
      %v3746 = vpop.xlane.xlu0 %3745
      %v3747 = vmul.f32 %v3746, %v504
      %v3748 = vsub.f32 %v3743, %v3747
      %v3749 = vmul.f32 %v3748, %v3748
      %v3750 = vsel %vm500, %v3749, 0.0
      %3751 = vadd.xlane.f32.xlu0 %v3750
      %v3752 = vpop.xlane.xlu0 %3751
      %v3753 = vmul.f32 %v3752, %v511
      %v3754 = vlaneseq
      %v3755 = vshrl.u32 %v3754, 7
      %v3756 = vsub.s32 2, %v3755
      %v3757 = vrot.slane %v2783, %v3756
      %v3758 = vmul.f32 %v3757, %v3748
      %v3759 = vrsqrt.pop %v3753
      %v3760 = vmul.f32 %v3753, %v3759
      %vm3761 = vcmp.eq.f32.partialorder %v3753, inf
      %v3762 = vsel %vm3761, %v3753, %v3760
      %vm3763 = vcmp.eq.f32.partialorder %v3753, 0.0
      %v3764 = vand.u32 %v3753, 2147483648
      %v3765 = vsel %vm3763, %v3764, %v3762
      %v3766 = vadd.f32 %v3765, 1e-06
      %v3767 = vrcp.pop %v3766
      %v3768 = vmul.f32 %v3758, %v3767
      %v3769 = vlaneseq
      %v3770 = vshrl.u32 %v3769, 7
      %v3771 = vsub.s32 3, %v3770
      %v3772 = vrot.slane %v2783, %v3771
      %v3773 = vadd.f32 %v3768, %v3772
      %v3774 = vpack.c.bf16 %v3773, %v3773
      %3775 = vrot.lane.b32.xlu0 %v2844, 80
      %v3776 = vpop.permute.xlu0 %3775
      %3777 = vrot.lane.b32.xlu0 %v2845, 80
      %v3778 = vpop.permute.xlu0 %3777
      %3781 = vrot.lane.b32.xlu0 %v2823, 80
      %v3782 = vpop.permute.xlu0 %3781
      %v3785 = vsel %vm500, %v3774, 0
      %3787 = vmatprep.subr.bf16.mxu0 0
      %3788 = vmatpush1.bf16.msra.mxu0 %v3776
      %3789 = vmatprep.subr.bf16.mxu0 0
      %3790 = vmatpush1.bf16.msra.mxu0 %v3778
      %3791 = vmatprep.subr.bf16.mxu0 0
      %3792 = vmatpush1.bf16.msra.mxu0 0
      %3793 = vmatprep.subr.bf16.mxu0 0
      %3794 = vmatpush1.bf16.msra.mxu0 0
      %3795 = vmatprep.subr.bf16.mxu0 0
      %3796 = vmatpush1.bf16.msra.mxu0 0
      %3797 = vmatprep.subr.bf16.mxu0 0
      %3798 = vmatpush1.bf16.msra.mxu0 0
      %3799 = vmatprep.subr.bf16.mxu0 0
      %3800 = vmatpush1.bf16.msra.mxu0 0
      %3801 = vmatprep.subr.bf16.mxu0 0
      %3802 = vmatpush1.bf16.msra.mxu0 0
      %3803 = vmatprep.subr.bf16.mxu0 0
      %3804 = vmatpush1.bf16.msra.mxu0 0
      %3805 = vmatprep.subr.bf16.mxu0 0
      %3806 = vmatpush1.bf16.msra.mxu0 0
      %3807 = vmatprep.subr.bf16.mxu0 0
      %3808 = vmatpush1.bf16.msra.mxu0 0
      %3809 = vmatprep.subr.bf16.mxu0 0
      %3810 = vmatpush1.bf16.msra.mxu0 0
      %3811 = vmatprep.subr.bf16.mxu0 0
      %3812 = vmatpush1.bf16.msra.mxu0 0
      %3813 = vmatprep.subr.bf16.mxu0 0
      %3814 = vmatpush1.bf16.msra.mxu0 0
      %3815 = vmatprep.subr.bf16.mxu0 0
      %3816 = vmatpush1.bf16.msra.mxu0 0
      %3817 = vmatprep.subr.bf16.mxu0 0
      %3818 = vmatpush1.bf16.msra.mxu0 0
      %3819 = vmatprep.mubr.bf16.mxu0 0
      %3820 = vmatmul.mubr.bf16.gmra.mrb[0].mxu0 %v3785
      %v3821 = vpop.f32.mrb[0].mxu0
      %v3822 = vadd.f32 %v3782, %v3821
      %v3823 = vpop.f32.mrb[0].mxu0
      %v3824 = vpop.f32.mrb[0].mxu0
      %v3825 = vpop.f32.mrb[0].mxu0
      %3826 = vdwg.mxu0
      %3827 = vrot.lane.b32.xlu0 %v2906, 80
      %v3828 = vpop.permute.xlu0 %3827
      %3829 = vrot.lane.b32.xlu0 %v2907, 80
      %v3830 = vpop.permute.xlu0 %3829
      %3833 = vrot.lane.b32.xlu0 %v2827, 80
      %v3834 = vpop.permute.xlu0 %3833
      %3836 = vmatprep.subr.bf16.mxu0 0
      %3837 = vmatpush1.bf16.msra.mxu0 %v3828
      %3838 = vmatprep.subr.bf16.mxu0 0
      %3839 = vmatpush1.bf16.msra.mxu0 %v3830
      %3840 = vmatprep.subr.bf16.mxu0 0
      %3841 = vmatpush1.bf16.msra.mxu0 0
      %3842 = vmatprep.subr.bf16.mxu0 0
      %3843 = vmatpush1.bf16.msra.mxu0 0
      %3844 = vmatprep.subr.bf16.mxu0 0
      %3845 = vmatpush1.bf16.msra.mxu0 0
      %3846 = vmatprep.subr.bf16.mxu0 0
      %3847 = vmatpush1.bf16.msra.mxu0 0
      %3848 = vmatprep.subr.bf16.mxu0 0
      %3849 = vmatpush1.bf16.msra.mxu0 0
      %3850 = vmatprep.subr.bf16.mxu0 0
      %3851 = vmatpush1.bf16.msra.mxu0 0
      %3852 = vmatprep.subr.bf16.mxu0 0
      %3853 = vmatpush1.bf16.msra.mxu0 0
      %3854 = vmatprep.subr.bf16.mxu0 0
      %3855 = vmatpush1.bf16.msra.mxu0 0
      %3856 = vmatprep.subr.bf16.mxu0 0
      %3857 = vmatpush1.bf16.msra.mxu0 0
      %3858 = vmatprep.subr.bf16.mxu0 0
      %3859 = vmatpush1.bf16.msra.mxu0 0
      %3860 = vmatprep.subr.bf16.mxu0 0
      %3861 = vmatpush1.bf16.msra.mxu0 0
      %3862 = vmatprep.subr.bf16.mxu0 0
      %3863 = vmatpush1.bf16.msra.mxu0 0
      %3864 = vmatprep.subr.bf16.mxu0 0
      %3865 = vmatpush1.bf16.msra.mxu0 0
      %3866 = vmatprep.subr.bf16.mxu0 0
      %3867 = vmatpush1.bf16.msra.mxu0 0
      %3868 = vmatprep.mubr.bf16.mxu0 0
      %3869 = vmatmul.mubr.bf16.gmra.mrb[0].mxu0 %v3785
      %v3870 = vpop.f32.mrb[0].mxu0
      %v3871 = vadd.f32 %v3834, %v3870
      %v3872 = vpop.f32.mrb[0].mxu0
      %v3873 = vpop.f32.mrb[0].mxu0
      %v3874 = vpop.f32.mrb[0].mxu0
      %3875 = vdwg.mxu0
      %3876 = vrot.lane.b32.xlu0 %v2965, 80
      %v3877 = vpop.permute.xlu0 %3876
      %3878 = vrot.lane.b32.xlu0 %v2966, 80
      %v3879 = vpop.permute.xlu0 %3878
      %3882 = vrot.lane.b32.xlu0 %v2831, 80
      %v3883 = vpop.permute.xlu0 %3882
      %3885 = vmatprep.subr.bf16.mxu0 0
      %3886 = vmatpush1.bf16.msra.mxu0 %v3877
      %3887 = vmatprep.subr.bf16.mxu0 0
      %3888 = vmatpush1.bf16.msra.mxu0 %v3879
      %3889 = vmatprep.subr.bf16.mxu0 0
      %3890 = vmatpush1.bf16.msra.mxu0 0
      %3891 = vmatprep.subr.bf16.mxu0 0
      %3892 = vmatpush1.bf16.msra.mxu0 0
      %3893 = vmatprep.subr.bf16.mxu0 0
      %3894 = vmatpush1.bf16.msra.mxu0 0
      %3895 = vmatprep.subr.bf16.mxu0 0
      %3896 = vmatpush1.bf16.msra.mxu0 0
      %3897 = vmatprep.subr.bf16.mxu0 0
      %3898 = vmatpush1.bf16.msra.mxu0 0
      %3899 = vmatprep.subr.bf16.mxu0 0
      %3900 = vmatpush1.bf16.msra.mxu0 0
      %3901 = vmatprep.subr.bf16.mxu0 0
      %3902 = vmatpush1.bf16.msra.mxu0 0
      %3903 = vmatprep.subr.bf16.mxu0 0
      %3904 = vmatpush1.bf16.msra.mxu0 0
      %3905 = vmatprep.subr.bf16.mxu0 0
      %3906 = vmatpush1.bf16.msra.mxu0 0
      %3907 = vmatprep.subr.bf16.mxu0 0
      %3908 = vmatpush1.bf16.msra.mxu0 0
      %3909 = vmatprep.subr.bf16.mxu0 0
      %3910 = vmatpush1.bf16.msra.mxu0 0
      %3911 = vmatprep.subr.bf16.mxu0 0
      %3912 = vmatpush1.bf16.msra.mxu0 0
      %3913 = vmatprep.subr.bf16.mxu0 0
      %3914 = vmatpush1.bf16.msra.mxu0 0
      %3915 = vmatprep.subr.bf16.mxu0 0
      %3916 = vmatpush1.bf16.msra.mxu0 0
      %3917 = vmatprep.mubr.bf16.mxu0 0
      %3918 = vmatmul.mubr.bf16.gmra.mrb[0].mxu0 %v3785
      %v3919 = vpop.f32.mrb[0].mxu0
      %v3920 = vadd.f32 %v3883, %v3919
      %v3921 = vpop.f32.mrb[0].mxu0
      %v3922 = vpop.f32.mrb[0].mxu0
      %v3923 = vpop.f32.mrb[0].mxu0
      %3924 = vdwg.mxu0
      %3925 = vrot.lane.b32.xlu0 %v3024, 80
      %v3926 = vpop.permute.xlu0 %3925
      %3927 = vrot.lane.b32.xlu0 %v3025, 80
      %v3928 = vpop.permute.xlu0 %3927
      %3931 = vrot.lane.b32.xlu0 %v2835, 80
      %v3932 = vpop.permute.xlu0 %3931
      %3934 = vmatprep.subr.bf16.mxu0 0
      %3935 = vmatpush1.bf16.msra.mxu0 %v3926
      %3936 = vmatprep.subr.bf16.mxu0 0
      %3937 = vmatpush1.bf16.msra.mxu0 %v3928
      %3938 = vmatprep.subr.bf16.mxu0 0
      %3939 = vmatpush1.bf16.msra.mxu0 0
      %3940 = vmatprep.subr.bf16.mxu0 0
      %3941 = vmatpush1.bf16.msra.mxu0 0
      %3942 = vmatprep.subr.bf16.mxu0 0
      %3943 = vmatpush1.bf16.msra.mxu0 0
      %3944 = vmatprep.subr.bf16.mxu0 0
      %3945 = vmatpush1.bf16.msra.mxu0 0
      %3946 = vmatprep.subr.bf16.mxu0 0
      %3947 = vmatpush1.bf16.msra.mxu0 0
      %3948 = vmatprep.subr.bf16.mxu0 0
      %3949 = vmatpush1.bf16.msra.mxu0 0
      %3950 = vmatprep.subr.bf16.mxu0 0
      %3951 = vmatpush1.bf16.msra.mxu0 0
      %3952 = vmatprep.subr.bf16.mxu0 0
      %3953 = vmatpush1.bf16.msra.mxu0 0
      %3954 = vmatprep.subr.bf16.mxu0 0
      %3955 = vmatpush1.bf16.msra.mxu0 0
      %3956 = vmatprep.subr.bf16.mxu0 0
      %3957 = vmatpush1.bf16.msra.mxu0 0
      %3958 = vmatprep.subr.bf16.mxu0 0
      %3959 = vmatpush1.bf16.msra.mxu0 0
      %3960 = vmatprep.subr.bf16.mxu0 0
      %3961 = vmatpush1.bf16.msra.mxu0 0
      %3962 = vmatprep.subr.bf16.mxu0 0
      %3963 = vmatpush1.bf16.msra.mxu0 0
      %3964 = vmatprep.subr.bf16.mxu0 0
      %3965 = vmatpush1.bf16.msra.mxu0 0
      %3966 = vmatprep.mubr.bf16.mxu0 0
      %3967 = vmatmul.mubr.bf16.gmra.mrb[0].mxu0 %v3785
      %v3968 = vpop.f32.mrb[0].mxu0
      %v3969 = vadd.f32 %v3932, %v3968
      %v3970 = vpop.f32.mrb[0].mxu0
      %v3971 = vpop.f32.mrb[0].mxu0
      %v3972 = vpop.f32.mrb[0].mxu0
      %3973 = vdwg.mxu0
      %3974 = vrot.lane.b32.xlu0 %v2844, 72
      %v3975 = vpop.permute.xlu0 %3974
      %3976 = vrot.lane.b32.xlu0 %v2845, 72
      %v3977 = vpop.permute.xlu0 %3976
      %3980 = vrot.lane.b32.xlu0 %v2823, 72
      %v3981 = vpop.permute.xlu0 %3980
      %v3984 = vsel %vm500, %v2745, 0
      %3986 = vmatprep.subr.bf16.mxu0 0
      %3987 = vmatpush1.bf16.msra.mxu0 %v3975
      %3988 = vmatprep.subr.bf16.mxu0 0
      %3989 = vmatpush1.bf16.msra.mxu0 %v3977
      %3990 = vmatprep.subr.bf16.mxu0 0
      %3991 = vmatpush1.bf16.msra.mxu0 0
      %3992 = vmatprep.subr.bf16.mxu0 0
      %3993 = vmatpush1.bf16.msra.mxu0 0
      %3994 = vmatprep.subr.bf16.mxu0 0
      %3995 = vmatpush1.bf16.msra.mxu0 0
      %3996 = vmatprep.subr.bf16.mxu0 0
      %3997 = vmatpush1.bf16.msra.mxu0 0
      %3998 = vmatprep.subr.bf16.mxu0 0
      %3999 = vmatpush1.bf16.msra.mxu0 0
      %4000 = vmatprep.subr.bf16.mxu0 0
      %4001 = vmatpush1.bf16.msra.mxu0 0
      %4002 = vmatprep.subr.bf16.mxu0 0
      %4003 = vmatpush1.bf16.msra.mxu0 0
      %4004 = vmatprep.subr.bf16.mxu0 0
      %4005 = vmatpush1.bf16.msra.mxu0 0
      %4006 = vmatprep.subr.bf16.mxu0 0
      %4007 = vmatpush1.bf16.msra.mxu0 0
      %4008 = vmatprep.subr.bf16.mxu0 0
      %4009 = vmatpush1.bf16.msra.mxu0 0
      %4010 = vmatprep.subr.bf16.mxu0 0
      %4011 = vmatpush1.bf16.msra.mxu0 0
      %4012 = vmatprep.subr.bf16.mxu0 0
      %4013 = vmatpush1.bf16.msra.mxu0 0
      %4014 = vmatprep.subr.bf16.mxu0 0
      %4015 = vmatpush1.bf16.msra.mxu0 0
      %4016 = vmatprep.subr.bf16.mxu0 0
      %4017 = vmatpush1.bf16.msra.mxu0 0
      %4018 = vmatprep.mubr.bf16.mxu0 0
      %4019 = vmatmul.mubr.bf16.gmra.mrb[0].mxu0 %v3984
      %v4020 = vpop.f32.mrb[0].mxu0
      %v4021 = vadd.f32 %v3981, %v4020
      %v4022 = vpop.f32.mrb[0].mxu0
      %v4023 = vpop.f32.mrb[0].mxu0
      %v4024 = vpop.f32.mrb[0].mxu0
      %4025 = vdwg.mxu0
      %4026 = vrot.lane.b32.xlu0 %v2906, 72
      %v4027 = vpop.permute.xlu0 %4026
      %4028 = vrot.lane.b32.xlu0 %v2907, 72
      %v4029 = vpop.permute.xlu0 %4028
      %4032 = vrot.lane.b32.xlu0 %v2827, 72
      %v4033 = vpop.permute.xlu0 %4032
      %4035 = vmatprep.subr.bf16.mxu0 0
      %4036 = vmatpush1.bf16.msra.mxu0 %v4027
      %4037 = vmatprep.subr.bf16.mxu0 0
      %4038 = vmatpush1.bf16.msra.mxu0 %v4029
      %4039 = vmatprep.subr.bf16.mxu0 0
      %4040 = vmatpush1.bf16.msra.mxu0 0
      %4041 = vmatprep.subr.bf16.mxu0 0
      %4042 = vmatpush1.bf16.msra.mxu0 0
      %4043 = vmatprep.subr.bf16.mxu0 0
      %4044 = vmatpush1.bf16.msra.mxu0 0
      %4045 = vmatprep.subr.bf16.mxu0 0
      %4046 = vmatpush1.bf16.msra.mxu0 0
      %4047 = vmatprep.subr.bf16.mxu0 0
      %4048 = vmatpush1.bf16.msra.mxu0 0
      %4049 = vmatprep.subr.bf16.mxu0 0
      %4050 = vmatpush1.bf16.msra.mxu0 0
      %4051 = vmatprep.subr.bf16.mxu0 0
      %4052 = vmatpush1.bf16.msra.mxu0 0
      %4053 = vmatprep.subr.bf16.mxu0 0
      %4054 = vmatpush1.bf16.msra.mxu0 0
      %4055 = vmatprep.subr.bf16.mxu0 0
      %4056 = vmatpush1.bf16.msra.mxu0 0
      %4057 = vmatprep.subr.bf16.mxu0 0
      %4058 = vmatpush1.bf16.msra.mxu0 0
      %4059 = vmatprep.subr.bf16.mxu0 0
      %4060 = vmatpush1.bf16.msra.mxu0 0
      %4061 = vmatprep.subr.bf16.mxu0 0
      %4062 = vmatpush1.bf16.msra.mxu0 0
      %4063 = vmatprep.subr.bf16.mxu0 0
      %4064 = vmatpush1.bf16.msra.mxu0 0
      %4065 = vmatprep.subr.bf16.mxu0 0
      %4066 = vmatpush1.bf16.msra.mxu0 0
      %4067 = vmatprep.mubr.bf16.mxu0 0
      %4068 = vmatmul.mubr.bf16.gmra.mrb[0].mxu0 %v3984
      %v4069 = vpop.f32.mrb[0].mxu0
      %v4070 = vadd.f32 %v4033, %v4069
      %v4071 = vpop.f32.mrb[0].mxu0
      %v4072 = vpop.f32.mrb[0].mxu0
      %v4073 = vpop.f32.mrb[0].mxu0
      %4074 = vdwg.mxu0
      %4075 = vrot.lane.b32.xlu0 %v2965, 72
      %v4076 = vpop.permute.xlu0 %4075
      %4077 = vrot.lane.b32.xlu0 %v2966, 72
      %v4078 = vpop.permute.xlu0 %4077
      %4081 = vrot.lane.b32.xlu0 %v2831, 72
      %v4082 = vpop.permute.xlu0 %4081
      %4084 = vmatprep.subr.bf16.mxu0 0
      %4085 = vmatpush1.bf16.msra.mxu0 %v4076
      %4086 = vmatprep.subr.bf16.mxu0 0
      %4087 = vmatpush1.bf16.msra.mxu0 %v4078
      %4088 = vmatprep.subr.bf16.mxu0 0
      %4089 = vmatpush1.bf16.msra.mxu0 0
      %4090 = vmatprep.subr.bf16.mxu0 0
      %4091 = vmatpush1.bf16.msra.mxu0 0
      %4092 = vmatprep.subr.bf16.mxu0 0
      %4093 = vmatpush1.bf16.msra.mxu0 0
      %4094 = vmatprep.subr.bf16.mxu0 0
      %4095 = vmatpush1.bf16.msra.mxu0 0
      %4096 = vmatprep.subr.bf16.mxu0 0
      %4097 = vmatpush1.bf16.msra.mxu0 0
      %4098 = vmatprep.subr.bf16.mxu0 0
      %4099 = vmatpush1.bf16.msra.mxu0 0
      %4100 = vmatprep.subr.bf16.mxu0 0
      %4101 = vmatpush1.bf16.msra.mxu0 0
      %4102 = vmatprep.subr.bf16.mxu0 0
      %4103 = vmatpush1.bf16.msra.mxu0 0
      %4104 = vmatprep.subr.bf16.mxu0 0
      %4105 = vmatpush1.bf16.msra.mxu0 0
      %4106 = vmatprep.subr.bf16.mxu0 0
      %4107 = vmatpush1.bf16.msra.mxu0 0
      %4108 = vmatprep.subr.bf16.mxu0 0
      %4109 = vmatpush1.bf16.msra.mxu0 0
      %4110 = vmatprep.subr.bf16.mxu0 0
      %4111 = vmatpush1.bf16.msra.mxu0 0
      %4112 = vmatprep.subr.bf16.mxu0 0
      %4113 = vmatpush1.bf16.msra.mxu0 0
      %4114 = vmatprep.subr.bf16.mxu0 0
      %4115 = vmatpush1.bf16.msra.mxu0 0
      %4116 = vmatprep.mubr.bf16.mxu0 0
      %4117 = vmatmul.mubr.bf16.gmra.mrb[0].mxu0 %v3984
      %v4118 = vpop.f32.mrb[0].mxu0
      %v4119 = vadd.f32 %v4082, %v4118
      %v4120 = vpop.f32.mrb[0].mxu0
      %v4121 = vpop.f32.mrb[0].mxu0
      %v4122 = vpop.f32.mrb[0].mxu0
      %4123 = vdwg.mxu0
      %4124 = vrot.lane.b32.xlu0 %v3024, 72
      %v4125 = vpop.permute.xlu0 %4124
      %4126 = vrot.lane.b32.xlu0 %v3025, 72
      %v4127 = vpop.permute.xlu0 %4126
      %4130 = vrot.lane.b32.xlu0 %v2835, 72
      %v4131 = vpop.permute.xlu0 %4130
      %4133 = vmatprep.subr.bf16.mxu0 0
      %4134 = vmatpush1.bf16.msra.mxu0 %v4125
      %4135 = vmatprep.subr.bf16.mxu0 0
      %4136 = vmatpush1.bf16.msra.mxu0 %v4127
      %4137 = vmatprep.subr.bf16.mxu0 0
      %4138 = vmatpush1.bf16.msra.mxu0 0
      %4139 = vmatprep.subr.bf16.mxu0 0
      %4140 = vmatpush1.bf16.msra.mxu0 0
      %4141 = vmatprep.subr.bf16.mxu0 0
      %4142 = vmatpush1.bf16.msra.mxu0 0
      %4143 = vmatprep.subr.bf16.mxu0 0
      %4144 = vmatpush1.bf16.msra.mxu0 0
      %4145 = vmatprep.subr.bf16.mxu0 0
      %4146 = vmatpush1.bf16.msra.mxu0 0
      %4147 = vmatprep.subr.bf16.mxu0 0
      %4148 = vmatpush1.bf16.msra.mxu0 0
      %4149 = vmatprep.subr.bf16.mxu0 0
      %4150 = vmatpush1.bf16.msra.mxu0 0
      %4151 = vmatprep.subr.bf16.mxu0 0
      %4152 = vmatpush1.bf16.msra.mxu0 0
      %4153 = vmatprep.subr.bf16.mxu0 0
      %4154 = vmatpush1.bf16.msra.mxu0 0
      %4155 = vmatprep.subr.bf16.mxu0 0
      %4156 = vmatpush1.bf16.msra.mxu0 0
      %4157 = vmatprep.subr.bf16.mxu0 0
      %4158 = vmatpush1.bf16.msra.mxu0 0
      %4159 = vmatprep.subr.bf16.mxu0 0
      %4160 = vmatpush1.bf16.msra.mxu0 0
      %4161 = vmatprep.subr.bf16.mxu0 0
      %4162 = vmatpush1.bf16.msra.mxu0 0
      %4163 = vmatprep.subr.bf16.mxu0 0
      %4164 = vmatpush1.bf16.msra.mxu0 0
      %4165 = vmatprep.mubr.bf16.mxu0 0
      %4166 = vmatmul.mubr.bf16.gmra.mrb[0].mxu0 %v3984
      %v4167 = vpop.f32.mrb[0].mxu0
      %v4168 = vadd.f32 %v4131, %v4167
      %v4169 = vpop.f32.mrb[0].mxu0
      %v4170 = vpop.f32.mrb[0].mxu0
      %v4171 = vpop.f32.mrb[0].mxu0
      %4172 = vdwg.mxu0
      %v4173 = vpack.c.bf16 %v3822, %v3822
      %v4174 = vpack.c.bf16 %v3871, %v3871
      %v4175 = vpack.c.bf16 %v3920, %v3920
      %v4176 = vpack.c.bf16 %v3969, %v3969
      %v4177 = vpack.c.bf16 %v4021, %v4021
      %v4178 = vpack.c.bf16 %v4070, %v4070
      %v4179 = vpack.c.bf16 %v4119, %v4119
      %v4180 = vpack.c.bf16 %v4168, %v4168
      %v4182 = vsel %vm776, %v4173, 0
      %v4185 = vsel %vm776, %v4177, 0
      %4187 = vmatprep.subr.bf16.mxu0 0
      %4188 = vmatpush1.bf16.xpose.msra.mxu0 %v4185
      %4189 = vmatprep.subr.bf16.mxu0 0
      %4190 = vmatpush1.bf16.xpose.msra.mxu0 0
      %4191 = vmatprep.subr.bf16.mxu0 0
      %4192 = vmatpush1.bf16.xpose.msra.mxu0 0
      %4193 = vmatprep.subr.bf16.mxu0 0
      %4194 = vmatpush1.bf16.xpose.msra.mxu0 0
      %4195 = vmatprep.subr.bf16.mxu0 0
      %4196 = vmatpush1.bf16.xpose.msra.mxu0 0
      %4197 = vmatprep.subr.bf16.mxu0 0
      %4198 = vmatpush1.bf16.xpose.msra.mxu0 0
      %4199 = vmatprep.subr.bf16.mxu0 0
      %4200 = vmatpush1.bf16.xpose.msra.mxu0 0
      %4201 = vmatprep.subr.bf16.mxu0 0
      %4202 = vmatpush1.bf16.xpose.msra.mxu0 0
      %4203 = vmatprep.subr.bf16.mxu0 0
      %4204 = vmatpush1.bf16.xpose.msra.mxu0 0
      %4205 = vmatprep.subr.bf16.mxu0 0
      %4206 = vmatpush1.bf16.xpose.msra.mxu0 0
      %4207 = vmatprep.subr.bf16.mxu0 0
      %4208 = vmatpush1.bf16.xpose.msra.mxu0 0
      %4209 = vmatprep.subr.bf16.mxu0 0
      %4210 = vmatpush1.bf16.xpose.msra.mxu0 0
      %4211 = vmatprep.subr.bf16.mxu0 0
      %4212 = vmatpush1.bf16.xpose.msra.mxu0 0
      %4213 = vmatprep.subr.bf16.mxu0 0
      %4214 = vmatpush1.bf16.xpose.msra.mxu0 0
      %4215 = vmatprep.subr.bf16.mxu0 0
      %4216 = vmatpush1.bf16.xpose.msra.mxu0 0
      %4217 = vmatprep.subr.bf16.mxu0 0
      %4218 = vmatpush1.bf16.xpose.msra.mxu0 0
      %4219 = vmatprep.mubr.bf16.mxu0 0
      %4220 = vmatmul.mubr.bf16.gmra.mrb[0].mxu0 %v4182
      %v4221 = vpop.f32.mrb[0].mxu0
      %v4222 = vadd.f32 0.0, %v4221
      %v4223 = vpop.f32.mrb[0].mxu0
      %v4224 = vpop.f32.mrb[0].mxu0
      %v4225 = vpop.f32.mrb[0].mxu0
      %4226 = vdwg.mxu0
      %v4228 = vsel %vm776, %v4174, 0
      %v4231 = vsel %vm776, %v4178, 0
      %4233 = vmatprep.subr.bf16.mxu0 0
      %4234 = vmatpush1.bf16.xpose.msra.mxu0 %v4231
      %4235 = vmatprep.subr.bf16.mxu0 0
      %4236 = vmatpush1.bf16.xpose.msra.mxu0 0
      %4237 = vmatprep.subr.bf16.mxu0 0
      %4238 = vmatpush1.bf16.xpose.msra.mxu0 0
      %4239 = vmatprep.subr.bf16.mxu0 0
      %4240 = vmatpush1.bf16.xpose.msra.mxu0 0
      %4241 = vmatprep.subr.bf16.mxu0 0
      %4242 = vmatpush1.bf16.xpose.msra.mxu0 0
      %4243 = vmatprep.subr.bf16.mxu0 0
      %4244 = vmatpush1.bf16.xpose.msra.mxu0 0
      %4245 = vmatprep.subr.bf16.mxu0 0
      %4246 = vmatpush1.bf16.xpose.msra.mxu0 0
      %4247 = vmatprep.subr.bf16.mxu0 0
      %4248 = vmatpush1.bf16.xpose.msra.mxu0 0
      %4249 = vmatprep.subr.bf16.mxu0 0
      %4250 = vmatpush1.bf16.xpose.msra.mxu0 0
      %4251 = vmatprep.subr.bf16.mxu0 0
      %4252 = vmatpush1.bf16.xpose.msra.mxu0 0
      %4253 = vmatprep.subr.bf16.mxu0 0
      %4254 = vmatpush1.bf16.xpose.msra.mxu0 0
      %4255 = vmatprep.subr.bf16.mxu0 0
      %4256 = vmatpush1.bf16.xpose.msra.mxu0 0
      %4257 = vmatprep.subr.bf16.mxu0 0
      %4258 = vmatpush1.bf16.xpose.msra.mxu0 0
      %4259 = vmatprep.subr.bf16.mxu0 0
      %4260 = vmatpush1.bf16.xpose.msra.mxu0 0
      %4261 = vmatprep.subr.bf16.mxu0 0
      %4262 = vmatpush1.bf16.xpose.msra.mxu0 0
      %4263 = vmatprep.subr.bf16.mxu0 0
      %4264 = vmatpush1.bf16.xpose.msra.mxu0 0
      %4265 = vmatprep.mubr.bf16.mxu0 0
      %4266 = vmatmul.mubr.bf16.gmra.mrb[0].mxu0 %v4228
      %v4267 = vpop.f32.mrb[0].mxu0
      %v4268 = vadd.f32 0.0, %v4267
      %v4269 = vpop.f32.mrb[0].mxu0
      %v4270 = vpop.f32.mrb[0].mxu0
      %v4271 = vpop.f32.mrb[0].mxu0
      %4272 = vdwg.mxu0
      %v4274 = vsel %vm776, %v4175, 0
      %v4277 = vsel %vm776, %v4179, 0
      %4279 = vmatprep.subr.bf16.mxu0 0
      %4280 = vmatpush1.bf16.xpose.msra.mxu0 %v4277
      %4281 = vmatprep.subr.bf16.mxu0 0
      %4282 = vmatpush1.bf16.xpose.msra.mxu0 0
      %4283 = vmatprep.subr.bf16.mxu0 0
      %4284 = vmatpush1.bf16.xpose.msra.mxu0 0
      %4285 = vmatprep.subr.bf16.mxu0 0
      %4286 = vmatpush1.bf16.xpose.msra.mxu0 0
      %4287 = vmatprep.subr.bf16.mxu0 0
      %4288 = vmatpush1.bf16.xpose.msra.mxu0 0
      %4289 = vmatprep.subr.bf16.mxu0 0
      %4290 = vmatpush1.bf16.xpose.msra.mxu0 0
      %4291 = vmatprep.subr.bf16.mxu0 0
      %4292 = vmatpush1.bf16.xpose.msra.mxu0 0
      %4293 = vmatprep.subr.bf16.mxu0 0
      %4294 = vmatpush1.bf16.xpose.msra.mxu0 0
      %4295 = vmatprep.subr.bf16.mxu0 0
      %4296 = vmatpush1.bf16.xpose.msra.mxu0 0
      %4297 = vmatprep.subr.bf16.mxu0 0
      %4298 = vmatpush1.bf16.xpose.msra.mxu0 0
      %4299 = vmatprep.subr.bf16.mxu0 0
      %4300 = vmatpush1.bf16.xpose.msra.mxu0 0
      %4301 = vmatprep.subr.bf16.mxu0 0
      %4302 = vmatpush1.bf16.xpose.msra.mxu0 0
      %4303 = vmatprep.subr.bf16.mxu0 0
      %4304 = vmatpush1.bf16.xpose.msra.mxu0 0
      %4305 = vmatprep.subr.bf16.mxu0 0
      %4306 = vmatpush1.bf16.xpose.msra.mxu0 0
      %4307 = vmatprep.subr.bf16.mxu0 0
      %4308 = vmatpush1.bf16.xpose.msra.mxu0 0
      %4309 = vmatprep.subr.bf16.mxu0 0
      %4310 = vmatpush1.bf16.xpose.msra.mxu0 0
      %4311 = vmatprep.mubr.bf16.mxu0 0
      %4312 = vmatmul.mubr.bf16.gmra.mrb[0].mxu0 %v4274
      %v4313 = vpop.f32.mrb[0].mxu0
      %v4314 = vadd.f32 0.0, %v4313
      %v4315 = vpop.f32.mrb[0].mxu0
      %v4316 = vpop.f32.mrb[0].mxu0
      %v4317 = vpop.f32.mrb[0].mxu0
      %4318 = vdwg.mxu0
      %v4320 = vsel %vm776, %v4176, 0
      %v4323 = vsel %vm776, %v4180, 0
      %4325 = vmatprep.subr.bf16.mxu0 0
      %4326 = vmatpush1.bf16.xpose.msra.mxu0 %v4323
      %4327 = vmatprep.subr.bf16.mxu0 0
      %4328 = vmatpush1.bf16.xpose.msra.mxu0 0
      %4329 = vmatprep.subr.bf16.mxu0 0
      %4330 = vmatpush1.bf16.xpose.msra.mxu0 0
      %4331 = vmatprep.subr.bf16.mxu0 0
      %4332 = vmatpush1.bf16.xpose.msra.mxu0 0
      %4333 = vmatprep.subr.bf16.mxu0 0
      %4334 = vmatpush1.bf16.xpose.msra.mxu0 0
      %4335 = vmatprep.subr.bf16.mxu0 0
      %4336 = vmatpush1.bf16.xpose.msra.mxu0 0
      %4337 = vmatprep.subr.bf16.mxu0 0
      %4338 = vmatpush1.bf16.xpose.msra.mxu0 0
      %4339 = vmatprep.subr.bf16.mxu0 0
      %4340 = vmatpush1.bf16.xpose.msra.mxu0 0
      %4341 = vmatprep.subr.bf16.mxu0 0
      %4342 = vmatpush1.bf16.xpose.msra.mxu0 0
      %4343 = vmatprep.subr.bf16.mxu0 0
      %4344 = vmatpush1.bf16.xpose.msra.mxu0 0
      %4345 = vmatprep.subr.bf16.mxu0 0
      %4346 = vmatpush1.bf16.xpose.msra.mxu0 0
      %4347 = vmatprep.subr.bf16.mxu0 0
      %4348 = vmatpush1.bf16.xpose.msra.mxu0 0
      %4349 = vmatprep.subr.bf16.mxu0 0
      %4350 = vmatpush1.bf16.xpose.msra.mxu0 0
      %4351 = vmatprep.subr.bf16.mxu0 0
      %4352 = vmatpush1.bf16.xpose.msra.mxu0 0
      %4353 = vmatprep.subr.bf16.mxu0 0
      %4354 = vmatpush1.bf16.xpose.msra.mxu0 0
      %4355 = vmatprep.subr.bf16.mxu0 0
      %4356 = vmatpush1.bf16.xpose.msra.mxu0 0
      %4357 = vmatprep.mubr.bf16.mxu0 0
      %4358 = vmatmul.mubr.bf16.gmra.mrb[0].mxu0 %v4320
      %v4359 = vpop.f32.mrb[0].mxu0
      %v4360 = vadd.f32 0.0, %v4359
      %v4361 = vpop.f32.mrb[0].mxu0
      %v4362 = vpop.f32.mrb[0].mxu0
      %v4363 = vpop.f32.mrb[0].mxu0
      %4364 = vdwg.mxu0
      %v4365 = vmul.f32 %v4222, 0.35355338
      %v4366 = vmul.f32 %v4268, 0.35355338
      %v4367 = vmul.f32 %v4314, 0.35355338
      %v4368 = vmul.f32 %v4360, 0.35355338
      %v4369 = vadd.f32 %v4365, %v978
      %v4370 = vadd.f32 %v4366, %v978
      %v4371 = vadd.f32 %v4367, %v978
      %v4372 = vadd.f32 %v4368, %v978
      %v4373 = vsel %vm776, %v4369, -inf
      %4374 = vmax.xlane.f32.xlu0 %v4373
      %v4375 = vpop.xlane.xlu0 %4374
      %v4376 = vsel %vm776, %v4370, -inf
      %4377 = vmax.xlane.f32.xlu0 %v4376
      %v4378 = vpop.xlane.xlu0 %4377
      %v4379 = vsel %vm776, %v4371, -inf
      %4380 = vmax.xlane.f32.xlu0 %v4379
      %v4381 = vpop.xlane.xlu0 %4380
      %v4382 = vsel %vm776, %v4372, -inf
      %4383 = vmax.xlane.f32.xlu0 %v4382
      %v4384 = vpop.xlane.xlu0 %4383
      %v4385 = vsub.f32 %v4369, %v4375
      %v4386 = vsub.f32 %v4370, %v4378
      %v4387 = vsub.f32 %v4371, %v4381
      %v4388 = vsub.f32 %v4372, %v4384
      %v4389 = vmul.f32 %v4385, 1.442695
      %v4390 = vpow.pop %v4389
      %v4391 = vmul.f32 %v4386, 1.442695
      %v4392 = vpow.pop %v4391
      %v4393 = vmul.f32 %v4387, 1.442695
      %v4394 = vpow.pop %v4393
      %v4395 = vmul.f32 %v4388, 1.442695
      %v4396 = vpow.pop %v4395
      %v4397 = vsel %vm776, %v4390, 0.0
      %4398 = vadd.xlane.f32.xlu0 %v4397
      %v4399 = vpop.xlane.xlu0 %4398
      %v4400 = vsel %vm776, %v4392, 0.0
      %4401 = vadd.xlane.f32.xlu0 %v4400
      %v4402 = vpop.xlane.xlu0 %4401
      %v4403 = vsel %vm776, %v4394, 0.0
      %4404 = vadd.xlane.f32.xlu0 %v4403
      %v4405 = vpop.xlane.xlu0 %4404
      %v4406 = vsel %vm776, %v4396, 0.0
      %4407 = vadd.xlane.f32.xlu0 %v4406
      %v4408 = vpop.xlane.xlu0 %4407
      %v4409 = vrcp.pop %v4399
      %v4410 = vrcp.pop %v4402
      %v4411 = vrcp.pop %v4405
      %v4412 = vrcp.pop %v4408
      %v4413 = vmul.f32 %v4390, %v4409
      %v4414 = vmul.f32 %v4392, %v4410
      %v4415 = vmul.f32 %v4394, %v4411
      %v4416 = vmul.f32 %v4396, %v4412
      %v4417 = vpack.c.bf16 %v4413, %v4413
      %v4418 = vpack.c.bf16 %v4414, %v4414
      %v4419 = vpack.c.bf16 %v4415, %v4415
      %v4420 = vpack.c.bf16 %v4416, %v4416
      %4422 = vrot.lane.b32.xlu0 %v4177, 120
      %v4423 = vpop.permute.xlu0 %4422
      %v4425 = vsel %vm776, %v4417, 0
      %v4428 = vsel %vm1037, %v4423, 0
      %4430 = vmatprep.subr.bf16.mxu0 0
      %4431 = vmatpush1.bf16.msra.mxu0 %v4428
      %4432 = vmatprep.subr.bf16.mxu0 0
      %4433 = vmatpush1.bf16.msra.mxu0 0
      %4434 = vmatprep.subr.bf16.mxu0 0
      %4435 = vmatpush1.bf16.msra.mxu0 0
      %4436 = vmatprep.subr.bf16.mxu0 0
      %4437 = vmatpush1.bf16.msra.mxu0 0
      %4438 = vmatprep.subr.bf16.mxu0 0
      %4439 = vmatpush1.bf16.msra.mxu0 0
      %4440 = vmatprep.subr.bf16.mxu0 0
      %4441 = vmatpush1.bf16.msra.mxu0 0
      %4442 = vmatprep.subr.bf16.mxu0 0
      %4443 = vmatpush1.bf16.msra.mxu0 0
      %4444 = vmatprep.subr.bf16.mxu0 0
      %4445 = vmatpush1.bf16.msra.mxu0 0
      %4446 = vmatprep.subr.bf16.mxu0 0
      %4447 = vmatpush1.bf16.msra.mxu0 0
      %4448 = vmatprep.subr.bf16.mxu0 0
      %4449 = vmatpush1.bf16.msra.mxu0 0
      %4450 = vmatprep.subr.bf16.mxu0 0
      %4451 = vmatpush1.bf16.msra.mxu0 0
      %4452 = vmatprep.subr.bf16.mxu0 0
      %4453 = vmatpush1.bf16.msra.mxu0 0
      %4454 = vmatprep.subr.bf16.mxu0 0
      %4455 = vmatpush1.bf16.msra.mxu0 0
      %4456 = vmatprep.subr.bf16.mxu0 0
      %4457 = vmatpush1.bf16.msra.mxu0 0
      %4458 = vmatprep.subr.bf16.mxu0 0
      %4459 = vmatpush1.bf16.msra.mxu0 0
      %4460 = vmatprep.subr.bf16.mxu0 0
      %4461 = vmatpush1.bf16.msra.mxu0 0
      %4462 = vmatprep.mubr.bf16.mxu0 0
      %4463 = vmatmul.mubr.bf16.gmra.mrb[0].mxu0 %v4425
      %v4464 = vpop.f32.mrb[0].mxu0
      %v4465 = vadd.f32 0.0, %v4464
      %v4466 = vpop.f32.mrb[0].mxu0
      %v4467 = vpop.f32.mrb[0].mxu0
      %v4468 = vpop.f32.mrb[0].mxu0
      %4469 = vdwg.mxu0
      %4471 = vrot.lane.b32.xlu0 %v4178, 120
      %v4472 = vpop.permute.xlu0 %4471
      %v4474 = vsel %vm776, %v4418, 0
      %v4477 = vsel %vm1037, %v4472, 0
      %4479 = vmatprep.subr.bf16.mxu0 0
      %4480 = vmatpush1.bf16.msra.mxu0 %v4477
      %4481 = vmatprep.subr.bf16.mxu0 0
      %4482 = vmatpush1.bf16.msra.mxu0 0
      %4483 = vmatprep.subr.bf16.mxu0 0
      %4484 = vmatpush1.bf16.msra.mxu0 0
      %4485 = vmatprep.subr.bf16.mxu0 0
      %4486 = vmatpush1.bf16.msra.mxu0 0
      %4487 = vmatprep.subr.bf16.mxu0 0
      %4488 = vmatpush1.bf16.msra.mxu0 0
      %4489 = vmatprep.subr.bf16.mxu0 0
      %4490 = vmatpush1.bf16.msra.mxu0 0
      %4491 = vmatprep.subr.bf16.mxu0 0
      %4492 = vmatpush1.bf16.msra.mxu0 0
      %4493 = vmatprep.subr.bf16.mxu0 0
      %4494 = vmatpush1.bf16.msra.mxu0 0
      %4495 = vmatprep.subr.bf16.mxu0 0
      %4496 = vmatpush1.bf16.msra.mxu0 0
      %4497 = vmatprep.subr.bf16.mxu0 0
      %4498 = vmatpush1.bf16.msra.mxu0 0
      %4499 = vmatprep.subr.bf16.mxu0 0
      %4500 = vmatpush1.bf16.msra.mxu0 0
      %4501 = vmatprep.subr.bf16.mxu0 0
      %4502 = vmatpush1.bf16.msra.mxu0 0
      %4503 = vmatprep.subr.bf16.mxu0 0
      %4504 = vmatpush1.bf16.msra.mxu0 0
      %4505 = vmatprep.subr.bf16.mxu0 0
      %4506 = vmatpush1.bf16.msra.mxu0 0
      %4507 = vmatprep.subr.bf16.mxu0 0
      %4508 = vmatpush1.bf16.msra.mxu0 0
      %4509 = vmatprep.subr.bf16.mxu0 0
      %4510 = vmatpush1.bf16.msra.mxu0 0
      %4511 = vmatprep.mubr.bf16.mxu0 0
      %4512 = vmatmul.mubr.bf16.gmra.mrb[0].mxu0 %v4474
      %v4513 = vpop.f32.mrb[0].mxu0
      %v4514 = vadd.f32 0.0, %v4513
      %v4515 = vpop.f32.mrb[0].mxu0
      %v4516 = vpop.f32.mrb[0].mxu0
      %v4517 = vpop.f32.mrb[0].mxu0
      %4518 = vdwg.mxu0
      %4520 = vrot.lane.b32.xlu0 %v4179, 120
      %v4521 = vpop.permute.xlu0 %4520
      %v4523 = vsel %vm776, %v4419, 0
      %v4526 = vsel %vm1037, %v4521, 0
      %4528 = vmatprep.subr.bf16.mxu0 0
      %4529 = vmatpush1.bf16.msra.mxu0 %v4526
      %4530 = vmatprep.subr.bf16.mxu0 0
      %4531 = vmatpush1.bf16.msra.mxu0 0
      %4532 = vmatprep.subr.bf16.mxu0 0
      %4533 = vmatpush1.bf16.msra.mxu0 0
      %4534 = vmatprep.subr.bf16.mxu0 0
      %4535 = vmatpush1.bf16.msra.mxu0 0
      %4536 = vmatprep.subr.bf16.mxu0 0
      %4537 = vmatpush1.bf16.msra.mxu0 0
      %4538 = vmatprep.subr.bf16.mxu0 0
      %4539 = vmatpush1.bf16.msra.mxu0 0
      %4540 = vmatprep.subr.bf16.mxu0 0
      %4541 = vmatpush1.bf16.msra.mxu0 0
      %4542 = vmatprep.subr.bf16.mxu0 0
      %4543 = vmatpush1.bf16.msra.mxu0 0
      %4544 = vmatprep.subr.bf16.mxu0 0
      %4545 = vmatpush1.bf16.msra.mxu0 0
      %4546 = vmatprep.subr.bf16.mxu0 0
      %4547 = vmatpush1.bf16.msra.mxu0 0
      %4548 = vmatprep.subr.bf16.mxu0 0
      %4549 = vmatpush1.bf16.msra.mxu0 0
      %4550 = vmatprep.subr.bf16.mxu0 0
      %4551 = vmatpush1.bf16.msra.mxu0 0
      %4552 = vmatprep.subr.bf16.mxu0 0
      %4553 = vmatpush1.bf16.msra.mxu0 0
      %4554 = vmatprep.subr.bf16.mxu0 0
      %4555 = vmatpush1.bf16.msra.mxu0 0
      %4556 = vmatprep.subr.bf16.mxu0 0
      %4557 = vmatpush1.bf16.msra.mxu0 0
      %4558 = vmatprep.subr.bf16.mxu0 0
      %4559 = vmatpush1.bf16.msra.mxu0 0
      %4560 = vmatprep.mubr.bf16.mxu0 0
      %4561 = vmatmul.mubr.bf16.gmra.mrb[0].mxu0 %v4523
      %v4562 = vpop.f32.mrb[0].mxu0
      %v4563 = vadd.f32 0.0, %v4562
      %v4564 = vpop.f32.mrb[0].mxu0
      %v4565 = vpop.f32.mrb[0].mxu0
      %v4566 = vpop.f32.mrb[0].mxu0
      %4567 = vdwg.mxu0
      %4569 = vrot.lane.b32.xlu0 %v4180, 120
      %v4570 = vpop.permute.xlu0 %4569
      %v4572 = vsel %vm776, %v4420, 0
      %v4575 = vsel %vm1037, %v4570, 0
      %4577 = vmatprep.subr.bf16.mxu0 0
      %4578 = vmatpush1.bf16.msra.mxu0 %v4575
      %4579 = vmatprep.subr.bf16.mxu0 0
      %4580 = vmatpush1.bf16.msra.mxu0 0
      %4581 = vmatprep.subr.bf16.mxu0 0
      %4582 = vmatpush1.bf16.msra.mxu0 0
      %4583 = vmatprep.subr.bf16.mxu0 0
      %4584 = vmatpush1.bf16.msra.mxu0 0
      %4585 = vmatprep.subr.bf16.mxu0 0
      %4586 = vmatpush1.bf16.msra.mxu0 0
      %4587 = vmatprep.subr.bf16.mxu0 0
      %4588 = vmatpush1.bf16.msra.mxu0 0
      %4589 = vmatprep.subr.bf16.mxu0 0
      %4590 = vmatpush1.bf16.msra.mxu0 0
      %4591 = vmatprep.subr.bf16.mxu0 0
      %4592 = vmatpush1.bf16.msra.mxu0 0
      %4593 = vmatprep.subr.bf16.mxu0 0
      %4594 = vmatpush1.bf16.msra.mxu0 0
      %4595 = vmatprep.subr.bf16.mxu0 0
      %4596 = vmatpush1.bf16.msra.mxu0 0
      %4597 = vmatprep.subr.bf16.mxu0 0
      %4598 = vmatpush1.bf16.msra.mxu0 0
      %4599 = vmatprep.subr.bf16.mxu0 0
      %4600 = vmatpush1.bf16.msra.mxu0 0
      %4601 = vmatprep.subr.bf16.mxu0 0
      %4602 = vmatpush1.bf16.msra.mxu0 0
      %4603 = vmatprep.subr.bf16.mxu0 0
      %4604 = vmatpush1.bf16.msra.mxu0 0
      %4605 = vmatprep.subr.bf16.mxu0 0
      %4606 = vmatpush1.bf16.msra.mxu0 0
      %4607 = vmatprep.subr.bf16.mxu0 0
      %4608 = vmatpush1.bf16.msra.mxu0 0
      %4609 = vmatprep.mubr.bf16.mxu0 0
      %4610 = vmatmul.mubr.bf16.gmra.mrb[0].mxu0 %v4572
      %v4611 = vpop.f32.mrb[0].mxu0
      %v4612 = vadd.f32 0.0, %v4611
      %v4613 = vpop.f32.mrb[0].mxu0
      %v4614 = vpop.f32.mrb[0].mxu0
      %v4615 = vpop.f32.mrb[0].mxu0
      %4616 = vdwg.mxu0
      %v4617 = vpack.c.bf16 %v4465, %v4465
      %v4618 = vpack.c.bf16 %v4514, %v4514
      %v4619 = vpack.c.bf16 %v4563, %v4563
      %v4620 = vpack.c.bf16 %v4612, %v4612
      %4621 = vrot.lane.b32.xlu0 %v3529, 64
      %v4622 = vpop.permute.xlu0 %4621
      %v4624 = vsel %vm776, %v4617, 0
      %v4627 = vsel %vm1037, %v4622, 0
      %4629 = vmatprep.subr.bf16.mxu0 0
      %4630 = vmatpush1.bf16.msra.mxu0 %v4627
      %4631 = vmatprep.subr.bf16.mxu0 0
      %4632 = vmatpush1.bf16.msra.mxu0 0
      %4633 = vmatprep.subr.bf16.mxu0 0
      %4634 = vmatpush1.bf16.msra.mxu0 0
      %4635 = vmatprep.subr.bf16.mxu0 0
      %4636 = vmatpush1.bf16.msra.mxu0 0
      %4637 = vmatprep.subr.bf16.mxu0 0
      %4638 = vmatpush1.bf16.msra.mxu0 0
      %4639 = vmatprep.subr.bf16.mxu0 0
      %4640 = vmatpush1.bf16.msra.mxu0 0
      %4641 = vmatprep.subr.bf16.mxu0 0
      %4642 = vmatpush1.bf16.msra.mxu0 0
      %4643 = vmatprep.subr.bf16.mxu0 0
      %4644 = vmatpush1.bf16.msra.mxu0 0
      %4645 = vmatprep.subr.bf16.mxu0 0
      %4646 = vmatpush1.bf16.msra.mxu0 0
      %4647 = vmatprep.subr.bf16.mxu0 0
      %4648 = vmatpush1.bf16.msra.mxu0 0
      %4649 = vmatprep.subr.bf16.mxu0 0
      %4650 = vmatpush1.bf16.msra.mxu0 0
      %4651 = vmatprep.subr.bf16.mxu0 0
      %4652 = vmatpush1.bf16.msra.mxu0 0
      %4653 = vmatprep.subr.bf16.mxu0 0
      %4654 = vmatpush1.bf16.msra.mxu0 0
      %4655 = vmatprep.subr.bf16.mxu0 0
      %4656 = vmatpush1.bf16.msra.mxu0 0
      %4657 = vmatprep.subr.bf16.mxu0 0
      %4658 = vmatpush1.bf16.msra.mxu0 0
      %4659 = vmatprep.subr.bf16.mxu0 0
      %4660 = vmatpush1.bf16.msra.mxu0 0
      %4661 = vmatprep.mubr.bf16.mxu0 0
      %4662 = vmatmul.mubr.bf16.gmra.mrb[0].mxu0 %v4624
      %v4663 = vpop.f32.mrb[0].mxu0
      %v4664 = vadd.f32 0.0, %v4663
      %v4665 = vpop.f32.mrb[0].mxu0
      %v4666 = vpop.f32.mrb[0].mxu0
      %v4667 = vpop.f32.mrb[0].mxu0
      %4668 = vdwg.mxu0
      %4669 = vrot.lane.b32.xlu0 %v3580, 64
      %v4670 = vpop.permute.xlu0 %4669
      %v4672 = vsel %vm776, %v4618, 0
      %v4675 = vsel %vm1037, %v4670, 0
      %4677 = vmatprep.subr.bf16.mxu0 0
      %4678 = vmatpush1.bf16.msra.mxu0 %v4675
      %4679 = vmatprep.subr.bf16.mxu0 0
      %4680 = vmatpush1.bf16.msra.mxu0 0
      %4681 = vmatprep.subr.bf16.mxu0 0
      %4682 = vmatpush1.bf16.msra.mxu0 0
      %4683 = vmatprep.subr.bf16.mxu0 0
      %4684 = vmatpush1.bf16.msra.mxu0 0
      %4685 = vmatprep.subr.bf16.mxu0 0
      %4686 = vmatpush1.bf16.msra.mxu0 0
      %4687 = vmatprep.subr.bf16.mxu0 0
      %4688 = vmatpush1.bf16.msra.mxu0 0
      %4689 = vmatprep.subr.bf16.mxu0 0
      %4690 = vmatpush1.bf16.msra.mxu0 0
      %4691 = vmatprep.subr.bf16.mxu0 0
      %4692 = vmatpush1.bf16.msra.mxu0 0
      %4693 = vmatprep.subr.bf16.mxu0 0
      %4694 = vmatpush1.bf16.msra.mxu0 0
      %4695 = vmatprep.subr.bf16.mxu0 0
      %4696 = vmatpush1.bf16.msra.mxu0 0
      %4697 = vmatprep.subr.bf16.mxu0 0
      %4698 = vmatpush1.bf16.msra.mxu0 0
      %4699 = vmatprep.subr.bf16.mxu0 0
      %4700 = vmatpush1.bf16.msra.mxu0 0
      %4701 = vmatprep.subr.bf16.mxu0 0
      %4702 = vmatpush1.bf16.msra.mxu0 0
      %4703 = vmatprep.subr.bf16.mxu0 0
      %4704 = vmatpush1.bf16.msra.mxu0 0
      %4705 = vmatprep.subr.bf16.mxu0 0
      %4706 = vmatpush1.bf16.msra.mxu0 0
      %4707 = vmatprep.subr.bf16.mxu0 0
      %4708 = vmatpush1.bf16.msra.mxu0 0
      %4709 = vmatprep.mubr.bf16.mxu0 0
      %4710 = vmatmul.mubr.bf16.gmra.mrb[0].mxu0 %v4672
      %v4711 = vpop.f32.mrb[0].mxu0
      %v4712 = vadd.f32 0.0, %v4711
      %v4713 = vpop.f32.mrb[0].mxu0
      %v4714 = vpop.f32.mrb[0].mxu0
      %v4715 = vpop.f32.mrb[0].mxu0
      %4716 = vdwg.mxu0
      %4717 = vrot.lane.b32.xlu0 %v3631, 64
      %v4718 = vpop.permute.xlu0 %4717
      %v4720 = vsel %vm776, %v4619, 0
      %v4723 = vsel %vm1037, %v4718, 0
      %4725 = vmatprep.subr.bf16.mxu0 0
      %4726 = vmatpush1.bf16.msra.mxu0 %v4723
      %4727 = vmatprep.subr.bf16.mxu0 0
      %4728 = vmatpush1.bf16.msra.mxu0 0
      %4729 = vmatprep.subr.bf16.mxu0 0
      %4730 = vmatpush1.bf16.msra.mxu0 0
      %4731 = vmatprep.subr.bf16.mxu0 0
      %4732 = vmatpush1.bf16.msra.mxu0 0
      %4733 = vmatprep.subr.bf16.mxu0 0
      %4734 = vmatpush1.bf16.msra.mxu0 0
      %4735 = vmatprep.subr.bf16.mxu0 0
      %4736 = vmatpush1.bf16.msra.mxu0 0
      %4737 = vmatprep.subr.bf16.mxu0 0
      %4738 = vmatpush1.bf16.msra.mxu0 0
      %4739 = vmatprep.subr.bf16.mxu0 0
      %4740 = vmatpush1.bf16.msra.mxu0 0
      %4741 = vmatprep.subr.bf16.mxu0 0
      %4742 = vmatpush1.bf16.msra.mxu0 0
      %4743 = vmatprep.subr.bf16.mxu0 0
      %4744 = vmatpush1.bf16.msra.mxu0 0
      %4745 = vmatprep.subr.bf16.mxu0 0
      %4746 = vmatpush1.bf16.msra.mxu0 0
      %4747 = vmatprep.subr.bf16.mxu0 0
      %4748 = vmatpush1.bf16.msra.mxu0 0
      %4749 = vmatprep.subr.bf16.mxu0 0
      %4750 = vmatpush1.bf16.msra.mxu0 0
      %4751 = vmatprep.subr.bf16.mxu0 0
      %4752 = vmatpush1.bf16.msra.mxu0 0
      %4753 = vmatprep.subr.bf16.mxu0 0
      %4754 = vmatpush1.bf16.msra.mxu0 0
      %4755 = vmatprep.subr.bf16.mxu0 0
      %4756 = vmatpush1.bf16.msra.mxu0 0
      %4757 = vmatprep.mubr.bf16.mxu0 0
      %4758 = vmatmul.mubr.bf16.gmra.mrb[0].mxu0 %v4720
      %v4759 = vpop.f32.mrb[0].mxu0
      %v4760 = vadd.f32 0.0, %v4759
      %v4761 = vpop.f32.mrb[0].mxu0
      %v4762 = vpop.f32.mrb[0].mxu0
      %v4763 = vpop.f32.mrb[0].mxu0
      %4764 = vdwg.mxu0
      %4765 = vrot.lane.b32.xlu0 %v3682, 64
      %v4766 = vpop.permute.xlu0 %4765
      %v4768 = vsel %vm776, %v4620, 0
      %v4771 = vsel %vm1037, %v4766, 0
      %4773 = vmatprep.subr.bf16.mxu0 0
      %4774 = vmatpush1.bf16.msra.mxu0 %v4771
      %4775 = vmatprep.subr.bf16.mxu0 0
      %4776 = vmatpush1.bf16.msra.mxu0 0
      %4777 = vmatprep.subr.bf16.mxu0 0
      %4778 = vmatpush1.bf16.msra.mxu0 0
      %4779 = vmatprep.subr.bf16.mxu0 0
      %4780 = vmatpush1.bf16.msra.mxu0 0
      %4781 = vmatprep.subr.bf16.mxu0 0
      %4782 = vmatpush1.bf16.msra.mxu0 0
      %4783 = vmatprep.subr.bf16.mxu0 0
      %4784 = vmatpush1.bf16.msra.mxu0 0
      %4785 = vmatprep.subr.bf16.mxu0 0
      %4786 = vmatpush1.bf16.msra.mxu0 0
      %4787 = vmatprep.subr.bf16.mxu0 0
      %4788 = vmatpush1.bf16.msra.mxu0 0
      %4789 = vmatprep.subr.bf16.mxu0 0
      %4790 = vmatpush1.bf16.msra.mxu0 0
      %4791 = vmatprep.subr.bf16.mxu0 0
      %4792 = vmatpush1.bf16.msra.mxu0 0
      %4793 = vmatprep.subr.bf16.mxu0 0
      %4794 = vmatpush1.bf16.msra.mxu0 0
      %4795 = vmatprep.subr.bf16.mxu0 0
      %4796 = vmatpush1.bf16.msra.mxu0 0
      %4797 = vmatprep.subr.bf16.mxu0 0
      %4798 = vmatpush1.bf16.msra.mxu0 0
      %4799 = vmatprep.subr.bf16.mxu0 0
      %4800 = vmatpush1.bf16.msra.mxu0 0
      %4801 = vmatprep.subr.bf16.mxu0 0
      %4802 = vmatpush1.bf16.msra.mxu0 0
      %4803 = vmatprep.subr.bf16.mxu0 0
      %4804 = vmatpush1.bf16.msra.mxu0 0
      %4805 = vmatprep.mubr.bf16.mxu0 0
      %4806 = vmatmul.mubr.bf16.gmra.mrb[0].mxu0 %v4768
      %v4807 = vpop.f32.mrb[0].mxu0
      %v4808 = vadd.f32 0.0, %v4807
      %v4809 = vpop.f32.mrb[0].mxu0
      %v4810 = vpop.f32.mrb[0].mxu0
      %v4811 = vpop.f32.mrb[0].mxu0
      %4812 = vdwg.mxu0
      %v4813 = vsel %vm500, %v4664, 0.0
      %v4814 = vsel %vm500, %v4712, 0.0
      %v4815 = vadd.f32 %v4813, %v4814
      %v4816 = vsel %vm500, %v4760, 0.0
      %v4817 = vadd.f32 %v4815, %v4816
      %v4818 = vsel %vm500, %v4808, 0.0
      %v4819 = vadd.f32 %v4817, %v4818
      %v4820 = vlaneseq
      %v4821 = vshrl.u32 %v4820, 7
      %v4822 = vsub.s32 4, %v4821
      %v4823 = vrot.slane %v2783, %v4822
      %v4824 = vadd.f32 %v4819, %v4823
      %v4825 = vadd.f32 %v3743, %v4824
      %v4826 = vsel %vm500, %v4825, 0.0
      %4827 = vadd.xlane.f32.xlu0 %v4826
      %v4828 = vpop.xlane.xlu0 %4827
      %v4829 = vmul.f32 %v4828, %v504
      %v4830 = vsub.f32 %v4825, %v4829
      %v4831 = vmul.f32 %v4830, %v4830
      %v4832 = vsel %vm500, %v4831, 0.0
      %4833 = vadd.xlane.f32.xlu0 %v4832
      %v4834 = vpop.xlane.xlu0 %4833
      %v4835 = vmul.f32 %v4834, %v511
      %v4836 = vlaneseq
      %v4837 = vshrl.u32 %v4836, 7
      %v4838 = vsub.s32 5, %v4837
      %v4839 = vrot.slane %v2783, %v4838
      %v4840 = vmul.f32 %v4839, %v4830
      %v4841 = vrsqrt.pop %v4835
      %v4842 = vmul.f32 %v4835, %v4841
      %vm4843 = vcmp.eq.f32.partialorder %v4835, inf
      %v4844 = vsel %vm4843, %v4835, %v4842
      %vm4845 = vcmp.eq.f32.partialorder %v4835, 0.0
      %v4846 = vand.u32 %v4835, 2147483648
      %v4847 = vsel %vm4845, %v4846, %v4844
      %v4848 = vadd.f32 %v4847, 1e-06
      %v4849 = vrcp.pop %v4848
      %v4850 = vmul.f32 %v4840, %v4849
      %v4851 = vlaneseq
      %v4852 = vshrl.u32 %v4851, 7
      %v4853 = vsub.s32 6, %v4852
      %v4854 = vrot.slane %v2783, %v4853
      %v4855 = vadd.f32 %v4850, %v4854
      %v4856 = vpack.c.bf16 %v4855, %v4855
      %v4857 = vlaneseq
      %v4858 = vshrl.u32 %v4857, 7
      %v4859 = vsub.s32 7, %v4858
      %v4860 = vrot.slane %v2783, %v4859
      %v4865 = vunpack.c.l.b16 %v2770
      %v4866 = vunpack.c.l.b16 %v2771
      %v4867 = vunpack.c.l.b16 %v2772
      %v4868 = vunpack.c.l.b16 %v2773
      %v4869 = vpack.c.b16 %v4866, %v4865
      %v4870 = vpack.c.b16 %v4868, %v4867
      %4871 = vrot.lane.b32.xlu0 %v4869, 64
      %v4872 = vpop.permute.xlu0 %4871
      %4873 = vrot.lane.b32.xlu0 %v4870, 64
      %v4874 = vpop.permute.xlu0 %4873
      %v4878 = vsel %vm500, %v4856, 0
      %4880 = vmatprep.subr.bf16.mxu0 0
      %4881 = vmatpush1.bf16.msra.mxu0 %v4872
      %4882 = vmatprep.subr.bf16.mxu0 0
      %4883 = vmatpush1.bf16.msra.mxu0 %v4874
      %4884 = vmatprep.subr.bf16.mxu0 0
      %4885 = vmatpush1.bf16.msra.mxu0 0
      %4886 = vmatprep.subr.bf16.mxu0 0
      %4887 = vmatpush1.bf16.msra.mxu0 0
      %4888 = vmatprep.subr.bf16.mxu0 0
      %4889 = vmatpush1.bf16.msra.mxu0 0
      %4890 = vmatprep.subr.bf16.mxu0 0
      %4891 = vmatpush1.bf16.msra.mxu0 0
      %4892 = vmatprep.subr.bf16.mxu0 0
      %4893 = vmatpush1.bf16.msra.mxu0 0
      %4894 = vmatprep.subr.bf16.mxu0 0
      %4895 = vmatpush1.bf16.msra.mxu0 0
      %4896 = vmatprep.subr.bf16.mxu0 0
      %4897 = vmatpush1.bf16.msra.mxu0 0
      %4898 = vmatprep.subr.bf16.mxu0 0
      %4899 = vmatpush1.bf16.msra.mxu0 0
      %4900 = vmatprep.subr.bf16.mxu0 0
      %4901 = vmatpush1.bf16.msra.mxu0 0
      %4902 = vmatprep.subr.bf16.mxu0 0
      %4903 = vmatpush1.bf16.msra.mxu0 0
      %4904 = vmatprep.subr.bf16.mxu0 0
      %4905 = vmatpush1.bf16.msra.mxu0 0
      %4906 = vmatprep.subr.bf16.mxu0 0
      %4907 = vmatpush1.bf16.msra.mxu0 0
      %4908 = vmatprep.subr.bf16.mxu0 0
      %4909 = vmatpush1.bf16.msra.mxu0 0
      %4910 = vmatprep.subr.bf16.mxu0 0
      %4911 = vmatpush1.bf16.msra.mxu0 0
      %4912 = vmatprep.mubr.bf16.mxu0 0
      %4913 = vmatmul.mubr.bf16.gmra.mrb[0].mxu0 %v4878
      %v4914 = vpop.f32.mrb[0].mxu0
      %v4915 = vadd.f32 %v4860, %v4914
      %v4916 = vpop.f32.mrb[0].mxu0
      %v4917 = vpop.f32.mrb[0].mxu0
      %v4918 = vpop.f32.mrb[0].mxu0
      %4919 = vdwg.mxu0
      %v4920 = vmax.f32 %v4915, 0.0
      %v4921 = vpack.c.bf16 %v4920, %v4920
      %v4930 = vunpack.c.l.b16 %v2774
      %v4931 = vunpack.c.l.b16 %v2775
      %v4932 = vunpack.c.l.b16 %v2776
      %v4933 = vunpack.c.l.b16 %v2777
      %v4934 = vunpack.c.l.b16 %v2778
      %v4935 = vunpack.c.l.b16 %v2779
      %v4936 = vunpack.c.l.b16 %v2780
      %v4937 = vunpack.c.l.b16 %v2781
      %v4938 = vpack.c.b16 %v4931, %v4930
      %v4939 = vpack.c.b16 %v4933, %v4932
      %v4940 = vpack.c.b16 %v4935, %v4934
      %v4941 = vpack.c.b16 %v4937, %v4936
      %4942 = vrot.lane.b32.xlu0 %v4938, 96
      %v4943 = vpop.permute.xlu0 %4942
      %4944 = vrot.lane.b32.xlu0 %v4939, 96
      %v4945 = vpop.permute.xlu0 %4944
      %4946 = vrot.lane.b32.xlu0 %v4940, 96
      %v4947 = vpop.permute.xlu0 %4946
      %4948 = vrot.lane.b32.xlu0 %v4941, 96
      %v4949 = vpop.permute.xlu0 %4948
      %v4955 = vsel %vm1542, %v4921, 0
      %4957 = vmatprep.subr.bf16.mxu0 0
      %4958 = vmatpush1.bf16.msra.mxu0 %v4943
      %4959 = vmatprep.subr.bf16.mxu0 0
      %4960 = vmatpush1.bf16.msra.mxu0 %v4945
      %4961 = vmatprep.subr.bf16.mxu0 0
      %4962 = vmatpush1.bf16.msra.mxu0 %v4947
      %4963 = vmatprep.subr.bf16.mxu0 0
      %4964 = vmatpush1.bf16.msra.mxu0 %v4949
      %4965 = vmatprep.subr.bf16.mxu0 0
      %4966 = vmatpush1.bf16.msra.mxu0 0
      %4967 = vmatprep.subr.bf16.mxu0 0
      %4968 = vmatpush1.bf16.msra.mxu0 0
      %4969 = vmatprep.subr.bf16.mxu0 0
      %4970 = vmatpush1.bf16.msra.mxu0 0
      %4971 = vmatprep.subr.bf16.mxu0 0
      %4972 = vmatpush1.bf16.msra.mxu0 0
      %4973 = vmatprep.subr.bf16.mxu0 0
      %4974 = vmatpush1.bf16.msra.mxu0 0
      %4975 = vmatprep.subr.bf16.mxu0 0
      %4976 = vmatpush1.bf16.msra.mxu0 0
      %4977 = vmatprep.subr.bf16.mxu0 0
      %4978 = vmatpush1.bf16.msra.mxu0 0
      %4979 = vmatprep.subr.bf16.mxu0 0
      %4980 = vmatpush1.bf16.msra.mxu0 0
      %4981 = vmatprep.subr.bf16.mxu0 0
      %4982 = vmatpush1.bf16.msra.mxu0 0
      %4983 = vmatprep.subr.bf16.mxu0 0
      %4984 = vmatpush1.bf16.msra.mxu0 0
      %4985 = vmatprep.subr.bf16.mxu0 0
      %4986 = vmatpush1.bf16.msra.mxu0 0
      %4987 = vmatprep.subr.bf16.mxu0 0
      %4988 = vmatpush1.bf16.msra.mxu0 0
      %4989 = vmatprep.mubr.bf16.mxu0 0
      %4990 = vmatmul.mubr.bf16.gmra.mrb[0].mxu0 %v4955
      %v4991 = vpop.f32.mrb[0].mxu0
      %v4992 = vadd.f32 0.0, %v4991
      %v4993 = vpop.f32.mrb[0].mxu0
      %v4994 = vpop.f32.mrb[0].mxu0
      %v4995 = vpop.f32.mrb[0].mxu0
      %4996 = vdwg.mxu0
      %v4997 = vadd.f32 %v4825, %v4992
      %v4998 = vlaneseq
      %v4999 = vshrl.u32 %v4998, 7
      %v5000 = vsub.s32 0, %v4999
      %v5001 = vrot.slane %v2784, %v5000
      %v5002 = vadd.f32 %v4997, %v5001
      %v5003 = vld [vmem:[%s1592] sm:$0xf]
      %v5004 = vld [vmem:[%s1592 + $0x4] sm:$0xf]
      %v5005 = vld [vmem:[%s1592 + $0x8] sm:$0xf]
      %v5006 = vld [vmem:[%s1592 + $0xc] sm:$0xf]
      %v5007 = vld [vmem:[%s1592 + $0x10] sm:$0xf]
      %v5008 = vld [vmem:[%s1592 + $0x14] sm:$0xf]
      %v5009 = vld [vmem:[%s1592 + $0x18] sm:$0xf]
      %v5010 = vld [vmem:[%s1592 + $0x1c] sm:$0xf]
      %v5011 = vld [vmem:[%s1592 + $0x20] sm:$0xf]
      %v5012 = vld [vmem:[%s1592 + $0x24] sm:$0xf]
      %v5013 = vld [vmem:[%s1592 + $0x28] sm:$0xf]
      %v5014 = vld [vmem:[%s1592 + $0x2c] sm:$0xf]
      %v5015 = vld [vmem:[%s1592 + $0x30] sm:$0xf]
      %v5016 = vld [vmem:[%s1592 + $0x34] sm:$0xf]
      %v5017 = vld [vmem:[%s1592 + $0x38] sm:$0xf]
      %v5018 = vld [vmem:[%s1592 + $0x3c] sm:$0xf]
      %v5019 = vld [vmem:[%s1609] sm:$0x1]
      %v5020 = vld [vmem:[%s1609 + $0x1] sm:$0x1]
      %v5021 = vld [vmem:[%s1609 + $0x2] sm:$0x1]
      %v5022 = vld [vmem:[%s1609 + $0x3] sm:$0x1]
      %v5023 = vld [vmem:[%s1614] sm:$0xf]
      %v5024 = vld [vmem:[%s1614 + $0x4] sm:$0xf]
      %v5025 = vld [vmem:[%s1614 + $0x8] sm:$0xf]
      %v5026 = vld [vmem:[%s1614 + $0xc] sm:$0xf]
      %v5027 = vld [vmem:[%s1619] sm:$0xf]
      %v5028 = vld [vmem:[%s1619 + $0x4] sm:$0xf]
      %v5029 = vld [vmem:[%s1619 + $0x8] sm:$0xf]
      %v5030 = vld [vmem:[%s1619 + $0xc] sm:$0xf]
      %v5031 = vld [vmem:[%s1624] sm:$0xf]
      %v5032 = vld [vmem:[%s1624 + $0x4] sm:$0xf]
      %v5033 = vld [vmem:[%s1624 + $0x8] sm:$0xf]
      %v5034 = vld [vmem:[%s1624 + $0xc] sm:$0xf]
      %v5035 = vld [vmem:[%s1624 + $0x10] sm:$0xf]
      %v5036 = vld [vmem:[%s1624 + $0x14] sm:$0xf]
      %v5037 = vld [vmem:[%s1624 + $0x18] sm:$0xf]
      %v5038 = vld [vmem:[%s1624 + $0x1c] sm:$0xf]
      %v5039 = vld [vmem:[%s1633] sm:$0xff]
      %v5040 = vld [vmem:[%s1633 + $0x8] sm:$0xff]
      %v5041 = vld [vmem:[%s1633 + $0x10] sm:$0x1]
      %v5042 = vsel %vm500, %v5002, 0.0
      %5043 = vadd.xlane.f32.xlu0 %v5042
      %v5044 = vpop.xlane.xlu0 %5043
      %v5045 = vmul.f32 %v5044, %v504
      %v5046 = vsub.f32 %v5002, %v5045
      %v5047 = vmul.f32 %v5046, %v5046
      %v5048 = vsel %vm500, %v5047, 0.0
      %5049 = vadd.xlane.f32.xlu0 %v5048
      %v5050 = vpop.xlane.xlu0 %5049
      %v5051 = vmul.f32 %v5050, %v511
      %v5052 = vlaneseq
      %v5053 = vshrl.u32 %v5052, 7
      %v5054 = vsub.s32 7, %v5053
      %v5055 = vrot.slane %v5039, %v5054
      %v5056 = vmul.f32 %v5055, %v5046
      %v5057 = vrsqrt.pop %v5051
      %v5058 = vmul.f32 %v5051, %v5057
      %vm5059 = vcmp.eq.f32.partialorder %v5051, inf
      %v5060 = vsel %vm5059, %v5051, %v5058
      %vm5061 = vcmp.eq.f32.partialorder %v5051, 0.0
      %v5062 = vand.u32 %v5051, 2147483648
      %v5063 = vsel %vm5061, %v5062, %v5060
      %v5064 = vadd.f32 %v5063, 1e-06
      %v5065 = vrcp.pop %v5064
      %v5066 = vmul.f32 %v5056, %v5065
      %v5067 = vlaneseq
      %v5068 = vshrl.u32 %v5067, 7
      %v5069 = vsub.s32 0, %v5068
      %v5070 = vrot.slane %v5040, %v5069
      %v5071 = vadd.f32 %v5066, %v5070
      %v5072 = vpack.c.bf16 %v5071, %v5071
      %v5077 = vlaneseq
      %v5078 = vshrl.u32 %v5077, 7
      %v5079 = vsub.s32 0, %v5078
      %v5080 = vrot.slane %v5019, %v5079
      %v5081 = vlaneseq
      %v5082 = vshrl.u32 %v5081, 7
      %v5083 = vsub.s32 0, %v5082
      %v5084 = vrot.slane %v5020, %v5083
      %v5085 = vlaneseq
      %v5086 = vshrl.u32 %v5085, 7
      %v5087 = vsub.s32 0, %v5086
      %v5088 = vrot.slane %v5021, %v5087
      %v5089 = vlaneseq
      %v5090 = vshrl.u32 %v5089, 7
      %v5091 = vsub.s32 0, %v5090
      %v5092 = vrot.slane %v5022, %v5091
      %v5097 = vunpack.c.l.b16 %v5003
      %v5098 = vunpack.c.l.b16 %v5004
      %v5099 = vunpack.c.l.b16 %v5005
      %v5100 = vunpack.c.l.b16 %v5006
      %v5101 = vpack.c.b16 %v5098, %v5097
      %v5102 = vpack.c.b16 %v5100, %v5099
      %5103 = vrot.lane.b32.xlu0 %v5101, 104
      %v5104 = vpop.permute.xlu0 %5103
      %5105 = vrot.lane.b32.xlu0 %v5102, 104
      %v5106 = vpop.permute.xlu0 %5105
      %5109 = vrot.lane.b32.xlu0 %v5080, 104
      %v5110 = vpop.permute.xlu0 %5109
      %v5113 = vsel %vm500, %v5072, 0
      %5115 = vmatprep.subr.bf16.mxu0 0
      %5116 = vmatpush1.bf16.msra.mxu0 %v5104
      %5117 = vmatprep.subr.bf16.mxu0 0
      %5118 = vmatpush1.bf16.msra.mxu0 %v5106
      %5119 = vmatprep.subr.bf16.mxu0 0
      %5120 = vmatpush1.bf16.msra.mxu0 0
      %5121 = vmatprep.subr.bf16.mxu0 0
      %5122 = vmatpush1.bf16.msra.mxu0 0
      %5123 = vmatprep.subr.bf16.mxu0 0
      %5124 = vmatpush1.bf16.msra.mxu0 0
      %5125 = vmatprep.subr.bf16.mxu0 0
      %5126 = vmatpush1.bf16.msra.mxu0 0
      %5127 = vmatprep.subr.bf16.mxu0 0
      %5128 = vmatpush1.bf16.msra.mxu0 0
      %5129 = vmatprep.subr.bf16.mxu0 0
      %5130 = vmatpush1.bf16.msra.mxu0 0
      %5131 = vmatprep.subr.bf16.mxu0 0
      %5132 = vmatpush1.bf16.msra.mxu0 0
      %5133 = vmatprep.subr.bf16.mxu0 0
      %5134 = vmatpush1.bf16.msra.mxu0 0
      %5135 = vmatprep.subr.bf16.mxu0 0
      %5136 = vmatpush1.bf16.msra.mxu0 0
      %5137 = vmatprep.subr.bf16.mxu0 0
      %5138 = vmatpush1.bf16.msra.mxu0 0
      %5139 = vmatprep.subr.bf16.mxu0 0
      %5140 = vmatpush1.bf16.msra.mxu0 0
      %5141 = vmatprep.subr.bf16.mxu0 0
      %5142 = vmatpush1.bf16.msra.mxu0 0
      %5143 = vmatprep.subr.bf16.mxu0 0
      %5144 = vmatpush1.bf16.msra.mxu0 0
      %5145 = vmatprep.subr.bf16.mxu0 0
      %5146 = vmatpush1.bf16.msra.mxu0 0
      %5147 = vmatprep.mubr.bf16.mxu0 0
      %5148 = vmatmul.mubr.bf16.gmra.mrb[0].mxu0 %v5113
      %v5149 = vpop.f32.mrb[0].mxu0
      %v5150 = vadd.f32 %v5110, %v5149
      %v5151 = vpop.f32.mrb[0].mxu0
      %v5152 = vpop.f32.mrb[0].mxu0
      %v5153 = vpop.f32.mrb[0].mxu0
      %5154 = vdwg.mxu0
      %v5159 = vunpack.c.l.b16 %v5007
      %v5160 = vunpack.c.l.b16 %v5008
      %v5161 = vunpack.c.l.b16 %v5009
      %v5162 = vunpack.c.l.b16 %v5010
      %v5163 = vpack.c.b16 %v5160, %v5159
      %v5164 = vpack.c.b16 %v5162, %v5161
      %5165 = vrot.lane.b32.xlu0 %v5163, 104
      %v5166 = vpop.permute.xlu0 %5165
      %5167 = vrot.lane.b32.xlu0 %v5164, 104
      %v5168 = vpop.permute.xlu0 %5167
      %5171 = vrot.lane.b32.xlu0 %v5084, 104
      %v5172 = vpop.permute.xlu0 %5171
      %5174 = vmatprep.subr.bf16.mxu0 0
      %5175 = vmatpush1.bf16.msra.mxu0 %v5166
      %5176 = vmatprep.subr.bf16.mxu0 0
      %5177 = vmatpush1.bf16.msra.mxu0 %v5168
      %5178 = vmatprep.subr.bf16.mxu0 0
      %5179 = vmatpush1.bf16.msra.mxu0 0
      %5180 = vmatprep.subr.bf16.mxu0 0
      %5181 = vmatpush1.bf16.msra.mxu0 0
      %5182 = vmatprep.subr.bf16.mxu0 0
      %5183 = vmatpush1.bf16.msra.mxu0 0
      %5184 = vmatprep.subr.bf16.mxu0 0
      %5185 = vmatpush1.bf16.msra.mxu0 0
      %5186 = vmatprep.subr.bf16.mxu0 0
      %5187 = vmatpush1.bf16.msra.mxu0 0
      %5188 = vmatprep.subr.bf16.mxu0 0
      %5189 = vmatpush1.bf16.msra.mxu0 0
      %5190 = vmatprep.subr.bf16.mxu0 0
      %5191 = vmatpush1.bf16.msra.mxu0 0
      %5192 = vmatprep.subr.bf16.mxu0 0
      %5193 = vmatpush1.bf16.msra.mxu0 0
      %5194 = vmatprep.subr.bf16.mxu0 0
      %5195 = vmatpush1.bf16.msra.mxu0 0
      %5196 = vmatprep.subr.bf16.mxu0 0
      %5197 = vmatpush1.bf16.msra.mxu0 0
      %5198 = vmatprep.subr.bf16.mxu0 0
      %5199 = vmatpush1.bf16.msra.mxu0 0
      %5200 = vmatprep.subr.bf16.mxu0 0
      %5201 = vmatpush1.bf16.msra.mxu0 0
      %5202 = vmatprep.subr.bf16.mxu0 0
      %5203 = vmatpush1.bf16.msra.mxu0 0
      %5204 = vmatprep.subr.bf16.mxu0 0
      %5205 = vmatpush1.bf16.msra.mxu0 0
      %5206 = vmatprep.mubr.bf16.mxu0 0
      %5207 = vmatmul.mubr.bf16.gmra.mrb[0].mxu0 %v5113
      %v5208 = vpop.f32.mrb[0].mxu0
      %v5209 = vadd.f32 %v5172, %v5208
      %v5210 = vpop.f32.mrb[0].mxu0
      %v5211 = vpop.f32.mrb[0].mxu0
      %v5212 = vpop.f32.mrb[0].mxu0
      %5213 = vdwg.mxu0
      %v5218 = vunpack.c.l.b16 %v5011
      %v5219 = vunpack.c.l.b16 %v5012
      %v5220 = vunpack.c.l.b16 %v5013
      %v5221 = vunpack.c.l.b16 %v5014
      %v5222 = vpack.c.b16 %v5219, %v5218
      %v5223 = vpack.c.b16 %v5221, %v5220
      %5224 = vrot.lane.b32.xlu0 %v5222, 104
      %v5225 = vpop.permute.xlu0 %5224
      %5226 = vrot.lane.b32.xlu0 %v5223, 104
      %v5227 = vpop.permute.xlu0 %5226
      %5230 = vrot.lane.b32.xlu0 %v5088, 104
      %v5231 = vpop.permute.xlu0 %5230
      %5233 = vmatprep.subr.bf16.mxu0 0
      %5234 = vmatpush1.bf16.msra.mxu0 %v5225
      %5235 = vmatprep.subr.bf16.mxu0 0
      %5236 = vmatpush1.bf16.msra.mxu0 %v5227
      %5237 = vmatprep.subr.bf16.mxu0 0
      %5238 = vmatpush1.bf16.msra.mxu0 0
      %5239 = vmatprep.subr.bf16.mxu0 0
      %5240 = vmatpush1.bf16.msra.mxu0 0
      %5241 = vmatprep.subr.bf16.mxu0 0
      %5242 = vmatpush1.bf16.msra.mxu0 0
      %5243 = vmatprep.subr.bf16.mxu0 0
      %5244 = vmatpush1.bf16.msra.mxu0 0
      %5245 = vmatprep.subr.bf16.mxu0 0
      %5246 = vmatpush1.bf16.msra.mxu0 0
      %5247 = vmatprep.subr.bf16.mxu0 0
      %5248 = vmatpush1.bf16.msra.mxu0 0
      %5249 = vmatprep.subr.bf16.mxu0 0
      %5250 = vmatpush1.bf16.msra.mxu0 0
      %5251 = vmatprep.subr.bf16.mxu0 0
      %5252 = vmatpush1.bf16.msra.mxu0 0
      %5253 = vmatprep.subr.bf16.mxu0 0
      %5254 = vmatpush1.bf16.msra.mxu0 0
      %5255 = vmatprep.subr.bf16.mxu0 0
      %5256 = vmatpush1.bf16.msra.mxu0 0
      %5257 = vmatprep.subr.bf16.mxu0 0
      %5258 = vmatpush1.bf16.msra.mxu0 0
      %5259 = vmatprep.subr.bf16.mxu0 0
      %5260 = vmatpush1.bf16.msra.mxu0 0
      %5261 = vmatprep.subr.bf16.mxu0 0
      %5262 = vmatpush1.bf16.msra.mxu0 0
      %5263 = vmatprep.subr.bf16.mxu0 0
      %5264 = vmatpush1.bf16.msra.mxu0 0
      %5265 = vmatprep.mubr.bf16.mxu0 0
      %5266 = vmatmul.mubr.bf16.gmra.mrb[0].mxu0 %v5113
      %v5267 = vpop.f32.mrb[0].mxu0
      %v5268 = vadd.f32 %v5231, %v5267
      %v5269 = vpop.f32.mrb[0].mxu0
      %v5270 = vpop.f32.mrb[0].mxu0
      %v5271 = vpop.f32.mrb[0].mxu0
      %5272 = vdwg.mxu0
      %v5277 = vunpack.c.l.b16 %v5015
      %v5278 = vunpack.c.l.b16 %v5016
      %v5279 = vunpack.c.l.b16 %v5017
      %v5280 = vunpack.c.l.b16 %v5018
      %v5281 = vpack.c.b16 %v5278, %v5277
      %v5282 = vpack.c.b16 %v5280, %v5279
      %5283 = vrot.lane.b32.xlu0 %v5281, 104
      %v5284 = vpop.permute.xlu0 %5283
      %5285 = vrot.lane.b32.xlu0 %v5282, 104
      %v5286 = vpop.permute.xlu0 %5285
      %5289 = vrot.lane.b32.xlu0 %v5092, 104
      %v5290 = vpop.permute.xlu0 %5289
      %5292 = vmatprep.subr.bf16.mxu0 0
      %5293 = vmatpush1.bf16.msra.mxu0 %v5284
      %5294 = vmatprep.subr.bf16.mxu0 0
      %5295 = vmatpush1.bf16.msra.mxu0 %v5286
      %5296 = vmatprep.subr.bf16.mxu0 0
      %5297 = vmatpush1.bf16.msra.mxu0 0
      %5298 = vmatprep.subr.bf16.mxu0 0
      %5299 = vmatpush1.bf16.msra.mxu0 0
      %5300 = vmatprep.subr.bf16.mxu0 0
      %5301 = vmatpush1.bf16.msra.mxu0 0
      %5302 = vmatprep.subr.bf16.mxu0 0
      %5303 = vmatpush1.bf16.msra.mxu0 0
      %5304 = vmatprep.subr.bf16.mxu0 0
      %5305 = vmatpush1.bf16.msra.mxu0 0
      %5306 = vmatprep.subr.bf16.mxu0 0
      %5307 = vmatpush1.bf16.msra.mxu0 0
      %5308 = vmatprep.subr.bf16.mxu0 0
      %5309 = vmatpush1.bf16.msra.mxu0 0
      %5310 = vmatprep.subr.bf16.mxu0 0
      %5311 = vmatpush1.bf16.msra.mxu0 0
      %5312 = vmatprep.subr.bf16.mxu0 0
      %5313 = vmatpush1.bf16.msra.mxu0 0
      %5314 = vmatprep.subr.bf16.mxu0 0
      %5315 = vmatpush1.bf16.msra.mxu0 0
      %5316 = vmatprep.subr.bf16.mxu0 0
      %5317 = vmatpush1.bf16.msra.mxu0 0
      %5318 = vmatprep.subr.bf16.mxu0 0
      %5319 = vmatpush1.bf16.msra.mxu0 0
      %5320 = vmatprep.subr.bf16.mxu0 0
      %5321 = vmatpush1.bf16.msra.mxu0 0
      %5322 = vmatprep.subr.bf16.mxu0 0
      %5323 = vmatpush1.bf16.msra.mxu0 0
      %5324 = vmatprep.mubr.bf16.mxu0 0
      %5325 = vmatmul.mubr.bf16.gmra.mrb[0].mxu0 %v5113
      %v5326 = vpop.f32.mrb[0].mxu0
      %v5327 = vadd.f32 %v5290, %v5326
      %v5328 = vpop.f32.mrb[0].mxu0
      %v5329 = vpop.f32.mrb[0].mxu0
      %v5330 = vpop.f32.mrb[0].mxu0
      %5331 = vdwg.mxu0
      %v5332 = vpack.c.bf16 %v5150, %v5150
      %v5333 = vpack.c.bf16 %v5209, %v5209
      %v5334 = vpack.c.bf16 %v5268, %v5268
      %v5335 = vpack.c.bf16 %v5327, %v5327
      %5337 = vrot.lane.b32.xlu0 %v5332, 120
      %v5338 = vpop.permute.xlu0 %5337
      %v5340 = vsel %vm776, %v5332, 0
      %v5343 = vsel %vm776, %v5338, 0
      %5345 = vmatprep.subr.bf16.mxu0 0
      %5346 = vmatpush1.bf16.xpose.msra.mxu0 %v5343
      %5347 = vmatprep.subr.bf16.mxu0 0
      %5348 = vmatpush1.bf16.xpose.msra.mxu0 0
      %5349 = vmatprep.subr.bf16.mxu0 0
      %5350 = vmatpush1.bf16.xpose.msra.mxu0 0
      %5351 = vmatprep.subr.bf16.mxu0 0
      %5352 = vmatpush1.bf16.xpose.msra.mxu0 0
      %5353 = vmatprep.subr.bf16.mxu0 0
      %5354 = vmatpush1.bf16.xpose.msra.mxu0 0
      %5355 = vmatprep.subr.bf16.mxu0 0
      %5356 = vmatpush1.bf16.xpose.msra.mxu0 0
      %5357 = vmatprep.subr.bf16.mxu0 0
      %5358 = vmatpush1.bf16.xpose.msra.mxu0 0
      %5359 = vmatprep.subr.bf16.mxu0 0
      %5360 = vmatpush1.bf16.xpose.msra.mxu0 0
      %5361 = vmatprep.subr.bf16.mxu0 0
      %5362 = vmatpush1.bf16.xpose.msra.mxu0 0
      %5363 = vmatprep.subr.bf16.mxu0 0
      %5364 = vmatpush1.bf16.xpose.msra.mxu0 0
      %5365 = vmatprep.subr.bf16.mxu0 0
      %5366 = vmatpush1.bf16.xpose.msra.mxu0 0
      %5367 = vmatprep.subr.bf16.mxu0 0
      %5368 = vmatpush1.bf16.xpose.msra.mxu0 0
      %5369 = vmatprep.subr.bf16.mxu0 0
      %5370 = vmatpush1.bf16.xpose.msra.mxu0 0
      %5371 = vmatprep.subr.bf16.mxu0 0
      %5372 = vmatpush1.bf16.xpose.msra.mxu0 0
      %5373 = vmatprep.subr.bf16.mxu0 0
      %5374 = vmatpush1.bf16.xpose.msra.mxu0 0
      %5375 = vmatprep.subr.bf16.mxu0 0
      %5376 = vmatpush1.bf16.xpose.msra.mxu0 0
      %5377 = vmatprep.mubr.bf16.mxu0 0
      %5378 = vmatmul.mubr.bf16.gmra.mrb[0].mxu0 %v5340
      %v5379 = vpop.f32.mrb[0].mxu0
      %v5380 = vadd.f32 0.0, %v5379
      %v5381 = vpop.f32.mrb[0].mxu0
      %v5382 = vpop.f32.mrb[0].mxu0
      %v5383 = vpop.f32.mrb[0].mxu0
      %5384 = vdwg.mxu0
      %5386 = vrot.lane.b32.xlu0 %v5333, 120
      %v5387 = vpop.permute.xlu0 %5386
      %v5389 = vsel %vm776, %v5333, 0
      %v5392 = vsel %vm776, %v5387, 0
      %5394 = vmatprep.subr.bf16.mxu0 0
      %5395 = vmatpush1.bf16.xpose.msra.mxu0 %v5392
      %5396 = vmatprep.subr.bf16.mxu0 0
      %5397 = vmatpush1.bf16.xpose.msra.mxu0 0
      %5398 = vmatprep.subr.bf16.mxu0 0
      %5399 = vmatpush1.bf16.xpose.msra.mxu0 0
      %5400 = vmatprep.subr.bf16.mxu0 0
      %5401 = vmatpush1.bf16.xpose.msra.mxu0 0
      %5402 = vmatprep.subr.bf16.mxu0 0
      %5403 = vmatpush1.bf16.xpose.msra.mxu0 0
      %5404 = vmatprep.subr.bf16.mxu0 0
      %5405 = vmatpush1.bf16.xpose.msra.mxu0 0
      %5406 = vmatprep.subr.bf16.mxu0 0
      %5407 = vmatpush1.bf16.xpose.msra.mxu0 0
      %5408 = vmatprep.subr.bf16.mxu0 0
      %5409 = vmatpush1.bf16.xpose.msra.mxu0 0
      %5410 = vmatprep.subr.bf16.mxu0 0
      %5411 = vmatpush1.bf16.xpose.msra.mxu0 0
      %5412 = vmatprep.subr.bf16.mxu0 0
      %5413 = vmatpush1.bf16.xpose.msra.mxu0 0
      %5414 = vmatprep.subr.bf16.mxu0 0
      %5415 = vmatpush1.bf16.xpose.msra.mxu0 0
      %5416 = vmatprep.subr.bf16.mxu0 0
      %5417 = vmatpush1.bf16.xpose.msra.mxu0 0
      %5418 = vmatprep.subr.bf16.mxu0 0
      %5419 = vmatpush1.bf16.xpose.msra.mxu0 0
      %5420 = vmatprep.subr.bf16.mxu0 0
      %5421 = vmatpush1.bf16.xpose.msra.mxu0 0
      %5422 = vmatprep.subr.bf16.mxu0 0
      %5423 = vmatpush1.bf16.xpose.msra.mxu0 0
      %5424 = vmatprep.subr.bf16.mxu0 0
      %5425 = vmatpush1.bf16.xpose.msra.mxu0 0
      %5426 = vmatprep.mubr.bf16.mxu0 0
      %5427 = vmatmul.mubr.bf16.gmra.mrb[0].mxu0 %v5389
      %v5428 = vpop.f32.mrb[0].mxu0
      %v5429 = vadd.f32 0.0, %v5428
      %v5430 = vpop.f32.mrb[0].mxu0
      %v5431 = vpop.f32.mrb[0].mxu0
      %v5432 = vpop.f32.mrb[0].mxu0
      %5433 = vdwg.mxu0
      %5435 = vrot.lane.b32.xlu0 %v5334, 120
      %v5436 = vpop.permute.xlu0 %5435
      %v5438 = vsel %vm776, %v5334, 0
      %v5441 = vsel %vm776, %v5436, 0
      %5443 = vmatprep.subr.bf16.mxu0 0
      %5444 = vmatpush1.bf16.xpose.msra.mxu0 %v5441
      %5445 = vmatprep.subr.bf16.mxu0 0
      %5446 = vmatpush1.bf16.xpose.msra.mxu0 0
      %5447 = vmatprep.subr.bf16.mxu0 0
      %5448 = vmatpush1.bf16.xpose.msra.mxu0 0
      %5449 = vmatprep.subr.bf16.mxu0 0
      %5450 = vmatpush1.bf16.xpose.msra.mxu0 0
      %5451 = vmatprep.subr.bf16.mxu0 0
      %5452 = vmatpush1.bf16.xpose.msra.mxu0 0
      %5453 = vmatprep.subr.bf16.mxu0 0
      %5454 = vmatpush1.bf16.xpose.msra.mxu0 0
      %5455 = vmatprep.subr.bf16.mxu0 0
      %5456 = vmatpush1.bf16.xpose.msra.mxu0 0
      %5457 = vmatprep.subr.bf16.mxu0 0
      %5458 = vmatpush1.bf16.xpose.msra.mxu0 0
      %5459 = vmatprep.subr.bf16.mxu0 0
      %5460 = vmatpush1.bf16.xpose.msra.mxu0 0
      %5461 = vmatprep.subr.bf16.mxu0 0
      %5462 = vmatpush1.bf16.xpose.msra.mxu0 0
      %5463 = vmatprep.subr.bf16.mxu0 0
      %5464 = vmatpush1.bf16.xpose.msra.mxu0 0
      %5465 = vmatprep.subr.bf16.mxu0 0
      %5466 = vmatpush1.bf16.xpose.msra.mxu0 0
      %5467 = vmatprep.subr.bf16.mxu0 0
      %5468 = vmatpush1.bf16.xpose.msra.mxu0 0
      %5469 = vmatprep.subr.bf16.mxu0 0
      %5470 = vmatpush1.bf16.xpose.msra.mxu0 0
      %5471 = vmatprep.subr.bf16.mxu0 0
      %5472 = vmatpush1.bf16.xpose.msra.mxu0 0
      %5473 = vmatprep.subr.bf16.mxu0 0
      %5474 = vmatpush1.bf16.xpose.msra.mxu0 0
      %5475 = vmatprep.mubr.bf16.mxu0 0
      %5476 = vmatmul.mubr.bf16.gmra.mrb[0].mxu0 %v5438
      %v5477 = vpop.f32.mrb[0].mxu0
      %v5478 = vadd.f32 0.0, %v5477
      %v5479 = vpop.f32.mrb[0].mxu0
      %v5480 = vpop.f32.mrb[0].mxu0
      %v5481 = vpop.f32.mrb[0].mxu0
      %5482 = vdwg.mxu0
      %5484 = vrot.lane.b32.xlu0 %v5335, 120
      %v5485 = vpop.permute.xlu0 %5484
      %v5487 = vsel %vm776, %v5335, 0
      %v5490 = vsel %vm776, %v5485, 0
      %5492 = vmatprep.subr.bf16.mxu0 0
      %5493 = vmatpush1.bf16.xpose.msra.mxu0 %v5490
      %5494 = vmatprep.subr.bf16.mxu0 0
      %5495 = vmatpush1.bf16.xpose.msra.mxu0 0
      %5496 = vmatprep.subr.bf16.mxu0 0
      %5497 = vmatpush1.bf16.xpose.msra.mxu0 0
      %5498 = vmatprep.subr.bf16.mxu0 0
      %5499 = vmatpush1.bf16.xpose.msra.mxu0 0
      %5500 = vmatprep.subr.bf16.mxu0 0
      %5501 = vmatpush1.bf16.xpose.msra.mxu0 0
      %5502 = vmatprep.subr.bf16.mxu0 0
      %5503 = vmatpush1.bf16.xpose.msra.mxu0 0
      %5504 = vmatprep.subr.bf16.mxu0 0
      %5505 = vmatpush1.bf16.xpose.msra.mxu0 0
      %5506 = vmatprep.subr.bf16.mxu0 0
      %5507 = vmatpush1.bf16.xpose.msra.mxu0 0
      %5508 = vmatprep.subr.bf16.mxu0 0
      %5509 = vmatpush1.bf16.xpose.msra.mxu0 0
      %5510 = vmatprep.subr.bf16.mxu0 0
      %5511 = vmatpush1.bf16.xpose.msra.mxu0 0
      %5512 = vmatprep.subr.bf16.mxu0 0
      %5513 = vmatpush1.bf16.xpose.msra.mxu0 0
      %5514 = vmatprep.subr.bf16.mxu0 0
      %5515 = vmatpush1.bf16.xpose.msra.mxu0 0
      %5516 = vmatprep.subr.bf16.mxu0 0
      %5517 = vmatpush1.bf16.xpose.msra.mxu0 0
      %5518 = vmatprep.subr.bf16.mxu0 0
      %5519 = vmatpush1.bf16.xpose.msra.mxu0 0
      %5520 = vmatprep.subr.bf16.mxu0 0
      %5521 = vmatpush1.bf16.xpose.msra.mxu0 0
      %5522 = vmatprep.subr.bf16.mxu0 0
      %5523 = vmatpush1.bf16.xpose.msra.mxu0 0
      %5524 = vmatprep.mubr.bf16.mxu0 0
      %5525 = vmatmul.mubr.bf16.gmra.mrb[0].mxu0 %v5487
      %v5526 = vpop.f32.mrb[0].mxu0
      %v5527 = vadd.f32 0.0, %v5526
      %v5528 = vpop.f32.mrb[0].mxu0
      %v5529 = vpop.f32.mrb[0].mxu0
      %v5530 = vpop.f32.mrb[0].mxu0
      %5531 = vdwg.mxu0
      %v5532 = vmul.f32 %v5380, 0.35355338
      %v5533 = vmul.f32 %v5429, 0.35355338
      %v5534 = vmul.f32 %v5478, 0.35355338
      %v5535 = vmul.f32 %v5527, 0.35355338
      %v5536 = vadd.f32 %v5532, %v461
      %v5537 = vadd.f32 %v5533, %v461
      %v5538 = vadd.f32 %v5534, %v461
      %v5539 = vadd.f32 %v5535, %v461
      %v5540 = vsel %vm776, %v5536, -inf
      %5541 = vmax.xlane.f32.xlu0 %v5540
      %v5542 = vpop.xlane.xlu0 %5541
      %v5543 = vsel %vm776, %v5537, -inf
      %5544 = vmax.xlane.f32.xlu0 %v5543
      %v5545 = vpop.xlane.xlu0 %5544
      %v5546 = vsel %vm776, %v5538, -inf
      %5547 = vmax.xlane.f32.xlu0 %v5546
      %v5548 = vpop.xlane.xlu0 %5547
      %v5549 = vsel %vm776, %v5539, -inf
      %5550 = vmax.xlane.f32.xlu0 %v5549
      %v5551 = vpop.xlane.xlu0 %5550
      %v5552 = vsub.f32 %v5536, %v5542
      %v5553 = vsub.f32 %v5537, %v5545
      %v5554 = vsub.f32 %v5538, %v5548
      %v5555 = vsub.f32 %v5539, %v5551
      %v5556 = vmul.f32 %v5552, 1.442695
      %v5557 = vpow.pop %v5556
      %v5558 = vmul.f32 %v5553, 1.442695
      %v5559 = vpow.pop %v5558
      %v5560 = vmul.f32 %v5554, 1.442695
      %v5561 = vpow.pop %v5560
      %v5562 = vmul.f32 %v5555, 1.442695
      %v5563 = vpow.pop %v5562
      %v5564 = vsel %vm776, %v5557, 0.0
      %5565 = vadd.xlane.f32.xlu0 %v5564
      %v5566 = vpop.xlane.xlu0 %5565
      %v5567 = vsel %vm776, %v5559, 0.0
      %5568 = vadd.xlane.f32.xlu0 %v5567
      %v5569 = vpop.xlane.xlu0 %5568
      %v5570 = vsel %vm776, %v5561, 0.0
      %5571 = vadd.xlane.f32.xlu0 %v5570
      %v5572 = vpop.xlane.xlu0 %5571
      %v5573 = vsel %vm776, %v5563, 0.0
      %5574 = vadd.xlane.f32.xlu0 %v5573
      %v5575 = vpop.xlane.xlu0 %5574
      %v5576 = vrcp.pop %v5566
      %v5577 = vrcp.pop %v5569
      %v5578 = vrcp.pop %v5572
      %v5579 = vrcp.pop %v5575
      %v5580 = vmul.f32 %v5557, %v5576
      %v5581 = vmul.f32 %v5559, %v5577
      %v5582 = vmul.f32 %v5561, %v5578
      %v5583 = vmul.f32 %v5563, %v5579
      %v5584 = vpack.c.bf16 %v5580, %v5580
      %v5585 = vpack.c.bf16 %v5581, %v5581
      %v5586 = vpack.c.bf16 %v5582, %v5582
      %v5587 = vpack.c.bf16 %v5583, %v5583
      %5588 = vrot.lane.b32.xlu0 %v5332, 112
      %v5589 = vpop.permute.xlu0 %5588
      %v5591 = vsel %vm776, %v5584, 0
      %v5594 = vsel %vm1037, %v5589, 0
      %5596 = vmatprep.subr.bf16.mxu0 0
      %5597 = vmatpush1.bf16.msra.mxu0 %v5594
      %5598 = vmatprep.subr.bf16.mxu0 0
      %5599 = vmatpush1.bf16.msra.mxu0 0
      %5600 = vmatprep.subr.bf16.mxu0 0
      %5601 = vmatpush1.bf16.msra.mxu0 0
      %5602 = vmatprep.subr.bf16.mxu0 0
      %5603 = vmatpush1.bf16.msra.mxu0 0
      %5604 = vmatprep.subr.bf16.mxu0 0
      %5605 = vmatpush1.bf16.msra.mxu0 0
      %5606 = vmatprep.subr.bf16.mxu0 0
      %5607 = vmatpush1.bf16.msra.mxu0 0
      %5608 = vmatprep.subr.bf16.mxu0 0
      %5609 = vmatpush1.bf16.msra.mxu0 0
      %5610 = vmatprep.subr.bf16.mxu0 0
      %5611 = vmatpush1.bf16.msra.mxu0 0
      %5612 = vmatprep.subr.bf16.mxu0 0
      %5613 = vmatpush1.bf16.msra.mxu0 0
      %5614 = vmatprep.subr.bf16.mxu0 0
      %5615 = vmatpush1.bf16.msra.mxu0 0
      %5616 = vmatprep.subr.bf16.mxu0 0
      %5617 = vmatpush1.bf16.msra.mxu0 0
      %5618 = vmatprep.subr.bf16.mxu0 0
      %5619 = vmatpush1.bf16.msra.mxu0 0
      %5620 = vmatprep.subr.bf16.mxu0 0
      %5621 = vmatpush1.bf16.msra.mxu0 0
      %5622 = vmatprep.subr.bf16.mxu0 0
      %5623 = vmatpush1.bf16.msra.mxu0 0
      %5624 = vmatprep.subr.bf16.mxu0 0
      %5625 = vmatpush1.bf16.msra.mxu0 0
      %5626 = vmatprep.subr.bf16.mxu0 0
      %5627 = vmatpush1.bf16.msra.mxu0 0
      %5628 = vmatprep.mubr.bf16.mxu0 0
      %5629 = vmatmul.mubr.bf16.gmra.mrb[0].mxu0 %v5591
      %v5630 = vpop.f32.mrb[0].mxu0
      %v5631 = vadd.f32 0.0, %v5630
      %v5632 = vpop.f32.mrb[0].mxu0
      %v5633 = vpop.f32.mrb[0].mxu0
      %v5634 = vpop.f32.mrb[0].mxu0
      %5635 = vdwg.mxu0
      %5636 = vrot.lane.b32.xlu0 %v5333, 112
      %v5637 = vpop.permute.xlu0 %5636
      %v5639 = vsel %vm776, %v5585, 0
      %v5642 = vsel %vm1037, %v5637, 0
      %5644 = vmatprep.subr.bf16.mxu0 0
      %5645 = vmatpush1.bf16.msra.mxu0 %v5642
      %5646 = vmatprep.subr.bf16.mxu0 0
      %5647 = vmatpush1.bf16.msra.mxu0 0
      %5648 = vmatprep.subr.bf16.mxu0 0
      %5649 = vmatpush1.bf16.msra.mxu0 0
      %5650 = vmatprep.subr.bf16.mxu0 0
      %5651 = vmatpush1.bf16.msra.mxu0 0
      %5652 = vmatprep.subr.bf16.mxu0 0
      %5653 = vmatpush1.bf16.msra.mxu0 0
      %5654 = vmatprep.subr.bf16.mxu0 0
      %5655 = vmatpush1.bf16.msra.mxu0 0
      %5656 = vmatprep.subr.bf16.mxu0 0
      %5657 = vmatpush1.bf16.msra.mxu0 0
      %5658 = vmatprep.subr.bf16.mxu0 0
      %5659 = vmatpush1.bf16.msra.mxu0 0
      %5660 = vmatprep.subr.bf16.mxu0 0
      %5661 = vmatpush1.bf16.msra.mxu0 0
      %5662 = vmatprep.subr.bf16.mxu0 0
      %5663 = vmatpush1.bf16.msra.mxu0 0
      %5664 = vmatprep.subr.bf16.mxu0 0
      %5665 = vmatpush1.bf16.msra.mxu0 0
      %5666 = vmatprep.subr.bf16.mxu0 0
      %5667 = vmatpush1.bf16.msra.mxu0 0
      %5668 = vmatprep.subr.bf16.mxu0 0
      %5669 = vmatpush1.bf16.msra.mxu0 0
      %5670 = vmatprep.subr.bf16.mxu0 0
      %5671 = vmatpush1.bf16.msra.mxu0 0
      %5672 = vmatprep.subr.bf16.mxu0 0
      %5673 = vmatpush1.bf16.msra.mxu0 0
      %5674 = vmatprep.subr.bf16.mxu0 0
      %5675 = vmatpush1.bf16.msra.mxu0 0
      %5676 = vmatprep.mubr.bf16.mxu0 0
      %5677 = vmatmul.mubr.bf16.gmra.mrb[0].mxu0 %v5639
      %v5678 = vpop.f32.mrb[0].mxu0
      %v5679 = vadd.f32 0.0, %v5678
      %v5680 = vpop.f32.mrb[0].mxu0
      %v5681 = vpop.f32.mrb[0].mxu0
      %v5682 = vpop.f32.mrb[0].mxu0
      %5683 = vdwg.mxu0
      %5684 = vrot.lane.b32.xlu0 %v5334, 112
      %v5685 = vpop.permute.xlu0 %5684
      %v5687 = vsel %vm776, %v5586, 0
      %v5690 = vsel %vm1037, %v5685, 0
      %5692 = vmatprep.subr.bf16.mxu0 0
      %5693 = vmatpush1.bf16.msra.mxu0 %v5690
      %5694 = vmatprep.subr.bf16.mxu0 0
      %5695 = vmatpush1.bf16.msra.mxu0 0
      %5696 = vmatprep.subr.bf16.mxu0 0
      %5697 = vmatpush1.bf16.msra.mxu0 0
      %5698 = vmatprep.subr.bf16.mxu0 0
      %5699 = vmatpush1.bf16.msra.mxu0 0
      %5700 = vmatprep.subr.bf16.mxu0 0
      %5701 = vmatpush1.bf16.msra.mxu0 0
      %5702 = vmatprep.subr.bf16.mxu0 0
      %5703 = vmatpush1.bf16.msra.mxu0 0
      %5704 = vmatprep.subr.bf16.mxu0 0
      %5705 = vmatpush1.bf16.msra.mxu0 0
      %5706 = vmatprep.subr.bf16.mxu0 0
      %5707 = vmatpush1.bf16.msra.mxu0 0
      %5708 = vmatprep.subr.bf16.mxu0 0
      %5709 = vmatpush1.bf16.msra.mxu0 0
      %5710 = vmatprep.subr.bf16.mxu0 0
      %5711 = vmatpush1.bf16.msra.mxu0 0
      %5712 = vmatprep.subr.bf16.mxu0 0
      %5713 = vmatpush1.bf16.msra.mxu0 0
      %5714 = vmatprep.subr.bf16.mxu0 0
      %5715 = vmatpush1.bf16.msra.mxu0 0
      %5716 = vmatprep.subr.bf16.mxu0 0
      %5717 = vmatpush1.bf16.msra.mxu0 0
      %5718 = vmatprep.subr.bf16.mxu0 0
      %5719 = vmatpush1.bf16.msra.mxu0 0
      %5720 = vmatprep.subr.bf16.mxu0 0
      %5721 = vmatpush1.bf16.msra.mxu0 0
      %5722 = vmatprep.subr.bf16.mxu0 0
      %5723 = vmatpush1.bf16.msra.mxu0 0
      %5724 = vmatprep.mubr.bf16.mxu0 0
      %5725 = vmatmul.mubr.bf16.gmra.mrb[0].mxu0 %v5687
      %v5726 = vpop.f32.mrb[0].mxu0
      %v5727 = vadd.f32 0.0, %v5726
      %v5728 = vpop.f32.mrb[0].mxu0
      %v5729 = vpop.f32.mrb[0].mxu0
      %v5730 = vpop.f32.mrb[0].mxu0
      %5731 = vdwg.mxu0
      %5732 = vrot.lane.b32.xlu0 %v5335, 112
      %v5733 = vpop.permute.xlu0 %5732
      %v5735 = vsel %vm776, %v5587, 0
      %v5738 = vsel %vm1037, %v5733, 0
      %5740 = vmatprep.subr.bf16.mxu0 0
      %5741 = vmatpush1.bf16.msra.mxu0 %v5738
      %5742 = vmatprep.subr.bf16.mxu0 0
      %5743 = vmatpush1.bf16.msra.mxu0 0
      %5744 = vmatprep.subr.bf16.mxu0 0
      %5745 = vmatpush1.bf16.msra.mxu0 0
      %5746 = vmatprep.subr.bf16.mxu0 0
      %5747 = vmatpush1.bf16.msra.mxu0 0
      %5748 = vmatprep.subr.bf16.mxu0 0
      %5749 = vmatpush1.bf16.msra.mxu0 0
      %5750 = vmatprep.subr.bf16.mxu0 0
      %5751 = vmatpush1.bf16.msra.mxu0 0
      %5752 = vmatprep.subr.bf16.mxu0 0
      %5753 = vmatpush1.bf16.msra.mxu0 0
      %5754 = vmatprep.subr.bf16.mxu0 0
      %5755 = vmatpush1.bf16.msra.mxu0 0
      %5756 = vmatprep.subr.bf16.mxu0 0
      %5757 = vmatpush1.bf16.msra.mxu0 0
      %5758 = vmatprep.subr.bf16.mxu0 0
      %5759 = vmatpush1.bf16.msra.mxu0 0
      %5760 = vmatprep.subr.bf16.mxu0 0
      %5761 = vmatpush1.bf16.msra.mxu0 0
      %5762 = vmatprep.subr.bf16.mxu0 0
      %5763 = vmatpush1.bf16.msra.mxu0 0
      %5764 = vmatprep.subr.bf16.mxu0 0
      %5765 = vmatpush1.bf16.msra.mxu0 0
      %5766 = vmatprep.subr.bf16.mxu0 0
      %5767 = vmatpush1.bf16.msra.mxu0 0
      %5768 = vmatprep.subr.bf16.mxu0 0
      %5769 = vmatpush1.bf16.msra.mxu0 0
      %5770 = vmatprep.subr.bf16.mxu0 0
      %5771 = vmatpush1.bf16.msra.mxu0 0
      %5772 = vmatprep.mubr.bf16.mxu0 0
      %5773 = vmatmul.mubr.bf16.gmra.mrb[0].mxu0 %v5735
      %v5774 = vpop.f32.mrb[0].mxu0
      %v5775 = vadd.f32 0.0, %v5774
      %v5776 = vpop.f32.mrb[0].mxu0
      %v5777 = vpop.f32.mrb[0].mxu0
      %v5778 = vpop.f32.mrb[0].mxu0
      %5779 = vdwg.mxu0
      %v5780 = vpack.c.bf16 %v5631, %v5631
      %v5781 = vpack.c.bf16 %v5679, %v5679
      %v5782 = vpack.c.bf16 %v5727, %v5727
      %v5783 = vpack.c.bf16 %v5775, %v5775
      %v5785 = vunpack.c.l.b16 %v5023
      %v5786 = vpack.c.b16 %v5785, %v5785
      %5787 = vrot.lane.b32.xlu0 %v5786, 96
      %v5788 = vpop.permute.xlu0 %5787
      %v5790 = vsel %vm776, %v5780, 0
      %v5793 = vsel %vm1037, %v5788, 0
      %5795 = vmatprep.subr.bf16.mxu0 0
      %5796 = vmatpush1.bf16.msra.mxu0 %v5793
      %5797 = vmatprep.subr.bf16.mxu0 0
      %5798 = vmatpush1.bf16.msra.mxu0 0
      %5799 = vmatprep.subr.bf16.mxu0 0
      %5800 = vmatpush1.bf16.msra.mxu0 0
      %5801 = vmatprep.subr.bf16.mxu0 0
      %5802 = vmatpush1.bf16.msra.mxu0 0
      %5803 = vmatprep.subr.bf16.mxu0 0
      %5804 = vmatpush1.bf16.msra.mxu0 0
      %5805 = vmatprep.subr.bf16.mxu0 0
      %5806 = vmatpush1.bf16.msra.mxu0 0
      %5807 = vmatprep.subr.bf16.mxu0 0
      %5808 = vmatpush1.bf16.msra.mxu0 0
      %5809 = vmatprep.subr.bf16.mxu0 0
      %5810 = vmatpush1.bf16.msra.mxu0 0
      %5811 = vmatprep.subr.bf16.mxu0 0
      %5812 = vmatpush1.bf16.msra.mxu0 0
      %5813 = vmatprep.subr.bf16.mxu0 0
      %5814 = vmatpush1.bf16.msra.mxu0 0
      %5815 = vmatprep.subr.bf16.mxu0 0
      %5816 = vmatpush1.bf16.msra.mxu0 0
      %5817 = vmatprep.subr.bf16.mxu0 0
      %5818 = vmatpush1.bf16.msra.mxu0 0
      %5819 = vmatprep.subr.bf16.mxu0 0
      %5820 = vmatpush1.bf16.msra.mxu0 0
      %5821 = vmatprep.subr.bf16.mxu0 0
      %5822 = vmatpush1.bf16.msra.mxu0 0
      %5823 = vmatprep.subr.bf16.mxu0 0
      %5824 = vmatpush1.bf16.msra.mxu0 0
      %5825 = vmatprep.subr.bf16.mxu0 0
      %5826 = vmatpush1.bf16.msra.mxu0 0
      %5827 = vmatprep.mubr.bf16.mxu0 0
      %5828 = vmatmul.mubr.bf16.gmra.mrb[0].mxu0 %v5790
      %v5829 = vpop.f32.mrb[0].mxu0
      %v5830 = vadd.f32 0.0, %v5829
      %v5831 = vpop.f32.mrb[0].mxu0
      %v5832 = vpop.f32.mrb[0].mxu0
      %v5833 = vpop.f32.mrb[0].mxu0
      %5834 = vdwg.mxu0
      %v5836 = vunpack.c.l.b16 %v5024
      %v5837 = vpack.c.b16 %v5836, %v5836
      %5838 = vrot.lane.b32.xlu0 %v5837, 96
      %v5839 = vpop.permute.xlu0 %5838
      %v5841 = vsel %vm776, %v5781, 0
      %v5844 = vsel %vm1037, %v5839, 0
      %5846 = vmatprep.subr.bf16.mxu0 0
      %5847 = vmatpush1.bf16.msra.mxu0 %v5844
      %5848 = vmatprep.subr.bf16.mxu0 0
      %5849 = vmatpush1.bf16.msra.mxu0 0
      %5850 = vmatprep.subr.bf16.mxu0 0
      %5851 = vmatpush1.bf16.msra.mxu0 0
      %5852 = vmatprep.subr.bf16.mxu0 0
      %5853 = vmatpush1.bf16.msra.mxu0 0
      %5854 = vmatprep.subr.bf16.mxu0 0
      %5855 = vmatpush1.bf16.msra.mxu0 0
      %5856 = vmatprep.subr.bf16.mxu0 0
      %5857 = vmatpush1.bf16.msra.mxu0 0
      %5858 = vmatprep.subr.bf16.mxu0 0
      %5859 = vmatpush1.bf16.msra.mxu0 0
      %5860 = vmatprep.subr.bf16.mxu0 0
      %5861 = vmatpush1.bf16.msra.mxu0 0
      %5862 = vmatprep.subr.bf16.mxu0 0
      %5863 = vmatpush1.bf16.msra.mxu0 0
      %5864 = vmatprep.subr.bf16.mxu0 0
      %5865 = vmatpush1.bf16.msra.mxu0 0
      %5866 = vmatprep.subr.bf16.mxu0 0
      %5867 = vmatpush1.bf16.msra.mxu0 0
      %5868 = vmatprep.subr.bf16.mxu0 0
      %5869 = vmatpush1.bf16.msra.mxu0 0
      %5870 = vmatprep.subr.bf16.mxu0 0
      %5871 = vmatpush1.bf16.msra.mxu0 0
      %5872 = vmatprep.subr.bf16.mxu0 0
      %5873 = vmatpush1.bf16.msra.mxu0 0
      %5874 = vmatprep.subr.bf16.mxu0 0
      %5875 = vmatpush1.bf16.msra.mxu0 0
      %5876 = vmatprep.subr.bf16.mxu0 0
      %5877 = vmatpush1.bf16.msra.mxu0 0
      %5878 = vmatprep.mubr.bf16.mxu0 0
      %5879 = vmatmul.mubr.bf16.gmra.mrb[0].mxu0 %v5841
      %v5880 = vpop.f32.mrb[0].mxu0
      %v5881 = vadd.f32 0.0, %v5880
      %v5882 = vpop.f32.mrb[0].mxu0
      %v5883 = vpop.f32.mrb[0].mxu0
      %v5884 = vpop.f32.mrb[0].mxu0
      %5885 = vdwg.mxu0
      %v5887 = vunpack.c.l.b16 %v5025
      %v5888 = vpack.c.b16 %v5887, %v5887
      %5889 = vrot.lane.b32.xlu0 %v5888, 96
      %v5890 = vpop.permute.xlu0 %5889
      %v5892 = vsel %vm776, %v5782, 0
      %v5895 = vsel %vm1037, %v5890, 0
      %5897 = vmatprep.subr.bf16.mxu0 0
      %5898 = vmatpush1.bf16.msra.mxu0 %v5895
      %5899 = vmatprep.subr.bf16.mxu0 0
      %5900 = vmatpush1.bf16.msra.mxu0 0
      %5901 = vmatprep.subr.bf16.mxu0 0
      %5902 = vmatpush1.bf16.msra.mxu0 0
      %5903 = vmatprep.subr.bf16.mxu0 0
      %5904 = vmatpush1.bf16.msra.mxu0 0
      %5905 = vmatprep.subr.bf16.mxu0 0
      %5906 = vmatpush1.bf16.msra.mxu0 0
      %5907 = vmatprep.subr.bf16.mxu0 0
      %5908 = vmatpush1.bf16.msra.mxu0 0
      %5909 = vmatprep.subr.bf16.mxu0 0
      %5910 = vmatpush1.bf16.msra.mxu0 0
      %5911 = vmatprep.subr.bf16.mxu0 0
      %5912 = vmatpush1.bf16.msra.mxu0 0
      %5913 = vmatprep.subr.bf16.mxu0 0
      %5914 = vmatpush1.bf16.msra.mxu0 0
      %5915 = vmatprep.subr.bf16.mxu0 0
      %5916 = vmatpush1.bf16.msra.mxu0 0
      %5917 = vmatprep.subr.bf16.mxu0 0
      %5918 = vmatpush1.bf16.msra.mxu0 0
      %5919 = vmatprep.subr.bf16.mxu0 0
      %5920 = vmatpush1.bf16.msra.mxu0 0
      %5921 = vmatprep.subr.bf16.mxu0 0
      %5922 = vmatpush1.bf16.msra.mxu0 0
      %5923 = vmatprep.subr.bf16.mxu0 0
      %5924 = vmatpush1.bf16.msra.mxu0 0
      %5925 = vmatprep.subr.bf16.mxu0 0
      %5926 = vmatpush1.bf16.msra.mxu0 0
      %5927 = vmatprep.subr.bf16.mxu0 0
      %5928 = vmatpush1.bf16.msra.mxu0 0
      %5929 = vmatprep.mubr.bf16.mxu0 0
      %5930 = vmatmul.mubr.bf16.gmra.mrb[0].mxu0 %v5892
      %v5931 = vpop.f32.mrb[0].mxu0
      %v5932 = vadd.f32 0.0, %v5931
      %v5933 = vpop.f32.mrb[0].mxu0
      %v5934 = vpop.f32.mrb[0].mxu0
      %v5935 = vpop.f32.mrb[0].mxu0
      %5936 = vdwg.mxu0
      %v5938 = vunpack.c.l.b16 %v5026
      %v5939 = vpack.c.b16 %v5938, %v5938
      %5940 = vrot.lane.b32.xlu0 %v5939, 96
      %v5941 = vpop.permute.xlu0 %5940
      %v5943 = vsel %vm776, %v5783, 0
      %v5946 = vsel %vm1037, %v5941, 0
      %5948 = vmatprep.subr.bf16.mxu0 0
      %5949 = vmatpush1.bf16.msra.mxu0 %v5946
      %5950 = vmatprep.subr.bf16.mxu0 0
      %5951 = vmatpush1.bf16.msra.mxu0 0
      %5952 = vmatprep.subr.bf16.mxu0 0
      %5953 = vmatpush1.bf16.msra.mxu0 0
      %5954 = vmatprep.subr.bf16.mxu0 0
      %5955 = vmatpush1.bf16.msra.mxu0 0
      %5956 = vmatprep.subr.bf16.mxu0 0
      %5957 = vmatpush1.bf16.msra.mxu0 0
      %5958 = vmatprep.subr.bf16.mxu0 0
      %5959 = vmatpush1.bf16.msra.mxu0 0
      %5960 = vmatprep.subr.bf16.mxu0 0
      %5961 = vmatpush1.bf16.msra.mxu0 0
      %5962 = vmatprep.subr.bf16.mxu0 0
      %5963 = vmatpush1.bf16.msra.mxu0 0
      %5964 = vmatprep.subr.bf16.mxu0 0
      %5965 = vmatpush1.bf16.msra.mxu0 0
      %5966 = vmatprep.subr.bf16.mxu0 0
      %5967 = vmatpush1.bf16.msra.mxu0 0
      %5968 = vmatprep.subr.bf16.mxu0 0
      %5969 = vmatpush1.bf16.msra.mxu0 0
      %5970 = vmatprep.subr.bf16.mxu0 0
      %5971 = vmatpush1.bf16.msra.mxu0 0
      %5972 = vmatprep.subr.bf16.mxu0 0
      %5973 = vmatpush1.bf16.msra.mxu0 0
      %5974 = vmatprep.subr.bf16.mxu0 0
      %5975 = vmatpush1.bf16.msra.mxu0 0
      %5976 = vmatprep.subr.bf16.mxu0 0
      %5977 = vmatpush1.bf16.msra.mxu0 0
      %5978 = vmatprep.subr.bf16.mxu0 0
      %5979 = vmatpush1.bf16.msra.mxu0 0
      %5980 = vmatprep.mubr.bf16.mxu0 0
      %5981 = vmatmul.mubr.bf16.gmra.mrb[0].mxu0 %v5943
      %v5982 = vpop.f32.mrb[0].mxu0
      %v5983 = vadd.f32 0.0, %v5982
      %v5984 = vpop.f32.mrb[0].mxu0
      %v5985 = vpop.f32.mrb[0].mxu0
      %v5986 = vpop.f32.mrb[0].mxu0
      %5987 = vdwg.mxu0
      %v5988 = vsel %vm500, %v5830, 0.0
      %v5989 = vsel %vm500, %v5881, 0.0
      %v5990 = vadd.f32 %v5988, %v5989
      %v5991 = vsel %vm500, %v5932, 0.0
      %v5992 = vadd.f32 %v5990, %v5991
      %v5993 = vsel %vm500, %v5983, 0.0
      %v5994 = vadd.f32 %v5992, %v5993
      %v5995 = vlaneseq
      %v5996 = vshrl.u32 %v5995, 7
      %v5997 = vsub.s32 1, %v5996
      %v5998 = vrot.slane %v5040, %v5997
      %v5999 = vadd.f32 %v5994, %v5998
      %v6000 = vadd.f32 %v5002, %v5999
      %v6001 = vsel %vm500, %v6000, 0.0
      %6002 = vadd.xlane.f32.xlu0 %v6001
      %v6003 = vpop.xlane.xlu0 %6002
      %v6004 = vmul.f32 %v6003, %v504
      %v6005 = vsub.f32 %v6000, %v6004
      %v6006 = vmul.f32 %v6005, %v6005
      %v6007 = vsel %vm500, %v6006, 0.0
      %6008 = vadd.xlane.f32.xlu0 %v6007
      %v6009 = vpop.xlane.xlu0 %6008
      %v6010 = vmul.f32 %v6009, %v511
      %v6011 = vlaneseq
      %v6012 = vshrl.u32 %v6011, 7
      %v6013 = vsub.s32 2, %v6012
      %v6014 = vrot.slane %v5040, %v6013
      %v6015 = vmul.f32 %v6014, %v6005
      %v6016 = vrsqrt.pop %v6010
      %v6017 = vmul.f32 %v6010, %v6016
      %vm6018 = vcmp.eq.f32.partialorder %v6010, inf
      %v6019 = vsel %vm6018, %v6010, %v6017
      %vm6020 = vcmp.eq.f32.partialorder %v6010, 0.0
      %v6021 = vand.u32 %v6010, 2147483648
      %v6022 = vsel %vm6020, %v6021, %v6019
      %v6023 = vadd.f32 %v6022, 1e-06
      %v6024 = vrcp.pop %v6023
      %v6025 = vmul.f32 %v6015, %v6024
      %v6026 = vlaneseq
      %v6027 = vshrl.u32 %v6026, 7
      %v6028 = vsub.s32 3, %v6027
      %v6029 = vrot.slane %v5040, %v6028
      %v6030 = vadd.f32 %v6025, %v6029
      %v6031 = vpack.c.bf16 %v6030, %v6030
      %6032 = vrot.lane.b32.xlu0 %v5101, 80
      %v6033 = vpop.permute.xlu0 %6032
      %6034 = vrot.lane.b32.xlu0 %v5102, 80
      %v6035 = vpop.permute.xlu0 %6034
      %6038 = vrot.lane.b32.xlu0 %v5080, 80
      %v6039 = vpop.permute.xlu0 %6038
      %v6042 = vsel %vm500, %v6031, 0
      %6044 = vmatprep.subr.bf16.mxu0 0
      %6045 = vmatpush1.bf16.msra.mxu0 %v6033
      %6046 = vmatprep.subr.bf16.mxu0 0
      %6047 = vmatpush1.bf16.msra.mxu0 %v6035
      %6048 = vmatprep.subr.bf16.mxu0 0
      %6049 = vmatpush1.bf16.msra.mxu0 0
      %6050 = vmatprep.subr.bf16.mxu0 0
      %6051 = vmatpush1.bf16.msra.mxu0 0
      %6052 = vmatprep.subr.bf16.mxu0 0
      %6053 = vmatpush1.bf16.msra.mxu0 0
      %6054 = vmatprep.subr.bf16.mxu0 0
      %6055 = vmatpush1.bf16.msra.mxu0 0
      %6056 = vmatprep.subr.bf16.mxu0 0
      %6057 = vmatpush1.bf16.msra.mxu0 0
      %6058 = vmatprep.subr.bf16.mxu0 0
      %6059 = vmatpush1.bf16.msra.mxu0 0
      %6060 = vmatprep.subr.bf16.mxu0 0
      %6061 = vmatpush1.bf16.msra.mxu0 0
      %6062 = vmatprep.subr.bf16.mxu0 0
      %6063 = vmatpush1.bf16.msra.mxu0 0
      %6064 = vmatprep.subr.bf16.mxu0 0
      %6065 = vmatpush1.bf16.msra.mxu0 0
      %6066 = vmatprep.subr.bf16.mxu0 0
      %6067 = vmatpush1.bf16.msra.mxu0 0
      %6068 = vmatprep.subr.bf16.mxu0 0
      %6069 = vmatpush1.bf16.msra.mxu0 0
      %6070 = vmatprep.subr.bf16.mxu0 0
      %6071 = vmatpush1.bf16.msra.mxu0 0
      %6072 = vmatprep.subr.bf16.mxu0 0
      %6073 = vmatpush1.bf16.msra.mxu0 0
      %6074 = vmatprep.subr.bf16.mxu0 0
      %6075 = vmatpush1.bf16.msra.mxu0 0
      %6076 = vmatprep.mubr.bf16.mxu0 0
      %6077 = vmatmul.mubr.bf16.gmra.mrb[0].mxu0 %v6042
      %v6078 = vpop.f32.mrb[0].mxu0
      %v6079 = vadd.f32 %v6039, %v6078
      %v6080 = vpop.f32.mrb[0].mxu0
      %v6081 = vpop.f32.mrb[0].mxu0
      %v6082 = vpop.f32.mrb[0].mxu0
      %6083 = vdwg.mxu0
      %6084 = vrot.lane.b32.xlu0 %v5163, 80
      %v6085 = vpop.permute.xlu0 %6084
      %6086 = vrot.lane.b32.xlu0 %v5164, 80
      %v6087 = vpop.permute.xlu0 %6086
      %6090 = vrot.lane.b32.xlu0 %v5084, 80
      %v6091 = vpop.permute.xlu0 %6090
      %6093 = vmatprep.subr.bf16.mxu0 0
      %6094 = vmatpush1.bf16.msra.mxu0 %v6085
      %6095 = vmatprep.subr.bf16.mxu0 0
      %6096 = vmatpush1.bf16.msra.mxu0 %v6087
      %6097 = vmatprep.subr.bf16.mxu0 0
      %6098 = vmatpush1.bf16.msra.mxu0 0
      %6099 = vmatprep.subr.bf16.mxu0 0
      %6100 = vmatpush1.bf16.msra.mxu0 0
      %6101 = vmatprep.subr.bf16.mxu0 0
      %6102 = vmatpush1.bf16.msra.mxu0 0
      %6103 = vmatprep.subr.bf16.mxu0 0
      %6104 = vmatpush1.bf16.msra.mxu0 0
      %6105 = vmatprep.subr.bf16.mxu0 0
      %6106 = vmatpush1.bf16.msra.mxu0 0
      %6107 = vmatprep.subr.bf16.mxu0 0
      %6108 = vmatpush1.bf16.msra.mxu0 0
      %6109 = vmatprep.subr.bf16.mxu0 0
      %6110 = vmatpush1.bf16.msra.mxu0 0
      %6111 = vmatprep.subr.bf16.mxu0 0
      %6112 = vmatpush1.bf16.msra.mxu0 0
      %6113 = vmatprep.subr.bf16.mxu0 0
      %6114 = vmatpush1.bf16.msra.mxu0 0
      %6115 = vmatprep.subr.bf16.mxu0 0
      %6116 = vmatpush1.bf16.msra.mxu0 0
      %6117 = vmatprep.subr.bf16.mxu0 0
      %6118 = vmatpush1.bf16.msra.mxu0 0
      %6119 = vmatprep.subr.bf16.mxu0 0
      %6120 = vmatpush1.bf16.msra.mxu0 0
      %6121 = vmatprep.subr.bf16.mxu0 0
      %6122 = vmatpush1.bf16.msra.mxu0 0
      %6123 = vmatprep.subr.bf16.mxu0 0
      %6124 = vmatpush1.bf16.msra.mxu0 0
      %6125 = vmatprep.mubr.bf16.mxu0 0
      %6126 = vmatmul.mubr.bf16.gmra.mrb[0].mxu0 %v6042
      %v6127 = vpop.f32.mrb[0].mxu0
      %v6128 = vadd.f32 %v6091, %v6127
      %v6129 = vpop.f32.mrb[0].mxu0
      %v6130 = vpop.f32.mrb[0].mxu0
      %v6131 = vpop.f32.mrb[0].mxu0
      %6132 = vdwg.mxu0
      %6133 = vrot.lane.b32.xlu0 %v5222, 80
      %v6134 = vpop.permute.xlu0 %6133
      %6135 = vrot.lane.b32.xlu0 %v5223, 80
      %v6136 = vpop.permute.xlu0 %6135
      %6139 = vrot.lane.b32.xlu0 %v5088, 80
      %v6140 = vpop.permute.xlu0 %6139
      %6142 = vmatprep.subr.bf16.mxu0 0
      %6143 = vmatpush1.bf16.msra.mxu0 %v6134
      %6144 = vmatprep.subr.bf16.mxu0 0
      %6145 = vmatpush1.bf16.msra.mxu0 %v6136
      %6146 = vmatprep.subr.bf16.mxu0 0
      %6147 = vmatpush1.bf16.msra.mxu0 0
      %6148 = vmatprep.subr.bf16.mxu0 0
      %6149 = vmatpush1.bf16.msra.mxu0 0
      %6150 = vmatprep.subr.bf16.mxu0 0
      %6151 = vmatpush1.bf16.msra.mxu0 0
      %6152 = vmatprep.subr.bf16.mxu0 0
      %6153 = vmatpush1.bf16.msra.mxu0 0
      %6154 = vmatprep.subr.bf16.mxu0 0
      %6155 = vmatpush1.bf16.msra.mxu0 0
      %6156 = vmatprep.subr.bf16.mxu0 0
      %6157 = vmatpush1.bf16.msra.mxu0 0
      %6158 = vmatprep.subr.bf16.mxu0 0
      %6159 = vmatpush1.bf16.msra.mxu0 0
      %6160 = vmatprep.subr.bf16.mxu0 0
      %6161 = vmatpush1.bf16.msra.mxu0 0
      %6162 = vmatprep.subr.bf16.mxu0 0
      %6163 = vmatpush1.bf16.msra.mxu0 0
      %6164 = vmatprep.subr.bf16.mxu0 0
      %6165 = vmatpush1.bf16.msra.mxu0 0
      %6166 = vmatprep.subr.bf16.mxu0 0
      %6167 = vmatpush1.bf16.msra.mxu0 0
      %6168 = vmatprep.subr.bf16.mxu0 0
      %6169 = vmatpush1.bf16.msra.mxu0 0
      %6170 = vmatprep.subr.bf16.mxu0 0
      %6171 = vmatpush1.bf16.msra.mxu0 0
      %6172 = vmatprep.subr.bf16.mxu0 0
      %6173 = vmatpush1.bf16.msra.mxu0 0
      %6174 = vmatprep.mubr.bf16.mxu0 0
      %6175 = vmatmul.mubr.bf16.gmra.mrb[0].mxu0 %v6042
      %v6176 = vpop.f32.mrb[0].mxu0
      %v6177 = vadd.f32 %v6140, %v6176
      %v6178 = vpop.f32.mrb[0].mxu0
      %v6179 = vpop.f32.mrb[0].mxu0
      %v6180 = vpop.f32.mrb[0].mxu0
      %6181 = vdwg.mxu0
      %6182 = vrot.lane.b32.xlu0 %v5281, 80
      %v6183 = vpop.permute.xlu0 %6182
      %6184 = vrot.lane.b32.xlu0 %v5282, 80
      %v6185 = vpop.permute.xlu0 %6184
      %6188 = vrot.lane.b32.xlu0 %v5092, 80
      %v6189 = vpop.permute.xlu0 %6188
      %6191 = vmatprep.subr.bf16.mxu0 0
      %6192 = vmatpush1.bf16.msra.mxu0 %v6183
      %6193 = vmatprep.subr.bf16.mxu0 0
      %6194 = vmatpush1.bf16.msra.mxu0 %v6185
      %6195 = vmatprep.subr.bf16.mxu0 0
      %6196 = vmatpush1.bf16.msra.mxu0 0
      %6197 = vmatprep.subr.bf16.mxu0 0
      %6198 = vmatpush1.bf16.msra.mxu0 0
      %6199 = vmatprep.subr.bf16.mxu0 0
      %6200 = vmatpush1.bf16.msra.mxu0 0
      %6201 = vmatprep.subr.bf16.mxu0 0
      %6202 = vmatpush1.bf16.msra.mxu0 0
      %6203 = vmatprep.subr.bf16.mxu0 0
      %6204 = vmatpush1.bf16.msra.mxu0 0
      %6205 = vmatprep.subr.bf16.mxu0 0
      %6206 = vmatpush1.bf16.msra.mxu0 0
      %6207 = vmatprep.subr.bf16.mxu0 0
      %6208 = vmatpush1.bf16.msra.mxu0 0
      %6209 = vmatprep.subr.bf16.mxu0 0
      %6210 = vmatpush1.bf16.msra.mxu0 0
      %6211 = vmatprep.subr.bf16.mxu0 0
      %6212 = vmatpush1.bf16.msra.mxu0 0
      %6213 = vmatprep.subr.bf16.mxu0 0
      %6214 = vmatpush1.bf16.msra.mxu0 0
      %6215 = vmatprep.subr.bf16.mxu0 0
      %6216 = vmatpush1.bf16.msra.mxu0 0
      %6217 = vmatprep.subr.bf16.mxu0 0
      %6218 = vmatpush1.bf16.msra.mxu0 0
      %6219 = vmatprep.subr.bf16.mxu0 0
      %6220 = vmatpush1.bf16.msra.mxu0 0
      %6221 = vmatprep.subr.bf16.mxu0 0
      %6222 = vmatpush1.bf16.msra.mxu0 0
      %6223 = vmatprep.mubr.bf16.mxu0 0
      %6224 = vmatmul.mubr.bf16.gmra.mrb[0].mxu0 %v6042
      %v6225 = vpop.f32.mrb[0].mxu0
      %v6226 = vadd.f32 %v6189, %v6225
      %v6227 = vpop.f32.mrb[0].mxu0
      %v6228 = vpop.f32.mrb[0].mxu0
      %v6229 = vpop.f32.mrb[0].mxu0
      %6230 = vdwg.mxu0
      %6231 = vrot.lane.b32.xlu0 %v5101, 72
      %v6232 = vpop.permute.xlu0 %6231
      %6233 = vrot.lane.b32.xlu0 %v5102, 72
      %v6234 = vpop.permute.xlu0 %6233
      %6237 = vrot.lane.b32.xlu0 %v5080, 72
      %v6238 = vpop.permute.xlu0 %6237
      %6240 = vmatprep.subr.bf16.mxu0 0
      %6241 = vmatpush1.bf16.msra.mxu0 %v6232
      %6242 = vmatprep.subr.bf16.mxu0 0
      %6243 = vmatpush1.bf16.msra.mxu0 %v6234
      %6244 = vmatprep.subr.bf16.mxu0 0
      %6245 = vmatpush1.bf16.msra.mxu0 0
      %6246 = vmatprep.subr.bf16.mxu0 0
      %6247 = vmatpush1.bf16.msra.mxu0 0
      %6248 = vmatprep.subr.bf16.mxu0 0
      %6249 = vmatpush1.bf16.msra.mxu0 0
      %6250 = vmatprep.subr.bf16.mxu0 0
      %6251 = vmatpush1.bf16.msra.mxu0 0
      %6252 = vmatprep.subr.bf16.mxu0 0
      %6253 = vmatpush1.bf16.msra.mxu0 0
      %6254 = vmatprep.subr.bf16.mxu0 0
      %6255 = vmatpush1.bf16.msra.mxu0 0
      %6256 = vmatprep.subr.bf16.mxu0 0
      %6257 = vmatpush1.bf16.msra.mxu0 0
      %6258 = vmatprep.subr.bf16.mxu0 0
      %6259 = vmatpush1.bf16.msra.mxu0 0
      %6260 = vmatprep.subr.bf16.mxu0 0
      %6261 = vmatpush1.bf16.msra.mxu0 0
      %6262 = vmatprep.subr.bf16.mxu0 0
      %6263 = vmatpush1.bf16.msra.mxu0 0
      %6264 = vmatprep.subr.bf16.mxu0 0
      %6265 = vmatpush1.bf16.msra.mxu0 0
      %6266 = vmatprep.subr.bf16.mxu0 0
      %6267 = vmatpush1.bf16.msra.mxu0 0
      %6268 = vmatprep.subr.bf16.mxu0 0
      %6269 = vmatpush1.bf16.msra.mxu0 0
      %6270 = vmatprep.subr.bf16.mxu0 0
      %6271 = vmatpush1.bf16.msra.mxu0 0
      %6272 = vmatprep.mubr.bf16.mxu0 0
      %6273 = vmatmul.mubr.bf16.gmra.mrb[0].mxu0 %v3984
      %v6274 = vpop.f32.mrb[0].mxu0
      %v6275 = vadd.f32 %v6238, %v6274
      %v6276 = vpop.f32.mrb[0].mxu0
      %v6277 = vpop.f32.mrb[0].mxu0
      %v6278 = vpop.f32.mrb[0].mxu0
      %6279 = vdwg.mxu0
      %6280 = vrot.lane.b32.xlu0 %v5163, 72
      %v6281 = vpop.permute.xlu0 %6280
      %6282 = vrot.lane.b32.xlu0 %v5164, 72
      %v6283 = vpop.permute.xlu0 %6282
      %6286 = vrot.lane.b32.xlu0 %v5084, 72
      %v6287 = vpop.permute.xlu0 %6286
      %6289 = vmatprep.subr.bf16.mxu0 0
      %6290 = vmatpush1.bf16.msra.mxu0 %v6281
      %6291 = vmatprep.subr.bf16.mxu0 0
      %6292 = vmatpush1.bf16.msra.mxu0 %v6283
      %6293 = vmatprep.subr.bf16.mxu0 0
      %6294 = vmatpush1.bf16.msra.mxu0 0
      %6295 = vmatprep.subr.bf16.mxu0 0
      %6296 = vmatpush1.bf16.msra.mxu0 0
      %6297 = vmatprep.subr.bf16.mxu0 0
      %6298 = vmatpush1.bf16.msra.mxu0 0
      %6299 = vmatprep.subr.bf16.mxu0 0
      %6300 = vmatpush1.bf16.msra.mxu0 0
      %6301 = vmatprep.subr.bf16.mxu0 0
      %6302 = vmatpush1.bf16.msra.mxu0 0
      %6303 = vmatprep.subr.bf16.mxu0 0
      %6304 = vmatpush1.bf16.msra.mxu0 0
      %6305 = vmatprep.subr.bf16.mxu0 0
      %6306 = vmatpush1.bf16.msra.mxu0 0
      %6307 = vmatprep.subr.bf16.mxu0 0
      %6308 = vmatpush1.bf16.msra.mxu0 0
      %6309 = vmatprep.subr.bf16.mxu0 0
      %6310 = vmatpush1.bf16.msra.mxu0 0
      %6311 = vmatprep.subr.bf16.mxu0 0
      %6312 = vmatpush1.bf16.msra.mxu0 0
      %6313 = vmatprep.subr.bf16.mxu0 0
      %6314 = vmatpush1.bf16.msra.mxu0 0
      %6315 = vmatprep.subr.bf16.mxu0 0
      %6316 = vmatpush1.bf16.msra.mxu0 0
      %6317 = vmatprep.subr.bf16.mxu0 0
      %6318 = vmatpush1.bf16.msra.mxu0 0
      %6319 = vmatprep.subr.bf16.mxu0 0
      %6320 = vmatpush1.bf16.msra.mxu0 0
      %6321 = vmatprep.mubr.bf16.mxu0 0
      %6322 = vmatmul.mubr.bf16.gmra.mrb[0].mxu0 %v3984
      %v6323 = vpop.f32.mrb[0].mxu0
      %v6324 = vadd.f32 %v6287, %v6323
      %v6325 = vpop.f32.mrb[0].mxu0
      %v6326 = vpop.f32.mrb[0].mxu0
      %v6327 = vpop.f32.mrb[0].mxu0
      %6328 = vdwg.mxu0
      %6329 = vrot.lane.b32.xlu0 %v5222, 72
      %v6330 = vpop.permute.xlu0 %6329
      %6331 = vrot.lane.b32.xlu0 %v5223, 72
      %v6332 = vpop.permute.xlu0 %6331
      %6335 = vrot.lane.b32.xlu0 %v5088, 72
      %v6336 = vpop.permute.xlu0 %6335
      %6338 = vmatprep.subr.bf16.mxu0 0
      %6339 = vmatpush1.bf16.msra.mxu0 %v6330
      %6340 = vmatprep.subr.bf16.mxu0 0
      %6341 = vmatpush1.bf16.msra.mxu0 %v6332
      %6342 = vmatprep.subr.bf16.mxu0 0
      %6343 = vmatpush1.bf16.msra.mxu0 0
      %6344 = vmatprep.subr.bf16.mxu0 0
      %6345 = vmatpush1.bf16.msra.mxu0 0
      %6346 = vmatprep.subr.bf16.mxu0 0
      %6347 = vmatpush1.bf16.msra.mxu0 0
      %6348 = vmatprep.subr.bf16.mxu0 0
      %6349 = vmatpush1.bf16.msra.mxu0 0
      %6350 = vmatprep.subr.bf16.mxu0 0
      %6351 = vmatpush1.bf16.msra.mxu0 0
      %6352 = vmatprep.subr.bf16.mxu0 0
      %6353 = vmatpush1.bf16.msra.mxu0 0
      %6354 = vmatprep.subr.bf16.mxu0 0
      %6355 = vmatpush1.bf16.msra.mxu0 0
      %6356 = vmatprep.subr.bf16.mxu0 0
      %6357 = vmatpush1.bf16.msra.mxu0 0
      %6358 = vmatprep.subr.bf16.mxu0 0
      %6359 = vmatpush1.bf16.msra.mxu0 0
      %6360 = vmatprep.subr.bf16.mxu0 0
      %6361 = vmatpush1.bf16.msra.mxu0 0
      %6362 = vmatprep.subr.bf16.mxu0 0
      %6363 = vmatpush1.bf16.msra.mxu0 0
      %6364 = vmatprep.subr.bf16.mxu0 0
      %6365 = vmatpush1.bf16.msra.mxu0 0
      %6366 = vmatprep.subr.bf16.mxu0 0
      %6367 = vmatpush1.bf16.msra.mxu0 0
      %6368 = vmatprep.subr.bf16.mxu0 0
      %6369 = vmatpush1.bf16.msra.mxu0 0
      %6370 = vmatprep.mubr.bf16.mxu0 0
      %6371 = vmatmul.mubr.bf16.gmra.mrb[0].mxu0 %v3984
      %v6372 = vpop.f32.mrb[0].mxu0
      %v6373 = vadd.f32 %v6336, %v6372
      %v6374 = vpop.f32.mrb[0].mxu0
      %v6375 = vpop.f32.mrb[0].mxu0
      %v6376 = vpop.f32.mrb[0].mxu0
      %6377 = vdwg.mxu0
      %6378 = vrot.lane.b32.xlu0 %v5281, 72
      %v6379 = vpop.permute.xlu0 %6378
      %6380 = vrot.lane.b32.xlu0 %v5282, 72
      %v6381 = vpop.permute.xlu0 %6380
      %6384 = vrot.lane.b32.xlu0 %v5092, 72
      %v6385 = vpop.permute.xlu0 %6384
      %6387 = vmatprep.subr.bf16.mxu0 0
      %6388 = vmatpush1.bf16.msra.mxu0 %v6379
      %6389 = vmatprep.subr.bf16.mxu0 0
      %6390 = vmatpush1.bf16.msra.mxu0 %v6381
      %6391 = vmatprep.subr.bf16.mxu0 0
      %6392 = vmatpush1.bf16.msra.mxu0 0
      %6393 = vmatprep.subr.bf16.mxu0 0
      %6394 = vmatpush1.bf16.msra.mxu0 0
      %6395 = vmatprep.subr.bf16.mxu0 0
      %6396 = vmatpush1.bf16.msra.mxu0 0
      %6397 = vmatprep.subr.bf16.mxu0 0
      %6398 = vmatpush1.bf16.msra.mxu0 0
      %6399 = vmatprep.subr.bf16.mxu0 0
      %6400 = vmatpush1.bf16.msra.mxu0 0
      %6401 = vmatprep.subr.bf16.mxu0 0
      %6402 = vmatpush1.bf16.msra.mxu0 0
      %6403 = vmatprep.subr.bf16.mxu0 0
      %6404 = vmatpush1.bf16.msra.mxu0 0
      %6405 = vmatprep.subr.bf16.mxu0 0
      %6406 = vmatpush1.bf16.msra.mxu0 0
      %6407 = vmatprep.subr.bf16.mxu0 0
      %6408 = vmatpush1.bf16.msra.mxu0 0
      %6409 = vmatprep.subr.bf16.mxu0 0
      %6410 = vmatpush1.bf16.msra.mxu0 0
      %6411 = vmatprep.subr.bf16.mxu0 0
      %6412 = vmatpush1.bf16.msra.mxu0 0
      %6413 = vmatprep.subr.bf16.mxu0 0
      %6414 = vmatpush1.bf16.msra.mxu0 0
      %6415 = vmatprep.subr.bf16.mxu0 0
      %6416 = vmatpush1.bf16.msra.mxu0 0
      %6417 = vmatprep.subr.bf16.mxu0 0
      %6418 = vmatpush1.bf16.msra.mxu0 0
      %6419 = vmatprep.mubr.bf16.mxu0 0
      %6420 = vmatmul.mubr.bf16.gmra.mrb[0].mxu0 %v3984
      %v6421 = vpop.f32.mrb[0].mxu0
      %v6422 = vadd.f32 %v6385, %v6421
      %v6423 = vpop.f32.mrb[0].mxu0
      %v6424 = vpop.f32.mrb[0].mxu0
      %v6425 = vpop.f32.mrb[0].mxu0
      %6426 = vdwg.mxu0
      %v6427 = vpack.c.bf16 %v6079, %v6079
      %v6428 = vpack.c.bf16 %v6128, %v6128
      %v6429 = vpack.c.bf16 %v6177, %v6177
      %v6430 = vpack.c.bf16 %v6226, %v6226
      %v6431 = vpack.c.bf16 %v6275, %v6275
      %v6432 = vpack.c.bf16 %v6324, %v6324
      %v6433 = vpack.c.bf16 %v6373, %v6373
      %v6434 = vpack.c.bf16 %v6422, %v6422
      %v6436 = vsel %vm776, %v6427, 0
      %v6439 = vsel %vm776, %v6431, 0
      %6441 = vmatprep.subr.bf16.mxu0 0
      %6442 = vmatpush1.bf16.xpose.msra.mxu0 %v6439
      %6443 = vmatprep.subr.bf16.mxu0 0
      %6444 = vmatpush1.bf16.xpose.msra.mxu0 0
      %6445 = vmatprep.subr.bf16.mxu0 0
      %6446 = vmatpush1.bf16.xpose.msra.mxu0 0
      %6447 = vmatprep.subr.bf16.mxu0 0
      %6448 = vmatpush1.bf16.xpose.msra.mxu0 0
      %6449 = vmatprep.subr.bf16.mxu0 0
      %6450 = vmatpush1.bf16.xpose.msra.mxu0 0
      %6451 = vmatprep.subr.bf16.mxu0 0
      %6452 = vmatpush1.bf16.xpose.msra.mxu0 0
      %6453 = vmatprep.subr.bf16.mxu0 0
      %6454 = vmatpush1.bf16.xpose.msra.mxu0 0
      %6455 = vmatprep.subr.bf16.mxu0 0
      %6456 = vmatpush1.bf16.xpose.msra.mxu0 0
      %6457 = vmatprep.subr.bf16.mxu0 0
      %6458 = vmatpush1.bf16.xpose.msra.mxu0 0
      %6459 = vmatprep.subr.bf16.mxu0 0
      %6460 = vmatpush1.bf16.xpose.msra.mxu0 0
      %6461 = vmatprep.subr.bf16.mxu0 0
      %6462 = vmatpush1.bf16.xpose.msra.mxu0 0
      %6463 = vmatprep.subr.bf16.mxu0 0
      %6464 = vmatpush1.bf16.xpose.msra.mxu0 0
      %6465 = vmatprep.subr.bf16.mxu0 0
      %6466 = vmatpush1.bf16.xpose.msra.mxu0 0
      %6467 = vmatprep.subr.bf16.mxu0 0
      %6468 = vmatpush1.bf16.xpose.msra.mxu0 0
      %6469 = vmatprep.subr.bf16.mxu0 0
      %6470 = vmatpush1.bf16.xpose.msra.mxu0 0
      %6471 = vmatprep.subr.bf16.mxu0 0
      %6472 = vmatpush1.bf16.xpose.msra.mxu0 0
      %6473 = vmatprep.mubr.bf16.mxu0 0
      %6474 = vmatmul.mubr.bf16.gmra.mrb[0].mxu0 %v6436
      %v6475 = vpop.f32.mrb[0].mxu0
      %v6476 = vadd.f32 0.0, %v6475
      %v6477 = vpop.f32.mrb[0].mxu0
      %v6478 = vpop.f32.mrb[0].mxu0
      %v6479 = vpop.f32.mrb[0].mxu0
      %6480 = vdwg.mxu0
      %v6482 = vsel %vm776, %v6428, 0
      %v6485 = vsel %vm776, %v6432, 0
      %6487 = vmatprep.subr.bf16.mxu0 0
      %6488 = vmatpush1.bf16.xpose.msra.mxu0 %v6485
      %6489 = vmatprep.subr.bf16.mxu0 0
      %6490 = vmatpush1.bf16.xpose.msra.mxu0 0
      %6491 = vmatprep.subr.bf16.mxu0 0
      %6492 = vmatpush1.bf16.xpose.msra.mxu0 0
      %6493 = vmatprep.subr.bf16.mxu0 0
      %6494 = vmatpush1.bf16.xpose.msra.mxu0 0
      %6495 = vmatprep.subr.bf16.mxu0 0
      %6496 = vmatpush1.bf16.xpose.msra.mxu0 0
      %6497 = vmatprep.subr.bf16.mxu0 0
      %6498 = vmatpush1.bf16.xpose.msra.mxu0 0
      %6499 = vmatprep.subr.bf16.mxu0 0
      %6500 = vmatpush1.bf16.xpose.msra.mxu0 0
      %6501 = vmatprep.subr.bf16.mxu0 0
      %6502 = vmatpush1.bf16.xpose.msra.mxu0 0
      %6503 = vmatprep.subr.bf16.mxu0 0
      %6504 = vmatpush1.bf16.xpose.msra.mxu0 0
      %6505 = vmatprep.subr.bf16.mxu0 0
      %6506 = vmatpush1.bf16.xpose.msra.mxu0 0
      %6507 = vmatprep.subr.bf16.mxu0 0
      %6508 = vmatpush1.bf16.xpose.msra.mxu0 0
      %6509 = vmatprep.subr.bf16.mxu0 0
      %6510 = vmatpush1.bf16.xpose.msra.mxu0 0
      %6511 = vmatprep.subr.bf16.mxu0 0
      %6512 = vmatpush1.bf16.xpose.msra.mxu0 0
      %6513 = vmatprep.subr.bf16.mxu0 0
      %6514 = vmatpush1.bf16.xpose.msra.mxu0 0
      %6515 = vmatprep.subr.bf16.mxu0 0
      %6516 = vmatpush1.bf16.xpose.msra.mxu0 0
      %6517 = vmatprep.subr.bf16.mxu0 0
      %6518 = vmatpush1.bf16.xpose.msra.mxu0 0
      %6519 = vmatprep.mubr.bf16.mxu0 0
      %6520 = vmatmul.mubr.bf16.gmra.mrb[0].mxu0 %v6482
      %v6521 = vpop.f32.mrb[0].mxu0
      %v6522 = vadd.f32 0.0, %v6521
      %v6523 = vpop.f32.mrb[0].mxu0
      %v6524 = vpop.f32.mrb[0].mxu0
      %v6525 = vpop.f32.mrb[0].mxu0
      %6526 = vdwg.mxu0
      %v6528 = vsel %vm776, %v6429, 0
      %v6531 = vsel %vm776, %v6433, 0
      %6533 = vmatprep.subr.bf16.mxu0 0
      %6534 = vmatpush1.bf16.xpose.msra.mxu0 %v6531
      %6535 = vmatprep.subr.bf16.mxu0 0
      %6536 = vmatpush1.bf16.xpose.msra.mxu0 0
      %6537 = vmatprep.subr.bf16.mxu0 0
      %6538 = vmatpush1.bf16.xpose.msra.mxu0 0
      %6539 = vmatprep.subr.bf16.mxu0 0
      %6540 = vmatpush1.bf16.xpose.msra.mxu0 0
      %6541 = vmatprep.subr.bf16.mxu0 0
      %6542 = vmatpush1.bf16.xpose.msra.mxu0 0
      %6543 = vmatprep.subr.bf16.mxu0 0
      %6544 = vmatpush1.bf16.xpose.msra.mxu0 0
      %6545 = vmatprep.subr.bf16.mxu0 0
      %6546 = vmatpush1.bf16.xpose.msra.mxu0 0
      %6547 = vmatprep.subr.bf16.mxu0 0
      %6548 = vmatpush1.bf16.xpose.msra.mxu0 0
      %6549 = vmatprep.subr.bf16.mxu0 0
      %6550 = vmatpush1.bf16.xpose.msra.mxu0 0
      %6551 = vmatprep.subr.bf16.mxu0 0
      %6552 = vmatpush1.bf16.xpose.msra.mxu0 0
      %6553 = vmatprep.subr.bf16.mxu0 0
      %6554 = vmatpush1.bf16.xpose.msra.mxu0 0
      %6555 = vmatprep.subr.bf16.mxu0 0
      %6556 = vmatpush1.bf16.xpose.msra.mxu0 0
      %6557 = vmatprep.subr.bf16.mxu0 0
      %6558 = vmatpush1.bf16.xpose.msra.mxu0 0
      %6559 = vmatprep.subr.bf16.mxu0 0
      %6560 = vmatpush1.bf16.xpose.msra.mxu0 0
      %6561 = vmatprep.subr.bf16.mxu0 0
      %6562 = vmatpush1.bf16.xpose.msra.mxu0 0
      %6563 = vmatprep.subr.bf16.mxu0 0
      %6564 = vmatpush1.bf16.xpose.msra.mxu0 0
      %6565 = vmatprep.mubr.bf16.mxu0 0
      %6566 = vmatmul.mubr.bf16.gmra.mrb[0].mxu0 %v6528
      %v6567 = vpop.f32.mrb[0].mxu0
      %v6568 = vadd.f32 0.0, %v6567
      %v6569 = vpop.f32.mrb[0].mxu0
      %v6570 = vpop.f32.mrb[0].mxu0
      %v6571 = vpop.f32.mrb[0].mxu0
      %6572 = vdwg.mxu0
      %v6574 = vsel %vm776, %v6430, 0
      %v6577 = vsel %vm776, %v6434, 0
      %6579 = vmatprep.subr.bf16.mxu0 0
      %6580 = vmatpush1.bf16.xpose.msra.mxu0 %v6577
      %6581 = vmatprep.subr.bf16.mxu0 0
      %6582 = vmatpush1.bf16.xpose.msra.mxu0 0
      %6583 = vmatprep.subr.bf16.mxu0 0
      %6584 = vmatpush1.bf16.xpose.msra.mxu0 0
      %6585 = vmatprep.subr.bf16.mxu0 0
      %6586 = vmatpush1.bf16.xpose.msra.mxu0 0
      %6587 = vmatprep.subr.bf16.mxu0 0
      %6588 = vmatpush1.bf16.xpose.msra.mxu0 0
      %6589 = vmatprep.subr.bf16.mxu0 0
      %6590 = vmatpush1.bf16.xpose.msra.mxu0 0
      %6591 = vmatprep.subr.bf16.mxu0 0
      %6592 = vmatpush1.bf16.xpose.msra.mxu0 0
      %6593 = vmatprep.subr.bf16.mxu0 0
      %6594 = vmatpush1.bf16.xpose.msra.mxu0 0
      %6595 = vmatprep.subr.bf16.mxu0 0
      %6596 = vmatpush1.bf16.xpose.msra.mxu0 0
      %6597 = vmatprep.subr.bf16.mxu0 0
      %6598 = vmatpush1.bf16.xpose.msra.mxu0 0
      %6599 = vmatprep.subr.bf16.mxu0 0
      %6600 = vmatpush1.bf16.xpose.msra.mxu0 0
      %6601 = vmatprep.subr.bf16.mxu0 0
      %6602 = vmatpush1.bf16.xpose.msra.mxu0 0
      %6603 = vmatprep.subr.bf16.mxu0 0
      %6604 = vmatpush1.bf16.xpose.msra.mxu0 0
      %6605 = vmatprep.subr.bf16.mxu0 0
      %6606 = vmatpush1.bf16.xpose.msra.mxu0 0
      %6607 = vmatprep.subr.bf16.mxu0 0
      %6608 = vmatpush1.bf16.xpose.msra.mxu0 0
      %6609 = vmatprep.subr.bf16.mxu0 0
      %6610 = vmatpush1.bf16.xpose.msra.mxu0 0
      %6611 = vmatprep.mubr.bf16.mxu0 0
      %6612 = vmatmul.mubr.bf16.gmra.mrb[0].mxu0 %v6574
      %v6613 = vpop.f32.mrb[0].mxu0
      %v6614 = vadd.f32 0.0, %v6613
      %v6615 = vpop.f32.mrb[0].mxu0
      %v6616 = vpop.f32.mrb[0].mxu0
      %v6617 = vpop.f32.mrb[0].mxu0
      %6618 = vdwg.mxu0
      %v6619 = vmul.f32 %v6476, 0.35355338
      %v6620 = vmul.f32 %v6522, 0.35355338
      %v6621 = vmul.f32 %v6568, 0.35355338
      %v6622 = vmul.f32 %v6614, 0.35355338
      %v6623 = vadd.f32 %v6619, %v978
      %v6624 = vadd.f32 %v6620, %v978
      %v6625 = vadd.f32 %v6621, %v978
      %v6626 = vadd.f32 %v6622, %v978
      %v6627 = vsel %vm776, %v6623, -inf
      %6628 = vmax.xlane.f32.xlu0 %v6627
      %v6629 = vpop.xlane.xlu0 %6628
      %v6630 = vsel %vm776, %v6624, -inf
      %6631 = vmax.xlane.f32.xlu0 %v6630
      %v6632 = vpop.xlane.xlu0 %6631
      %v6633 = vsel %vm776, %v6625, -inf
      %6634 = vmax.xlane.f32.xlu0 %v6633
      %v6635 = vpop.xlane.xlu0 %6634
      %v6636 = vsel %vm776, %v6626, -inf
      %6637 = vmax.xlane.f32.xlu0 %v6636
      %v6638 = vpop.xlane.xlu0 %6637
      %v6639 = vsub.f32 %v6623, %v6629
      %v6640 = vsub.f32 %v6624, %v6632
      %v6641 = vsub.f32 %v6625, %v6635
      %v6642 = vsub.f32 %v6626, %v6638
      %v6643 = vmul.f32 %v6639, 1.442695
      %v6644 = vpow.pop %v6643
      %v6645 = vmul.f32 %v6640, 1.442695
      %v6646 = vpow.pop %v6645
      %v6647 = vmul.f32 %v6641, 1.442695
      %v6648 = vpow.pop %v6647
      %v6649 = vmul.f32 %v6642, 1.442695
      %v6650 = vpow.pop %v6649
      %v6651 = vsel %vm776, %v6644, 0.0
      %6652 = vadd.xlane.f32.xlu0 %v6651
      %v6653 = vpop.xlane.xlu0 %6652
      %v6654 = vsel %vm776, %v6646, 0.0
      %6655 = vadd.xlane.f32.xlu0 %v6654
      %v6656 = vpop.xlane.xlu0 %6655
      %v6657 = vsel %vm776, %v6648, 0.0
      %6658 = vadd.xlane.f32.xlu0 %v6657
      %v6659 = vpop.xlane.xlu0 %6658
      %v6660 = vsel %vm776, %v6650, 0.0
      %6661 = vadd.xlane.f32.xlu0 %v6660
      %v6662 = vpop.xlane.xlu0 %6661
      %v6663 = vrcp.pop %v6653
      %v6664 = vrcp.pop %v6656
      %v6665 = vrcp.pop %v6659
      %v6666 = vrcp.pop %v6662
      %v6667 = vmul.f32 %v6644, %v6663
      %v6668 = vmul.f32 %v6646, %v6664
      %v6669 = vmul.f32 %v6648, %v6665
      %v6670 = vmul.f32 %v6650, %v6666
      %v6671 = vpack.c.bf16 %v6667, %v6667
      %v6672 = vpack.c.bf16 %v6668, %v6668
      %v6673 = vpack.c.bf16 %v6669, %v6669
      %v6674 = vpack.c.bf16 %v6670, %v6670
      %6676 = vrot.lane.b32.xlu0 %v6431, 120
      %v6677 = vpop.permute.xlu0 %6676
      %v6679 = vsel %vm776, %v6671, 0
      %v6682 = vsel %vm1037, %v6677, 0
      %6684 = vmatprep.subr.bf16.mxu0 0
      %6685 = vmatpush1.bf16.msra.mxu0 %v6682
      %6686 = vmatprep.subr.bf16.mxu0 0
      %6687 = vmatpush1.bf16.msra.mxu0 0
      %6688 = vmatprep.subr.bf16.mxu0 0
      %6689 = vmatpush1.bf16.msra.mxu0 0
      %6690 = vmatprep.subr.bf16.mxu0 0
      %6691 = vmatpush1.bf16.msra.mxu0 0
      %6692 = vmatprep.subr.bf16.mxu0 0
      %6693 = vmatpush1.bf16.msra.mxu0 0
      %6694 = vmatprep.subr.bf16.mxu0 0
      %6695 = vmatpush1.bf16.msra.mxu0 0
      %6696 = vmatprep.subr.bf16.mxu0 0
      %6697 = vmatpush1.bf16.msra.mxu0 0
      %6698 = vmatprep.subr.bf16.mxu0 0
      %6699 = vmatpush1.bf16.msra.mxu0 0
      %6700 = vmatprep.subr.bf16.mxu0 0
      %6701 = vmatpush1.bf16.msra.mxu0 0
      %6702 = vmatprep.subr.bf16.mxu0 0
      %6703 = vmatpush1.bf16.msra.mxu0 0
      %6704 = vmatprep.subr.bf16.mxu0 0
      %6705 = vmatpush1.bf16.msra.mxu0 0
      %6706 = vmatprep.subr.bf16.mxu0 0
      %6707 = vmatpush1.bf16.msra.mxu0 0
      %6708 = vmatprep.subr.bf16.mxu0 0
      %6709 = vmatpush1.bf16.msra.mxu0 0
      %6710 = vmatprep.subr.bf16.mxu0 0
      %6711 = vmatpush1.bf16.msra.mxu0 0
      %6712 = vmatprep.subr.bf16.mxu0 0
      %6713 = vmatpush1.bf16.msra.mxu0 0
      %6714 = vmatprep.subr.bf16.mxu0 0
      %6715 = vmatpush1.bf16.msra.mxu0 0
      %6716 = vmatprep.mubr.bf16.mxu0 0
      %6717 = vmatmul.mubr.bf16.gmra.mrb[0].mxu0 %v6679
      %v6718 = vpop.f32.mrb[0].mxu0
      %v6719 = vadd.f32 0.0, %v6718
      %v6720 = vpop.f32.mrb[0].mxu0
      %v6721 = vpop.f32.mrb[0].mxu0
      %v6722 = vpop.f32.mrb[0].mxu0
      %6723 = vdwg.mxu0
      %6725 = vrot.lane.b32.xlu0 %v6432, 120
      %v6726 = vpop.permute.xlu0 %6725
      %v6728 = vsel %vm776, %v6672, 0
      %v6731 = vsel %vm1037, %v6726, 0
      %6733 = vmatprep.subr.bf16.mxu0 0
      %6734 = vmatpush1.bf16.msra.mxu0 %v6731
      %6735 = vmatprep.subr.bf16.mxu0 0
      %6736 = vmatpush1.bf16.msra.mxu0 0
      %6737 = vmatprep.subr.bf16.mxu0 0
      %6738 = vmatpush1.bf16.msra.mxu0 0
      %6739 = vmatprep.subr.bf16.mxu0 0
      %6740 = vmatpush1.bf16.msra.mxu0 0
      %6741 = vmatprep.subr.bf16.mxu0 0
      %6742 = vmatpush1.bf16.msra.mxu0 0
      %6743 = vmatprep.subr.bf16.mxu0 0
      %6744 = vmatpush1.bf16.msra.mxu0 0
      %6745 = vmatprep.subr.bf16.mxu0 0
      %6746 = vmatpush1.bf16.msra.mxu0 0
      %6747 = vmatprep.subr.bf16.mxu0 0
      %6748 = vmatpush1.bf16.msra.mxu0 0
      %6749 = vmatprep.subr.bf16.mxu0 0
      %6750 = vmatpush1.bf16.msra.mxu0 0
      %6751 = vmatprep.subr.bf16.mxu0 0
      %6752 = vmatpush1.bf16.msra.mxu0 0
      %6753 = vmatprep.subr.bf16.mxu0 0
      %6754 = vmatpush1.bf16.msra.mxu0 0
      %6755 = vmatprep.subr.bf16.mxu0 0
      %6756 = vmatpush1.bf16.msra.mxu0 0
      %6757 = vmatprep.subr.bf16.mxu0 0
      %6758 = vmatpush1.bf16.msra.mxu0 0
      %6759 = vmatprep.subr.bf16.mxu0 0
      %6760 = vmatpush1.bf16.msra.mxu0 0
      %6761 = vmatprep.subr.bf16.mxu0 0
      %6762 = vmatpush1.bf16.msra.mxu0 0
      %6763 = vmatprep.subr.bf16.mxu0 0
      %6764 = vmatpush1.bf16.msra.mxu0 0
      %6765 = vmatprep.mubr.bf16.mxu0 0
      %6766 = vmatmul.mubr.bf16.gmra.mrb[0].mxu0 %v6728
      %v6767 = vpop.f32.mrb[0].mxu0
      %v6768 = vadd.f32 0.0, %v6767
      %v6769 = vpop.f32.mrb[0].mxu0
      %v6770 = vpop.f32.mrb[0].mxu0
      %v6771 = vpop.f32.mrb[0].mxu0
      %6772 = vdwg.mxu0
      %6774 = vrot.lane.b32.xlu0 %v6433, 120
      %v6775 = vpop.permute.xlu0 %6774
      %v6777 = vsel %vm776, %v6673, 0
      %v6780 = vsel %vm1037, %v6775, 0
      %6782 = vmatprep.subr.bf16.mxu0 0
      %6783 = vmatpush1.bf16.msra.mxu0 %v6780
      %6784 = vmatprep.subr.bf16.mxu0 0
      %6785 = vmatpush1.bf16.msra.mxu0 0
      %6786 = vmatprep.subr.bf16.mxu0 0
      %6787 = vmatpush1.bf16.msra.mxu0 0
      %6788 = vmatprep.subr.bf16.mxu0 0
      %6789 = vmatpush1.bf16.msra.mxu0 0
      %6790 = vmatprep.subr.bf16.mxu0 0
      %6791 = vmatpush1.bf16.msra.mxu0 0
      %6792 = vmatprep.subr.bf16.mxu0 0
      %6793 = vmatpush1.bf16.msra.mxu0 0
      %6794 = vmatprep.subr.bf16.mxu0 0
      %6795 = vmatpush1.bf16.msra.mxu0 0
      %6796 = vmatprep.subr.bf16.mxu0 0
      %6797 = vmatpush1.bf16.msra.mxu0 0
      %6798 = vmatprep.subr.bf16.mxu0 0
      %6799 = vmatpush1.bf16.msra.mxu0 0
      %6800 = vmatprep.subr.bf16.mxu0 0
      %6801 = vmatpush1.bf16.msra.mxu0 0
      %6802 = vmatprep.subr.bf16.mxu0 0
      %6803 = vmatpush1.bf16.msra.mxu0 0
      %6804 = vmatprep.subr.bf16.mxu0 0
      %6805 = vmatpush1.bf16.msra.mxu0 0
      %6806 = vmatprep.subr.bf16.mxu0 0
      %6807 = vmatpush1.bf16.msra.mxu0 0
      %6808 = vmatprep.subr.bf16.mxu0 0
      %6809 = vmatpush1.bf16.msra.mxu0 0
      %6810 = vmatprep.subr.bf16.mxu0 0
      %6811 = vmatpush1.bf16.msra.mxu0 0
      %6812 = vmatprep.subr.bf16.mxu0 0
      %6813 = vmatpush1.bf16.msra.mxu0 0
      %6814 = vmatprep.mubr.bf16.mxu0 0
      %6815 = vmatmul.mubr.bf16.gmra.mrb[0].mxu0 %v6777
      %v6816 = vpop.f32.mrb[0].mxu0
      %v6817 = vadd.f32 0.0, %v6816
      %v6818 = vpop.f32.mrb[0].mxu0
      %v6819 = vpop.f32.mrb[0].mxu0
      %v6820 = vpop.f32.mrb[0].mxu0
      %6821 = vdwg.mxu0
      %6823 = vrot.lane.b32.xlu0 %v6434, 120
      %v6824 = vpop.permute.xlu0 %6823
      %v6826 = vsel %vm776, %v6674, 0
      %v6829 = vsel %vm1037, %v6824, 0
      %6831 = vmatprep.subr.bf16.mxu0 0
      %6832 = vmatpush1.bf16.msra.mxu0 %v6829
      %6833 = vmatprep.subr.bf16.mxu0 0
      %6834 = vmatpush1.bf16.msra.mxu0 0
      %6835 = vmatprep.subr.bf16.mxu0 0
      %6836 = vmatpush1.bf16.msra.mxu0 0
      %6837 = vmatprep.subr.bf16.mxu0 0
      %6838 = vmatpush1.bf16.msra.mxu0 0
      %6839 = vmatprep.subr.bf16.mxu0 0
      %6840 = vmatpush1.bf16.msra.mxu0 0
      %6841 = vmatprep.subr.bf16.mxu0 0
      %6842 = vmatpush1.bf16.msra.mxu0 0
      %6843 = vmatprep.subr.bf16.mxu0 0
      %6844 = vmatpush1.bf16.msra.mxu0 0
      %6845 = vmatprep.subr.bf16.mxu0 0
      %6846 = vmatpush1.bf16.msra.mxu0 0
      %6847 = vmatprep.subr.bf16.mxu0 0
      %6848 = vmatpush1.bf16.msra.mxu0 0
      %6849 = vmatprep.subr.bf16.mxu0 0
      %6850 = vmatpush1.bf16.msra.mxu0 0
      %6851 = vmatprep.subr.bf16.mxu0 0
      %6852 = vmatpush1.bf16.msra.mxu0 0
      %6853 = vmatprep.subr.bf16.mxu0 0
      %6854 = vmatpush1.bf16.msra.mxu0 0
      %6855 = vmatprep.subr.bf16.mxu0 0
      %6856 = vmatpush1.bf16.msra.mxu0 0
      %6857 = vmatprep.subr.bf16.mxu0 0
      %6858 = vmatpush1.bf16.msra.mxu0 0
      %6859 = vmatprep.subr.bf16.mxu0 0
      %6860 = vmatpush1.bf16.msra.mxu0 0
      %6861 = vmatprep.subr.bf16.mxu0 0
      %6862 = vmatpush1.bf16.msra.mxu0 0
      %6863 = vmatprep.mubr.bf16.mxu0 0
      %6864 = vmatmul.mubr.bf16.gmra.mrb[0].mxu0 %v6826
      %v6865 = vpop.f32.mrb[0].mxu0
      %v6866 = vadd.f32 0.0, %v6865
      %v6867 = vpop.f32.mrb[0].mxu0
      %v6868 = vpop.f32.mrb[0].mxu0
      %v6869 = vpop.f32.mrb[0].mxu0
      %6870 = vdwg.mxu0
      %v6871 = vpack.c.bf16 %v6719, %v6719
      %v6872 = vpack.c.bf16 %v6768, %v6768
      %v6873 = vpack.c.bf16 %v6817, %v6817
      %v6874 = vpack.c.bf16 %v6866, %v6866
      %6875 = vrot.lane.b32.xlu0 %v5786, 64
      %v6876 = vpop.permute.xlu0 %6875
      %v6878 = vsel %vm776, %v6871, 0
      %v6881 = vsel %vm1037, %v6876, 0
      %6883 = vmatprep.subr.bf16.mxu0 0
      %6884 = vmatpush1.bf16.msra.mxu0 %v6881
      %6885 = vmatprep.subr.bf16.mxu0 0
      %6886 = vmatpush1.bf16.msra.mxu0 0
      %6887 = vmatprep.subr.bf16.mxu0 0
      %6888 = vmatpush1.bf16.msra.mxu0 0
      %6889 = vmatprep.subr.bf16.mxu0 0
      %6890 = vmatpush1.bf16.msra.mxu0 0
      %6891 = vmatprep.subr.bf16.mxu0 0
      %6892 = vmatpush1.bf16.msra.mxu0 0
      %6893 = vmatprep.subr.bf16.mxu0 0
      %6894 = vmatpush1.bf16.msra.mxu0 0
      %6895 = vmatprep.subr.bf16.mxu0 0
      %6896 = vmatpush1.bf16.msra.mxu0 0
      %6897 = vmatprep.subr.bf16.mxu0 0
      %6898 = vmatpush1.bf16.msra.mxu0 0
      %6899 = vmatprep.subr.bf16.mxu0 0
      %6900 = vmatpush1.bf16.msra.mxu0 0
      %6901 = vmatprep.subr.bf16.mxu0 0
      %6902 = vmatpush1.bf16.msra.mxu0 0
      %6903 = vmatprep.subr.bf16.mxu0 0
      %6904 = vmatpush1.bf16.msra.mxu0 0
      %6905 = vmatprep.subr.bf16.mxu0 0
      %6906 = vmatpush1.bf16.msra.mxu0 0
      %6907 = vmatprep.subr.bf16.mxu0 0
      %6908 = vmatpush1.bf16.msra.mxu0 0
      %6909 = vmatprep.subr.bf16.mxu0 0
      %6910 = vmatpush1.bf16.msra.mxu0 0
      %6911 = vmatprep.subr.bf16.mxu0 0
      %6912 = vmatpush1.bf16.msra.mxu0 0
      %6913 = vmatprep.subr.bf16.mxu0 0
      %6914 = vmatpush1.bf16.msra.mxu0 0
      %6915 = vmatprep.mubr.bf16.mxu0 0
      %6916 = vmatmul.mubr.bf16.gmra.mrb[0].mxu0 %v6878
      %v6917 = vpop.f32.mrb[0].mxu0
      %v6918 = vadd.f32 0.0, %v6917
      %v6919 = vpop.f32.mrb[0].mxu0
      %v6920 = vpop.f32.mrb[0].mxu0
      %v6921 = vpop.f32.mrb[0].mxu0
      %6922 = vdwg.mxu0
      %6923 = vrot.lane.b32.xlu0 %v5837, 64
      %v6924 = vpop.permute.xlu0 %6923
      %v6926 = vsel %vm776, %v6872, 0
      %v6929 = vsel %vm1037, %v6924, 0
      %6931 = vmatprep.subr.bf16.mxu0 0
      %6932 = vmatpush1.bf16.msra.mxu0 %v6929
      %6933 = vmatprep.subr.bf16.mxu0 0
      %6934 = vmatpush1.bf16.msra.mxu0 0
      %6935 = vmatprep.subr.bf16.mxu0 0
      %6936 = vmatpush1.bf16.msra.mxu0 0
      %6937 = vmatprep.subr.bf16.mxu0 0
      %6938 = vmatpush1.bf16.msra.mxu0 0
      %6939 = vmatprep.subr.bf16.mxu0 0
      %6940 = vmatpush1.bf16.msra.mxu0 0
      %6941 = vmatprep.subr.bf16.mxu0 0
      %6942 = vmatpush1.bf16.msra.mxu0 0
      %6943 = vmatprep.subr.bf16.mxu0 0
      %6944 = vmatpush1.bf16.msra.mxu0 0
      %6945 = vmatprep.subr.bf16.mxu0 0
      %6946 = vmatpush1.bf16.msra.mxu0 0
      %6947 = vmatprep.subr.bf16.mxu0 0
      %6948 = vmatpush1.bf16.msra.mxu0 0
      %6949 = vmatprep.subr.bf16.mxu0 0
      %6950 = vmatpush1.bf16.msra.mxu0 0
      %6951 = vmatprep.subr.bf16.mxu0 0
      %6952 = vmatpush1.bf16.msra.mxu0 0
      %6953 = vmatprep.subr.bf16.mxu0 0
      %6954 = vmatpush1.bf16.msra.mxu0 0
      %6955 = vmatprep.subr.bf16.mxu0 0
      %6956 = vmatpush1.bf16.msra.mxu0 0
      %6957 = vmatprep.subr.bf16.mxu0 0
      %6958 = vmatpush1.bf16.msra.mxu0 0
      %6959 = vmatprep.subr.bf16.mxu0 0
      %6960 = vmatpush1.bf16.msra.mxu0 0
      %6961 = vmatprep.subr.bf16.mxu0 0
      %6962 = vmatpush1.bf16.msra.mxu0 0
      %6963 = vmatprep.mubr.bf16.mxu0 0
      %6964 = vmatmul.mubr.bf16.gmra.mrb[0].mxu0 %v6926
      %v6965 = vpop.f32.mrb[0].mxu0
      %v6966 = vadd.f32 0.0, %v6965
      %v6967 = vpop.f32.mrb[0].mxu0
      %v6968 = vpop.f32.mrb[0].mxu0
      %v6969 = vpop.f32.mrb[0].mxu0
      %6970 = vdwg.mxu0
      %6971 = vrot.lane.b32.xlu0 %v5888, 64
      %v6972 = vpop.permute.xlu0 %6971
      %v6974 = vsel %vm776, %v6873, 0
      %v6977 = vsel %vm1037, %v6972, 0
      %6979 = vmatprep.subr.bf16.mxu0 0
      %6980 = vmatpush1.bf16.msra.mxu0 %v6977
      %6981 = vmatprep.subr.bf16.mxu0 0
      %6982 = vmatpush1.bf16.msra.mxu0 0
      %6983 = vmatprep.subr.bf16.mxu0 0
      %6984 = vmatpush1.bf16.msra.mxu0 0
      %6985 = vmatprep.subr.bf16.mxu0 0
      %6986 = vmatpush1.bf16.msra.mxu0 0
      %6987 = vmatprep.subr.bf16.mxu0 0
      %6988 = vmatpush1.bf16.msra.mxu0 0
      %6989 = vmatprep.subr.bf16.mxu0 0
      %6990 = vmatpush1.bf16.msra.mxu0 0
      %6991 = vmatprep.subr.bf16.mxu0 0
      %6992 = vmatpush1.bf16.msra.mxu0 0
      %6993 = vmatprep.subr.bf16.mxu0 0
      %6994 = vmatpush1.bf16.msra.mxu0 0
      %6995 = vmatprep.subr.bf16.mxu0 0
      %6996 = vmatpush1.bf16.msra.mxu0 0
      %6997 = vmatprep.subr.bf16.mxu0 0
      %6998 = vmatpush1.bf16.msra.mxu0 0
      %6999 = vmatprep.subr.bf16.mxu0 0
      %7000 = vmatpush1.bf16.msra.mxu0 0
      %7001 = vmatprep.subr.bf16.mxu0 0
      %7002 = vmatpush1.bf16.msra.mxu0 0
      %7003 = vmatprep.subr.bf16.mxu0 0
      %7004 = vmatpush1.bf16.msra.mxu0 0
      %7005 = vmatprep.subr.bf16.mxu0 0
      %7006 = vmatpush1.bf16.msra.mxu0 0
      %7007 = vmatprep.subr.bf16.mxu0 0
      %7008 = vmatpush1.bf16.msra.mxu0 0
      %7009 = vmatprep.subr.bf16.mxu0 0
      %7010 = vmatpush1.bf16.msra.mxu0 0
      %7011 = vmatprep.mubr.bf16.mxu0 0
      %7012 = vmatmul.mubr.bf16.gmra.mrb[0].mxu0 %v6974
      %v7013 = vpop.f32.mrb[0].mxu0
      %v7014 = vadd.f32 0.0, %v7013
      %v7015 = vpop.f32.mrb[0].mxu0
      %v7016 = vpop.f32.mrb[0].mxu0
      %v7017 = vpop.f32.mrb[0].mxu0
      %7018 = vdwg.mxu0
      %7019 = vrot.lane.b32.xlu0 %v5939, 64
      %v7020 = vpop.permute.xlu0 %7019
      %v7022 = vsel %vm776, %v6874, 0
      %v7025 = vsel %vm1037, %v7020, 0
      %7027 = vmatprep.subr.bf16.mxu0 0
      %7028 = vmatpush1.bf16.msra.mxu0 %v7025
      %7029 = vmatprep.subr.bf16.mxu0 0
      %7030 = vmatpush1.bf16.msra.mxu0 0
      %7031 = vmatprep.subr.bf16.mxu0 0
      %7032 = vmatpush1.bf16.msra.mxu0 0
      %7033 = vmatprep.subr.bf16.mxu0 0
      %7034 = vmatpush1.bf16.msra.mxu0 0
      %7035 = vmatprep.subr.bf16.mxu0 0
      %7036 = vmatpush1.bf16.msra.mxu0 0
      %7037 = vmatprep.subr.bf16.mxu0 0
      %7038 = vmatpush1.bf16.msra.mxu0 0
      %7039 = vmatprep.subr.bf16.mxu0 0
      %7040 = vmatpush1.bf16.msra.mxu0 0
      %7041 = vmatprep.subr.bf16.mxu0 0
      %7042 = vmatpush1.bf16.msra.mxu0 0
      %7043 = vmatprep.subr.bf16.mxu0 0
      %7044 = vmatpush1.bf16.msra.mxu0 0
      %7045 = vmatprep.subr.bf16.mxu0 0
      %7046 = vmatpush1.bf16.msra.mxu0 0
      %7047 = vmatprep.subr.bf16.mxu0 0
      %7048 = vmatpush1.bf16.msra.mxu0 0
      %7049 = vmatprep.subr.bf16.mxu0 0
      %7050 = vmatpush1.bf16.msra.mxu0 0
      %7051 = vmatprep.subr.bf16.mxu0 0
      %7052 = vmatpush1.bf16.msra.mxu0 0
      %7053 = vmatprep.subr.bf16.mxu0 0
      %7054 = vmatpush1.bf16.msra.mxu0 0
      %7055 = vmatprep.subr.bf16.mxu0 0
      %7056 = vmatpush1.bf16.msra.mxu0 0
      %7057 = vmatprep.subr.bf16.mxu0 0
      %7058 = vmatpush1.bf16.msra.mxu0 0
      %7059 = vmatprep.mubr.bf16.mxu0 0
      %7060 = vmatmul.mubr.bf16.gmra.mrb[0].mxu0 %v7022
      %v7061 = vpop.f32.mrb[0].mxu0
      %v7062 = vadd.f32 0.0, %v7061
      %v7063 = vpop.f32.mrb[0].mxu0
      %v7064 = vpop.f32.mrb[0].mxu0
      %v7065 = vpop.f32.mrb[0].mxu0
      %7066 = vdwg.mxu0
      %v7067 = vsel %vm500, %v6918, 0.0
      %v7068 = vsel %vm500, %v6966, 0.0
      %v7069 = vadd.f32 %v7067, %v7068
      %v7070 = vsel %vm500, %v7014, 0.0
      %v7071 = vadd.f32 %v7069, %v7070
      %v7072 = vsel %vm500, %v7062, 0.0
      %v7073 = vadd.f32 %v7071, %v7072
      %v7074 = vlaneseq
      %v7075 = vshrl.u32 %v7074, 7
      %v7076 = vsub.s32 4, %v7075
      %v7077 = vrot.slane %v5040, %v7076
      %v7078 = vadd.f32 %v7073, %v7077
      %v7079 = vadd.f32 %v6000, %v7078
      %v7080 = vsel %vm500, %v7079, 0.0
      %7081 = vadd.xlane.f32.xlu0 %v7080
      %v7082 = vpop.xlane.xlu0 %7081
      %v7083 = vmul.f32 %v7082, %v504
      %v7084 = vsub.f32 %v7079, %v7083
      %v7085 = vmul.f32 %v7084, %v7084
      %v7086 = vsel %vm500, %v7085, 0.0
      %7087 = vadd.xlane.f32.xlu0 %v7086
      %v7088 = vpop.xlane.xlu0 %7087
      %v7089 = vmul.f32 %v7088, %v511
      %v7090 = vlaneseq
      %v7091 = vshrl.u32 %v7090, 7
      %v7092 = vsub.s32 5, %v7091
      %v7093 = vrot.slane %v5040, %v7092
      %v7094 = vmul.f32 %v7093, %v7084
      %v7095 = vrsqrt.pop %v7089
      %v7096 = vmul.f32 %v7089, %v7095
      %vm7097 = vcmp.eq.f32.partialorder %v7089, inf
      %v7098 = vsel %vm7097, %v7089, %v7096
      %vm7099 = vcmp.eq.f32.partialorder %v7089, 0.0
      %v7100 = vand.u32 %v7089, 2147483648
      %v7101 = vsel %vm7099, %v7100, %v7098
      %v7102 = vadd.f32 %v7101, 1e-06
      %v7103 = vrcp.pop %v7102
      %v7104 = vmul.f32 %v7094, %v7103
      %v7105 = vlaneseq
      %v7106 = vshrl.u32 %v7105, 7
      %v7107 = vsub.s32 6, %v7106
      %v7108 = vrot.slane %v5040, %v7107
      %v7109 = vadd.f32 %v7104, %v7108
      %v7110 = vpack.c.bf16 %v7109, %v7109
      %v7111 = vlaneseq
      %v7112 = vshrl.u32 %v7111, 7
      %v7113 = vsub.s32 7, %v7112
      %v7114 = vrot.slane %v5040, %v7113
      %v7119 = vunpack.c.l.b16 %v5027
      %v7120 = vunpack.c.l.b16 %v5028
      %v7121 = vunpack.c.l.b16 %v5029
      %v7122 = vunpack.c.l.b16 %v5030
      %v7123 = vpack.c.b16 %v7120, %v7119
      %v7124 = vpack.c.b16 %v7122, %v7121
      %7125 = vrot.lane.b32.xlu0 %v7123, 64
      %v7126 = vpop.permute.xlu0 %7125
      %7127 = vrot.lane.b32.xlu0 %v7124, 64
      %v7128 = vpop.permute.xlu0 %7127
      %v7132 = vsel %vm500, %v7110, 0
      %7134 = vmatprep.subr.bf16.mxu0 0
      %7135 = vmatpush1.bf16.msra.mxu0 %v7126
      %7136 = vmatprep.subr.bf16.mxu0 0
      %7137 = vmatpush1.bf16.msra.mxu0 %v7128
      %7138 = vmatprep.subr.bf16.mxu0 0
      %7139 = vmatpush1.bf16.msra.mxu0 0
      %7140 = vmatprep.subr.bf16.mxu0 0
      %7141 = vmatpush1.bf16.msra.mxu0 0
      %7142 = vmatprep.subr.bf16.mxu0 0
      %7143 = vmatpush1.bf16.msra.mxu0 0
      %7144 = vmatprep.subr.bf16.mxu0 0
      %7145 = vmatpush1.bf16.msra.mxu0 0
      %7146 = vmatprep.subr.bf16.mxu0 0
      %7147 = vmatpush1.bf16.msra.mxu0 0
      %7148 = vmatprep.subr.bf16.mxu0 0
      %7149 = vmatpush1.bf16.msra.mxu0 0
      %7150 = vmatprep.subr.bf16.mxu0 0
      %7151 = vmatpush1.bf16.msra.mxu0 0
      %7152 = vmatprep.subr.bf16.mxu0 0
      %7153 = vmatpush1.bf16.msra.mxu0 0
      %7154 = vmatprep.subr.bf16.mxu0 0
      %7155 = vmatpush1.bf16.msra.mxu0 0
      %7156 = vmatprep.subr.bf16.mxu0 0
      %7157 = vmatpush1.bf16.msra.mxu0 0
      %7158 = vmatprep.subr.bf16.mxu0 0
      %7159 = vmatpush1.bf16.msra.mxu0 0
      %7160 = vmatprep.subr.bf16.mxu0 0
      %7161 = vmatpush1.bf16.msra.mxu0 0
      %7162 = vmatprep.subr.bf16.mxu0 0
      %7163 = vmatpush1.bf16.msra.mxu0 0
      %7164 = vmatprep.subr.bf16.mxu0 0
      %7165 = vmatpush1.bf16.msra.mxu0 0
      %7166 = vmatprep.mubr.bf16.mxu0 0
      %7167 = vmatmul.mubr.bf16.gmra.mrb[0].mxu0 %v7132
      %v7168 = vpop.f32.mrb[0].mxu0
      %v7169 = vadd.f32 %v7114, %v7168
      %v7170 = vpop.f32.mrb[0].mxu0
      %v7171 = vpop.f32.mrb[0].mxu0
      %v7172 = vpop.f32.mrb[0].mxu0
      %7173 = vdwg.mxu0
      %v7174 = vmax.f32 %v7169, 0.0
      %v7175 = vpack.c.bf16 %v7174, %v7174
      %v7184 = vunpack.c.l.b16 %v5031
      %v7185 = vunpack.c.l.b16 %v5032
      %v7186 = vunpack.c.l.b16 %v5033
      %v7187 = vunpack.c.l.b16 %v5034
      %v7188 = vunpack.c.l.b16 %v5035
      %v7189 = vunpack.c.l.b16 %v5036
      %v7190 = vunpack.c.l.b16 %v5037
      %v7191 = vunpack.c.l.b16 %v5038
      %v7192 = vpack.c.b16 %v7185, %v7184
      %v7193 = vpack.c.b16 %v7187, %v7186
      %v7194 = vpack.c.b16 %v7189, %v7188
      %v7195 = vpack.c.b16 %v7191, %v7190
      %7196 = vrot.lane.b32.xlu0 %v7192, 96
      %v7197 = vpop.permute.xlu0 %7196
      %7198 = vrot.lane.b32.xlu0 %v7193, 96
      %v7199 = vpop.permute.xlu0 %7198
      %7200 = vrot.lane.b32.xlu0 %v7194, 96
      %v7201 = vpop.permute.xlu0 %7200
      %7202 = vrot.lane.b32.xlu0 %v7195, 96
      %v7203 = vpop.permute.xlu0 %7202
      %v7209 = vsel %vm1542, %v7175, 0
      %7211 = vmatprep.subr.bf16.mxu0 0
      %7212 = vmatpush1.bf16.msra.mxu0 %v7197
      %7213 = vmatprep.subr.bf16.mxu0 0
      %7214 = vmatpush1.bf16.msra.mxu0 %v7199
      %7215 = vmatprep.subr.bf16.mxu0 0
      %7216 = vmatpush1.bf16.msra.mxu0 %v7201
      %7217 = vmatprep.subr.bf16.mxu0 0
      %7218 = vmatpush1.bf16.msra.mxu0 %v7203
      %7219 = vmatprep.subr.bf16.mxu0 0
      %7220 = vmatpush1.bf16.msra.mxu0 0
      %7221 = vmatprep.subr.bf16.mxu0 0
      %7222 = vmatpush1.bf16.msra.mxu0 0
      %7223 = vmatprep.subr.bf16.mxu0 0
      %7224 = vmatpush1.bf16.msra.mxu0 0
      %7225 = vmatprep.subr.bf16.mxu0 0
      %7226 = vmatpush1.bf16.msra.mxu0 0
      %7227 = vmatprep.subr.bf16.mxu0 0
      %7228 = vmatpush1.bf16.msra.mxu0 0
      %7229 = vmatprep.subr.bf16.mxu0 0
      %7230 = vmatpush1.bf16.msra.mxu0 0
      %7231 = vmatprep.subr.bf16.mxu0 0
      %7232 = vmatpush1.bf16.msra.mxu0 0
      %7233 = vmatprep.subr.bf16.mxu0 0
      %7234 = vmatpush1.bf16.msra.mxu0 0
      %7235 = vmatprep.subr.bf16.mxu0 0
      %7236 = vmatpush1.bf16.msra.mxu0 0
      %7237 = vmatprep.subr.bf16.mxu0 0
      %7238 = vmatpush1.bf16.msra.mxu0 0
      %7239 = vmatprep.subr.bf16.mxu0 0
      %7240 = vmatpush1.bf16.msra.mxu0 0
      %7241 = vmatprep.subr.bf16.mxu0 0
      %7242 = vmatpush1.bf16.msra.mxu0 0
      %7243 = vmatprep.mubr.bf16.mxu0 0
      %7244 = vmatmul.mubr.bf16.gmra.mrb[0].mxu0 %v7209
      %v7245 = vpop.f32.mrb[0].mxu0
      %v7246 = vadd.f32 0.0, %v7245
      %v7247 = vpop.f32.mrb[0].mxu0
      %v7248 = vpop.f32.mrb[0].mxu0
      %v7249 = vpop.f32.mrb[0].mxu0
      %7250 = vdwg.mxu0
      %v7251 = vadd.f32 %v7079, %v7246
      %v7252 = vlaneseq
      %v7253 = vshrl.u32 %v7252, 7
      %v7254 = vsub.s32 0, %v7253
      %v7255 = vrot.slane %v5041, %v7254
      %v7256 = vadd.f32 %v7251, %v7255
      %v7257 = vsel %vm500, %v7256, 0.0
      %7258 = vadd.xlane.f32.xlu0 %v7257
      %v7259 = vpop.xlane.xlu0 %7258
      %v7260 = vmul.f32 %v7259, %v504
      %v7261 = vsub.f32 %v7256, %v7260
      %v7262 = vmul.f32 %v7261, %v7261
      %v7263 = vsel %vm500, %v7262, 0.0
      %7264 = vadd.xlane.f32.xlu0 %v7263
      %v7265 = vpop.xlane.xlu0 %7264
      %v7266 = vmul.f32 %v7265, %v511
      %v7267 = vlaneseq
      %v7268 = vshrl.u32 %v7267, 7
      %v7269 = vsub.s32 2, %v7268
      %v7270 = vrot.slane %v462, %v7269
      %v7271 = vmul.f32 %v7270, %v7261
      %v7272 = vrsqrt.pop %v7266
      %v7273 = vmul.f32 %v7266, %v7272
      %vm7274 = vcmp.eq.f32.partialorder %v7266, inf
      %v7275 = vsel %vm7274, %v7266, %v7273
      %vm7276 = vcmp.eq.f32.partialorder %v7266, 0.0
      %v7277 = vand.u32 %v7266, 2147483648
      %v7278 = vsel %vm7276, %v7277, %v7275
      %v7279 = vadd.f32 %v7278, 1e-06
      %v7280 = vrcp.pop %v7279
      %v7281 = vmul.f32 %v7271, %v7280
      %v7282 = vlaneseq
      %v7283 = vshrl.u32 %v7282, 7
      %v7284 = vsub.s32 3, %v7283
      %v7285 = vrot.slane %v462, %v7284
      %v7286 = vadd.f32 %v7281, %v7285
      %v7287 = vpack.c.bf16 %v7286, %v7286
      %v7288 = vld [vmem:[%s11] sm:$0xf]
      %v7289 = vld [vmem:[%s11 + $0x4] sm:$0xf]
      %v7290 = vld [vmem:[%s11 + $0x8] sm:$0xf]
      %v7291 = vld [vmem:[%s11 + $0xc] sm:$0xf]
      %v7292 = vlaneseq
      %v7293 = vshrl.u32 %v7292, 7
      %v7294 = vsub.s32 4, %v7293
      %v7295 = vrot.slane %v462, %v7294
      %v7300 = vunpack.c.l.b16 %v7288
      %v7301 = vunpack.c.l.b16 %v7289
      %v7302 = vunpack.c.l.b16 %v7290
      %v7303 = vunpack.c.l.b16 %v7291
      %v7304 = vpack.c.b16 %v7301, %v7300
      %v7305 = vpack.c.b16 %v7303, %v7302
      %v7309 = vsel %vm500, %v7287, 0
      %7311 = vmatprep.subr.bf16.mxu0 0
      %7312 = vmatpush1.bf16.msra.mxu0 %v7304
      %7313 = vmatprep.subr.bf16.mxu0 0
      %7314 = vmatpush1.bf16.msra.mxu0 %v7305
      %7315 = vmatprep.subr.bf16.mxu0 0
      %7316 = vmatpush1.bf16.msra.mxu0 0
      %7317 = vmatprep.subr.bf16.mxu0 0
      %7318 = vmatpush1.bf16.msra.mxu0 0
      %7319 = vmatprep.subr.bf16.mxu0 0
      %7320 = vmatpush1.bf16.msra.mxu0 0
      %7321 = vmatprep.subr.bf16.mxu0 0
      %7322 = vmatpush1.bf16.msra.mxu0 0
      %7323 = vmatprep.subr.bf16.mxu0 0
      %7324 = vmatpush1.bf16.msra.mxu0 0
      %7325 = vmatprep.subr.bf16.mxu0 0
      %7326 = vmatpush1.bf16.msra.mxu0 0
      %7327 = vmatprep.subr.bf16.mxu0 0
      %7328 = vmatpush1.bf16.msra.mxu0 0
      %7329 = vmatprep.subr.bf16.mxu0 0
      %7330 = vmatpush1.bf16.msra.mxu0 0
      %7331 = vmatprep.subr.bf16.mxu0 0
      %7332 = vmatpush1.bf16.msra.mxu0 0
      %7333 = vmatprep.subr.bf16.mxu0 0
      %7334 = vmatpush1.bf16.msra.mxu0 0
      %7335 = vmatprep.subr.bf16.mxu0 0
      %7336 = vmatpush1.bf16.msra.mxu0 0
      %7337 = vmatprep.subr.bf16.mxu0 0
      %7338 = vmatpush1.bf16.msra.mxu0 0
      %7339 = vmatprep.subr.bf16.mxu0 0
      %7340 = vmatpush1.bf16.msra.mxu0 0
      %7341 = vmatprep.subr.bf16.mxu0 0
      %7342 = vmatpush1.bf16.msra.mxu0 0
      %7343 = vmatprep.mubr.bf16.mxu0 0
      %7344 = vmatmul.mubr.bf16.gmra.mrb[0].mxu0 %v7309
      %v7345 = vpop.f32.mrb[0].mxu0
      %v7346 = vadd.f32 %v7295, %v7345
      %v7347 = vpop.f32.mrb[0].mxu0
      %v7348 = vpop.f32.mrb[0].mxu0
      %v7349 = vpop.f32.mrb[0].mxu0
      %7350 = vdwg.mxu0
      %7351 = vst [vmem:[%s456] sm:$0xff] %v7346
      %p7352 = scmp.lt.s32.totalorder %s23, 1
      %s7353 = scalar_select %p7352, %s23, 1
      %s7354 = smul.addr %s7353, 8
      %s7355 = scalar_lea.vmem %s12, %s7354
      // Predicated region
      $region69: #{encoder_decoder_forward.1} parent=67 // pred_check
        %p7356 = pneg %p313
      $region70: #{encoder_decoder_forward.1} parent=67 // pred_check_branch
        %7358 = sbr.rel (%p7356) target = $region72
      $region71: #{encoder_decoder_forward.1} parent=67 // pred_region
        _
      $region72: #{encoder_decoder_forward.1} parent=67 // pred_fallthru
        _
    $region68: #{encoder_decoder_forward.1} parent=5 // pred_fallthru
      _
    %p7359 = scmp.le.s32.totalorder 2, %s18
    // Predicated region
    $region73: #{encoder_decoder_forward.1} parent=5 // pred_check
      %p7360 = pneg %p7359
    $region74: #{encoder_decoder_forward.1} parent=5 // pred_check_branch
      %7362 = sbr.rel (%p7360) target = $region76
    $region75: #{encoder_decoder_forward.1} parent=5 // pred_region
      %s7363 = ssub.s32 %s18, 2
      // Predicated region
      $region77: #{encoder_decoder_forward.1} parent=75 // pred_check
        %p7364 = pneg %p319
      $region78: #{encoder_decoder_forward.1} parent=75 // pred_check_branch
        %7366 = sbr.rel (%p7364) target = $region80
      $region79: #{encoder_decoder_forward.1} parent=75 // pred_region
        %p7367 = scmp.lt.s32.totalorder %s24, 1
        %s7368 = scalar_select %p7367, %s24, 1
        %s7369 = smul.addr %s7368, 8
        %s7370 = scalar_lea.vmem %s12, %s7369
      $region80: #{encoder_decoder_forward.1} parent=75 // pred_fallthru
        _
    $region76: #{encoder_decoder_forward.1} parent=5 // pred_fallthru
      _
  $region6: #{encoder_decoder_forward.1} parent=0 // loop_footer
    %s22 = sadd.s32 1, %s18
  $region7: #{encoder_decoder_forward.1} parent=0 // loop_footer_branch
    %17 = sbr.rel target = $region3
  $region8: #{encoder_decoder_forward.1} parent=0 // loop_exit
    _

</llo_original>
